<compile_context>
chip_gen: v7x
topology: tpu7x:2x2x1
jax: 0.10.0
libtpu: 0.0.40
codegen_flags: <defaults>
</compile_context>

<pallas_src>
import jax
import jax.numpy as jnp
from jax import lax
from jax.experimental import pallas as pl
from jax.experimental.pallas import tpu as pltpu


def _silu(v):
    return v * jax.nn.sigmoid(v)


def _ceil_to(v, m):
    return ((v + m - 1) // m) * m


def init_params(key, Cin, Cout, D, groups=8):
    """Deterministic synthetic parameters in 'natural' (PyTorch-like) layouts."""
    Cmid = max(Cout // 8, 1)
    keys = jax.random.split(key, 24)
    it = iter(range(24))

    def nrm(shape, s=0.1):
        return jax.random.normal(keys[next(it)], shape, jnp.float32) * s

    if Cin != Cout:
        w_skip, b_skip = nrm((Cin, Cout)), nrm((Cout,))
    else:
        w_skip = jnp.eye(Cout, dtype=jnp.float32)
        b_skip = jnp.zeros((Cout,), jnp.float32)

    p = {
        "w_skip": w_skip, "b_skip": b_skip,
        "w_gate": nrm((Cin, 1)), "b_gate": nrm((1,)),
        "w1": nrm((3, 3, Cin, Cout)), "b1": nrm((Cout,)),
        "g1w": 1.0 + nrm((Cout,), 0.05), "g1b": nrm((Cout,), 0.05),
        "wt": nrm((D, 2 * Cout)), "bt": nrm((2 * Cout,)),
        "w2": nrm((3, 3, Cout, Cout)), "b2": nrm((Cout,)),
        "g2w": 1.0 + nrm((Cout,), 0.05), "g2b": nrm((Cout,), 0.05),
        "w_se1": nrm((Cout, Cmid)), "b_se1": nrm((Cmid,)),
        "w_se2": nrm((Cmid, Cout)), "b_se2": nrm((Cout,)),
        "w3": nrm((3, 3, Cout, Cout)), "b3": nrm((Cout,)),
        "g3w": 1.0 + nrm((Cout,), 0.05), "g3b": nrm((Cout,), 0.05),
        "scale": jnp.ones((), jnp.float32),
    }
    return p


def _conv_w_to_kernel(w_hwio, cin_p):
    """(3,3,Cin,Cout) HWIO -> (Cout, 9*cin_p), tap-major / channel-minor, Cin zero-padded."""
    kh, kw, cin, cout = w_hwio.shape
    w = jnp.zeros((kh, kw, cin_p, cout), jnp.float32)
    w = w.at[:, :, :cin, :].set(w_hwio.astype(jnp.float32))
    return jnp.transpose(w.reshape(kh * kw, cin_p, cout), (2, 0, 1)).reshape(
        cout, kh * kw * cin_p)


def time_conv_attention_block(x, t_emb, params, *, groups=8, eps=1e-5):
    """x: (B, Cin, H, W) NCHW float32; t_emb: (B, D) -> (B, Cout, H, W)."""
    B, Cin, H, W = x.shape
    D = t_emb.shape[1]
    Cout = params["b1"].shape[0]
    Cmid = params["b_se1"].shape[0]
    HW = H * W
    assert Cout % 8 == 0 and Cout % groups == 0
    Cin_p = max(_ceil_to(Cin, 8), 8)
    R_sg = _ceil_to(Cout + 1, 8)          # padded rows for fused skip+gate weight

    # ---- host-side layout plumbing (free) ---------------------------------
    x_k = jnp.zeros((B, Cin_p, HW), jnp.float32)
    x_k = x_k.at[:, :Cin, :].set(x.reshape(B, Cin, HW).astype(jnp.float32))
    t_k = t_emb.reshape(B, D, 1).astype(jnp.float32)

    def col(v):
        return v.reshape(-1, 1).astype(jnp.float32)

    wsg = jnp.zeros((R_sg, Cin_p), jnp.float32)
    wsg = wsg.at[:Cout, :Cin].set(params["w_skip"].T.astype(jnp.float32))
    wsg = wsg.at[Cout, :Cin].set(params["w_gate"][:, 0].astype(jnp.float32))
    bsg = jnp.zeros((R_sg, 1), jnp.float32)
    bsg = bsg.at[:Cout, 0].set(params["b_skip"].astype(jnp.float32))
    bsg = bsg.at[Cout, 0].set(params["b_gate"][0].astype(jnp.float32))

    wk1 = _conv_w_to_kernel(params["w1"], Cin_p)        # (Cout, 9*Cin_p)
    wk2 = _conv_w_to_kernel(params["w2"], Cout)         # (Cout, 9*Cout)
    wk3 = _conv_w_to_kernel(params["w3"], Cout)

    wt_k = params["wt"].T.astype(jnp.float32)           # (2*Cout, D)
    bt_k = col(params["bt"])
    wse1 = params["w_se1"].T.astype(jnp.float32)        # (Cmid, Cout)
    wse2 = params["w_se2"].T.astype(jnp.float32)        # (Cout, Cmid)

    gs = Cout // groups
    cidx = jnp.arange(Cout)
    gmat = (cidx[:, None] // gs == cidx[None, :] // gs).astype(jnp.float32) / gs
    scale = params["scale"].reshape(1, 1).astype(jnp.float32)

    plist = [wsg, bsg,
             wk1, col(params["b1"]), col(params["g1w"]), col(params["g1b"]),
             wt_k, bt_k,
             wk2, col(params["b2"]), col(params["g2w"]), col(params["g2b"]),
             wse1, col(params["b_se1"]), wse2, col(params["b_se2"]),
             wk3, col(params["b3"]), col(params["g3w"]), col(params["g3b"]),
             gmat, scale]

    # ---- kernel ------------------------------------------------------------
    def kernel(x_ref, t_ref,
               wsg_ref, bsg_ref,
               wk1_ref, b1_ref, g1w_ref, g1b_ref,
               wt_ref, bt_ref,
               wk2_ref, b2_ref, g2w_ref, g2b_ref,
               wse1_ref, bse1_ref, wse2_ref, bse2_ref,
               wk3_ref, b3_ref, g3w_ref, g3b_ref,
               gmat_ref, scale_ref,
               o_ref):

        # column-boundary masks on the flattened spatial (lane) axis, hoisted once
        col_idx = lax.broadcasted_iota(jnp.int32, (1, HW), 1) % W
        not_left = (col_idx > 0).astype(jnp.float32)        # valid when reading w-1
        not_right = (col_idx < (W - 1)).astype(jnp.float32)  # valid when reading w+1

        def shift_lanes(v, delta):
            # out[:, p] = v[:, p + delta] if 0 <= p + delta < HW else 0
            if delta == 0:
                return v
            c = v.shape[0]
            pad = jnp.zeros((c, abs(delta)), v.dtype)
            if delta > 0:
                return jnp.concatenate([v[:, delta:], pad], axis=1)
            return jnp.concatenate([pad, v[:, :delta]], axis=1)

        def conv3x3(v, w_ref, b_ref):
            # v: (C, HW) channel-major. Single im2col matmul on the MXU.
            taps = []
            for ky in range(3):
                for kx in range(3):
                    delta = (ky - 1) * W + (kx - 1)
                    s = shift_lanes(v, delta)
                    if kx == 0:
                        s = s * not_left
                    elif kx == 2:
                        s = s * not_right
                    taps.append(s)
            patches = jnp.concatenate(taps, axis=0)          # (9*C, HW)
            return jnp.dot(w_ref[...], patches,
                           preferred_element_type=jnp.float32) + b_ref[...]

        def groupnorm(y, gw_ref, gb_ref):
            m = jnp.mean(y, axis=1, keepdims=True)           # (Cout, 1)
            m2 = jnp.mean(y * y, axis=1, keepdims=True)      # (Cout, 1)
            stats = jnp.concatenate([m, m2], axis=1)         # (Cout, 2)
            g = jnp.dot(gmat_ref[...], stats,
                        preferred_element_type=jnp.float32)  # group-pooled stats
            gm, gm2 = g[:, 0:1], g[:, 1:2]
            inv = lax.rsqrt(gm2 - gm * gm + eps)
            return (y - gm) * inv * gw_ref[...] + gb_ref[...]

        x_c = x_ref[0].astype(jnp.float32)                   # (Cin_p, HW)

        # fused skip (1x1) + gate (1x1 -> sigmoid) path
        sg = jnp.dot(wsg_ref[...], x_c,
                     preferred_element_type=jnp.float32) + bsg_ref[...]
        identity = sg[:Cout, :]                              # (Cout, HW)
        gate = jax.nn.sigmoid(sg[Cout:Cout + 1, :])          # (1, HW)
        identity = identity * gate

        # layer1: conv3x3 -> GN(8) -> SiLU
        y = _silu(groupnorm(conv3x3(x_c, wk1_ref, b1_ref), g1w_ref, g1b_ref))

        # time FiLM: SiLU(Linear(t)) -> per-channel shift / bias columns
        t_col = t_ref[0].astype(jnp.float32)                 # (D, 1)
        film = _silu(jnp.dot(wt_ref[...], t_col,
                             preferred_element_type=jnp.float32) + bt_ref[...])
        f_shift = film[:Cout, :]                             # (Cout, 1)
        f_bias = film[Cout:, :]                              # (Cout, 1)
        y = y * (1.0 + f_shift) + f_bias

        # layer2: conv3x3 -> GN(8) -> SiLU
        y = _silu(groupnorm(conv3x3(y, wk2_ref, b2_ref), g2w_ref, g2b_ref))

        # SE block: global avg pool -> 1x1 -> SiLU -> 1x1 -> sigmoid -> scale
        pooled = jnp.mean(y, axis=1, keepdims=True)          # (Cout, 1)
        h = _silu(jnp.dot(wse1_ref[...], pooled,
                          preferred_element_type=jnp.float32) + bse1_ref[...])
        se = jax.nn.sigmoid(jnp.dot(wse2_ref[...], h,
                                    preferred_element_type=jnp.float32)
                            + bse2_ref[...])                 # (Cout, 1)
        y = y * se

        # layer3: conv3x3 -> GN(8) -> SiLU
        y = _silu(groupnorm(conv3x3(y, wk3_ref, b3_ref), g3w_ref, g3b_ref))

        out = identity + scale_ref[...] * y                  # (Cout, HW), lane-dense
        o_ref[0] = out.astype(o_ref.dtype)

    in_specs = [
        pl.BlockSpec((1, Cin_p, HW), lambda b: (b, 0, 0)),   # x, per batch
        pl.BlockSpec((1, D, 1), lambda b: (b, 0, 0)),        # t_emb column, per batch
    ] + [pl.BlockSpec(p.shape, lambda b, _n=p.ndim: (0,) * _n) for p in plist]

    out_spec = pl.BlockSpec((1, Cout, HW), lambda b: (b, 0, 0))

    grid_spec = pltpu.PrefetchScalarGridSpec(
        num_scalar_prefetch=0,
        grid=(B,),
        in_specs=in_specs,
        out_specs=out_spec,
    )

    out = pl.pallas_call(
        kernel,
        out_shape=jax.ShapeDtypeStruct((B, Cout, HW), jnp.float32),
        grid_spec=grid_spec,
        compiler_params=pltpu.CompilerParams(
            dimension_semantics=("parallel",)),   # batches independent; shards on v7x
    )(x_k, t_k, *plist)

    return out.reshape(B, Cout, H, W)


def reference_forward(x, t_emb, params, *, groups=8, eps=1e-5):
    """Pure-JAX reference of the PyTorch forward (NCHW)."""
    B, Cin, H, W = x.shape
    Cout = params["b1"].shape[0]
    P = lax.Precision.HIGHEST

    def conv3x3(z, w_hwio, b):
        y = lax.conv_general_dilated(
            z, w_hwio, (1, 1), "SAME",
            dimension_numbers=("NCHW", "HWIO", "NCHW"), precision=P)
        return y + b.reshape(1, -1, 1, 1)

    def gn(z, gw, gb):
        C = z.shape[1]
        gs = C // groups
        zr = z.reshape(B, groups, gs, H * W)
        m = zr.mean(axis=(2, 3), keepdims=True)
        v = ((zr - m) ** 2).mean(axis=(2, 3), keepdims=True)
        zn = ((zr - m) / jnp.sqrt(v + eps)).reshape(B, C, H, W)
        return zn * gw.reshape(1, C, 1, 1) + gb.reshape(1, C, 1, 1)

    silu = _silu
    identity = (jnp.einsum("bchw,cd->bdhw", x, params["w_skip"], precision=P)
                + params["b_skip"].reshape(1, -1, 1, 1))
    gate = jax.nn.sigmoid(
        jnp.einsum("bchw,cd->bdhw", x, params["w_gate"], precision=P)
        + params["b_gate"].reshape(1, 1, 1, 1))
    identity = identity * gate

    y = silu(gn(conv3x3(x, params["w1"], params["b1"]), params["g1w"], params["g1b"]))
    film = silu(jnp.dot(t_emb, params["wt"], precision=P) + params["bt"])
    shift, tbias = film[:, :Cout], film[:, Cout:]
    y = y * (1.0 + shift[:, :, None, None]) + tbias[:, :, None, None]
    y = silu(gn(conv3x3(y, params["w2"], params["b2"]), params["g2w"], params["g2b"]))
    pooled = y.mean(axis=(2, 3))
    h = silu(jnp.dot(pooled, params["w_se1"], precision=P) + params["b_se1"])
    se = jax.nn.sigmoid(jnp.dot(h, params["w_se2"], precision=P) + params["b_se2"])
    y = y * se[:, :, None, None]
    y = silu(gn(conv3x3(y, params["w3"], params["b3"]), params["g3w"], params["g3b"]))
    return identity + params["scale"] * y


if __name__ == "__main__":
    jax.config.update("jax_default_matmul_precision", "highest")

    B, H, W = 2, 16, 16
    Cin, Cout, D = 4, 16, 32   # in_chans=4, out_chans=16, time_emb_dim=32

    key = jax.random.PRNGKey(0)
    kx, kt, kp = jax.random.split(key, 3)
    x = jax.random.normal(kx, (B, Cin, H, W), jnp.float32)
    t_emb = jax.random.normal(kt, (B, D), jnp.float32)
    params = init_params(kp, Cin, Cout, D)

    out = time_conv_attention_block(x, t_emb, params)
    out = jax.block_until_ready(out)

    ref = reference_forward(x, t_emb, params)
    assert out.shape == (B, Cout, H, W), out.shape
    max_err = float(jnp.max(jnp.abs(out - ref)))
    if not (max_err < 5e-3):
        raise AssertionError(f"kernel/reference mismatch: max abs err = {max_err}")

    print("KERNEL_OK")
</pallas_src>

<mosaic_0001>
module attributes {stable_mosaic.version = 11 : i64} {
  func.func @kernel(%arg0: i32, %arg1: memref<1x8x256xf32, #tpu.memory_space<vmem>>, %arg2: memref<1x32x1xf32, #tpu.memory_space<vmem>>, %arg3: memref<24x8xf32, #tpu.memory_space<vmem>>, %arg4: memref<24x1xf32, #tpu.memory_space<vmem>>, %arg5: memref<16x72xf32, #tpu.memory_space<vmem>>, %arg6: memref<16x1xf32, #tpu.memory_space<vmem>>, %arg7: memref<16x1xf32, #tpu.memory_space<vmem>>, %arg8: memref<16x1xf32, #tpu.memory_space<vmem>>, %arg9: memref<32x32xf32, #tpu.memory_space<vmem>>, %arg10: memref<32x1xf32, #tpu.memory_space<vmem>>, %arg11: memref<16x144xf32, #tpu.memory_space<vmem>>, %arg12: memref<16x1xf32, #tpu.memory_space<vmem>>, %arg13: memref<16x1xf32, #tpu.memory_space<vmem>>, %arg14: memref<16x1xf32, #tpu.memory_space<vmem>>, %arg15: memref<2x16xf32, #tpu.memory_space<vmem>>, %arg16: memref<2x1xf32, #tpu.memory_space<vmem>>, %arg17: memref<16x2xf32, #tpu.memory_space<vmem>>, %arg18: memref<16x1xf32, #tpu.memory_space<vmem>>, %arg19: memref<16x144xf32, #tpu.memory_space<vmem>>, %arg20: memref<16x1xf32, #tpu.memory_space<vmem>>, %arg21: memref<16x1xf32, #tpu.memory_space<vmem>>, %arg22: memref<16x1xf32, #tpu.memory_space<vmem>>, %arg23: memref<16x16xf32, #tpu.memory_space<vmem>>, %arg24: memref<1x1xf32, #tpu.memory_space<vmem>>, %arg25: memref<1x16x256xf32, #tpu.memory_space<vmem>>) attributes {dimension_semantics = [#tpu.dimension_semantics<parallel>], iteration_bounds = array<i64: 2>, scalar_prefetch = 0 : i64, scratch_operands = 0 : i64, tpu.core_type = #tpu.core_type<tc>, window_params = [{transform_indices = @transform_0, window_bounds = array<i64: 1, 8, 256>}, {transform_indices = @transform_1, window_bounds = array<i64: 1, 32, 1>}, {pipeline_mode = #tpu.pipeline_mode<synchronous>, transform_indices = @transform_2, window_bounds = array<i64: 24, 8>}, {pipeline_mode = #tpu.pipeline_mode<synchronous>, transform_indices = @transform_3, window_bounds = array<i64: 24, 1>}, {pipeline_mode = #tpu.pipeline_mode<synchronous>, transform_indices = @transform_4, window_bounds = array<i64: 16, 72>}, {pipeline_mode = #tpu.pipeline_mode<synchronous>, transform_indices = @transform_5, window_bounds = array<i64: 16, 1>}, {pipeline_mode = #tpu.pipeline_mode<synchronous>, transform_indices = @transform_6, window_bounds = array<i64: 16, 1>}, {pipeline_mode = #tpu.pipeline_mode<synchronous>, transform_indices = @transform_7, window_bounds = array<i64: 16, 1>}, {pipeline_mode = #tpu.pipeline_mode<synchronous>, transform_indices = @transform_8, window_bounds = array<i64: 32, 32>}, {pipeline_mode = #tpu.pipeline_mode<synchronous>, transform_indices = @transform_9, window_bounds = array<i64: 32, 1>}, {pipeline_mode = #tpu.pipeline_mode<synchronous>, transform_indices = @transform_10, window_bounds = array<i64: 16, 144>}, {pipeline_mode = #tpu.pipeline_mode<synchronous>, transform_indices = @transform_11, window_bounds = array<i64: 16, 1>}, {pipeline_mode = #tpu.pipeline_mode<synchronous>, transform_indices = @transform_12, window_bounds = array<i64: 16, 1>}, {pipeline_mode = #tpu.pipeline_mode<synchronous>, transform_indices = @transform_13, window_bounds = array<i64: 16, 1>}, {pipeline_mode = #tpu.pipeline_mode<synchronous>, transform_indices = @transform_14, window_bounds = array<i64: 2, 16>}, {pipeline_mode = #tpu.pipeline_mode<synchronous>, transform_indices = @transform_15, window_bounds = array<i64: 2, 1>}, {pipeline_mode = #tpu.pipeline_mode<synchronous>, transform_indices = @transform_16, window_bounds = array<i64: 16, 2>}, {pipeline_mode = #tpu.pipeline_mode<synchronous>, transform_indices = @transform_17, window_bounds = array<i64: 16, 1>}, {pipeline_mode = #tpu.pipeline_mode<synchronous>, transform_indices = @transform_18, window_bounds = array<i64: 16, 144>}, {pipeline_mode = #tpu.pipeline_mode<synchronous>, transform_indices = @transform_19, window_bounds = array<i64: 16, 1>}, {pipeline_mode = #tpu.pipeline_mode<synchronous>, transform_indices = @transform_20, window_bounds = array<i64: 16, 1>}, {pipeline_mode = #tpu.pipeline_mode<synchronous>, transform_indices = @transform_21, window_bounds = array<i64: 16, 1>}, {pipeline_mode = #tpu.pipeline_mode<synchronous>, transform_indices = @transform_22, window_bounds = array<i64: 16, 16>}, {pipeline_mode = #tpu.pipeline_mode<synchronous>, transform_indices = @transform_23, window_bounds = array<i64: 1, 1>}, {transform_indices = @transform_24, window_bounds = array<i64: 1, 16, 256>}]} {
    %0 = tpu.iota {dimensions = array<i32: 1>} : vector<1x256xi32>
    %c16_i32 = arith.constant 16 : i32
    %c0_i32 = arith.constant 0 : i32
    %1 = arith.cmpi eq, %c16_i32, %c0_i32 : i32
    %c1_i32 = arith.constant 1 : i32
    %2 = arith.select %1, %c1_i32, %c16_i32 : i32
    %3 = vector.broadcast %2 : i32 to vector<1x256xi32>
    %4 = arith.remsi %0, %3 : vector<1x256xi32>
    %c0_i32_0 = arith.constant 0 : i32
    %5 = vector.broadcast %c0_i32_0 : i32 to vector<1x256xi32>
    %6 = arith.cmpi ne, %4, %5 : vector<1x256xi32>
    %c0_i32_1 = arith.constant 0 : i32
    %7 = vector.broadcast %c0_i32_1 : i32 to vector<1x256xi32>
    %8 = arith.cmpi slt, %4, %7 : vector<1x256xi32>
    %c0_i32_2 = arith.constant 0 : i32
    %9 = arith.cmpi slt, %2, %c0_i32_2 : i32
    %10 = vector.broadcast %9 : i1 to vector<1x256xi1>
    %11 = vector.broadcast %10 : vector<1x256xi1> to vector<1x256xi1>
    %12 = arith.xori %8, %11 : vector<1x256xi1>
    %13 = arith.andi %12, %6 : vector<1x256xi1>
    %14 = vector.broadcast %2 : i32 to vector<1x256xi32>
    %15 = arith.addi %4, %14 : vector<1x256xi32>
    %16 = arith.select %13, %15, %4 : vector<1x256xi1>, vector<1x256xi32>
    %c0_i32_3 = arith.constant 0 : i32
    %17 = vector.broadcast %c0_i32_3 : i32 to vector<1x256xi32>
    %18 = arith.cmpi sgt, %16, %17 : vector<1x256xi32>
    %19 = arith.extui %18 : vector<1x256xi1> to vector<1x256xi32>
    %20 = arith.sitofp %19 : vector<1x256xi32> to vector<1x256xf32>
    %c15_i32 = arith.constant 15 : i32
    %21 = vector.broadcast %c15_i32 : i32 to vector<1x256xi32>
    %22 = arith.cmpi slt, %16, %21 : vector<1x256xi32>
    %23 = arith.extui %22 : vector<1x256xi1> to vector<1x256xi32>
    %24 = arith.sitofp %23 : vector<1x256xi32> to vector<1x256xf32>
    %c0 = arith.constant 0 : index
    %c0_4 = arith.constant 0 : index
    %c0_5 = arith.constant 0 : index
    %25 = vector.load %arg1[%c0, %c0_4, %c0_5] : memref<1x8x256xf32, #tpu.memory_space<vmem>>, vector<1x8x256xf32>
    %26 = vector.shape_cast %25 : vector<1x8x256xf32> to vector<8x256xf32>
    %c0_6 = arith.constant 0 : index
    %c0_7 = arith.constant 0 : index
    %27 = vector.load %arg3[%c0_6, %c0_7] : memref<24x8xf32, #tpu.memory_space<vmem>>, vector<24x8xf32>
    %cst = arith.constant dense<0.000000e+00> : vector<24x256xf32>
    %28 = tpu.matmul %27, %26, %cst {dimension_numbers = #tpu.dot_dimension_numbers<[1], [0], [0], [1], [0, 0, 1, 1], [], []>, precision = #tpu.contract_precision<fp32>} : vector<24x8xf32>, vector<8x256xf32>, vector<24x256xf32> -> vector<24x256xf32>
    %c0_8 = arith.constant 0 : index
    %c0_9 = arith.constant 0 : index
    %29 = vector.load %arg4[%c0_8, %c0_9] : memref<24x1xf32, #tpu.memory_space<vmem>>, vector<24x1xf32>
    %30 = vector.broadcast %29 : vector<24x1xf32> to vector<24x256xf32>
    %31 = arith.addf %28, %30 : vector<24x256xf32>
    %32 = vector.extract_strided_slice %31 {offsets = [0, 0], sizes = [16, 256], strides = [1, 1]} : vector<24x256xf32> to vector<16x256xf32>
    %33 = vector.extract_strided_slice %31 {offsets = [16, 0], sizes = [1, 256], strides = [1, 1]} : vector<24x256xf32> to vector<1x256xf32>
    %34 = arith.negf %33 : vector<1x256xf32>
    %35 = math.exp %34 : vector<1x256xf32>
    %cst_10 = arith.constant 1.000000e+00 : f32
    %36 = vector.broadcast %cst_10 : f32 to vector<1x256xf32>
    %37 = arith.addf %36, %35 : vector<1x256xf32>
    %38 = arith.divf %36, %37 : vector<1x256xf32>
    %39 = vector.broadcast %38 : vector<1x256xf32> to vector<16x256xf32>
    %40 = arith.mulf %32, %39 : vector<16x256xf32>
    %cst_11 = arith.constant 0.000000e+00 : f32
    %41 = vector.broadcast %cst_11 : f32 to vector<8x17xf32>
    %42 = vector.extract_strided_slice %26 {offsets = [0, 0], sizes = [8, 239], strides = [1, 1]} : vector<8x256xf32> to vector<8x239xf32>
    %43 = tpu.concatenate %41, %42 in 1 : vector<8x17xf32>, vector<8x239xf32> -> vector<8x256xf32>
    %44 = vector.broadcast %20 : vector<1x256xf32> to vector<8x256xf32>
    %45 = arith.mulf %43, %44 : vector<8x256xf32>
    %cst_12 = arith.constant 0.000000e+00 : f32
    %46 = vector.broadcast %cst_12 : f32 to vector<8x16xf32>
    %47 = vector.extract_strided_slice %26 {offsets = [0, 0], sizes = [8, 240], strides = [1, 1]} : vector<8x256xf32> to vector<8x240xf32>
    %48 = tpu.concatenate %46, %47 in 1 : vector<8x16xf32>, vector<8x240xf32> -> vector<8x256xf32>
    %cst_13 = arith.constant 0.000000e+00 : f32
    %49 = vector.broadcast %cst_13 : f32 to vector<8x15xf32>
    %50 = vector.extract_strided_slice %26 {offsets = [0, 0], sizes = [8, 241], strides = [1, 1]} : vector<8x256xf32> to vector<8x241xf32>
    %51 = tpu.concatenate %49, %50 in 1 : vector<8x15xf32>, vector<8x241xf32> -> vector<8x256xf32>
    %52 = vector.broadcast %24 : vector<1x256xf32> to vector<8x256xf32>
    %53 = arith.mulf %51, %52 : vector<8x256xf32>
    %cst_14 = arith.constant 0.000000e+00 : f32
    %54 = vector.broadcast %cst_14 : f32 to vector<8x1xf32>
    %55 = vector.extract_strided_slice %26 {offsets = [0, 0], sizes = [8, 255], strides = [1, 1]} : vector<8x256xf32> to vector<8x255xf32>
    %56 = tpu.concatenate %54, %55 in 1 : vector<8x1xf32>, vector<8x255xf32> -> vector<8x256xf32>
    %57 = vector.broadcast %20 : vector<1x256xf32> to vector<8x256xf32>
    %58 = arith.mulf %56, %57 : vector<8x256xf32>
    %cst_15 = arith.constant 0.000000e+00 : f32
    %59 = vector.broadcast %cst_15 : f32 to vector<8x1xf32>
    %60 = vector.extract_strided_slice %26 {offsets = [0, 1], sizes = [8, 255], strides = [1, 1]} : vector<8x256xf32> to vector<8x255xf32>
    %61 = tpu.concatenate %60, %59 in 1 : vector<8x255xf32>, vector<8x1xf32> -> vector<8x256xf32>
    %62 = vector.broadcast %24 : vector<1x256xf32> to vector<8x256xf32>
    %63 = arith.mulf %61, %62 : vector<8x256xf32>
    %cst_16 = arith.constant 0.000000e+00 : f32
    %64 = vector.broadcast %cst_16 : f32 to vector<8x15xf32>
    %65 = vector.extract_strided_slice %26 {offsets = [0, 15], sizes = [8, 241], strides = [1, 1]} : vector<8x256xf32> to vector<8x241xf32>
    %66 = tpu.concatenate %65, %64 in 1 : vector<8x241xf32>, vector<8x15xf32> -> vector<8x256xf32>
    %67 = vector.broadcast %20 : vector<1x256xf32> to vector<8x256xf32>
    %68 = arith.mulf %66, %67 : vector<8x256xf32>
    %cst_17 = arith.constant 0.000000e+00 : f32
    %69 = vector.broadcast %cst_17 : f32 to vector<8x16xf32>
    %70 = vector.extract_strided_slice %26 {offsets = [0, 16], sizes = [8, 240], strides = [1, 1]} : vector<8x256xf32> to vector<8x240xf32>
    %71 = tpu.concatenate %70, %69 in 1 : vector<8x240xf32>, vector<8x16xf32> -> vector<8x256xf32>
    %cst_18 = arith.constant 0.000000e+00 : f32
    %72 = vector.broadcast %cst_18 : f32 to vector<8x17xf32>
    %73 = vector.extract_strided_slice %26 {offsets = [0, 17], sizes = [8, 239], strides = [1, 1]} : vector<8x256xf32> to vector<8x239xf32>
    %74 = tpu.concatenate %73, %72 in 1 : vector<8x239xf32>, vector<8x17xf32> -> vector<8x256xf32>
    %75 = vector.broadcast %24 : vector<1x256xf32> to vector<8x256xf32>
    %76 = arith.mulf %74, %75 : vector<8x256xf32>
    %77 = tpu.concatenate %45, %48, %53, %58, %26, %63, %68, %71, %76 in 0 : vector<8x256xf32>, vector<8x256xf32>, vector<8x256xf32>, vector<8x256xf32>, vector<8x256xf32>, vector<8x256xf32>, vector<8x256xf32>, vector<8x256xf32>, vector<8x256xf32> -> vector<72x256xf32>
    %c0_19 = arith.constant 0 : index
    %c0_20 = arith.constant 0 : index
    %78 = vector.load %arg5[%c0_19, %c0_20] : memref<16x72xf32, #tpu.memory_space<vmem>>, vector<16x72xf32>
    %cst_21 = arith.constant dense<0.000000e+00> : vector<16x256xf32>
    %79 = tpu.matmul %78, %77, %cst_21 {dimension_numbers = #tpu.dot_dimension_numbers<[1], [0], [0], [1], [0, 0, 1, 1], [], []>, precision = #tpu.contract_precision<fp32>} : vector<16x72xf32>, vector<72x256xf32>, vector<16x256xf32> -> vector<16x256xf32>
    %c0_22 = arith.constant 0 : index
    %c0_23 = arith.constant 0 : index
    %80 = vector.load %arg6[%c0_22, %c0_23] : memref<16x1xf32, #tpu.memory_space<vmem>>, vector<16x1xf32>
    %81 = vector.broadcast %80 : vector<16x1xf32> to vector<16x256xf32>
    %82 = arith.addf %79, %81 : vector<16x256xf32>
    %cst_24 = arith.constant dense<0.000000e+00> : vector<16xf32>
    %83 = vector.multi_reduction <add>, %82, %cst_24 [1] : vector<16x256xf32> to vector<16xf32>
    %84 = vector.shape_cast %83 : vector<16xf32> to vector<16x1xf32>
    %cst_25 = arith.constant 2.560000e+02 : f32
    %85 = vector.broadcast %cst_25 : f32 to vector<16x1xf32>
    %86 = arith.divf %84, %85 : vector<16x1xf32>
    %87 = arith.mulf %82, %82 : vector<16x256xf32>
    %cst_26 = arith.constant dense<0.000000e+00> : vector<16xf32>
    %88 = vector.multi_reduction <add>, %87, %cst_26 [1] : vector<16x256xf32> to vector<16xf32>
    %89 = vector.shape_cast %88 : vector<16xf32> to vector<16x1xf32>
    %cst_27 = arith.constant 2.560000e+02 : f32
    %90 = vector.broadcast %cst_27 : f32 to vector<16x1xf32>
    %91 = arith.divf %89, %90 : vector<16x1xf32>
    %92 = tpu.concatenate %86, %91 in 1 : vector<16x1xf32>, vector<16x1xf32> -> vector<16x2xf32>
    %c0_28 = arith.constant 0 : index
    %c0_29 = arith.constant 0 : index
    %93 = vector.load %arg23[%c0_28, %c0_29] : memref<16x16xf32, #tpu.memory_space<vmem>>, vector<16x16xf32>
    %cst_30 = arith.constant dense<0.000000e+00> : vector<16x2xf32>
    %94 = tpu.matmul %93, %92, %cst_30 {dimension_numbers = #tpu.dot_dimension_numbers<[1], [0], [0], [1], [0, 0, 1, 1], [], []>, precision = #tpu.contract_precision<fp32>} : vector<16x16xf32>, vector<16x2xf32>, vector<16x2xf32> -> vector<16x2xf32>
    %95 = vector.extract_strided_slice %94 {offsets = [0, 0], sizes = [16, 1], strides = [1, 1]} : vector<16x2xf32> to vector<16x1xf32>
    %96 = vector.extract_strided_slice %94 {offsets = [0, 1], sizes = [16, 1], strides = [1, 1]} : vector<16x2xf32> to vector<16x1xf32>
    %97 = arith.mulf %95, %95 : vector<16x1xf32>
    %98 = arith.subf %96, %97 : vector<16x1xf32>
    %cst_31 = arith.constant 9.99999974E-6 : f32
    %99 = vector.broadcast %cst_31 : f32 to vector<16x1xf32>
    %100 = arith.addf %98, %99 : vector<16x1xf32>
    %101 = math.rsqrt %100 : vector<16x1xf32>
    %102 = vector.broadcast %95 : vector<16x1xf32> to vector<16x256xf32>
    %103 = arith.subf %82, %102 : vector<16x256xf32>
    %104 = vector.broadcast %101 : vector<16x1xf32> to vector<16x256xf32>
    %105 = arith.mulf %103, %104 : vector<16x256xf32>
    %c0_32 = arith.constant 0 : index
    %c0_33 = arith.constant 0 : index
    %106 = vector.load %arg7[%c0_32, %c0_33] : memref<16x1xf32, #tpu.memory_space<vmem>>, vector<16x1xf32>
    %107 = vector.broadcast %106 : vector<16x1xf32> to vector<16x256xf32>
    %108 = arith.mulf %105, %107 : vector<16x256xf32>
    %c0_34 = arith.constant 0 : index
    %c0_35 = arith.constant 0 : index
    %109 = vector.load %arg8[%c0_34, %c0_35] : memref<16x1xf32, #tpu.memory_space<vmem>>, vector<16x1xf32>
    %110 = vector.broadcast %109 : vector<16x1xf32> to vector<16x256xf32>
    %111 = arith.addf %108, %110 : vector<16x256xf32>
    %112 = arith.negf %111 : vector<16x256xf32>
    %113 = math.exp %112 : vector<16x256xf32>
    %cst_36 = arith.constant 1.000000e+00 : f32
    %114 = vector.broadcast %cst_36 : f32 to vector<16x256xf32>
    %115 = arith.addf %114, %113 : vector<16x256xf32>
    %116 = arith.divf %114, %115 : vector<16x256xf32>
    %117 = arith.mulf %111, %116 : vector<16x256xf32>
    %c0_37 = arith.constant 0 : index
    %c0_38 = arith.constant 0 : index
    %c0_39 = arith.constant 0 : index
    %118 = vector.load %arg2[%c0_37, %c0_38, %c0_39] : memref<1x32x1xf32, #tpu.memory_space<vmem>>, vector<1x32x1xf32>
    %119 = vector.shape_cast %118 : vector<1x32x1xf32> to vector<32x1xf32>
    %c0_40 = arith.constant 0 : index
    %c0_41 = arith.constant 0 : index
    %120 = vector.load %arg9[%c0_40, %c0_41] : memref<32x32xf32, #tpu.memory_space<vmem>>, vector<32x32xf32>
    %cst_42 = arith.constant dense<0.000000e+00> : vector<32x1xf32>
    %121 = tpu.matmul %120, %119, %cst_42 {dimension_numbers = #tpu.dot_dimension_numbers<[1], [0], [0], [1], [0, 0, 1, 1], [], []>, precision = #tpu.contract_precision<fp32>} : vector<32x32xf32>, vector<32x1xf32>, vector<32x1xf32> -> vector<32x1xf32>
    %c0_43 = arith.constant 0 : index
    %c0_44 = arith.constant 0 : index
    %122 = vector.load %arg10[%c0_43, %c0_44] : memref<32x1xf32, #tpu.memory_space<vmem>>, vector<32x1xf32>
    %123 = arith.addf %121, %122 : vector<32x1xf32>
    %124 = arith.negf %123 : vector<32x1xf32>
    %125 = math.exp %124 : vector<32x1xf32>
    %cst_45 = arith.constant 1.000000e+00 : f32
    %126 = vector.broadcast %cst_45 : f32 to vector<32x1xf32>
    %127 = arith.addf %126, %125 : vector<32x1xf32>
    %128 = arith.divf %126, %127 : vector<32x1xf32>
    %129 = arith.mulf %123, %128 : vector<32x1xf32>
    %130 = vector.extract_strided_slice %129 {offsets = [0, 0], sizes = [16, 1], strides = [1, 1]} : vector<32x1xf32> to vector<16x1xf32>
    %131 = vector.extract_strided_slice %129 {offsets = [16, 0], sizes = [16, 1], strides = [1, 1]} : vector<32x1xf32> to vector<16x1xf32>
    %cst_46 = arith.constant 1.000000e+00 : f32
    %132 = vector.broadcast %cst_46 : f32 to vector<16x1xf32>
    %133 = arith.addf %132, %130 : vector<16x1xf32>
    %134 = vector.broadcast %133 : vector<16x1xf32> to vector<16x256xf32>
    %135 = arith.mulf %117, %134 : vector<16x256xf32>
    %136 = vector.broadcast %131 : vector<16x1xf32> to vector<16x256xf32>
    %137 = arith.addf %135, %136 : vector<16x256xf32>
    %cst_47 = arith.constant 0.000000e+00 : f32
    %138 = vector.broadcast %cst_47 : f32 to vector<16x17xf32>
    %139 = vector.extract_strided_slice %137 {offsets = [0, 0], sizes = [16, 239], strides = [1, 1]} : vector<16x256xf32> to vector<16x239xf32>
    %140 = tpu.concatenate %138, %139 in 1 : vector<16x17xf32>, vector<16x239xf32> -> vector<16x256xf32>
    %141 = vector.broadcast %20 : vector<1x256xf32> to vector<16x256xf32>
    %142 = arith.mulf %140, %141 : vector<16x256xf32>
    %cst_48 = arith.constant 0.000000e+00 : f32
    %143 = vector.broadcast %cst_48 : f32 to vector<16x16xf32>
    %144 = vector.extract_strided_slice %137 {offsets = [0, 0], sizes = [16, 240], strides = [1, 1]} : vector<16x256xf32> to vector<16x240xf32>
    %145 = tpu.concatenate %143, %144 in 1 : vector<16x16xf32>, vector<16x240xf32> -> vector<16x256xf32>
    %cst_49 = arith.constant 0.000000e+00 : f32
    %146 = vector.broadcast %cst_49 : f32 to vector<16x15xf32>
    %147 = vector.extract_strided_slice %137 {offsets = [0, 0], sizes = [16, 241], strides = [1, 1]} : vector<16x256xf32> to vector<16x241xf32>
    %148 = tpu.concatenate %146, %147 in 1 : vector<16x15xf32>, vector<16x241xf32> -> vector<16x256xf32>
    %149 = vector.broadcast %24 : vector<1x256xf32> to vector<16x256xf32>
    %150 = arith.mulf %148, %149 : vector<16x256xf32>
    %cst_50 = arith.constant 0.000000e+00 : f32
    %151 = vector.broadcast %cst_50 : f32 to vector<16x1xf32>
    %152 = vector.extract_strided_slice %137 {offsets = [0, 0], sizes = [16, 255], strides = [1, 1]} : vector<16x256xf32> to vector<16x255xf32>
    %153 = tpu.concatenate %151, %152 in 1 : vector<16x1xf32>, vector<16x255xf32> -> vector<16x256xf32>
    %154 = vector.broadcast %20 : vector<1x256xf32> to vector<16x256xf32>
    %155 = arith.mulf %153, %154 : vector<16x256xf32>
    %cst_51 = arith.constant 0.000000e+00 : f32
    %156 = vector.broadcast %cst_51 : f32 to vector<16x1xf32>
    %157 = vector.extract_strided_slice %137 {offsets = [0, 1], sizes = [16, 255], strides = [1, 1]} : vector<16x256xf32> to vector<16x255xf32>
    %158 = tpu.concatenate %157, %156 in 1 : vector<16x255xf32>, vector<16x1xf32> -> vector<16x256xf32>
    %159 = vector.broadcast %24 : vector<1x256xf32> to vector<16x256xf32>
    %160 = arith.mulf %158, %159 : vector<16x256xf32>
    %cst_52 = arith.constant 0.000000e+00 : f32
    %161 = vector.broadcast %cst_52 : f32 to vector<16x15xf32>
    %162 = vector.extract_strided_slice %137 {offsets = [0, 15], sizes = [16, 241], strides = [1, 1]} : vector<16x256xf32> to vector<16x241xf32>
    %163 = tpu.concatenate %162, %161 in 1 : vector<16x241xf32>, vector<16x15xf32> -> vector<16x256xf32>
    %164 = vector.broadcast %20 : vector<1x256xf32> to vector<16x256xf32>
    %165 = arith.mulf %163, %164 : vector<16x256xf32>
    %cst_53 = arith.constant 0.000000e+00 : f32
    %166 = vector.broadcast %cst_53 : f32 to vector<16x16xf32>
    %167 = vector.extract_strided_slice %137 {offsets = [0, 16], sizes = [16, 240], strides = [1, 1]} : vector<16x256xf32> to vector<16x240xf32>
    %168 = tpu.concatenate %167, %166 in 1 : vector<16x240xf32>, vector<16x16xf32> -> vector<16x256xf32>
    %cst_54 = arith.constant 0.000000e+00 : f32
    %169 = vector.broadcast %cst_54 : f32 to vector<16x17xf32>
    %170 = vector.extract_strided_slice %137 {offsets = [0, 17], sizes = [16, 239], strides = [1, 1]} : vector<16x256xf32> to vector<16x239xf32>
    %171 = tpu.concatenate %170, %169 in 1 : vector<16x239xf32>, vector<16x17xf32> -> vector<16x256xf32>
    %172 = vector.broadcast %24 : vector<1x256xf32> to vector<16x256xf32>
    %173 = arith.mulf %171, %172 : vector<16x256xf32>
    %174 = tpu.concatenate %142, %145, %150, %155, %137, %160, %165, %168, %173 in 0 : vector<16x256xf32>, vector<16x256xf32>, vector<16x256xf32>, vector<16x256xf32>, vector<16x256xf32>, vector<16x256xf32>, vector<16x256xf32>, vector<16x256xf32>, vector<16x256xf32> -> vector<144x256xf32>
    %c0_55 = arith.constant 0 : index
    %c0_56 = arith.constant 0 : index
    %175 = vector.load %arg11[%c0_55, %c0_56] : memref<16x144xf32, #tpu.memory_space<vmem>>, vector<16x144xf32>
    %cst_57 = arith.constant dense<0.000000e+00> : vector<16x256xf32>
    %176 = tpu.matmul %175, %174, %cst_57 {dimension_numbers = #tpu.dot_dimension_numbers<[1], [0], [0], [1], [0, 0, 1, 1], [], []>, precision = #tpu.contract_precision<fp32>} : vector<16x144xf32>, vector<144x256xf32>, vector<16x256xf32> -> vector<16x256xf32>
    %c0_58 = arith.constant 0 : index
    %c0_59 = arith.constant 0 : index
    %177 = vector.load %arg12[%c0_58, %c0_59] : memref<16x1xf32, #tpu.memory_space<vmem>>, vector<16x1xf32>
    %178 = vector.broadcast %177 : vector<16x1xf32> to vector<16x256xf32>
    %179 = arith.addf %176, %178 : vector<16x256xf32>
    %cst_60 = arith.constant dense<0.000000e+00> : vector<16xf32>
    %180 = vector.multi_reduction <add>, %179, %cst_60 [1] : vector<16x256xf32> to vector<16xf32>
    %181 = vector.shape_cast %180 : vector<16xf32> to vector<16x1xf32>
    %cst_61 = arith.constant 2.560000e+02 : f32
    %182 = vector.broadcast %cst_61 : f32 to vector<16x1xf32>
    %183 = arith.divf %181, %182 : vector<16x1xf32>
    %184 = arith.mulf %179, %179 : vector<16x256xf32>
    %cst_62 = arith.constant dense<0.000000e+00> : vector<16xf32>
    %185 = vector.multi_reduction <add>, %184, %cst_62 [1] : vector<16x256xf32> to vector<16xf32>
    %186 = vector.shape_cast %185 : vector<16xf32> to vector<16x1xf32>
    %cst_63 = arith.constant 2.560000e+02 : f32
    %187 = vector.broadcast %cst_63 : f32 to vector<16x1xf32>
    %188 = arith.divf %186, %187 : vector<16x1xf32>
    %189 = tpu.concatenate %183, %188 in 1 : vector<16x1xf32>, vector<16x1xf32> -> vector<16x2xf32>
    %c0_64 = arith.constant 0 : index
    %c0_65 = arith.constant 0 : index
    %190 = vector.load %arg23[%c0_64, %c0_65] : memref<16x16xf32, #tpu.memory_space<vmem>>, vector<16x16xf32>
    %cst_66 = arith.constant dense<0.000000e+00> : vector<16x2xf32>
    %191 = tpu.matmul %190, %189, %cst_66 {dimension_numbers = #tpu.dot_dimension_numbers<[1], [0], [0], [1], [0, 0, 1, 1], [], []>, precision = #tpu.contract_precision<fp32>} : vector<16x16xf32>, vector<16x2xf32>, vector<16x2xf32> -> vector<16x2xf32>
    %192 = vector.extract_strided_slice %191 {offsets = [0, 0], sizes = [16, 1], strides = [1, 1]} : vector<16x2xf32> to vector<16x1xf32>
    %193 = vector.extract_strided_slice %191 {offsets = [0, 1], sizes = [16, 1], strides = [1, 1]} : vector<16x2xf32> to vector<16x1xf32>
    %194 = arith.mulf %192, %192 : vector<16x1xf32>
    %195 = arith.subf %193, %194 : vector<16x1xf32>
    %cst_67 = arith.constant 9.99999974E-6 : f32
    %196 = vector.broadcast %cst_67 : f32 to vector<16x1xf32>
    %197 = arith.addf %195, %196 : vector<16x1xf32>
    %198 = math.rsqrt %197 : vector<16x1xf32>
    %199 = vector.broadcast %192 : vector<16x1xf32> to vector<16x256xf32>
    %200 = arith.subf %179, %199 : vector<16x256xf32>
    %201 = vector.broadcast %198 : vector<16x1xf32> to vector<16x256xf32>
    %202 = arith.mulf %200, %201 : vector<16x256xf32>
    %c0_68 = arith.constant 0 : index
    %c0_69 = arith.constant 0 : index
    %203 = vector.load %arg13[%c0_68, %c0_69] : memref<16x1xf32, #tpu.memory_space<vmem>>, vector<16x1xf32>
    %204 = vector.broadcast %203 : vector<16x1xf32> to vector<16x256xf32>
    %205 = arith.mulf %202, %204 : vector<16x256xf32>
    %c0_70 = arith.constant 0 : index
    %c0_71 = arith.constant 0 : index
    %206 = vector.load %arg14[%c0_70, %c0_71] : memref<16x1xf32, #tpu.memory_space<vmem>>, vector<16x1xf32>
    %207 = vector.broadcast %206 : vector<16x1xf32> to vector<16x256xf32>
    %208 = arith.addf %205, %207 : vector<16x256xf32>
    %209 = arith.negf %208 : vector<16x256xf32>
    %210 = math.exp %209 : vector<16x256xf32>
    %cst_72 = arith.constant 1.000000e+00 : f32
    %211 = vector.broadcast %cst_72 : f32 to vector<16x256xf32>
    %212 = arith.addf %211, %210 : vector<16x256xf32>
    %213 = arith.divf %211, %212 : vector<16x256xf32>
    %214 = arith.mulf %208, %213 : vector<16x256xf32>
    %cst_73 = arith.constant dense<0.000000e+00> : vector<16xf32>
    %215 = vector.multi_reduction <add>, %214, %cst_73 [1] : vector<16x256xf32> to vector<16xf32>
    %216 = vector.shape_cast %215 : vector<16xf32> to vector<16x1xf32>
    %cst_74 = arith.constant 2.560000e+02 : f32
    %217 = vector.broadcast %cst_74 : f32 to vector<16x1xf32>
    %218 = arith.divf %216, %217 : vector<16x1xf32>
    %c0_75 = arith.constant 0 : index
    %c0_76 = arith.constant 0 : index
    %219 = vector.load %arg15[%c0_75, %c0_76] : memref<2x16xf32, #tpu.memory_space<vmem>>, vector<2x16xf32>
    %cst_77 = arith.constant dense<0.000000e+00> : vector<2x1xf32>
    %220 = tpu.matmul %219, %218, %cst_77 {dimension_numbers = #tpu.dot_dimension_numbers<[1], [0], [0], [1], [0, 0, 1, 1], [], []>, precision = #tpu.contract_precision<fp32>} : vector<2x16xf32>, vector<16x1xf32>, vector<2x1xf32> -> vector<2x1xf32>
    %c0_78 = arith.constant 0 : index
    %c0_79 = arith.constant 0 : index
    %221 = vector.load %arg16[%c0_78, %c0_79] : memref<2x1xf32, #tpu.memory_space<vmem>>, vector<2x1xf32>
    %222 = arith.addf %220, %221 : vector<2x1xf32>
    %223 = arith.negf %222 : vector<2x1xf32>
    %224 = math.exp %223 : vector<2x1xf32>
    %cst_80 = arith.constant 1.000000e+00 : f32
    %225 = vector.broadcast %cst_80 : f32 to vector<2x1xf32>
    %226 = arith.addf %225, %224 : vector<2x1xf32>
    %227 = arith.divf %225, %226 : vector<2x1xf32>
    %228 = arith.mulf %222, %227 : vector<2x1xf32>
    %c0_81 = arith.constant 0 : index
    %c0_82 = arith.constant 0 : index
    %229 = vector.load %arg17[%c0_81, %c0_82] : memref<16x2xf32, #tpu.memory_space<vmem>>, vector<16x2xf32>
    %cst_83 = arith.constant dense<0.000000e+00> : vector<16x1xf32>
    %230 = tpu.matmul %229, %228, %cst_83 {dimension_numbers = #tpu.dot_dimension_numbers<[1], [0], [0], [1], [0, 0, 1, 1], [], []>, precision = #tpu.contract_precision<fp32>} : vector<16x2xf32>, vector<2x1xf32>, vector<16x1xf32> -> vector<16x1xf32>
    %c0_84 = arith.constant 0 : index
    %c0_85 = arith.constant 0 : index
    %231 = vector.load %arg18[%c0_84, %c0_85] : memref<16x1xf32, #tpu.memory_space<vmem>>, vector<16x1xf32>
    %232 = arith.addf %230, %231 : vector<16x1xf32>
    %233 = arith.negf %232 : vector<16x1xf32>
    %234 = math.exp %233 : vector<16x1xf32>
    %cst_86 = arith.constant 1.000000e+00 : f32
    %235 = vector.broadcast %cst_86 : f32 to vector<16x1xf32>
    %236 = arith.addf %235, %234 : vector<16x1xf32>
    %237 = arith.divf %235, %236 : vector<16x1xf32>
    %238 = vector.broadcast %237 : vector<16x1xf32> to vector<16x256xf32>
    %239 = arith.mulf %214, %238 : vector<16x256xf32>
    %cst_87 = arith.constant 0.000000e+00 : f32
    %240 = vector.broadcast %cst_87 : f32 to vector<16x17xf32>
    %241 = vector.extract_strided_slice %239 {offsets = [0, 0], sizes = [16, 239], strides = [1, 1]} : vector<16x256xf32> to vector<16x239xf32>
    %242 = tpu.concatenate %240, %241 in 1 : vector<16x17xf32>, vector<16x239xf32> -> vector<16x256xf32>
    %243 = vector.broadcast %20 : vector<1x256xf32> to vector<16x256xf32>
    %244 = arith.mulf %242, %243 : vector<16x256xf32>
    %cst_88 = arith.constant 0.000000e+00 : f32
    %245 = vector.broadcast %cst_88 : f32 to vector<16x16xf32>
    %246 = vector.extract_strided_slice %239 {offsets = [0, 0], sizes = [16, 240], strides = [1, 1]} : vector<16x256xf32> to vector<16x240xf32>
    %247 = tpu.concatenate %245, %246 in 1 : vector<16x16xf32>, vector<16x240xf32> -> vector<16x256xf32>
    %cst_89 = arith.constant 0.000000e+00 : f32
    %248 = vector.broadcast %cst_89 : f32 to vector<16x15xf32>
    %249 = vector.extract_strided_slice %239 {offsets = [0, 0], sizes = [16, 241], strides = [1, 1]} : vector<16x256xf32> to vector<16x241xf32>
    %250 = tpu.concatenate %248, %249 in 1 : vector<16x15xf32>, vector<16x241xf32> -> vector<16x256xf32>
    %251 = vector.broadcast %24 : vector<1x256xf32> to vector<16x256xf32>
    %252 = arith.mulf %250, %251 : vector<16x256xf32>
    %cst_90 = arith.constant 0.000000e+00 : f32
    %253 = vector.broadcast %cst_90 : f32 to vector<16x1xf32>
    %254 = vector.extract_strided_slice %239 {offsets = [0, 0], sizes = [16, 255], strides = [1, 1]} : vector<16x256xf32> to vector<16x255xf32>
    %255 = tpu.concatenate %253, %254 in 1 : vector<16x1xf32>, vector<16x255xf32> -> vector<16x256xf32>
    %256 = vector.broadcast %20 : vector<1x256xf32> to vector<16x256xf32>
    %257 = arith.mulf %255, %256 : vector<16x256xf32>
    %cst_91 = arith.constant 0.000000e+00 : f32
    %258 = vector.broadcast %cst_91 : f32 to vector<16x1xf32>
    %259 = vector.extract_strided_slice %239 {offsets = [0, 1], sizes = [16, 255], strides = [1, 1]} : vector<16x256xf32> to vector<16x255xf32>
    %260 = tpu.concatenate %259, %258 in 1 : vector<16x255xf32>, vector<16x1xf32> -> vector<16x256xf32>
    %261 = vector.broadcast %24 : vector<1x256xf32> to vector<16x256xf32>
    %262 = arith.mulf %260, %261 : vector<16x256xf32>
    %cst_92 = arith.constant 0.000000e+00 : f32
    %263 = vector.broadcast %cst_92 : f32 to vector<16x15xf32>
    %264 = vector.extract_strided_slice %239 {offsets = [0, 15], sizes = [16, 241], strides = [1, 1]} : vector<16x256xf32> to vector<16x241xf32>
    %265 = tpu.concatenate %264, %263 in 1 : vector<16x241xf32>, vector<16x15xf32> -> vector<16x256xf32>
    %266 = vector.broadcast %20 : vector<1x256xf32> to vector<16x256xf32>
    %267 = arith.mulf %265, %266 : vector<16x256xf32>
    %cst_93 = arith.constant 0.000000e+00 : f32
    %268 = vector.broadcast %cst_93 : f32 to vector<16x16xf32>
    %269 = vector.extract_strided_slice %239 {offsets = [0, 16], sizes = [16, 240], strides = [1, 1]} : vector<16x256xf32> to vector<16x240xf32>
    %270 = tpu.concatenate %269, %268 in 1 : vector<16x240xf32>, vector<16x16xf32> -> vector<16x256xf32>
    %cst_94 = arith.constant 0.000000e+00 : f32
    %271 = vector.broadcast %cst_94 : f32 to vector<16x17xf32>
    %272 = vector.extract_strided_slice %239 {offsets = [0, 17], sizes = [16, 239], strides = [1, 1]} : vector<16x256xf32> to vector<16x239xf32>
    %273 = tpu.concatenate %272, %271 in 1 : vector<16x239xf32>, vector<16x17xf32> -> vector<16x256xf32>
    %274 = vector.broadcast %24 : vector<1x256xf32> to vector<16x256xf32>
    %275 = arith.mulf %273, %274 : vector<16x256xf32>
    %276 = tpu.concatenate %244, %247, %252, %257, %239, %262, %267, %270, %275 in 0 : vector<16x256xf32>, vector<16x256xf32>, vector<16x256xf32>, vector<16x256xf32>, vector<16x256xf32>, vector<16x256xf32>, vector<16x256xf32>, vector<16x256xf32>, vector<16x256xf32> -> vector<144x256xf32>
    %c0_95 = arith.constant 0 : index
    %c0_96 = arith.constant 0 : index
    %277 = vector.load %arg19[%c0_95, %c0_96] : memref<16x144xf32, #tpu.memory_space<vmem>>, vector<16x144xf32>
    %cst_97 = arith.constant dense<0.000000e+00> : vector<16x256xf32>
    %278 = tpu.matmul %277, %276, %cst_97 {dimension_numbers = #tpu.dot_dimension_numbers<[1], [0], [0], [1], [0, 0, 1, 1], [], []>, precision = #tpu.contract_precision<fp32>} : vector<16x144xf32>, vector<144x256xf32>, vector<16x256xf32> -> vector<16x256xf32>
    %c0_98 = arith.constant 0 : index
    %c0_99 = arith.constant 0 : index
    %279 = vector.load %arg20[%c0_98, %c0_99] : memref<16x1xf32, #tpu.memory_space<vmem>>, vector<16x1xf32>
    %280 = vector.broadcast %279 : vector<16x1xf32> to vector<16x256xf32>
    %281 = arith.addf %278, %280 : vector<16x256xf32>
    %cst_100 = arith.constant dense<0.000000e+00> : vector<16xf32>
    %282 = vector.multi_reduction <add>, %281, %cst_100 [1] : vector<16x256xf32> to vector<16xf32>
    %283 = vector.shape_cast %282 : vector<16xf32> to vector<16x1xf32>
    %cst_101 = arith.constant 2.560000e+02 : f32
    %284 = vector.broadcast %cst_101 : f32 to vector<16x1xf32>
    %285 = arith.divf %283, %284 : vector<16x1xf32>
    %286 = arith.mulf %281, %281 : vector<16x256xf32>
    %cst_102 = arith.constant dense<0.000000e+00> : vector<16xf32>
    %287 = vector.multi_reduction <add>, %286, %cst_102 [1] : vector<16x256xf32> to vector<16xf32>
    %288 = vector.shape_cast %287 : vector<16xf32> to vector<16x1xf32>
    %cst_103 = arith.constant 2.560000e+02 : f32
    %289 = vector.broadcast %cst_103 : f32 to vector<16x1xf32>
    %290 = arith.divf %288, %289 : vector<16x1xf32>
    %291 = tpu.concatenate %285, %290 in 1 : vector<16x1xf32>, vector<16x1xf32> -> vector<16x2xf32>
    %c0_104 = arith.constant 0 : index
    %c0_105 = arith.constant 0 : index
    %292 = vector.load %arg23[%c0_104, %c0_105] : memref<16x16xf32, #tpu.memory_space<vmem>>, vector<16x16xf32>
    %cst_106 = arith.constant dense<0.000000e+00> : vector<16x2xf32>
    %293 = tpu.matmul %292, %291, %cst_106 {dimension_numbers = #tpu.dot_dimension_numbers<[1], [0], [0], [1], [0, 0, 1, 1], [], []>, precision = #tpu.contract_precision<fp32>} : vector<16x16xf32>, vector<16x2xf32>, vector<16x2xf32> -> vector<16x2xf32>
    %294 = vector.extract_strided_slice %293 {offsets = [0, 0], sizes = [16, 1], strides = [1, 1]} : vector<16x2xf32> to vector<16x1xf32>
    %295 = vector.extract_strided_slice %293 {offsets = [0, 1], sizes = [16, 1], strides = [1, 1]} : vector<16x2xf32> to vector<16x1xf32>
    %296 = arith.mulf %294, %294 : vector<16x1xf32>
    %297 = arith.subf %295, %296 : vector<16x1xf32>
    %cst_107 = arith.constant 9.99999974E-6 : f32
    %298 = vector.broadcast %cst_107 : f32 to vector<16x1xf32>
    %299 = arith.addf %297, %298 : vector<16x1xf32>
    %300 = math.rsqrt %299 : vector<16x1xf32>
    %301 = vector.broadcast %294 : vector<16x1xf32> to vector<16x256xf32>
    %302 = arith.subf %281, %301 : vector<16x256xf32>
    %303 = vector.broadcast %300 : vector<16x1xf32> to vector<16x256xf32>
    %304 = arith.mulf %302, %303 : vector<16x256xf32>
    %c0_108 = arith.constant 0 : index
    %c0_109 = arith.constant 0 : index
    %305 = vector.load %arg21[%c0_108, %c0_109] : memref<16x1xf32, #tpu.memory_space<vmem>>, vector<16x1xf32>
    %306 = vector.broadcast %305 : vector<16x1xf32> to vector<16x256xf32>
    %307 = arith.mulf %304, %306 : vector<16x256xf32>
    %c0_110 = arith.constant 0 : index
    %c0_111 = arith.constant 0 : index
    %308 = vector.load %arg22[%c0_110, %c0_111] : memref<16x1xf32, #tpu.memory_space<vmem>>, vector<16x1xf32>
    %309 = vector.broadcast %308 : vector<16x1xf32> to vector<16x256xf32>
    %310 = arith.addf %307, %309 : vector<16x256xf32>
    %311 = arith.negf %310 : vector<16x256xf32>
    %312 = math.exp %311 : vector<16x256xf32>
    %cst_112 = arith.constant 1.000000e+00 : f32
    %313 = vector.broadcast %cst_112 : f32 to vector<16x256xf32>
    %314 = arith.addf %313, %312 : vector<16x256xf32>
    %315 = arith.divf %313, %314 : vector<16x256xf32>
    %316 = arith.mulf %310, %315 : vector<16x256xf32>
    %c0_113 = arith.constant 0 : index
    %c0_114 = arith.constant 0 : index
    %317 = vector.load %arg24[%c0_113, %c0_114] : memref<1x1xf32, #tpu.memory_space<vmem>>, vector<1x1xf32>
    %318 = vector.broadcast %317 : vector<1x1xf32> to vector<16x256xf32>
    %319 = arith.mulf %318, %316 : vector<16x256xf32>
    %320 = arith.addf %40, %319 : vector<16x256xf32>
    %c0_115 = arith.constant 0 : index
    %c0_116 = arith.constant 0 : index
    %c0_117 = arith.constant 0 : index
    %321 = vector.load %arg25[%c0_115, %c0_116, %c0_117] : memref<1x16x256xf32, #tpu.memory_space<vmem>>, vector<1x16x256xf32>
    %322 = vector.shape_cast %321 : vector<1x16x256xf32> to vector<16x256xf32>
    %323 = vector.shape_cast %320 : vector<16x256xf32> to vector<1x16x256xf32>
    tpu.vector_store %arg25[%c0_115, %c0_116, %c0_117], %323 {strides = array<i32>} : memref<1x16x256xf32, #tpu.memory_space<vmem>>, vector<1x16x256xf32>,
    return
  }
  func.func @transform_0(%arg0: i32) -> (i32, i32, i32) {
    %c0_i32 = arith.constant 0 : i32
    %c0_i32_0 = arith.constant 0 : i32
    %c0_i32_1 = arith.constant 0 : i32
    return %arg0, %c0_i32, %c0_i32_0 : i32, i32, i32
  }
  func.func @transform_1(%arg0: i32) -> (i32, i32, i32) {
    %c0_i32 = arith.constant 0 : i32
    %c0_i32_0 = arith.constant 0 : i32
    %c0_i32_1 = arith.constant 0 : i32
    return %arg0, %c0_i32, %c0_i32_0 : i32, i32, i32
  }
  func.func @transform_2(%arg0: i32) -> (i32, i32) {
    %c0_i32 = arith.constant 0 : i32
    %c0_i32_0 = arith.constant 0 : i32
    %c0_i32_1 = arith.constant 0 : i32
    return %c0_i32, %c0_i32_0 : i32, i32
  }
  func.func @transform_3(%arg0: i32) -> (i32, i32) {
    %c0_i32 = arith.constant 0 : i32
    %c0_i32_0 = arith.constant 0 : i32
    %c0_i32_1 = arith.constant 0 : i32
    return %c0_i32, %c0_i32_0 : i32, i32
  }
  func.func @transform_4(%arg0: i32) -> (i32, i32) {
    %c0_i32 = arith.constant 0 : i32
    %c0_i32_0 = arith.constant 0 : i32
    %c0_i32_1 = arith.constant 0 : i32
    return %c0_i32, %c0_i32_0 : i32, i32
  }
  func.func @transform_5(%arg0: i32) -> (i32, i32) {
    %c0_i32 = arith.constant 0 : i32
    %c0_i32_0 = arith.constant 0 : i32
    %c0_i32_1 = arith.constant 0 : i32
    return %c0_i32, %c0_i32_0 : i32, i32
  }
  func.func @transform_6(%arg0: i32) -> (i32, i32) {
    %c0_i32 = arith.constant 0 : i32
    %c0_i32_0 = arith.constant 0 : i32
    %c0_i32_1 = arith.constant 0 : i32
    return %c0_i32, %c0_i32_0 : i32, i32
  }
  func.func @transform_7(%arg0: i32) -> (i32, i32) {
    %c0_i32 = arith.constant 0 : i32
    %c0_i32_0 = arith.constant 0 : i32
    %c0_i32_1 = arith.constant 0 : i32
    return %c0_i32, %c0_i32_0 : i32, i32
  }
  func.func @transform_8(%arg0: i32) -> (i32, i32) {
    %c0_i32 = arith.constant 0 : i32
    %c0_i32_0 = arith.constant 0 : i32
    %c0_i32_1 = arith.constant 0 : i32
    return %c0_i32, %c0_i32_0 : i32, i32
  }
  func.func @transform_9(%arg0: i32) -> (i32, i32) {
    %c0_i32 = arith.constant 0 : i32
    %c0_i32_0 = arith.constant 0 : i32
    %c0_i32_1 = arith.constant 0 : i32
    return %c0_i32, %c0_i32_0 : i32, i32
  }
  func.func @transform_10(%arg0: i32) -> (i32, i32) {
    %c0_i32 = arith.constant 0 : i32
    %c0_i32_0 = arith.constant 0 : i32
    %c0_i32_1 = arith.constant 0 : i32
    return %c0_i32, %c0_i32_0 : i32, i32
  }
  func.func @transform_11(%arg0: i32) -> (i32, i32) {
    %c0_i32 = arith.constant 0 : i32
    %c0_i32_0 = arith.constant 0 : i32
    %c0_i32_1 = arith.constant 0 : i32
    return %c0_i32, %c0_i32_0 : i32, i32
  }
  func.func @transform_12(%arg0: i32) -> (i32, i32) {
    %c0_i32 = arith.constant 0 : i32
    %c0_i32_0 = arith.constant 0 : i32
    %c0_i32_1 = arith.constant 0 : i32
    return %c0_i32, %c0_i32_0 : i32, i32
  }
  func.func @transform_13(%arg0: i32) -> (i32, i32) {
    %c0_i32 = arith.constant 0 : i32
    %c0_i32_0 = arith.constant 0 : i32
    %c0_i32_1 = arith.constant 0 : i32
    return %c0_i32, %c0_i32_0 : i32, i32
  }
  func.func @transform_14(%arg0: i32) -> (i32, i32) {
    %c0_i32 = arith.constant 0 : i32
    %c0_i32_0 = arith.constant 0 : i32
    %c0_i32_1 = arith.constant 0 : i32
    return %c0_i32, %c0_i32_0 : i32, i32
  }
  func.func @transform_15(%arg0: i32) -> (i32, i32) {
    %c0_i32 = arith.constant 0 : i32
    %c0_i32_0 = arith.constant 0 : i32
    %c0_i32_1 = arith.constant 0 : i32
    return %c0_i32, %c0_i32_0 : i32, i32
  }
  func.func @transform_16(%arg0: i32) -> (i32, i32) {
    %c0_i32 = arith.constant 0 : i32
    %c0_i32_0 = arith.constant 0 : i32
    %c0_i32_1 = arith.constant 0 : i32
    return %c0_i32, %c0_i32_0 : i32, i32
  }
  func.func @transform_17(%arg0: i32) -> (i32, i32) {
    %c0_i32 = arith.constant 0 : i32
    %c0_i32_0 = arith.constant 0 : i32
    %c0_i32_1 = arith.constant 0 : i32
    return %c0_i32, %c0_i32_0 : i32, i32
  }
  func.func @transform_18(%arg0: i32) -> (i32, i32) {
    %c0_i32 = arith.constant 0 : i32
    %c0_i32_0 = arith.constant 0 : i32
    %c0_i32_1 = arith.constant 0 : i32
    return %c0_i32, %c0_i32_0 : i32, i32
  }
  func.func @transform_19(%arg0: i32) -> (i32, i32) {
    %c0_i32 = arith.constant 0 : i32
    %c0_i32_0 = arith.constant 0 : i32
    %c0_i32_1 = arith.constant 0 : i32
    return %c0_i32, %c0_i32_0 : i32, i32
  }
  func.func @transform_20(%arg0: i32) -> (i32, i32) {
    %c0_i32 = arith.constant 0 : i32
    %c0_i32_0 = arith.constant 0 : i32
    %c0_i32_1 = arith.constant 0 : i32
    return %c0_i32, %c0_i32_0 : i32, i32
  }
  func.func @transform_21(%arg0: i32) -> (i32, i32) {
    %c0_i32 = arith.constant 0 : i32
    %c0_i32_0 = arith.constant 0 : i32
    %c0_i32_1 = arith.constant 0 : i32
    return %c0_i32, %c0_i32_0 : i32, i32
  }
  func.func @transform_22(%arg0: i32) -> (i32, i32) {
    %c0_i32 = arith.constant 0 : i32
    %c0_i32_0 = arith.constant 0 : i32
    %c0_i32_1 = arith.constant 0 : i32
    return %c0_i32, %c0_i32_0 : i32, i32
  }
  func.func @transform_23(%arg0: i32) -> (i32, i32) {
    %c0_i32 = arith.constant 0 : i32
    %c0_i32_0 = arith.constant 0 : i32
    %c0_i32_1 = arith.constant 0 : i32
    return %c0_i32, %c0_i32_0 : i32, i32
  }
  func.func @transform_24(%arg0: i32) -> (i32, i32, i32) {
    %c0_i32 = arith.constant 0 : i32
    %c0_i32_0 = arith.constant 0 : i32
    %c0_i32_1 = arith.constant 0 : i32
    return %arg0, %c0_i32, %c0_i32_0 : i32, i32, i32
  }
}

</mosaic_0001>

<llo_original>
// kernel: tpu_custom_call.1
$region0: #{tpu_custom_call.1}
  #allocation0 [shape = 'u32[]', space=smem, size = 0x4, offset = 0x4, fixed_abs, tag = 'smem constant byte address 0x4 - core index']
  #allocation1 [shape = 'u32[144,128]{1,0:T(1,128)}', space=vmem, size = 0x12000, scoped, tag = 'internal scratch']
  #allocation2 [shape = 'f32[1,1]{1,0:T(1,128)S(1)}', space=vmem, size = 0x200, scoped, tag = 'scoped memory for tpu_custom_call.1']
  %s0 = inlined_call_operand.vmem [shape: f32[2,8,256], index: 0, kind: input, shape index: {}]
  %s1 = inlined_call_operand.vmem [shape: f32[2,32,1], index: 1, kind: input, shape index: {}]
  %s2 = inlined_call_operand.vmem [shape: f32[24,8], index: 2, kind: input, shape index: {}]
  %s3 = inlined_call_operand.vmem [shape: f32[24,1], index: 3, kind: input, shape index: {}]
  %s4 = inlined_call_operand.vmem [shape: f32[16,72], index: 4, kind: input, shape index: {}]
  %s5 = inlined_call_operand.vmem [shape: f32[16,1], index: 5, kind: input, shape index: {}]
  %s6 = inlined_call_operand.vmem [shape: f32[16,1], index: 6, kind: input, shape index: {}]
  %s7 = inlined_call_operand.vmem [shape: f32[16,1], index: 7, kind: input, shape index: {}]
  %s8 = inlined_call_operand.vmem [shape: f32[32,32], index: 8, kind: input, shape index: {}]
  %s9 = inlined_call_operand.vmem [shape: f32[32,1], index: 9, kind: input, shape index: {}]
  %s10 = inlined_call_operand.vmem [shape: f32[16,144], index: 10, kind: input, shape index: {}]
  %s11 = inlined_call_operand.vmem [shape: f32[16,1], index: 11, kind: input, shape index: {}]
  %s12 = inlined_call_operand.vmem [shape: f32[16,1], index: 12, kind: input, shape index: {}]
  %s13 = inlined_call_operand.vmem [shape: f32[16,1], index: 13, kind: input, shape index: {}]
  %s14 = inlined_call_operand.vmem [shape: f32[2,16], index: 14, kind: input, shape index: {}]
  %s15 = inlined_call_operand.vmem [shape: f32[2,1], index: 15, kind: input, shape index: {}]
  %s16 = inlined_call_operand.vmem [shape: f32[16,2], index: 16, kind: input, shape index: {}]
  %s17 = inlined_call_operand.vmem [shape: f32[16,1], index: 17, kind: input, shape index: {}]
  %s18 = inlined_call_operand.vmem [shape: f32[16,144], index: 18, kind: input, shape index: {}]
  %s19 = inlined_call_operand.vmem [shape: f32[16,1], index: 19, kind: input, shape index: {}]
  %s20 = inlined_call_operand.vmem [shape: f32[16,1], index: 20, kind: input, shape index: {}]
  %s21 = inlined_call_operand.vmem [shape: f32[16,1], index: 21, kind: input, shape index: {}]
  %s22 = inlined_call_operand.vmem [shape: f32[16,16], index: 22, kind: input, shape index: {}]
  %s23 = inlined_call_operand.<no memory space> [shape: f32[1,1], index: 23, kind: input, shape index: {}]
  %s24 = inlined_call_operand.hbm [shape: f32[2,16,256], index: 24, kind: output, shape index: {}]
  %s25 = sld [smem:[#allocation0]]
  $region129: #{tpu_custom_call.1} parent=0
    _
  %s27 = ssub.s32 1, %s25
  %s28 = scalar_select 0, %s27, %s25
  %v29 = vstv %s23
  %30 = vst [vmem:[#allocation2] sm:$0x1] %v29
  $region1: #{tpu_custom_call.1} parent=0
    #allocation3 [shape = 'u8[32768]{0}', space=vmem, size = 0x8000, scoped, tag = 'output window, operand 0']
    #allocation4 [shape = 's32[2]{0}', space=sflag, size = 0x8, scoped, tag = 'scoped memory for tpu_custom_call.1']
    %31 = vsyncpa [#allocation4], 0
    %s32 = scalar_lea.sflag [#allocation4], 1
    %33 = vsyncpa %s32, 0
    loop: start=0, step=1, limit=4
    $region2: #{tpu_custom_call.1} parent=1 // loop_pre_header
      _
    $region3: #{tpu_custom_call.1} parent=1 // loop_header
      %s35 = sphi 0, %s39
      %p36 = scmp.ge.s32.totalorder %s35, 4
      %s45 = sphi 0, %s47
      %s48 = sphi 0, %s45
      %s49 = sphi 0, %s48
      %s65 = sphi 0, %s49
      %s71 = sphi 0, %s73
      %s74 = sphi 0, %s71
      %s75 = sphi 0, %s74
      %s91 = sphi 0, %s75
      %s95 = sphi 0, %s95
      %s97 = sphi 0, %s95
      %s98 = sphi 0, %s97
      %s112 = sphi 0, %s98
      %s116 = sphi 0, %s116
      %s118 = sphi 0, %s116
      %s119 = sphi 0, %s118
      %s133 = sphi 0, %s119
      %s137 = sphi 0, %s137
      %s139 = sphi 0, %s137
      %s140 = sphi 0, %s139
      %s154 = sphi 0, %s140
      %s158 = sphi 0, %s158
      %s160 = sphi 0, %s158
      %s161 = sphi 0, %s160
      %s175 = sphi 0, %s161
      %s179 = sphi 0, %s179
      %s181 = sphi 0, %s179
      %s182 = sphi 0, %s181
      %s196 = sphi 0, %s182
      %s200 = sphi 0, %s200
      %s202 = sphi 0, %s200
      %s203 = sphi 0, %s202
      %s217 = sphi 0, %s203
      %s221 = sphi 0, %s221
      %s223 = sphi 0, %s221
      %s224 = sphi 0, %s223
      %s238 = sphi 0, %s224
      %s242 = sphi 0, %s242
      %s244 = sphi 0, %s242
      %s245 = sphi 0, %s244
      %s259 = sphi 0, %s245
      %s263 = sphi 0, %s263
      %s265 = sphi 0, %s263
      %s266 = sphi 0, %s265
      %s280 = sphi 0, %s266
      %s284 = sphi 0, %s284
      %s286 = sphi 0, %s284
      %s287 = sphi 0, %s286
      %s301 = sphi 0, %s287
      %s305 = sphi 0, %s305
      %s307 = sphi 0, %s305
      %s308 = sphi 0, %s307
      %s322 = sphi 0, %s308
      %s326 = sphi 0, %s326
      %s328 = sphi 0, %s326
      %s329 = sphi 0, %s328
      %s343 = sphi 0, %s329
      %s347 = sphi 0, %s347
      %s349 = sphi 0, %s347
      %s350 = sphi 0, %s349
      %s364 = sphi 0, %s350
      %s368 = sphi 0, %s368
      %s370 = sphi 0, %s368
      %s371 = sphi 0, %s370
      %s385 = sphi 0, %s371
      %s389 = sphi 0, %s389
      %s391 = sphi 0, %s389
      %s392 = sphi 0, %s391
      %s406 = sphi 0, %s392
      %s410 = sphi 0, %s410
      %s412 = sphi 0, %s410
      %s413 = sphi 0, %s412
      %s427 = sphi 0, %s413
      %s431 = sphi 0, %s431
      %s433 = sphi 0, %s431
      %s434 = sphi 0, %s433
      %s448 = sphi 0, %s434
      %s452 = sphi 0, %s452
      %s454 = sphi 0, %s452
      %s455 = sphi 0, %s454
      %s469 = sphi 0, %s455
      %s473 = sphi 0, %s473
      %s475 = sphi 0, %s473
      %s476 = sphi 0, %s475
      %s490 = sphi 0, %s476
      %s494 = sphi 0, %s494
      %s496 = sphi 0, %s494
      %s497 = sphi 0, %s496
      %s511 = sphi 0, %s497
      %s515 = sphi 0, %s515
      %s517 = sphi 0, %s515
      %s518 = sphi 0, %s517
      %s532 = sphi 0, %s518
      %s536 = sphi 0, %s536
      %s538 = sphi 0, %s536
      %s539 = sphi 0, %s538
      %s553 = sphi 0, %s539
      %s559 = sphi 0, %s561
      %s562 = sphi 0, %s559
      %s563 = sphi 0, %s562
      %s579 = sphi 0, %s563
    $region4: #{tpu_custom_call.1} parent=1 // loop_header_branch
      %38 = sbr.rel (%p36) target = $region8
    $region5: #{tpu_custom_call.1} parent=1 // loop_body
      %s40 = ssub.s32 %s35, 1
      %s41 = ssub.s32 %s35, 2
      %s42 = sadd.s32 %s35, 1
      %s43 = ssub.s32 %s35, %s42
      %p44 = scmp.eq.s32.totalorder %s43, 0
      %s46 = sadd.s32 %s45, 1
      %s47 = scalar_select %p44, %s45, %s46
      %p50 = pneg %p44
      %p51 = scmp.eq.s32.totalorder %s35, 1
      %p52 = por %p50, %p51
      %p53 = scmp.ne.s32.totalorder %s45, %s48
      %p54 = scmp.eq.s32.totalorder %s35, 0
      %p55 = por %p53, %p54
      %p56 = scmp.ne.s32.totalorder %s45, %s48
      %p57 = scmp.eq.s32.totalorder %s40, 1
      %p58 = por %p56, %p57
      %p59 = scmp.ne.s32.totalorder %s48, %s49
      %p60 = scmp.eq.s32.totalorder %s40, 0
      %p61 = por %p59, %p60
      %p62 = scmp.ne.s32.totalorder %s48, %s49
      %p63 = scmp.eq.s32.totalorder %s41, 1
      %p64 = por %p62, %p63
      %p66 = scmp.ne.s32.totalorder %s49, %s65
      %p67 = scmp.eq.s32.totalorder %s41, 0
      %p68 = por %p66, %p67
      %s69 = ssub.s32 %s35, %s42
      %p70 = scmp.eq.s32.totalorder %s69, 0
      %s72 = sadd.s32 %s71, 1
      %s73 = scalar_select %p70, %s71, %s72
      %p76 = pneg %p70
      %p77 = scmp.eq.s32.totalorder %s35, 1
      %p78 = por %p76, %p77
      %p79 = scmp.ne.s32.totalorder %s71, %s74
      %p80 = scmp.eq.s32.totalorder %s35, 0
      %p81 = por %p79, %p80
      %p82 = scmp.ne.s32.totalorder %s71, %s74
      %p83 = scmp.eq.s32.totalorder %s40, 1
      %p84 = por %p82, %p83
      %p85 = scmp.ne.s32.totalorder %s74, %s75
      %p86 = scmp.eq.s32.totalorder %s40, 0
      %p87 = por %p85, %p86
      %p88 = scmp.ne.s32.totalorder %s74, %s75
      %p89 = scmp.eq.s32.totalorder %s41, 1
      %p90 = por %p88, %p89
      %p92 = scmp.ne.s32.totalorder %s75, %s91
      %p93 = scmp.eq.s32.totalorder %s41, 0
      %p94 = por %p92, %p93
      %s96 = sadd.s32 %s95, 1
      %p99 = scmp.eq.s32.totalorder %s35, 1
      %p100 = scmp.ne.s32.totalorder %s95, %s97
      %p101 = scmp.eq.s32.totalorder %s35, 0
      %p102 = por %p100, %p101
      %p103 = scmp.ne.s32.totalorder %s95, %s97
      %p104 = scmp.eq.s32.totalorder %s40, 1
      %p105 = por %p103, %p104
      %p106 = scmp.ne.s32.totalorder %s97, %s98
      %p107 = scmp.eq.s32.totalorder %s40, 0
      %p108 = por %p106, %p107
      %p109 = scmp.ne.s32.totalorder %s97, %s98
      %p110 = scmp.eq.s32.totalorder %s41, 1
      %p111 = por %p109, %p110
      %p113 = scmp.ne.s32.totalorder %s98, %s112
      %p114 = scmp.eq.s32.totalorder %s41, 0
      %p115 = por %p113, %p114
      %s117 = sadd.s32 %s116, 1
      %p120 = scmp.eq.s32.totalorder %s35, 1
      %p121 = scmp.ne.s32.totalorder %s116, %s118
      %p122 = scmp.eq.s32.totalorder %s35, 0
      %p123 = por %p121, %p122
      %p124 = scmp.ne.s32.totalorder %s116, %s118
      %p125 = scmp.eq.s32.totalorder %s40, 1
      %p126 = por %p124, %p125
      %p127 = scmp.ne.s32.totalorder %s118, %s119
      %p128 = scmp.eq.s32.totalorder %s40, 0
      %p129 = por %p127, %p128
      %p130 = scmp.ne.s32.totalorder %s118, %s119
      %p131 = scmp.eq.s32.totalorder %s41, 1
      %p132 = por %p130, %p131
      %p134 = scmp.ne.s32.totalorder %s119, %s133
      %p135 = scmp.eq.s32.totalorder %s41, 0
      %p136 = por %p134, %p135
      %s138 = sadd.s32 %s137, 1
      %p141 = scmp.eq.s32.totalorder %s35, 1
      %p142 = scmp.ne.s32.totalorder %s137, %s139
      %p143 = scmp.eq.s32.totalorder %s35, 0
      %p144 = por %p142, %p143
      %p145 = scmp.ne.s32.totalorder %s137, %s139
      %p146 = scmp.eq.s32.totalorder %s40, 1
      %p147 = por %p145, %p146
      %p148 = scmp.ne.s32.totalorder %s139, %s140
      %p149 = scmp.eq.s32.totalorder %s40, 0
      %p150 = por %p148, %p149
      %p151 = scmp.ne.s32.totalorder %s139, %s140
      %p152 = scmp.eq.s32.totalorder %s41, 1
      %p153 = por %p151, %p152
      %p155 = scmp.ne.s32.totalorder %s140, %s154
      %p156 = scmp.eq.s32.totalorder %s41, 0
      %p157 = por %p155, %p156
      %s159 = sadd.s32 %s158, 1
      %p162 = scmp.eq.s32.totalorder %s35, 1
      %p163 = scmp.ne.s32.totalorder %s158, %s160
      %p164 = scmp.eq.s32.totalorder %s35, 0
      %p165 = por %p163, %p164
      %p166 = scmp.ne.s32.totalorder %s158, %s160
      %p167 = scmp.eq.s32.totalorder %s40, 1
      %p168 = por %p166, %p167
      %p169 = scmp.ne.s32.totalorder %s160, %s161
      %p170 = scmp.eq.s32.totalorder %s40, 0
      %p171 = por %p169, %p170
      %p172 = scmp.ne.s32.totalorder %s160, %s161
      %p173 = scmp.eq.s32.totalorder %s41, 1
      %p174 = por %p172, %p173
      %p176 = scmp.ne.s32.totalorder %s161, %s175
      %p177 = scmp.eq.s32.totalorder %s41, 0
      %p178 = por %p176, %p177
      %s180 = sadd.s32 %s179, 1
      %p183 = scmp.eq.s32.totalorder %s35, 1
      %p184 = scmp.ne.s32.totalorder %s179, %s181
      %p185 = scmp.eq.s32.totalorder %s35, 0
      %p186 = por %p184, %p185
      %p187 = scmp.ne.s32.totalorder %s179, %s181
      %p188 = scmp.eq.s32.totalorder %s40, 1
      %p189 = por %p187, %p188
      %p190 = scmp.ne.s32.totalorder %s181, %s182
      %p191 = scmp.eq.s32.totalorder %s40, 0
      %p192 = por %p190, %p191
      %p193 = scmp.ne.s32.totalorder %s181, %s182
      %p194 = scmp.eq.s32.totalorder %s41, 1
      %p195 = por %p193, %p194
      %p197 = scmp.ne.s32.totalorder %s182, %s196
      %p198 = scmp.eq.s32.totalorder %s41, 0
      %p199 = por %p197, %p198
      %s201 = sadd.s32 %s200, 1
      %p204 = scmp.eq.s32.totalorder %s35, 1
      %p205 = scmp.ne.s32.totalorder %s200, %s202
      %p206 = scmp.eq.s32.totalorder %s35, 0
      %p207 = por %p205, %p206
      %p208 = scmp.ne.s32.totalorder %s200, %s202
      %p209 = scmp.eq.s32.totalorder %s40, 1
      %p210 = por %p208, %p209
      %p211 = scmp.ne.s32.totalorder %s202, %s203
      %p212 = scmp.eq.s32.totalorder %s40, 0
      %p213 = por %p211, %p212
      %p214 = scmp.ne.s32.totalorder %s202, %s203
      %p215 = scmp.eq.s32.totalorder %s41, 1
      %p216 = por %p214, %p215
      %p218 = scmp.ne.s32.totalorder %s203, %s217
      %p219 = scmp.eq.s32.totalorder %s41, 0
      %p220 = por %p218, %p219
      %s222 = sadd.s32 %s221, 1
      %p225 = scmp.eq.s32.totalorder %s35, 1
      %p226 = scmp.ne.s32.totalorder %s221, %s223
      %p227 = scmp.eq.s32.totalorder %s35, 0
      %p228 = por %p226, %p227
      %p229 = scmp.ne.s32.totalorder %s221, %s223
      %p230 = scmp.eq.s32.totalorder %s40, 1
      %p231 = por %p229, %p230
      %p232 = scmp.ne.s32.totalorder %s223, %s224
      %p233 = scmp.eq.s32.totalorder %s40, 0
      %p234 = por %p232, %p233
      %p235 = scmp.ne.s32.totalorder %s223, %s224
      %p236 = scmp.eq.s32.totalorder %s41, 1
      %p237 = por %p235, %p236
      %p239 = scmp.ne.s32.totalorder %s224, %s238
      %p240 = scmp.eq.s32.totalorder %s41, 0
      %p241 = por %p239, %p240
      %s243 = sadd.s32 %s242, 1
      %p246 = scmp.eq.s32.totalorder %s35, 1
      %p247 = scmp.ne.s32.totalorder %s242, %s244
      %p248 = scmp.eq.s32.totalorder %s35, 0
      %p249 = por %p247, %p248
      %p250 = scmp.ne.s32.totalorder %s242, %s244
      %p251 = scmp.eq.s32.totalorder %s40, 1
      %p252 = por %p250, %p251
      %p253 = scmp.ne.s32.totalorder %s244, %s245
      %p254 = scmp.eq.s32.totalorder %s40, 0
      %p255 = por %p253, %p254
      %p256 = scmp.ne.s32.totalorder %s244, %s245
      %p257 = scmp.eq.s32.totalorder %s41, 1
      %p258 = por %p256, %p257
      %p260 = scmp.ne.s32.totalorder %s245, %s259
      %p261 = scmp.eq.s32.totalorder %s41, 0
      %p262 = por %p260, %p261
      %s264 = sadd.s32 %s263, 1
      %p267 = scmp.eq.s32.totalorder %s35, 1
      %p268 = scmp.ne.s32.totalorder %s263, %s265
      %p269 = scmp.eq.s32.totalorder %s35, 0
      %p270 = por %p268, %p269
      %p271 = scmp.ne.s32.totalorder %s263, %s265
      %p272 = scmp.eq.s32.totalorder %s40, 1
      %p273 = por %p271, %p272
      %p274 = scmp.ne.s32.totalorder %s265, %s266
      %p275 = scmp.eq.s32.totalorder %s40, 0
      %p276 = por %p274, %p275
      %p277 = scmp.ne.s32.totalorder %s265, %s266
      %p278 = scmp.eq.s32.totalorder %s41, 1
      %p279 = por %p277, %p278
      %p281 = scmp.ne.s32.totalorder %s266, %s280
      %p282 = scmp.eq.s32.totalorder %s41, 0
      %p283 = por %p281, %p282
      %s285 = sadd.s32 %s284, 1
      %p288 = scmp.eq.s32.totalorder %s35, 1
      %p289 = scmp.ne.s32.totalorder %s284, %s286
      %p290 = scmp.eq.s32.totalorder %s35, 0
      %p291 = por %p289, %p290
      %p292 = scmp.ne.s32.totalorder %s284, %s286
      %p293 = scmp.eq.s32.totalorder %s40, 1
      %p294 = por %p292, %p293
      %p295 = scmp.ne.s32.totalorder %s286, %s287
      %p296 = scmp.eq.s32.totalorder %s40, 0
      %p297 = por %p295, %p296
      %p298 = scmp.ne.s32.totalorder %s286, %s287
      %p299 = scmp.eq.s32.totalorder %s41, 1
      %p300 = por %p298, %p299
      %p302 = scmp.ne.s32.totalorder %s287, %s301
      %p303 = scmp.eq.s32.totalorder %s41, 0
      %p304 = por %p302, %p303
      %s306 = sadd.s32 %s305, 1
      %p309 = scmp.eq.s32.totalorder %s35, 1
      %p310 = scmp.ne.s32.totalorder %s305, %s307
      %p311 = scmp.eq.s32.totalorder %s35, 0
      %p312 = por %p310, %p311
      %p313 = scmp.ne.s32.totalorder %s305, %s307
      %p314 = scmp.eq.s32.totalorder %s40, 1
      %p315 = por %p313, %p314
      %p316 = scmp.ne.s32.totalorder %s307, %s308
      %p317 = scmp.eq.s32.totalorder %s40, 0
      %p318 = por %p316, %p317
      %p319 = scmp.ne.s32.totalorder %s307, %s308
      %p320 = scmp.eq.s32.totalorder %s41, 1
      %p321 = por %p319, %p320
      %p323 = scmp.ne.s32.totalorder %s308, %s322
      %p324 = scmp.eq.s32.totalorder %s41, 0
      %p325 = por %p323, %p324
      %s327 = sadd.s32 %s326, 1
      %p330 = scmp.eq.s32.totalorder %s35, 1
      %p331 = scmp.ne.s32.totalorder %s326, %s328
      %p332 = scmp.eq.s32.totalorder %s35, 0
      %p333 = por %p331, %p332
      %p334 = scmp.ne.s32.totalorder %s326, %s328
      %p335 = scmp.eq.s32.totalorder %s40, 1
      %p336 = por %p334, %p335
      %p337 = scmp.ne.s32.totalorder %s328, %s329
      %p338 = scmp.eq.s32.totalorder %s40, 0
      %p339 = por %p337, %p338
      %p340 = scmp.ne.s32.totalorder %s328, %s329
      %p341 = scmp.eq.s32.totalorder %s41, 1
      %p342 = por %p340, %p341
      %p344 = scmp.ne.s32.totalorder %s329, %s343
      %p345 = scmp.eq.s32.totalorder %s41, 0
      %p346 = por %p344, %p345
      %s348 = sadd.s32 %s347, 1
      %p351 = scmp.eq.s32.totalorder %s35, 1
      %p352 = scmp.ne.s32.totalorder %s347, %s349
      %p353 = scmp.eq.s32.totalorder %s35, 0
      %p354 = por %p352, %p353
      %p355 = scmp.ne.s32.totalorder %s347, %s349
      %p356 = scmp.eq.s32.totalorder %s40, 1
      %p357 = por %p355, %p356
      %p358 = scmp.ne.s32.totalorder %s349, %s350
      %p359 = scmp.eq.s32.totalorder %s40, 0
      %p360 = por %p358, %p359
      %p361 = scmp.ne.s32.totalorder %s349, %s350
      %p362 = scmp.eq.s32.totalorder %s41, 1
      %p363 = por %p361, %p362
      %p365 = scmp.ne.s32.totalorder %s350, %s364
      %p366 = scmp.eq.s32.totalorder %s41, 0
      %p367 = por %p365, %p366
      %s369 = sadd.s32 %s368, 1
      %p372 = scmp.eq.s32.totalorder %s35, 1
      %p373 = scmp.ne.s32.totalorder %s368, %s370
      %p374 = scmp.eq.s32.totalorder %s35, 0
      %p375 = por %p373, %p374
      %p376 = scmp.ne.s32.totalorder %s368, %s370
      %p377 = scmp.eq.s32.totalorder %s40, 1
      %p378 = por %p376, %p377
      %p379 = scmp.ne.s32.totalorder %s370, %s371
      %p380 = scmp.eq.s32.totalorder %s40, 0
      %p381 = por %p379, %p380
      %p382 = scmp.ne.s32.totalorder %s370, %s371
      %p383 = scmp.eq.s32.totalorder %s41, 1
      %p384 = por %p382, %p383
      %p386 = scmp.ne.s32.totalorder %s371, %s385
      %p387 = scmp.eq.s32.totalorder %s41, 0
      %p388 = por %p386, %p387
      %s390 = sadd.s32 %s389, 1
      %p393 = scmp.eq.s32.totalorder %s35, 1
      %p394 = scmp.ne.s32.totalorder %s389, %s391
      %p395 = scmp.eq.s32.totalorder %s35, 0
      %p396 = por %p394, %p395
      %p397 = scmp.ne.s32.totalorder %s389, %s391
      %p398 = scmp.eq.s32.totalorder %s40, 1
      %p399 = por %p397, %p398
      %p400 = scmp.ne.s32.totalorder %s391, %s392
      %p401 = scmp.eq.s32.totalorder %s40, 0
      %p402 = por %p400, %p401
      %p403 = scmp.ne.s32.totalorder %s391, %s392
      %p404 = scmp.eq.s32.totalorder %s41, 1
      %p405 = por %p403, %p404
      %p407 = scmp.ne.s32.totalorder %s392, %s406
      %p408 = scmp.eq.s32.totalorder %s41, 0
      %p409 = por %p407, %p408
      %s411 = sadd.s32 %s410, 1
      %p414 = scmp.eq.s32.totalorder %s35, 1
      %p415 = scmp.ne.s32.totalorder %s410, %s412
      %p416 = scmp.eq.s32.totalorder %s35, 0
      %p417 = por %p415, %p416
      %p418 = scmp.ne.s32.totalorder %s410, %s412
      %p419 = scmp.eq.s32.totalorder %s40, 1
      %p420 = por %p418, %p419
      %p421 = scmp.ne.s32.totalorder %s412, %s413
      %p422 = scmp.eq.s32.totalorder %s40, 0
      %p423 = por %p421, %p422
      %p424 = scmp.ne.s32.totalorder %s412, %s413
      %p425 = scmp.eq.s32.totalorder %s41, 1
      %p426 = por %p424, %p425
      %p428 = scmp.ne.s32.totalorder %s413, %s427
      %p429 = scmp.eq.s32.totalorder %s41, 0
      %p430 = por %p428, %p429
      %s432 = sadd.s32 %s431, 1
      %p435 = scmp.eq.s32.totalorder %s35, 1
      %p436 = scmp.ne.s32.totalorder %s431, %s433
      %p437 = scmp.eq.s32.totalorder %s35, 0
      %p438 = por %p436, %p437
      %p439 = scmp.ne.s32.totalorder %s431, %s433
      %p440 = scmp.eq.s32.totalorder %s40, 1
      %p441 = por %p439, %p440
      %p442 = scmp.ne.s32.totalorder %s433, %s434
      %p443 = scmp.eq.s32.totalorder %s40, 0
      %p444 = por %p442, %p443
      %p445 = scmp.ne.s32.totalorder %s433, %s434
      %p446 = scmp.eq.s32.totalorder %s41, 1
      %p447 = por %p445, %p446
      %p449 = scmp.ne.s32.totalorder %s434, %s448
      %p450 = scmp.eq.s32.totalorder %s41, 0
      %p451 = por %p449, %p450
      %s453 = sadd.s32 %s452, 1
      %p456 = scmp.eq.s32.totalorder %s35, 1
      %p457 = scmp.ne.s32.totalorder %s452, %s454
      %p458 = scmp.eq.s32.totalorder %s35, 0
      %p459 = por %p457, %p458
      %p460 = scmp.ne.s32.totalorder %s452, %s454
      %p461 = scmp.eq.s32.totalorder %s40, 1
      %p462 = por %p460, %p461
      %p463 = scmp.ne.s32.totalorder %s454, %s455
      %p464 = scmp.eq.s32.totalorder %s40, 0
      %p465 = por %p463, %p464
      %p466 = scmp.ne.s32.totalorder %s454, %s455
      %p467 = scmp.eq.s32.totalorder %s41, 1
      %p468 = por %p466, %p467
      %p470 = scmp.ne.s32.totalorder %s455, %s469
      %p471 = scmp.eq.s32.totalorder %s41, 0
      %p472 = por %p470, %p471
      %s474 = sadd.s32 %s473, 1
      %p477 = scmp.eq.s32.totalorder %s35, 1
      %p478 = scmp.ne.s32.totalorder %s473, %s475
      %p479 = scmp.eq.s32.totalorder %s35, 0
      %p480 = por %p478, %p479
      %p481 = scmp.ne.s32.totalorder %s473, %s475
      %p482 = scmp.eq.s32.totalorder %s40, 1
      %p483 = por %p481, %p482
      %p484 = scmp.ne.s32.totalorder %s475, %s476
      %p485 = scmp.eq.s32.totalorder %s40, 0
      %p486 = por %p484, %p485
      %p487 = scmp.ne.s32.totalorder %s475, %s476
      %p488 = scmp.eq.s32.totalorder %s41, 1
      %p489 = por %p487, %p488
      %p491 = scmp.ne.s32.totalorder %s476, %s490
      %p492 = scmp.eq.s32.totalorder %s41, 0
      %p493 = por %p491, %p492
      %s495 = sadd.s32 %s494, 1
      %p498 = scmp.eq.s32.totalorder %s35, 1
      %p499 = scmp.ne.s32.totalorder %s494, %s496
      %p500 = scmp.eq.s32.totalorder %s35, 0
      %p501 = por %p499, %p500
      %p502 = scmp.ne.s32.totalorder %s494, %s496
      %p503 = scmp.eq.s32.totalorder %s40, 1
      %p504 = por %p502, %p503
      %p505 = scmp.ne.s32.totalorder %s496, %s497
      %p506 = scmp.eq.s32.totalorder %s40, 0
      %p507 = por %p505, %p506
      %p508 = scmp.ne.s32.totalorder %s496, %s497
      %p509 = scmp.eq.s32.totalorder %s41, 1
      %p510 = por %p508, %p509
      %p512 = scmp.ne.s32.totalorder %s497, %s511
      %p513 = scmp.eq.s32.totalorder %s41, 0
      %p514 = por %p512, %p513
      %s516 = sadd.s32 %s515, 1
      %p519 = scmp.eq.s32.totalorder %s35, 1
      %p520 = scmp.ne.s32.totalorder %s515, %s517
      %p521 = scmp.eq.s32.totalorder %s35, 0
      %p522 = por %p520, %p521
      %p523 = scmp.ne.s32.totalorder %s515, %s517
      %p524 = scmp.eq.s32.totalorder %s40, 1
      %p525 = por %p523, %p524
      %p526 = scmp.ne.s32.totalorder %s517, %s518
      %p527 = scmp.eq.s32.totalorder %s40, 0
      %p528 = por %p526, %p527
      %p529 = scmp.ne.s32.totalorder %s517, %s518
      %p530 = scmp.eq.s32.totalorder %s41, 1
      %p531 = por %p529, %p530
      %p533 = scmp.ne.s32.totalorder %s518, %s532
      %p534 = scmp.eq.s32.totalorder %s41, 0
      %p535 = por %p533, %p534
      %s537 = sadd.s32 %s536, 1
      %p540 = scmp.eq.s32.totalorder %s35, 1
      %p541 = scmp.ne.s32.totalorder %s536, %s538
      %p542 = scmp.eq.s32.totalorder %s35, 0
      %p543 = por %p541, %p542
      %p544 = scmp.ne.s32.totalorder %s536, %s538
      %p545 = scmp.eq.s32.totalorder %s40, 1
      %p546 = por %p544, %p545
      %p547 = scmp.ne.s32.totalorder %s538, %s539
      %p548 = scmp.eq.s32.totalorder %s40, 0
      %p549 = por %p547, %p548
      %p550 = scmp.ne.s32.totalorder %s538, %s539
      %p551 = scmp.eq.s32.totalorder %s41, 1
      %p552 = por %p550, %p551
      %p554 = scmp.ne.s32.totalorder %s539, %s553
      %p555 = scmp.eq.s32.totalorder %s41, 0
      %p556 = por %p554, %p555
      %s557 = ssub.s32 %s35, %s42
      %p558 = scmp.eq.s32.totalorder %s557, 0
      %s560 = sadd.s32 %s559, 1
      %s561 = scalar_select %p558, %s559, %s560
      %p564 = pneg %p558
      %p565 = scmp.eq.s32.totalorder %s35, 1
      %p566 = por %p564, %p565
      %p567 = scmp.ne.s32.totalorder %s559, %s562
      %p568 = scmp.eq.s32.totalorder %s35, 0
      %p569 = por %p567, %p568
      %p570 = scmp.ne.s32.totalorder %s559, %s562
      %p571 = scmp.eq.s32.totalorder %s40, 1
      %p572 = por %p570, %p571
      %p573 = scmp.ne.s32.totalorder %s562, %s563
      %p574 = scmp.eq.s32.totalorder %s40, 0
      %p575 = por %p573, %p574
      %p576 = scmp.ne.s32.totalorder %s562, %s563
      %p577 = scmp.eq.s32.totalorder %s41, 1
      %p578 = por %p576, %p577
      %p580 = scmp.ne.s32.totalorder %s563, %s579
      %p581 = scmp.eq.s32.totalorder %s41, 0
      %p582 = por %p580, %p581
      %p583 = scmp.le.s32.totalorder 1, %s35
      %p584 = scmp.lt.s32.totalorder %s35, 3
      %p585 = pnand %p583, %p584
      %p586 = pneg %p585
      // Predicated region
      $region9: #{tpu_custom_call.1} parent=5 // pred_check
        _
      $region10: #{tpu_custom_call.1} parent=5 // pred_check_branch
        %588 = sbr.rel (%p585) target = $region12
      $region11: #{tpu_custom_call.1} parent=5 // pred_region
        %s589 = ssub.s32 %s35, 1
        // Predicated region
        $region13: #{tpu_custom_call.1} parent=11 // pred_check
          %p590 = pneg %p108
        $region14: #{tpu_custom_call.1} parent=11 // pred_check_branch
          %592 = sbr.rel (%p590) target = $region16
        $region15: #{tpu_custom_call.1} parent=11 // pred_region
          _
        $region16: #{tpu_custom_call.1} parent=11 // pred_fallthru
          _
        // Predicated region
        $region17: #{tpu_custom_call.1} parent=11 // pred_check
          %p593 = pneg %p129
        $region18: #{tpu_custom_call.1} parent=11 // pred_check_branch
          %595 = sbr.rel (%p593) target = $region20
        $region19: #{tpu_custom_call.1} parent=11 // pred_region
          _
        $region20: #{tpu_custom_call.1} parent=11 // pred_fallthru
          _
        // Predicated region
        $region21: #{tpu_custom_call.1} parent=11 // pred_check
          %p596 = pneg %p150
        $region22: #{tpu_custom_call.1} parent=11 // pred_check_branch
          %598 = sbr.rel (%p596) target = $region24
        $region23: #{tpu_custom_call.1} parent=11 // pred_region
          _
        $region24: #{tpu_custom_call.1} parent=11 // pred_fallthru
          _
        // Predicated region
        $region25: #{tpu_custom_call.1} parent=11 // pred_check
          %p599 = pneg %p171
        $region26: #{tpu_custom_call.1} parent=11 // pred_check_branch
          %601 = sbr.rel (%p599) target = $region28
        $region27: #{tpu_custom_call.1} parent=11 // pred_region
          _
        $region28: #{tpu_custom_call.1} parent=11 // pred_fallthru
          _
        // Predicated region
        $region29: #{tpu_custom_call.1} parent=11 // pred_check
          %p602 = pneg %p192
        $region30: #{tpu_custom_call.1} parent=11 // pred_check_branch
          %604 = sbr.rel (%p602) target = $region32
        $region31: #{tpu_custom_call.1} parent=11 // pred_region
          _
        $region32: #{tpu_custom_call.1} parent=11 // pred_fallthru
          _
        // Predicated region
        $region33: #{tpu_custom_call.1} parent=11 // pred_check
          %p605 = pneg %p213
        $region34: #{tpu_custom_call.1} parent=11 // pred_check_branch
          %607 = sbr.rel (%p605) target = $region36
        $region35: #{tpu_custom_call.1} parent=11 // pred_region
          _
        $region36: #{tpu_custom_call.1} parent=11 // pred_fallthru
          _
        // Predicated region
        $region37: #{tpu_custom_call.1} parent=11 // pred_check
          %p608 = pneg %p234
        $region38: #{tpu_custom_call.1} parent=11 // pred_check_branch
          %610 = sbr.rel (%p608) target = $region40
        $region39: #{tpu_custom_call.1} parent=11 // pred_region
          _
        $region40: #{tpu_custom_call.1} parent=11 // pred_fallthru
          _
        // Predicated region
        $region41: #{tpu_custom_call.1} parent=11 // pred_check
          %p611 = pneg %p255
        $region42: #{tpu_custom_call.1} parent=11 // pred_check_branch
          %613 = sbr.rel (%p611) target = $region44
        $region43: #{tpu_custom_call.1} parent=11 // pred_region
          _
        $region44: #{tpu_custom_call.1} parent=11 // pred_fallthru
          _
        // Predicated region
        $region45: #{tpu_custom_call.1} parent=11 // pred_check
          %p614 = pneg %p276
        $region46: #{tpu_custom_call.1} parent=11 // pred_check_branch
          %616 = sbr.rel (%p614) target = $region48
        $region47: #{tpu_custom_call.1} parent=11 // pred_region
          _
        $region48: #{tpu_custom_call.1} parent=11 // pred_fallthru
          _
        // Predicated region
        $region49: #{tpu_custom_call.1} parent=11 // pred_check
          %p617 = pneg %p297
        $region50: #{tpu_custom_call.1} parent=11 // pred_check_branch
          %619 = sbr.rel (%p617) target = $region52
        $region51: #{tpu_custom_call.1} parent=11 // pred_region
          _
        $region52: #{tpu_custom_call.1} parent=11 // pred_fallthru
          _
        // Predicated region
        $region53: #{tpu_custom_call.1} parent=11 // pred_check
          %p620 = pneg %p318
        $region54: #{tpu_custom_call.1} parent=11 // pred_check_branch
          %622 = sbr.rel (%p620) target = $region56
        $region55: #{tpu_custom_call.1} parent=11 // pred_region
          _
        $region56: #{tpu_custom_call.1} parent=11 // pred_fallthru
          _
        // Predicated region
        $region57: #{tpu_custom_call.1} parent=11 // pred_check
          %p623 = pneg %p339
        $region58: #{tpu_custom_call.1} parent=11 // pred_check_branch
          %625 = sbr.rel (%p623) target = $region60
        $region59: #{tpu_custom_call.1} parent=11 // pred_region
          _
        $region60: #{tpu_custom_call.1} parent=11 // pred_fallthru
          _
        // Predicated region
        $region61: #{tpu_custom_call.1} parent=11 // pred_check
          %p626 = pneg %p360
        $region62: #{tpu_custom_call.1} parent=11 // pred_check_branch
          %628 = sbr.rel (%p626) target = $region64
        $region63: #{tpu_custom_call.1} parent=11 // pred_region
          _
        $region64: #{tpu_custom_call.1} parent=11 // pred_fallthru
          _
        // Predicated region
        $region65: #{tpu_custom_call.1} parent=11 // pred_check
          %p629 = pneg %p381
        $region66: #{tpu_custom_call.1} parent=11 // pred_check_branch
          %631 = sbr.rel (%p629) target = $region68
        $region67: #{tpu_custom_call.1} parent=11 // pred_region
          _
        $region68: #{tpu_custom_call.1} parent=11 // pred_fallthru
          _
        // Predicated region
        $region69: #{tpu_custom_call.1} parent=11 // pred_check
          %p632 = pneg %p402
        $region70: #{tpu_custom_call.1} parent=11 // pred_check_branch
          %634 = sbr.rel (%p632) target = $region72
        $region71: #{tpu_custom_call.1} parent=11 // pred_region
          _
        $region72: #{tpu_custom_call.1} parent=11 // pred_fallthru
          _
        // Predicated region
        $region73: #{tpu_custom_call.1} parent=11 // pred_check
          %p635 = pneg %p423
        $region74: #{tpu_custom_call.1} parent=11 // pred_check_branch
          %637 = sbr.rel (%p635) target = $region76
        $region75: #{tpu_custom_call.1} parent=11 // pred_region
          _
        $region76: #{tpu_custom_call.1} parent=11 // pred_fallthru
          _
        // Predicated region
        $region77: #{tpu_custom_call.1} parent=11 // pred_check
          %p638 = pneg %p444
        $region78: #{tpu_custom_call.1} parent=11 // pred_check_branch
          %640 = sbr.rel (%p638) target = $region80
        $region79: #{tpu_custom_call.1} parent=11 // pred_region
          _
        $region80: #{tpu_custom_call.1} parent=11 // pred_fallthru
          _
        // Predicated region
        $region81: #{tpu_custom_call.1} parent=11 // pred_check
          %p641 = pneg %p465
        $region82: #{tpu_custom_call.1} parent=11 // pred_check_branch
          %643 = sbr.rel (%p641) target = $region84
        $region83: #{tpu_custom_call.1} parent=11 // pred_region
          _
        $region84: #{tpu_custom_call.1} parent=11 // pred_fallthru
          _
        // Predicated region
        $region85: #{tpu_custom_call.1} parent=11 // pred_check
          %p644 = pneg %p486
        $region86: #{tpu_custom_call.1} parent=11 // pred_check_branch
          %646 = sbr.rel (%p644) target = $region88
        $region87: #{tpu_custom_call.1} parent=11 // pred_region
          _
        $region88: #{tpu_custom_call.1} parent=11 // pred_fallthru
          _
        // Predicated region
        $region89: #{tpu_custom_call.1} parent=11 // pred_check
          %p647 = pneg %p507
        $region90: #{tpu_custom_call.1} parent=11 // pred_check_branch
          %649 = sbr.rel (%p647) target = $region92
        $region91: #{tpu_custom_call.1} parent=11 // pred_region
          _
        $region92: #{tpu_custom_call.1} parent=11 // pred_fallthru
          _
        // Predicated region
        $region93: #{tpu_custom_call.1} parent=11 // pred_check
          %p650 = pneg %p528
        $region94: #{tpu_custom_call.1} parent=11 // pred_check_branch
          %652 = sbr.rel (%p650) target = $region96
        $region95: #{tpu_custom_call.1} parent=11 // pred_region
          _
        $region96: #{tpu_custom_call.1} parent=11 // pred_fallthru
          _
        // Predicated region
        $region97: #{tpu_custom_call.1} parent=11 // pred_check
          %p653 = pneg %p549
        $region98: #{tpu_custom_call.1} parent=11 // pred_check_branch
          %655 = sbr.rel (%p653) target = $region100
        $region99: #{tpu_custom_call.1} parent=11 // pred_region
          _
        $region100: #{tpu_custom_call.1} parent=11 // pred_fallthru
          _
      $region12: #{tpu_custom_call.1} parent=5 // pred_fallthru
        _
      %p656 = scmp.lt.s32.totalorder %s35, 2
      // Predicated region
      $region101: #{tpu_custom_call.1} parent=5 // pred_check
        %p657 = pneg %p656
      $region102: #{tpu_custom_call.1} parent=5 // pred_check_branch
        %659 = sbr.rel (%p657) target = $region104
      $region103: #{tpu_custom_call.1} parent=5 // pred_region
        // Predicated region
        $region105: #{tpu_custom_call.1} parent=103 // pred_check
          %p660 = pneg %p55
        $region106: #{tpu_custom_call.1} parent=103 // pred_check_branch
          %662 = sbr.rel (%p660) target = $region108
        $region107: #{tpu_custom_call.1} parent=103 // pred_region
          %p663 = scmp.lt.s32.totalorder %s35, 1
          %s664 = scalar_select %p663, %s35, 1
          %s665 = smul.addr %s664, 2
          %s666 = smul.addr %s665, 8
          %s667 = scalar_lea.vmem %s0, %s666
        $region108: #{tpu_custom_call.1} parent=103 // pred_fallthru
          _
        // Predicated region
        $region109: #{tpu_custom_call.1} parent=103 // pred_check
          %p668 = pneg %p81
        $region110: #{tpu_custom_call.1} parent=103 // pred_check_branch
          %670 = sbr.rel (%p668) target = $region112
        $region111: #{tpu_custom_call.1} parent=103 // pred_region
          %p671 = scmp.lt.s32.totalorder %s35, 1
          %s672 = scalar_select %p671, %s35, 1
          %s673 = smul.addr %s672, 4
          %s674 = smul.addr %s673, 8
          %s675 = scalar_lea.vmem %s1, %s674
        $region112: #{tpu_custom_call.1} parent=103 // pred_fallthru
          _
      $region104: #{tpu_custom_call.1} parent=5 // pred_fallthru
        _
      %p676 = scmp.le.s32.totalorder 1, %s35
      %p677 = scmp.lt.s32.totalorder %s35, 3
      %p678 = pnand %p676, %p677
      %p679 = pneg %p678
      // Predicated region
      $region113: #{tpu_custom_call.1} parent=5 // pred_check
        _
      $region114: #{tpu_custom_call.1} parent=5 // pred_check_branch
        %681 = sbr.rel (%p678) target = $region116
      $region115: #{tpu_custom_call.1} parent=5 // pred_region
        %s682 = ssub.s32 %s35, 1
        %p683 = scmp.lt.s32.totalorder %s40, 1
        %s684 = scalar_select %p683, %s40, 1
        %s685 = smul.addr %s684, 2
        %s686 = smul.addr %s685, 8
        %s687 = scalar_lea.vmem %s0, %s686
        %p688 = pneg %p61
        %p689 = pneg %p58
        %p690 = scmp.lt.s32.totalorder %s40, 1
        %s691 = scalar_select %p690, %s40, 1
        %s692 = smul.addr %s691, 4
        %s693 = smul.addr %s692, 8
        %s694 = scalar_lea.vmem %s1, %s693
        %p695 = pneg %p87
        %p696 = pneg %p84
        %p697 = pneg %p108
        %p698 = pneg %p105
        %p699 = pneg %p129
        %p700 = pneg %p126
        %p701 = pneg %p150
        %p702 = pneg %p147
        %p703 = pneg %p171
        %p704 = pneg %p168
        %p705 = pneg %p192
        %p706 = pneg %p189
        %p707 = pneg %p213
        %p708 = pneg %p210
        %p709 = pneg %p234
        %p710 = pneg %p231
        %p711 = pneg %p255
        %p712 = pneg %p252
        %p713 = pneg %p276
        %p714 = pneg %p273
        %p715 = pneg %p297
        %p716 = pneg %p294
        %p717 = pneg %p318
        %p718 = pneg %p315
        %p719 = pneg %p339
        %p720 = pneg %p336
        %p721 = pneg %p360
        %p722 = pneg %p357
        %p723 = pneg %p381
        %p724 = pneg %p378
        %p725 = pneg %p402
        %p726 = pneg %p399
        %p727 = pneg %p423
        %p728 = pneg %p420
        %p729 = pneg %p444
        %p730 = pneg %p441
        %p731 = pneg %p465
        %p732 = pneg %p462
        %p733 = pneg %p486
        %p734 = pneg %p483
        %p735 = pneg %p507
        %p736 = pneg %p504
        %p737 = pneg %p528
        %p738 = pneg %p525
        %p739 = pneg %p549
        %p740 = pneg %p546
        %p741 = pneg %p575
        %p742 = pneg %p572
        %s743 = sand.u32 %s562, 1
        %s744 = scalar_lea.sflag [#allocation4], %s743
        %s745 = sand.u32 %s562, 1
        %s746 = smul.addr %s745, 32
        %s747 = scalar_lea.vmem [#allocation3], %s746
        %p748 = scmp.lt.s32.totalorder %s40, 1
        %s749 = scalar_select %p748, %s40, 1
        %s750 = smul.addr %s749, 2
        %s751 = smul.addr %s750, 8
        %s752 = scalar_lea.vmem %s0, %s751
        %p753 = scmp.lt.s32.totalorder %s40, 1
        %s754 = scalar_select %p753, %s40, 1
        %s755 = smul.addr %s754, 4
        %s756 = smul.addr %s755, 8
        %s757 = scalar_lea.vmem %s1, %s756
        %v758 = vlaneseq
        %v759 = vand.u32 %v758, 127
        %v760 = vadd.s32 %v759, 128
        %vm761 = vcmp.lt.s32.totalorder %v759, 0
        %v762 = vsub.s32 0, %v759
        %v763 = vsel %vm761, %v762, %v759
        %v764 = vshrl.u32 %v763, 4
        %v765 = vand.u32 %v763, 15
        %v766 = vsub.s32 0, %v765
        %v767 = vsel %vm761, %v766, %v765
        %vm768 = vcmp.lt.s32.totalorder %v760, 0
        %v769 = vsub.s32 0, %v760
        %v770 = vsel %vm768, %v769, %v760
        %v771 = vshrl.u32 %v770, 4
        %v772 = vand.u32 %v770, 15
        %v773 = vsub.s32 0, %v772
        %v774 = vsel %vm768, %v773, %v772
        %vm775 = vcmp.ne.s32.totalorder %v767, 0
        %vm776 = vcmp.ne.s32.totalorder %v774, 0
        %vm777 = vcmp.lt.s32.totalorder %v767, 0
        %vm778 = vcmp.lt.s32.totalorder %v774, 0
        %vm779 = vmand %vm777, %vm775
        %vm780 = vmand %vm778, %vm776
        %v781 = vadd.s32 %v767, 16
        %v782 = vadd.s32 %v774, 16
        %v783 = vsel %vm779, %v781, %v767
        %v784 = vsel %vm780, %v782, %v774
        %vm785 = vcmp.gt.s32.totalorder %v783, 0
        %vm786 = vcmp.gt.s32.totalorder %v784, 0
        %v787 = vsel %vm785, 1, 0
        %v788 = vsel %vm786, 1, 0
        %v789 = vcvt.s32.f32 %v787
        %v790 = vcvt.s32.f32 %v788
        %vm791 = vcmp.lt.s32.totalorder %v783, 15
        %vm792 = vcmp.lt.s32.totalorder %v784, 15
        %v793 = vsel %vm791, 1, 0
        %v794 = vsel %vm792, 1, 0
        %v795 = vcvt.s32.f32 %v793
        %v796 = vcvt.s32.f32 %v794
        %v797 = vld [vmem:[%s752] sm:$0xff]
        %v798 = vld [vmem:[%s752 + $0x8] sm:$0xff]
        %v799 = vld [vmem:[%s2] sm:$0xff]
        %v800 = vld [vmem:[%s2 + $0x8] sm:$0xff]
        %v801 = vld [vmem:[%s2 + $0x10] sm:$0xff]
        %v802 = vld [vmem:[%s3] sm:$0xff]
        %v803 = vld [vmem:[%s3 + $0x8] sm:$0xff]
        %v804 = vld [vmem:[%s3 + $0x10] sm:$0xff]
        %806 = vset.pattern.permute.xlu0 0
        %807 = vperm.xlu0 %806, %v802
        %v808 = vpop.permute.xlu0 %807
        %811 = vset.pattern.permute.xlu0 0
        %812 = vperm.xlu0 %811, %v803
        %v813 = vpop.permute.xlu0 %812
        %816 = vset.pattern.permute.xlu0 0
        %817 = vperm.xlu0 %816, %v804
        %v818 = vpop.permute.xlu0 %817
        %vm820 = vcmask 64512
        %v822 = vsel %vm820, %v799, 0
        %v825 = vsel %vm820, %v800, 0
        %v828 = vsel %vm820, %v801, 0
        %v830 = vand.u32 %v798, 4294901760
        %831 = vmatprep.subr.mxu0 %v830
        %v832 = vand.u32 %v797, 4294901760
        %833 = vmatpush1.msra.mxu0 %v832
        %834 = vmatprep.subr.mxu0 0.0
        %835 = vmatpush1.msra.mxu0 0.0
        %836 = vmatprep.subr.mxu0 0.0
        %837 = vmatpush1.msra.mxu0 0.0
        %838 = vmatprep.subr.mxu0 0.0
        %839 = vmatpush1.msra.mxu0 0.0
        %840 = vmatprep.subr.mxu0 0.0
        %841 = vmatpush1.msra.mxu0 0.0
        %842 = vmatprep.subr.mxu0 0.0
        %843 = vmatpush1.msra.mxu0 0.0
        %844 = vmatprep.subr.mxu0 0.0
        %845 = vmatpush1.msra.mxu0 0.0
        %846 = vmatprep.subr.mxu0 0.0
        %847 = vmatpush1.msra.mxu0 0.0
        %848 = vmatprep.subr.mxu0 0.0
        %849 = vmatpush1.msra.mxu0 0.0
        %850 = vmatprep.subr.mxu0 0.0
        %851 = vmatpush1.msra.mxu0 0.0
        %852 = vmatprep.subr.mxu0 0.0
        %853 = vmatpush1.msra.mxu0 0.0
        %854 = vmatprep.subr.mxu0 0.0
        %855 = vmatpush1.msra.mxu0 0.0
        %856 = vmatprep.subr.mxu0 0.0
        %857 = vmatpush1.msra.mxu0 0.0
        %858 = vmatprep.subr.mxu0 0.0
        %859 = vmatpush1.msra.mxu0 0.0
        %860 = vmatprep.subr.mxu0 0.0
        %861 = vmatpush1.msra.mxu0 0.0
        %862 = vmatprep.subr.mxu0 0.0
        %863 = vmatpush1.msra.mxu0 0.0
        %864 = vmatprep.subr.mxu0 0.0
        %865 = vmatpush1.msra.mxu0 0.0
        %866 = vmatprep.subr.mxu0 0.0
        %867 = vmatpush1.msra.mxu0 0.0
        %868 = vmatprep.subr.mxu0 0.0
        %869 = vmatpush1.msra.mxu0 0.0
        %870 = vmatprep.subr.mxu0 0.0
        %871 = vmatpush1.msra.mxu0 0.0
        %872 = vmatprep.subr.mxu0 0.0
        %873 = vmatpush1.msra.mxu0 0.0
        %874 = vmatprep.subr.mxu0 0.0
        %875 = vmatpush1.msra.mxu0 0.0
        %876 = vmatprep.subr.mxu0 0.0
        %877 = vmatpush1.msra.mxu0 0.0
        %878 = vmatprep.subr.mxu0 0.0
        %879 = vmatpush1.msra.mxu0 0.0
        %880 = vmatprep.subr.mxu0 0.0
        %881 = vmatpush1.msra.mxu0 0.0
        %882 = vmatprep.subr.mxu0 0.0
        %883 = vmatpush1.msra.mxu0 0.0
        %884 = vmatprep.subr.mxu0 0.0
        %885 = vmatpush1.msra.mxu0 0.0
        %886 = vmatprep.subr.mxu0 0.0
        %887 = vmatpush1.msra.mxu0 0.0
        %888 = vmatprep.subr.mxu0 0.0
        %889 = vmatpush1.msra.mxu0 0.0
        %890 = vmatprep.subr.mxu0 0.0
        %891 = vmatpush1.msra.mxu0 0.0
        %892 = vmatprep.subr.mxu0 0.0
        %893 = vmatpush1.msra.mxu0 0.0
        %894 = vmatprep.subr.mxu0 0.0
        %895 = vmatpush1.msra.mxu0 0.0
        %896 = vmatprep.mubr.f32.mxu0 0.0
        %v897 = vand.u32 %v822, 4294901760
        %v898 = vsub.f32 %v822, %v897
        %v899 = vand.u32 %v898, 4294901760
        %v900 = vsub.f32 %v898, %v899
        %v901 = vand.u32 %v900, 4294901760
        %902 = vmatmul.mubr.f32.gmra.mrb[0].mxu0 %v901
        %v903 = vpop.f32.mrb[0].mxu0
        %v904 = vadd.f32 %v808, %v903
        %v905 = vpop.f32.mrb[0].mxu0
        %v906 = vadd.f32 %v808, %v905
        %907 = vmatprep.mubr.f32.mxu0 0.0
        %v908 = vand.u32 %v825, 4294901760
        %v909 = vsub.f32 %v825, %v908
        %v910 = vand.u32 %v909, 4294901760
        %v911 = vsub.f32 %v909, %v910
        %v912 = vand.u32 %v911, 4294901760
        %913 = vmatmul.mubr.f32.gmra.mrb[0].mxu0 %v912
        %v914 = vpop.f32.mrb[0].mxu0
        %v915 = vadd.f32 %v813, %v914
        %v916 = vpop.f32.mrb[0].mxu0
        %v917 = vadd.f32 %v813, %v916
        %918 = vmatprep.mubr.f32.mxu0 0.0
        %v919 = vand.u32 %v828, 4294901760
        %v920 = vsub.f32 %v828, %v919
        %v921 = vand.u32 %v920, 4294901760
        %v922 = vsub.f32 %v920, %v921
        %v923 = vand.u32 %v922, 4294901760
        %924 = vmatmul.mubr.f32.gmra.mrb[0].mxu0 %v923
        %v925 = vpop.f32.mrb[0].mxu0
        %v926 = vadd.f32 %v818, %v925
        %v927 = vpop.f32.mrb[0].mxu0
        %v928 = vadd.f32 %v818, %v927
        %929 = vdwg.mxu0
        %v930 = vand.u32 %v798, 4294901760
        %v931 = vsub.f32 %v798, %v930
        %v932 = vand.u32 %v931, 4294901760
        %v933 = vsub.f32 %v931, %v932
        %v934 = vand.u32 %v933, 4294901760
        %935 = vmatprep.subr.mxu0 %v934
        %v936 = vand.u32 %v797, 4294901760
        %v937 = vsub.f32 %v797, %v936
        %v938 = vand.u32 %v937, 4294901760
        %v939 = vsub.f32 %v937, %v938
        %v940 = vand.u32 %v939, 4294901760
        %941 = vmatpush1.msra.mxu0 %v940
        %942 = vmatprep.subr.mxu0 0.0
        %943 = vmatpush1.msra.mxu0 0.0
        %944 = vmatprep.subr.mxu0 0.0
        %945 = vmatpush1.msra.mxu0 0.0
        %946 = vmatprep.subr.mxu0 0.0
        %947 = vmatpush1.msra.mxu0 0.0
        %948 = vmatprep.subr.mxu0 0.0
        %949 = vmatpush1.msra.mxu0 0.0
        %950 = vmatprep.subr.mxu0 0.0
        %951 = vmatpush1.msra.mxu0 0.0
        %952 = vmatprep.subr.mxu0 0.0
        %953 = vmatpush1.msra.mxu0 0.0
        %954 = vmatprep.subr.mxu0 0.0
        %955 = vmatpush1.msra.mxu0 0.0
        %956 = vmatprep.subr.mxu0 0.0
        %957 = vmatpush1.msra.mxu0 0.0
        %958 = vmatprep.subr.mxu0 0.0
        %959 = vmatpush1.msra.mxu0 0.0
        %960 = vmatprep.subr.mxu0 0.0
        %961 = vmatpush1.msra.mxu0 0.0
        %962 = vmatprep.subr.mxu0 0.0
        %963 = vmatpush1.msra.mxu0 0.0
        %964 = vmatprep.subr.mxu0 0.0
        %965 = vmatpush1.msra.mxu0 0.0
        %966 = vmatprep.subr.mxu0 0.0
        %967 = vmatpush1.msra.mxu0 0.0
        %968 = vmatprep.subr.mxu0 0.0
        %969 = vmatpush1.msra.mxu0 0.0
        %970 = vmatprep.subr.mxu0 0.0
        %971 = vmatpush1.msra.mxu0 0.0
        %972 = vmatprep.subr.mxu0 0.0
        %973 = vmatpush1.msra.mxu0 0.0
        %974 = vmatprep.subr.mxu0 0.0
        %975 = vmatpush1.msra.mxu0 0.0
        %976 = vmatprep.subr.mxu0 0.0
        %977 = vmatpush1.msra.mxu0 0.0
        %978 = vmatprep.subr.mxu0 0.0
        %979 = vmatpush1.msra.mxu0 0.0
        %980 = vmatprep.subr.mxu0 0.0
        %981 = vmatpush1.msra.mxu0 0.0
        %982 = vmatprep.subr.mxu0 0.0
        %983 = vmatpush1.msra.mxu0 0.0
        %984 = vmatprep.subr.mxu0 0.0
        %985 = vmatpush1.msra.mxu0 0.0
        %986 = vmatprep.subr.mxu0 0.0
        %987 = vmatpush1.msra.mxu0 0.0
        %988 = vmatprep.subr.mxu0 0.0
        %989 = vmatpush1.msra.mxu0 0.0
        %990 = vmatprep.subr.mxu0 0.0
        %991 = vmatpush1.msra.mxu0 0.0
        %992 = vmatprep.subr.mxu0 0.0
        %993 = vmatpush1.msra.mxu0 0.0
        %994 = vmatprep.subr.mxu0 0.0
        %995 = vmatpush1.msra.mxu0 0.0
        %996 = vmatprep.subr.mxu0 0.0
        %997 = vmatpush1.msra.mxu0 0.0
        %998 = vmatprep.subr.mxu0 0.0
        %999 = vmatpush1.msra.mxu0 0.0
        %1000 = vmatprep.subr.mxu0 0.0
        %1001 = vmatpush1.msra.mxu0 0.0
        %1002 = vmatprep.subr.mxu0 0.0
        %1003 = vmatpush1.msra.mxu0 0.0
        %1004 = vmatprep.mubr.f32.mxu0 0.0
        %v1005 = vand.u32 %v822, 4294901760
        %1006 = vmatmul.mubr.f32.gmra.mrb[0].mxu0 %v1005
        %v1007 = vpop.f32.mrb[0].mxu0
        %v1008 = vadd.f32 %v904, %v1007
        %v1009 = vpop.f32.mrb[0].mxu0
        %v1010 = vadd.f32 %v906, %v1009
        %1011 = vmatprep.mubr.f32.mxu0 0.0
        %v1012 = vand.u32 %v825, 4294901760
        %1013 = vmatmul.mubr.f32.gmra.mrb[0].mxu0 %v1012
        %v1014 = vpop.f32.mrb[0].mxu0
        %v1015 = vadd.f32 %v915, %v1014
        %v1016 = vpop.f32.mrb[0].mxu0
        %v1017 = vadd.f32 %v917, %v1016
        %1018 = vmatprep.mubr.f32.mxu0 0.0
        %v1019 = vand.u32 %v828, 4294901760
        %1020 = vmatmul.mubr.f32.gmra.mrb[0].mxu0 %v1019
        %v1021 = vpop.f32.mrb[0].mxu0
        %v1022 = vadd.f32 %v926, %v1021
        %v1023 = vpop.f32.mrb[0].mxu0
        %v1024 = vadd.f32 %v928, %v1023
        %1025 = vdwg.mxu0
        %v1026 = vand.u32 %v798, 4294901760
        %v1027 = vsub.f32 %v798, %v1026
        %1028 = vmatprep.subr.mxu0 %v1027
        %v1029 = vand.u32 %v797, 4294901760
        %v1030 = vsub.f32 %v797, %v1029
        %1031 = vmatpush1.msra.mxu0 %v1030
        %1032 = vmatprep.subr.mxu0 0.0
        %1033 = vmatpush1.msra.mxu0 0.0
        %1034 = vmatprep.subr.mxu0 0.0
        %1035 = vmatpush1.msra.mxu0 0.0
        %1036 = vmatprep.subr.mxu0 0.0
        %1037 = vmatpush1.msra.mxu0 0.0
        %1038 = vmatprep.subr.mxu0 0.0
        %1039 = vmatpush1.msra.mxu0 0.0
        %1040 = vmatprep.subr.mxu0 0.0
        %1041 = vmatpush1.msra.mxu0 0.0
        %1042 = vmatprep.subr.mxu0 0.0
        %1043 = vmatpush1.msra.mxu0 0.0
        %1044 = vmatprep.subr.mxu0 0.0
        %1045 = vmatpush1.msra.mxu0 0.0
        %1046 = vmatprep.subr.mxu0 0.0
        %1047 = vmatpush1.msra.mxu0 0.0
        %1048 = vmatprep.subr.mxu0 0.0
        %1049 = vmatpush1.msra.mxu0 0.0
        %1050 = vmatprep.subr.mxu0 0.0
        %1051 = vmatpush1.msra.mxu0 0.0
        %1052 = vmatprep.subr.mxu0 0.0
        %1053 = vmatpush1.msra.mxu0 0.0
        %1054 = vmatprep.subr.mxu0 0.0
        %1055 = vmatpush1.msra.mxu0 0.0
        %1056 = vmatprep.subr.mxu0 0.0
        %1057 = vmatpush1.msra.mxu0 0.0
        %1058 = vmatprep.subr.mxu0 0.0
        %1059 = vmatpush1.msra.mxu0 0.0
        %1060 = vmatprep.subr.mxu0 0.0
        %1061 = vmatpush1.msra.mxu0 0.0
        %1062 = vmatprep.subr.mxu0 0.0
        %1063 = vmatpush1.msra.mxu0 0.0
        %1064 = vmatprep.subr.mxu0 0.0
        %1065 = vmatpush1.msra.mxu0 0.0
        %1066 = vmatprep.subr.mxu0 0.0
        %1067 = vmatpush1.msra.mxu0 0.0
        %1068 = vmatprep.subr.mxu0 0.0
        %1069 = vmatpush1.msra.mxu0 0.0
        %1070 = vmatprep.subr.mxu0 0.0
        %1071 = vmatpush1.msra.mxu0 0.0
        %1072 = vmatprep.subr.mxu0 0.0
        %1073 = vmatpush1.msra.mxu0 0.0
        %1074 = vmatprep.subr.mxu0 0.0
        %1075 = vmatpush1.msra.mxu0 0.0
        %1076 = vmatprep.subr.mxu0 0.0
        %1077 = vmatpush1.msra.mxu0 0.0
        %1078 = vmatprep.subr.mxu0 0.0
        %1079 = vmatpush1.msra.mxu0 0.0
        %1080 = vmatprep.subr.mxu0 0.0
        %1081 = vmatpush1.msra.mxu0 0.0
        %1082 = vmatprep.subr.mxu0 0.0
        %1083 = vmatpush1.msra.mxu0 0.0
        %1084 = vmatprep.subr.mxu0 0.0
        %1085 = vmatpush1.msra.mxu0 0.0
        %1086 = vmatprep.subr.mxu0 0.0
        %1087 = vmatpush1.msra.mxu0 0.0
        %1088 = vmatprep.subr.mxu0 0.0
        %1089 = vmatpush1.msra.mxu0 0.0
        %1090 = vmatprep.subr.mxu0 0.0
        %1091 = vmatpush1.msra.mxu0 0.0
        %1092 = vmatprep.subr.mxu0 0.0
        %1093 = vmatpush1.msra.mxu0 0.0
        %1094 = vmatprep.mubr.f32.mxu0 0.0
        %v1095 = vand.u32 %v822, 4294901760
        %v1096 = vsub.f32 %v822, %v1095
        %1097 = vmatmul.mubr.f32.gmra.mrb[0].mxu0 %v1096
        %v1098 = vpop.f32.mrb[0].mxu0
        %v1099 = vadd.f32 %v1008, %v1098
        %v1100 = vpop.f32.mrb[0].mxu0
        %v1101 = vadd.f32 %v1010, %v1100
        %1102 = vmatprep.mubr.f32.mxu0 0.0
        %v1103 = vand.u32 %v825, 4294901760
        %v1104 = vsub.f32 %v825, %v1103
        %1105 = vmatmul.mubr.f32.gmra.mrb[0].mxu0 %v1104
        %v1106 = vpop.f32.mrb[0].mxu0
        %v1107 = vadd.f32 %v1015, %v1106
        %v1108 = vpop.f32.mrb[0].mxu0
        %v1109 = vadd.f32 %v1017, %v1108
        %1110 = vmatprep.mubr.f32.mxu0 0.0
        %v1111 = vand.u32 %v828, 4294901760
        %v1112 = vsub.f32 %v828, %v1111
        %1113 = vmatmul.mubr.f32.gmra.mrb[0].mxu0 %v1112
        %v1114 = vpop.f32.mrb[0].mxu0
        %v1115 = vadd.f32 %v1022, %v1114
        %v1116 = vpop.f32.mrb[0].mxu0
        %v1117 = vadd.f32 %v1024, %v1116
        %1118 = vdwg.mxu0
        %v1119 = vand.u32 %v798, 4294901760
        %1120 = vmatprep.subr.mxu0 %v1119
        %v1121 = vand.u32 %v797, 4294901760
        %1122 = vmatpush1.msra.mxu0 %v1121
        %1123 = vmatprep.subr.mxu0 0.0
        %1124 = vmatpush1.msra.mxu0 0.0
        %1125 = vmatprep.subr.mxu0 0.0
        %1126 = vmatpush1.msra.mxu0 0.0
        %1127 = vmatprep.subr.mxu0 0.0
        %1128 = vmatpush1.msra.mxu0 0.0
        %1129 = vmatprep.subr.mxu0 0.0
        %1130 = vmatpush1.msra.mxu0 0.0
        %1131 = vmatprep.subr.mxu0 0.0
        %1132 = vmatpush1.msra.mxu0 0.0
        %1133 = vmatprep.subr.mxu0 0.0
        %1134 = vmatpush1.msra.mxu0 0.0
        %1135 = vmatprep.subr.mxu0 0.0
        %1136 = vmatpush1.msra.mxu0 0.0
        %1137 = vmatprep.subr.mxu0 0.0
        %1138 = vmatpush1.msra.mxu0 0.0
        %1139 = vmatprep.subr.mxu0 0.0
        %1140 = vmatpush1.msra.mxu0 0.0
        %1141 = vmatprep.subr.mxu0 0.0
        %1142 = vmatpush1.msra.mxu0 0.0
        %1143 = vmatprep.subr.mxu0 0.0
        %1144 = vmatpush1.msra.mxu0 0.0
        %1145 = vmatprep.subr.mxu0 0.0
        %1146 = vmatpush1.msra.mxu0 0.0
        %1147 = vmatprep.subr.mxu0 0.0
        %1148 = vmatpush1.msra.mxu0 0.0
        %1149 = vmatprep.subr.mxu0 0.0
        %1150 = vmatpush1.msra.mxu0 0.0
        %1151 = vmatprep.subr.mxu0 0.0
        %1152 = vmatpush1.msra.mxu0 0.0
        %1153 = vmatprep.subr.mxu0 0.0
        %1154 = vmatpush1.msra.mxu0 0.0
        %1155 = vmatprep.subr.mxu0 0.0
        %1156 = vmatpush1.msra.mxu0 0.0
        %1157 = vmatprep.subr.mxu0 0.0
        %1158 = vmatpush1.msra.mxu0 0.0
        %1159 = vmatprep.subr.mxu0 0.0
        %1160 = vmatpush1.msra.mxu0 0.0
        %1161 = vmatprep.subr.mxu0 0.0
        %1162 = vmatpush1.msra.mxu0 0.0
        %1163 = vmatprep.subr.mxu0 0.0
        %1164 = vmatpush1.msra.mxu0 0.0
        %1165 = vmatprep.subr.mxu0 0.0
        %1166 = vmatpush1.msra.mxu0 0.0
        %1167 = vmatprep.subr.mxu0 0.0
        %1168 = vmatpush1.msra.mxu0 0.0
        %1169 = vmatprep.subr.mxu0 0.0
        %1170 = vmatpush1.msra.mxu0 0.0
        %1171 = vmatprep.subr.mxu0 0.0
        %1172 = vmatpush1.msra.mxu0 0.0
        %1173 = vmatprep.subr.mxu0 0.0
        %1174 = vmatpush1.msra.mxu0 0.0
        %1175 = vmatprep.subr.mxu0 0.0
        %1176 = vmatpush1.msra.mxu0 0.0
        %1177 = vmatprep.subr.mxu0 0.0
        %1178 = vmatpush1.msra.mxu0 0.0
        %1179 = vmatprep.subr.mxu0 0.0
        %1180 = vmatpush1.msra.mxu0 0.0
        %1181 = vmatprep.subr.mxu0 0.0
        %1182 = vmatpush1.msra.mxu0 0.0
        %1183 = vmatprep.subr.mxu0 0.0
        %1184 = vmatpush1.msra.mxu0 0.0
        %1185 = vmatprep.mubr.f32.mxu0 0.0
        %v1186 = vand.u32 %v822, 4294901760
        %v1187 = vsub.f32 %v822, %v1186
        %v1188 = vand.u32 %v1187, 4294901760
        %1189 = vmatmul.mubr.f32.gmra.mrb[0].mxu0 %v1188
        %v1190 = vpop.f32.mrb[0].mxu0
        %v1191 = vadd.f32 %v1099, %v1190
        %v1192 = vpop.f32.mrb[0].mxu0
        %v1193 = vadd.f32 %v1101, %v1192
        %1194 = vmatprep.mubr.f32.mxu0 0.0
        %v1195 = vand.u32 %v825, 4294901760
        %v1196 = vsub.f32 %v825, %v1195
        %v1197 = vand.u32 %v1196, 4294901760
        %1198 = vmatmul.mubr.f32.gmra.mrb[0].mxu0 %v1197
        %v1199 = vpop.f32.mrb[0].mxu0
        %v1200 = vadd.f32 %v1107, %v1199
        %v1201 = vpop.f32.mrb[0].mxu0
        %v1202 = vadd.f32 %v1109, %v1201
        %1203 = vmatprep.mubr.f32.mxu0 0.0
        %v1204 = vand.u32 %v828, 4294901760
        %v1205 = vsub.f32 %v828, %v1204
        %v1206 = vand.u32 %v1205, 4294901760
        %1207 = vmatmul.mubr.f32.gmra.mrb[0].mxu0 %v1206
        %v1208 = vpop.f32.mrb[0].mxu0
        %v1209 = vadd.f32 %v1115, %v1208
        %v1210 = vpop.f32.mrb[0].mxu0
        %v1211 = vadd.f32 %v1117, %v1210
        %1212 = vdwg.mxu0
        %v1213 = vand.u32 %v798, 4294901760
        %v1214 = vsub.f32 %v798, %v1213
        %v1215 = vand.u32 %v1214, 4294901760
        %1216 = vmatprep.subr.mxu0 %v1215
        %v1217 = vand.u32 %v797, 4294901760
        %v1218 = vsub.f32 %v797, %v1217
        %v1219 = vand.u32 %v1218, 4294901760
        %1220 = vmatpush1.msra.mxu0 %v1219
        %1221 = vmatprep.subr.mxu0 0.0
        %1222 = vmatpush1.msra.mxu0 0.0
        %1223 = vmatprep.subr.mxu0 0.0
        %1224 = vmatpush1.msra.mxu0 0.0
        %1225 = vmatprep.subr.mxu0 0.0
        %1226 = vmatpush1.msra.mxu0 0.0
        %1227 = vmatprep.subr.mxu0 0.0
        %1228 = vmatpush1.msra.mxu0 0.0
        %1229 = vmatprep.subr.mxu0 0.0
        %1230 = vmatpush1.msra.mxu0 0.0
        %1231 = vmatprep.subr.mxu0 0.0
        %1232 = vmatpush1.msra.mxu0 0.0
        %1233 = vmatprep.subr.mxu0 0.0
        %1234 = vmatpush1.msra.mxu0 0.0
        %1235 = vmatprep.subr.mxu0 0.0
        %1236 = vmatpush1.msra.mxu0 0.0
        %1237 = vmatprep.subr.mxu0 0.0
        %1238 = vmatpush1.msra.mxu0 0.0
        %1239 = vmatprep.subr.mxu0 0.0
        %1240 = vmatpush1.msra.mxu0 0.0
        %1241 = vmatprep.subr.mxu0 0.0
        %1242 = vmatpush1.msra.mxu0 0.0
        %1243 = vmatprep.subr.mxu0 0.0
        %1244 = vmatpush1.msra.mxu0 0.0
        %1245 = vmatprep.subr.mxu0 0.0
        %1246 = vmatpush1.msra.mxu0 0.0
        %1247 = vmatprep.subr.mxu0 0.0
        %1248 = vmatpush1.msra.mxu0 0.0
        %1249 = vmatprep.subr.mxu0 0.0
        %1250 = vmatpush1.msra.mxu0 0.0
        %1251 = vmatprep.subr.mxu0 0.0
        %1252 = vmatpush1.msra.mxu0 0.0
        %1253 = vmatprep.subr.mxu0 0.0
        %1254 = vmatpush1.msra.mxu0 0.0
        %1255 = vmatprep.subr.mxu0 0.0
        %1256 = vmatpush1.msra.mxu0 0.0
        %1257 = vmatprep.subr.mxu0 0.0
        %1258 = vmatpush1.msra.mxu0 0.0
        %1259 = vmatprep.subr.mxu0 0.0
        %1260 = vmatpush1.msra.mxu0 0.0
        %1261 = vmatprep.subr.mxu0 0.0
        %1262 = vmatpush1.msra.mxu0 0.0
        %1263 = vmatprep.subr.mxu0 0.0
        %1264 = vmatpush1.msra.mxu0 0.0
        %1265 = vmatprep.subr.mxu0 0.0
        %1266 = vmatpush1.msra.mxu0 0.0
        %1267 = vmatprep.subr.mxu0 0.0
        %1268 = vmatpush1.msra.mxu0 0.0
        %1269 = vmatprep.subr.mxu0 0.0
        %1270 = vmatpush1.msra.mxu0 0.0
        %1271 = vmatprep.subr.mxu0 0.0
        %1272 = vmatpush1.msra.mxu0 0.0
        %1273 = vmatprep.subr.mxu0 0.0
        %1274 = vmatpush1.msra.mxu0 0.0
        %1275 = vmatprep.subr.mxu0 0.0
        %1276 = vmatpush1.msra.mxu0 0.0
        %1277 = vmatprep.subr.mxu0 0.0
        %1278 = vmatpush1.msra.mxu0 0.0
        %1279 = vmatprep.subr.mxu0 0.0
        %1280 = vmatpush1.msra.mxu0 0.0
        %1281 = vmatprep.subr.mxu0 0.0
        %1282 = vmatpush1.msra.mxu0 0.0
        %1283 = vmatprep.mubr.f32.mxu0 0.0
        %v1284 = vand.u32 %v822, 4294901760
        %1285 = vmatmul.mubr.f32.gmra.mrb[0].mxu0 %v1284
        %v1286 = vpop.f32.mrb[0].mxu0
        %v1287 = vadd.f32 %v1191, %v1286
        %v1288 = vpop.f32.mrb[0].mxu0
        %v1289 = vadd.f32 %v1193, %v1288
        %1290 = vmatprep.mubr.f32.mxu0 0.0
        %v1291 = vand.u32 %v825, 4294901760
        %1292 = vmatmul.mubr.f32.gmra.mrb[0].mxu0 %v1291
        %v1293 = vpop.f32.mrb[0].mxu0
        %v1294 = vadd.f32 %v1200, %v1293
        %v1295 = vpop.f32.mrb[0].mxu0
        %v1296 = vadd.f32 %v1202, %v1295
        %1297 = vmatprep.mubr.f32.mxu0 0.0
        %v1298 = vand.u32 %v828, 4294901760
        %1299 = vmatmul.mubr.f32.gmra.mrb[0].mxu0 %v1298
        %v1300 = vpop.f32.mrb[0].mxu0
        %v1301 = vadd.f32 %v1209, %v1300
        %v1302 = vpop.f32.mrb[0].mxu0
        %v1303 = vadd.f32 %v1211, %v1302
        %1304 = vdwg.mxu0
        %v1305 = vand.u32 %v798, 4294901760
        %1306 = vmatprep.subr.mxu0 %v1305
        %v1307 = vand.u32 %v797, 4294901760
        %1308 = vmatpush1.msra.mxu0 %v1307
        %1309 = vmatprep.subr.mxu0 0.0
        %1310 = vmatpush1.msra.mxu0 0.0
        %1311 = vmatprep.subr.mxu0 0.0
        %1312 = vmatpush1.msra.mxu0 0.0
        %1313 = vmatprep.subr.mxu0 0.0
        %1314 = vmatpush1.msra.mxu0 0.0
        %1315 = vmatprep.subr.mxu0 0.0
        %1316 = vmatpush1.msra.mxu0 0.0
        %1317 = vmatprep.subr.mxu0 0.0
        %1318 = vmatpush1.msra.mxu0 0.0
        %1319 = vmatprep.subr.mxu0 0.0
        %1320 = vmatpush1.msra.mxu0 0.0
        %1321 = vmatprep.subr.mxu0 0.0
        %1322 = vmatpush1.msra.mxu0 0.0
        %1323 = vmatprep.subr.mxu0 0.0
        %1324 = vmatpush1.msra.mxu0 0.0
        %1325 = vmatprep.subr.mxu0 0.0
        %1326 = vmatpush1.msra.mxu0 0.0
        %1327 = vmatprep.subr.mxu0 0.0
        %1328 = vmatpush1.msra.mxu0 0.0
        %1329 = vmatprep.subr.mxu0 0.0
        %1330 = vmatpush1.msra.mxu0 0.0
        %1331 = vmatprep.subr.mxu0 0.0
        %1332 = vmatpush1.msra.mxu0 0.0
        %1333 = vmatprep.subr.mxu0 0.0
        %1334 = vmatpush1.msra.mxu0 0.0
        %1335 = vmatprep.subr.mxu0 0.0
        %1336 = vmatpush1.msra.mxu0 0.0
        %1337 = vmatprep.subr.mxu0 0.0
        %1338 = vmatpush1.msra.mxu0 0.0
        %1339 = vmatprep.subr.mxu0 0.0
        %1340 = vmatpush1.msra.mxu0 0.0
        %1341 = vmatprep.subr.mxu0 0.0
        %1342 = vmatpush1.msra.mxu0 0.0
        %1343 = vmatprep.subr.mxu0 0.0
        %1344 = vmatpush1.msra.mxu0 0.0
        %1345 = vmatprep.subr.mxu0 0.0
        %1346 = vmatpush1.msra.mxu0 0.0
        %1347 = vmatprep.subr.mxu0 0.0
        %1348 = vmatpush1.msra.mxu0 0.0
        %1349 = vmatprep.subr.mxu0 0.0
        %1350 = vmatpush1.msra.mxu0 0.0
        %1351 = vmatprep.subr.mxu0 0.0
        %1352 = vmatpush1.msra.mxu0 0.0
        %1353 = vmatprep.subr.mxu0 0.0
        %1354 = vmatpush1.msra.mxu0 0.0
        %1355 = vmatprep.subr.mxu0 0.0
        %1356 = vmatpush1.msra.mxu0 0.0
        %1357 = vmatprep.subr.mxu0 0.0
        %1358 = vmatpush1.msra.mxu0 0.0
        %1359 = vmatprep.subr.mxu0 0.0
        %1360 = vmatpush1.msra.mxu0 0.0
        %1361 = vmatprep.subr.mxu0 0.0
        %1362 = vmatpush1.msra.mxu0 0.0
        %1363 = vmatprep.subr.mxu0 0.0
        %1364 = vmatpush1.msra.mxu0 0.0
        %1365 = vmatprep.subr.mxu0 0.0
        %1366 = vmatpush1.msra.mxu0 0.0
        %1367 = vmatprep.subr.mxu0 0.0
        %1368 = vmatpush1.msra.mxu0 0.0
        %1369 = vmatprep.subr.mxu0 0.0
        %1370 = vmatpush1.msra.mxu0 0.0
        %1371 = vmatprep.mubr.f32.mxu0 0.0
        %v1372 = vand.u32 %v822, 4294901760
        %1373 = vmatmul.mubr.f32.gmra.mrb[0].mxu0 %v1372
        %v1374 = vpop.f32.mrb[0].mxu0
        %v1375 = vadd.f32 %v1287, %v1374
        %v1376 = vpop.f32.mrb[0].mxu0
        %v1377 = vadd.f32 %v1289, %v1376
        %1378 = vmatprep.mubr.f32.mxu0 0.0
        %v1379 = vand.u32 %v825, 4294901760
        %1380 = vmatmul.mubr.f32.gmra.mrb[0].mxu0 %v1379
        %v1381 = vpop.f32.mrb[0].mxu0
        %v1382 = vadd.f32 %v1294, %v1381
        %v1383 = vpop.f32.mrb[0].mxu0
        %v1384 = vadd.f32 %v1296, %v1383
        %1385 = vmatprep.mubr.f32.mxu0 0.0
        %v1386 = vand.u32 %v828, 4294901760
        %1387 = vmatmul.mubr.f32.gmra.mrb[0].mxu0 %v1386
        %v1388 = vpop.f32.mrb[0].mxu0
        %v1389 = vadd.f32 %v1301, %v1388
        %v1390 = vpop.f32.mrb[0].mxu0
        %v1391 = vadd.f32 %v1303, %v1390
        %1392 = vdwg.mxu0
        %v1393 = vxor.u32 %v1389, 2147483648
        %v1394 = vxor.u32 %v1391, 2147483648
        %v1395 = vmul.f32 %v1393, 1.442695
        %v1396 = vpow.pop %v1395
        %v1397 = vmul.f32 %v1394, 1.442695
        %v1398 = vpow.pop %v1397
        %v1399 = vadd.f32 %v1396, 1.0
        %v1400 = vadd.f32 %v1398, 1.0
        %v1401 = vrcp.pop %v1399
        %v1402 = vmul.f32 1.0, %v1401
        %v1403 = vrcp.pop %v1400
        %v1404 = vmul.f32 1.0, %v1403
        %v1405 = vlaneseq
        %v1406 = vshrl.u32 %v1405, 7
        %v1407 = vsub.s32 0, %v1406
        %v1408 = vrot.slane %v1402, %v1407
        %v1409 = vlaneseq
        %v1410 = vshrl.u32 %v1409, 7
        %v1411 = vsub.s32 0, %v1410
        %v1412 = vrot.slane %v1404, %v1411
        %v1413 = vmul.f32 %v1375, %v1408
        %v1414 = vmul.f32 %v1377, %v1412
        %v1415 = vmul.f32 %v1382, %v1408
        %v1416 = vmul.f32 %v1384, %v1412
        %1419 = vrot.lane.b32.xlu0 %v797, 17
        %v1420 = vpop.permute.xlu0 %1419
        %1421 = vrot.lane.b32.xlu0 %v798, 17
        %v1422 = vpop.permute.xlu0 %1421
        %vm1423 = vcmask 138240
        %v1424 = vsel %vm1423, %v1420, %v1422
        %v1427 = vsel %vm1423, 0.0, %v1420
        %v1428 = vmul.f32 %v1427, %v789
        %v1429 = vmul.f32 %v1424, %v790
        %1430 = vrot.lane.b32.xlu0 %v797, 16
        %v1431 = vpop.permute.xlu0 %1430
        %1432 = vrot.lane.b32.xlu0 %v798, 16
        %v1433 = vpop.permute.xlu0 %1432
        %vm1434 = vcmask 130048
        %v1435 = vsel %vm1434, %v1431, %v1433
        %v1438 = vsel %vm1434, 0.0, %v1431
        %1439 = vrot.lane.b32.xlu0 %v797, 15
        %v1440 = vpop.permute.xlu0 %1439
        %1441 = vrot.lane.b32.xlu0 %v798, 15
        %v1442 = vpop.permute.xlu0 %1441
        %vm1443 = vcmask 121856
        %v1444 = vsel %vm1443, %v1440, %v1442
        %v1447 = vsel %vm1443, 0.0, %v1440
        %v1448 = vmul.f32 %v1447, %v795
        %v1449 = vmul.f32 %v1444, %v796
        %1450 = vrot.lane.b32.xlu0 %v797, 1
        %v1451 = vpop.permute.xlu0 %1450
        %1452 = vrot.lane.b32.xlu0 %v798, 1
        %v1453 = vpop.permute.xlu0 %1452
        %vm1454 = vcmask 7168
        %v1455 = vsel %vm1454, %v1451, %v1453
        %v1458 = vsel %vm1454, 0.0, %v1451
        %v1459 = vmul.f32 %v1458, %v789
        %v1460 = vmul.f32 %v1455, %v790
        %1461 = vrot.lane.b32.xlu0 %v797, 127
        %v1462 = vpop.permute.xlu0 %1461
        %1463 = vrot.lane.b32.xlu0 %v798, 127
        %v1464 = vpop.permute.xlu0 %1463
        %vm1465 = vcmask 1039360
        %v1466 = vsel %vm1465, %v1462, %v1464
        %v1469 = vsel %vm1465, %v1464, 0.0
        %v1470 = vmul.f32 %v1466, %v795
        %v1471 = vmul.f32 %v1469, %v796
        %1472 = vrot.lane.b32.xlu0 %v797, 113
        %v1473 = vpop.permute.xlu0 %1472
        %1474 = vrot.lane.b32.xlu0 %v798, 113
        %v1475 = vpop.permute.xlu0 %1474
        %vm1476 = vcmask 924672
        %v1477 = vsel %vm1476, %v1473, %v1475
        %v1480 = vsel %vm1476, %v1475, 0.0
        %v1481 = vmul.f32 %v1477, %v789
        %v1482 = vmul.f32 %v1480, %v790
        %1483 = vrot.lane.b32.xlu0 %v797, 112
        %v1484 = vpop.permute.xlu0 %1483
        %1485 = vrot.lane.b32.xlu0 %v798, 112
        %v1486 = vpop.permute.xlu0 %1485
        %vm1487 = vcmask 916480
        %v1488 = vsel %vm1487, %v1484, %v1486
        %v1491 = vsel %vm1487, %v1486, 0.0
        %1492 = vrot.lane.b32.xlu0 %v797, 111
        %v1493 = vpop.permute.xlu0 %1492
        %1494 = vrot.lane.b32.xlu0 %v798, 111
        %v1495 = vpop.permute.xlu0 %1494
        %vm1496 = vcmask 908288
        %v1497 = vsel %vm1496, %v1493, %v1495
        %v1500 = vsel %vm1496, %v1495, 0.0
        %v1501 = vmul.f32 %v1497, %v795
        %v1502 = vmul.f32 %v1500, %v796
        %v1503 = vld [vmem:[%s4] sm:$0xff]
        %v1504 = vld [vmem:[%s4 + $0x8] sm:$0xff]
        %v1505 = vld [vmem:[%s5] sm:$0xff]
        %v1506 = vld [vmem:[%s5 + $0x8] sm:$0xff]
        %1508 = vset.pattern.permute.xlu0 0
        %1509 = vperm.xlu0 %1508, %v1505
        %v1510 = vpop.permute.xlu0 %1509
        %1513 = vset.pattern.permute.xlu0 0
        %1514 = vperm.xlu0 %1513, %v1506
        %v1515 = vpop.permute.xlu0 %1514
        %vm1517 = vcmask 588800
        %v1519 = vsel %vm1517, %v1503, 0
        %v1522 = vsel %vm1517, %v1504, 0
        %v1524 = vand.u32 %v1429, 4294901760
        %1525 = vmatprep.subr.mxu0 %v1524
        %v1526 = vand.u32 %v1428, 4294901760
        %1527 = vmatpush1.msra.mxu0 %v1526
        %v1528 = vand.u32 %v1435, 4294901760
        %1529 = vmatprep.subr.mxu0 %v1528
        %v1530 = vand.u32 %v1438, 4294901760
        %1531 = vmatpush1.msra.mxu0 %v1530
        %v1532 = vand.u32 %v1449, 4294901760
        %1533 = vmatprep.subr.mxu0 %v1532
        %v1534 = vand.u32 %v1448, 4294901760
        %1535 = vmatpush1.msra.mxu0 %v1534
        %v1536 = vand.u32 %v1460, 4294901760
        %1537 = vmatprep.subr.mxu0 %v1536
        %v1538 = vand.u32 %v1459, 4294901760
        %1539 = vmatpush1.msra.mxu0 %v1538
        %v1540 = vand.u32 %v798, 4294901760
        %1541 = vmatprep.subr.mxu0 %v1540
        %v1542 = vand.u32 %v797, 4294901760
        %1543 = vmatpush1.msra.mxu0 %v1542
        %v1544 = vand.u32 %v1471, 4294901760
        %1545 = vmatprep.subr.mxu0 %v1544
        %v1546 = vand.u32 %v1470, 4294901760
        %1547 = vmatpush1.msra.mxu0 %v1546
        %v1548 = vand.u32 %v1482, 4294901760
        %1549 = vmatprep.subr.mxu0 %v1548
        %v1550 = vand.u32 %v1481, 4294901760
        %1551 = vmatpush1.msra.mxu0 %v1550
        %v1552 = vand.u32 %v1491, 4294901760
        %1553 = vmatprep.subr.mxu0 %v1552
        %v1554 = vand.u32 %v1488, 4294901760
        %1555 = vmatpush1.msra.mxu0 %v1554
        %v1556 = vand.u32 %v1502, 4294901760
        %1557 = vmatprep.subr.mxu0 %v1556
        %v1558 = vand.u32 %v1501, 4294901760
        %1559 = vmatpush1.msra.mxu0 %v1558
        %1560 = vmatprep.subr.mxu0 0.0
        %1561 = vmatpush1.msra.mxu0 0.0
        %1562 = vmatprep.subr.mxu0 0.0
        %1563 = vmatpush1.msra.mxu0 0.0
        %1564 = vmatprep.subr.mxu0 0.0
        %1565 = vmatpush1.msra.mxu0 0.0
        %1566 = vmatprep.subr.mxu0 0.0
        %1567 = vmatpush1.msra.mxu0 0.0
        %1568 = vmatprep.subr.mxu0 0.0
        %1569 = vmatpush1.msra.mxu0 0.0
        %1570 = vmatprep.subr.mxu0 0.0
        %1571 = vmatpush1.msra.mxu0 0.0
        %1572 = vmatprep.subr.mxu0 0.0
        %1573 = vmatpush1.msra.mxu0 0.0
        %1574 = vmatprep.subr.mxu0 0.0
        %1575 = vmatpush1.msra.mxu0 0.0
        %1576 = vmatprep.subr.mxu0 0.0
        %1577 = vmatpush1.msra.mxu0 0.0
        %1578 = vmatprep.subr.mxu0 0.0
        %1579 = vmatpush1.msra.mxu0 0.0
        %1580 = vmatprep.subr.mxu0 0.0
        %1581 = vmatpush1.msra.mxu0 0.0
        %1582 = vmatprep.subr.mxu0 0.0
        %1583 = vmatpush1.msra.mxu0 0.0
        %1584 = vmatprep.subr.mxu0 0.0
        %1585 = vmatpush1.msra.mxu0 0.0
        %1586 = vmatprep.subr.mxu0 0.0
        %1587 = vmatpush1.msra.mxu0 0.0
        %1588 = vmatprep.subr.mxu0 0.0
        %1589 = vmatpush1.msra.mxu0 0.0
        %1590 = vmatprep.subr.mxu0 0.0
        %1591 = vmatpush1.msra.mxu0 0.0
        %1592 = vmatprep.subr.mxu0 0.0
        %1593 = vmatpush1.msra.mxu0 0.0
        %1594 = vmatprep.subr.mxu0 0.0
        %1595 = vmatpush1.msra.mxu0 0.0
        %1596 = vmatprep.subr.mxu0 0.0
        %1597 = vmatpush1.msra.mxu0 0.0
        %1598 = vmatprep.subr.mxu0 0.0
        %1599 = vmatpush1.msra.mxu0 0.0
        %1600 = vmatprep.subr.mxu0 0.0
        %1601 = vmatpush1.msra.mxu0 0.0
        %1602 = vmatprep.subr.mxu0 0.0
        %1603 = vmatpush1.msra.mxu0 0.0
        %1604 = vmatprep.subr.mxu0 0.0
        %1605 = vmatpush1.msra.mxu0 0.0
        %1606 = vmatprep.mubr.f32.mxu0 0.0
        %v1607 = vand.u32 %v1519, 4294901760
        %v1608 = vsub.f32 %v1519, %v1607
        %v1609 = vand.u32 %v1608, 4294901760
        %v1610 = vsub.f32 %v1608, %v1609
        %v1611 = vand.u32 %v1610, 4294901760
        %1612 = vmatmul.mubr.f32.gmra.mrb[0].mxu0 %v1611
        %v1613 = vpop.f32.mrb[0].mxu0
        %v1614 = vadd.f32 %v1510, %v1613
        %v1615 = vpop.f32.mrb[0].mxu0
        %v1616 = vadd.f32 %v1510, %v1615
        %1617 = vmatprep.mubr.f32.mxu0 0.0
        %v1618 = vand.u32 %v1522, 4294901760
        %v1619 = vsub.f32 %v1522, %v1618
        %v1620 = vand.u32 %v1619, 4294901760
        %v1621 = vsub.f32 %v1619, %v1620
        %v1622 = vand.u32 %v1621, 4294901760
        %1623 = vmatmul.mubr.f32.gmra.mrb[0].mxu0 %v1622
        %v1624 = vpop.f32.mrb[0].mxu0
        %v1625 = vadd.f32 %v1515, %v1624
        %v1626 = vpop.f32.mrb[0].mxu0
        %v1627 = vadd.f32 %v1515, %v1626
        %1628 = vdwg.mxu0
        %v1629 = vand.u32 %v1429, 4294901760
        %v1630 = vsub.f32 %v1429, %v1629
        %v1631 = vand.u32 %v1630, 4294901760
        %v1632 = vsub.f32 %v1630, %v1631
        %v1633 = vand.u32 %v1632, 4294901760
        %1634 = vmatprep.subr.mxu0 %v1633
        %v1635 = vand.u32 %v1428, 4294901760
        %v1636 = vsub.f32 %v1428, %v1635
        %v1637 = vand.u32 %v1636, 4294901760
        %v1638 = vsub.f32 %v1636, %v1637
        %v1639 = vand.u32 %v1638, 4294901760
        %1640 = vmatpush1.msra.mxu0 %v1639
        %v1641 = vand.u32 %v1435, 4294901760
        %v1642 = vsub.f32 %v1435, %v1641
        %v1643 = vand.u32 %v1642, 4294901760
        %v1644 = vsub.f32 %v1642, %v1643
        %v1645 = vand.u32 %v1644, 4294901760
        %1646 = vmatprep.subr.mxu0 %v1645
        %v1647 = vand.u32 %v1438, 4294901760
        %v1648 = vsub.f32 %v1438, %v1647
        %v1649 = vand.u32 %v1648, 4294901760
        %v1650 = vsub.f32 %v1648, %v1649
        %v1651 = vand.u32 %v1650, 4294901760
        %1652 = vmatpush1.msra.mxu0 %v1651
        %v1653 = vand.u32 %v1449, 4294901760
        %v1654 = vsub.f32 %v1449, %v1653
        %v1655 = vand.u32 %v1654, 4294901760
        %v1656 = vsub.f32 %v1654, %v1655
        %v1657 = vand.u32 %v1656, 4294901760
        %1658 = vmatprep.subr.mxu0 %v1657
        %v1659 = vand.u32 %v1448, 4294901760
        %v1660 = vsub.f32 %v1448, %v1659
        %v1661 = vand.u32 %v1660, 4294901760
        %v1662 = vsub.f32 %v1660, %v1661
        %v1663 = vand.u32 %v1662, 4294901760
        %1664 = vmatpush1.msra.mxu0 %v1663
        %v1665 = vand.u32 %v1460, 4294901760
        %v1666 = vsub.f32 %v1460, %v1665
        %v1667 = vand.u32 %v1666, 4294901760
        %v1668 = vsub.f32 %v1666, %v1667
        %v1669 = vand.u32 %v1668, 4294901760
        %1670 = vmatprep.subr.mxu0 %v1669
        %v1671 = vand.u32 %v1459, 4294901760
        %v1672 = vsub.f32 %v1459, %v1671
        %v1673 = vand.u32 %v1672, 4294901760
        %v1674 = vsub.f32 %v1672, %v1673
        %v1675 = vand.u32 %v1674, 4294901760
        %1676 = vmatpush1.msra.mxu0 %v1675
        %v1677 = vand.u32 %v798, 4294901760
        %v1678 = vsub.f32 %v798, %v1677
        %v1679 = vand.u32 %v1678, 4294901760
        %v1680 = vsub.f32 %v1678, %v1679
        %v1681 = vand.u32 %v1680, 4294901760
        %1682 = vmatprep.subr.mxu0 %v1681
        %v1683 = vand.u32 %v797, 4294901760
        %v1684 = vsub.f32 %v797, %v1683
        %v1685 = vand.u32 %v1684, 4294901760
        %v1686 = vsub.f32 %v1684, %v1685
        %v1687 = vand.u32 %v1686, 4294901760
        %1688 = vmatpush1.msra.mxu0 %v1687
        %v1689 = vand.u32 %v1471, 4294901760
        %v1690 = vsub.f32 %v1471, %v1689
        %v1691 = vand.u32 %v1690, 4294901760
        %v1692 = vsub.f32 %v1690, %v1691
        %v1693 = vand.u32 %v1692, 4294901760
        %1694 = vmatprep.subr.mxu0 %v1693
        %v1695 = vand.u32 %v1470, 4294901760
        %v1696 = vsub.f32 %v1470, %v1695
        %v1697 = vand.u32 %v1696, 4294901760
        %v1698 = vsub.f32 %v1696, %v1697
        %v1699 = vand.u32 %v1698, 4294901760
        %1700 = vmatpush1.msra.mxu0 %v1699
        %v1701 = vand.u32 %v1482, 4294901760
        %v1702 = vsub.f32 %v1482, %v1701
        %v1703 = vand.u32 %v1702, 4294901760
        %v1704 = vsub.f32 %v1702, %v1703
        %v1705 = vand.u32 %v1704, 4294901760
        %1706 = vmatprep.subr.mxu0 %v1705
        %v1707 = vand.u32 %v1481, 4294901760
        %v1708 = vsub.f32 %v1481, %v1707
        %v1709 = vand.u32 %v1708, 4294901760
        %v1710 = vsub.f32 %v1708, %v1709
        %v1711 = vand.u32 %v1710, 4294901760
        %1712 = vmatpush1.msra.mxu0 %v1711
        %v1713 = vand.u32 %v1491, 4294901760
        %v1714 = vsub.f32 %v1491, %v1713
        %v1715 = vand.u32 %v1714, 4294901760
        %v1716 = vsub.f32 %v1714, %v1715
        %v1717 = vand.u32 %v1716, 4294901760
        %1718 = vmatprep.subr.mxu0 %v1717
        %v1719 = vand.u32 %v1488, 4294901760
        %v1720 = vsub.f32 %v1488, %v1719
        %v1721 = vand.u32 %v1720, 4294901760
        %v1722 = vsub.f32 %v1720, %v1721
        %v1723 = vand.u32 %v1722, 4294901760
        %1724 = vmatpush1.msra.mxu0 %v1723
        %v1725 = vand.u32 %v1502, 4294901760
        %v1726 = vsub.f32 %v1502, %v1725
        %v1727 = vand.u32 %v1726, 4294901760
        %v1728 = vsub.f32 %v1726, %v1727
        %v1729 = vand.u32 %v1728, 4294901760
        %1730 = vmatprep.subr.mxu0 %v1729
        %v1731 = vand.u32 %v1501, 4294901760
        %v1732 = vsub.f32 %v1501, %v1731
        %v1733 = vand.u32 %v1732, 4294901760
        %v1734 = vsub.f32 %v1732, %v1733
        %v1735 = vand.u32 %v1734, 4294901760
        %1736 = vmatpush1.msra.mxu0 %v1735
        %1737 = vmatprep.subr.mxu0 0.0
        %1738 = vmatpush1.msra.mxu0 0.0
        %1739 = vmatprep.subr.mxu0 0.0
        %1740 = vmatpush1.msra.mxu0 0.0
        %1741 = vmatprep.subr.mxu0 0.0
        %1742 = vmatpush1.msra.mxu0 0.0
        %1743 = vmatprep.subr.mxu0 0.0
        %1744 = vmatpush1.msra.mxu0 0.0
        %1745 = vmatprep.subr.mxu0 0.0
        %1746 = vmatpush1.msra.mxu0 0.0
        %1747 = vmatprep.subr.mxu0 0.0
        %1748 = vmatpush1.msra.mxu0 0.0
        %1749 = vmatprep.subr.mxu0 0.0
        %1750 = vmatpush1.msra.mxu0 0.0
        %1751 = vmatprep.subr.mxu0 0.0
        %1752 = vmatpush1.msra.mxu0 0.0
        %1753 = vmatprep.subr.mxu0 0.0
        %1754 = vmatpush1.msra.mxu0 0.0
        %1755 = vmatprep.subr.mxu0 0.0
        %1756 = vmatpush1.msra.mxu0 0.0
        %1757 = vmatprep.subr.mxu0 0.0
        %1758 = vmatpush1.msra.mxu0 0.0
        %1759 = vmatprep.subr.mxu0 0.0
        %1760 = vmatpush1.msra.mxu0 0.0
        %1761 = vmatprep.subr.mxu0 0.0
        %1762 = vmatpush1.msra.mxu0 0.0
        %1763 = vmatprep.subr.mxu0 0.0
        %1764 = vmatpush1.msra.mxu0 0.0
        %1765 = vmatprep.subr.mxu0 0.0
        %1766 = vmatpush1.msra.mxu0 0.0
        %1767 = vmatprep.subr.mxu0 0.0
        %1768 = vmatpush1.msra.mxu0 0.0
        %1769 = vmatprep.subr.mxu0 0.0
        %1770 = vmatpush1.msra.mxu0 0.0
        %1771 = vmatprep.subr.mxu0 0.0
        %1772 = vmatpush1.msra.mxu0 0.0
        %1773 = vmatprep.subr.mxu0 0.0
        %1774 = vmatpush1.msra.mxu0 0.0
        %1775 = vmatprep.subr.mxu0 0.0
        %1776 = vmatpush1.msra.mxu0 0.0
        %1777 = vmatprep.subr.mxu0 0.0
        %1778 = vmatpush1.msra.mxu0 0.0
        %1779 = vmatprep.subr.mxu0 0.0
        %1780 = vmatpush1.msra.mxu0 0.0
        %1781 = vmatprep.subr.mxu0 0.0
        %1782 = vmatpush1.msra.mxu0 0.0
        %1783 = vmatprep.mubr.f32.mxu0 0.0
        %v1784 = vand.u32 %v1519, 4294901760
        %1785 = vmatmul.mubr.f32.gmra.mrb[0].mxu0 %v1784
        %v1786 = vpop.f32.mrb[0].mxu0
        %v1787 = vadd.f32 %v1614, %v1786
        %v1788 = vpop.f32.mrb[0].mxu0
        %v1789 = vadd.f32 %v1616, %v1788
        %1790 = vmatprep.mubr.f32.mxu0 0.0
        %v1791 = vand.u32 %v1522, 4294901760
        %1792 = vmatmul.mubr.f32.gmra.mrb[0].mxu0 %v1791
        %v1793 = vpop.f32.mrb[0].mxu0
        %v1794 = vadd.f32 %v1625, %v1793
        %v1795 = vpop.f32.mrb[0].mxu0
        %v1796 = vadd.f32 %v1627, %v1795
        %1797 = vdwg.mxu0
        %v1798 = vand.u32 %v1429, 4294901760
        %v1799 = vsub.f32 %v1429, %v1798
        %1800 = vmatprep.subr.mxu0 %v1799
        %v1801 = vand.u32 %v1428, 4294901760
        %v1802 = vsub.f32 %v1428, %v1801
        %1803 = vmatpush1.msra.mxu0 %v1802
        %v1804 = vand.u32 %v1435, 4294901760
        %v1805 = vsub.f32 %v1435, %v1804
        %1806 = vmatprep.subr.mxu0 %v1805
        %v1807 = vand.u32 %v1438, 4294901760
        %v1808 = vsub.f32 %v1438, %v1807
        %1809 = vmatpush1.msra.mxu0 %v1808
        %v1810 = vand.u32 %v1449, 4294901760
        %v1811 = vsub.f32 %v1449, %v1810
        %1812 = vmatprep.subr.mxu0 %v1811
        %v1813 = vand.u32 %v1448, 4294901760
        %v1814 = vsub.f32 %v1448, %v1813
        %1815 = vmatpush1.msra.mxu0 %v1814
        %v1816 = vand.u32 %v1460, 4294901760
        %v1817 = vsub.f32 %v1460, %v1816
        %1818 = vmatprep.subr.mxu0 %v1817
        %v1819 = vand.u32 %v1459, 4294901760
        %v1820 = vsub.f32 %v1459, %v1819
        %1821 = vmatpush1.msra.mxu0 %v1820
        %v1822 = vand.u32 %v798, 4294901760
        %v1823 = vsub.f32 %v798, %v1822
        %1824 = vmatprep.subr.mxu0 %v1823
        %v1825 = vand.u32 %v797, 4294901760
        %v1826 = vsub.f32 %v797, %v1825
        %1827 = vmatpush1.msra.mxu0 %v1826
        %v1828 = vand.u32 %v1471, 4294901760
        %v1829 = vsub.f32 %v1471, %v1828
        %1830 = vmatprep.subr.mxu0 %v1829
        %v1831 = vand.u32 %v1470, 4294901760
        %v1832 = vsub.f32 %v1470, %v1831
        %1833 = vmatpush1.msra.mxu0 %v1832
        %v1834 = vand.u32 %v1482, 4294901760
        %v1835 = vsub.f32 %v1482, %v1834
        %1836 = vmatprep.subr.mxu0 %v1835
        %v1837 = vand.u32 %v1481, 4294901760
        %v1838 = vsub.f32 %v1481, %v1837
        %1839 = vmatpush1.msra.mxu0 %v1838
        %v1840 = vand.u32 %v1491, 4294901760
        %v1841 = vsub.f32 %v1491, %v1840
        %1842 = vmatprep.subr.mxu0 %v1841
        %v1843 = vand.u32 %v1488, 4294901760
        %v1844 = vsub.f32 %v1488, %v1843
        %1845 = vmatpush1.msra.mxu0 %v1844
        %v1846 = vand.u32 %v1502, 4294901760
        %v1847 = vsub.f32 %v1502, %v1846
        %1848 = vmatprep.subr.mxu0 %v1847
        %v1849 = vand.u32 %v1501, 4294901760
        %v1850 = vsub.f32 %v1501, %v1849
        %1851 = vmatpush1.msra.mxu0 %v1850
        %1852 = vmatprep.subr.mxu0 0.0
        %1853 = vmatpush1.msra.mxu0 0.0
        %1854 = vmatprep.subr.mxu0 0.0
        %1855 = vmatpush1.msra.mxu0 0.0
        %1856 = vmatprep.subr.mxu0 0.0
        %1857 = vmatpush1.msra.mxu0 0.0
        %1858 = vmatprep.subr.mxu0 0.0
        %1859 = vmatpush1.msra.mxu0 0.0
        %1860 = vmatprep.subr.mxu0 0.0
        %1861 = vmatpush1.msra.mxu0 0.0
        %1862 = vmatprep.subr.mxu0 0.0
        %1863 = vmatpush1.msra.mxu0 0.0
        %1864 = vmatprep.subr.mxu0 0.0
        %1865 = vmatpush1.msra.mxu0 0.0
        %1866 = vmatprep.subr.mxu0 0.0
        %1867 = vmatpush1.msra.mxu0 0.0
        %1868 = vmatprep.subr.mxu0 0.0
        %1869 = vmatpush1.msra.mxu0 0.0
        %1870 = vmatprep.subr.mxu0 0.0
        %1871 = vmatpush1.msra.mxu0 0.0
        %1872 = vmatprep.subr.mxu0 0.0
        %1873 = vmatpush1.msra.mxu0 0.0
        %1874 = vmatprep.subr.mxu0 0.0
        %1875 = vmatpush1.msra.mxu0 0.0
        %1876 = vmatprep.subr.mxu0 0.0
        %1877 = vmatpush1.msra.mxu0 0.0
        %1878 = vmatprep.subr.mxu0 0.0
        %1879 = vmatpush1.msra.mxu0 0.0
        %1880 = vmatprep.subr.mxu0 0.0
        %1881 = vmatpush1.msra.mxu0 0.0
        %1882 = vmatprep.subr.mxu0 0.0
        %1883 = vmatpush1.msra.mxu0 0.0
        %1884 = vmatprep.subr.mxu0 0.0
        %1885 = vmatpush1.msra.mxu0 0.0
        %1886 = vmatprep.subr.mxu0 0.0
        %1887 = vmatpush1.msra.mxu0 0.0
        %1888 = vmatprep.subr.mxu0 0.0
        %1889 = vmatpush1.msra.mxu0 0.0
        %1890 = vmatprep.subr.mxu0 0.0
        %1891 = vmatpush1.msra.mxu0 0.0
        %1892 = vmatprep.subr.mxu0 0.0
        %1893 = vmatpush1.msra.mxu0 0.0
        %1894 = vmatprep.subr.mxu0 0.0
        %1895 = vmatpush1.msra.mxu0 0.0
        %1896 = vmatprep.subr.mxu0 0.0
        %1897 = vmatpush1.msra.mxu0 0.0
        %1898 = vmatprep.mubr.f32.mxu0 0.0
        %v1899 = vand.u32 %v1519, 4294901760
        %v1900 = vsub.f32 %v1519, %v1899
        %1901 = vmatmul.mubr.f32.gmra.mrb[0].mxu0 %v1900
        %v1902 = vpop.f32.mrb[0].mxu0
        %v1903 = vadd.f32 %v1787, %v1902
        %v1904 = vpop.f32.mrb[0].mxu0
        %v1905 = vadd.f32 %v1789, %v1904
        %1906 = vmatprep.mubr.f32.mxu0 0.0
        %v1907 = vand.u32 %v1522, 4294901760
        %v1908 = vsub.f32 %v1522, %v1907
        %1909 = vmatmul.mubr.f32.gmra.mrb[0].mxu0 %v1908
        %v1910 = vpop.f32.mrb[0].mxu0
        %v1911 = vadd.f32 %v1794, %v1910
        %v1912 = vpop.f32.mrb[0].mxu0
        %v1913 = vadd.f32 %v1796, %v1912
        %1914 = vdwg.mxu0
        %v1915 = vand.u32 %v1429, 4294901760
        %1916 = vmatprep.subr.mxu0 %v1915
        %v1917 = vand.u32 %v1428, 4294901760
        %1918 = vmatpush1.msra.mxu0 %v1917
        %v1919 = vand.u32 %v1435, 4294901760
        %1920 = vmatprep.subr.mxu0 %v1919
        %v1921 = vand.u32 %v1438, 4294901760
        %1922 = vmatpush1.msra.mxu0 %v1921
        %v1923 = vand.u32 %v1449, 4294901760
        %1924 = vmatprep.subr.mxu0 %v1923
        %v1925 = vand.u32 %v1448, 4294901760
        %1926 = vmatpush1.msra.mxu0 %v1925
        %v1927 = vand.u32 %v1460, 4294901760
        %1928 = vmatprep.subr.mxu0 %v1927
        %v1929 = vand.u32 %v1459, 4294901760
        %1930 = vmatpush1.msra.mxu0 %v1929
        %v1931 = vand.u32 %v798, 4294901760
        %1932 = vmatprep.subr.mxu0 %v1931
        %v1933 = vand.u32 %v797, 4294901760
        %1934 = vmatpush1.msra.mxu0 %v1933
        %v1935 = vand.u32 %v1471, 4294901760
        %1936 = vmatprep.subr.mxu0 %v1935
        %v1937 = vand.u32 %v1470, 4294901760
        %1938 = vmatpush1.msra.mxu0 %v1937
        %v1939 = vand.u32 %v1482, 4294901760
        %1940 = vmatprep.subr.mxu0 %v1939
        %v1941 = vand.u32 %v1481, 4294901760
        %1942 = vmatpush1.msra.mxu0 %v1941
        %v1943 = vand.u32 %v1491, 4294901760
        %1944 = vmatprep.subr.mxu0 %v1943
        %v1945 = vand.u32 %v1488, 4294901760
        %1946 = vmatpush1.msra.mxu0 %v1945
        %v1947 = vand.u32 %v1502, 4294901760
        %1948 = vmatprep.subr.mxu0 %v1947
        %v1949 = vand.u32 %v1501, 4294901760
        %1950 = vmatpush1.msra.mxu0 %v1949
        %1951 = vmatprep.subr.mxu0 0.0
        %1952 = vmatpush1.msra.mxu0 0.0
        %1953 = vmatprep.subr.mxu0 0.0
        %1954 = vmatpush1.msra.mxu0 0.0
        %1955 = vmatprep.subr.mxu0 0.0
        %1956 = vmatpush1.msra.mxu0 0.0
        %1957 = vmatprep.subr.mxu0 0.0
        %1958 = vmatpush1.msra.mxu0 0.0
        %1959 = vmatprep.subr.mxu0 0.0
        %1960 = vmatpush1.msra.mxu0 0.0
        %1961 = vmatprep.subr.mxu0 0.0
        %1962 = vmatpush1.msra.mxu0 0.0
        %1963 = vmatprep.subr.mxu0 0.0
        %1964 = vmatpush1.msra.mxu0 0.0
        %1965 = vmatprep.subr.mxu0 0.0
        %1966 = vmatpush1.msra.mxu0 0.0
        %1967 = vmatprep.subr.mxu0 0.0
        %1968 = vmatpush1.msra.mxu0 0.0
        %1969 = vmatprep.subr.mxu0 0.0
        %1970 = vmatpush1.msra.mxu0 0.0
        %1971 = vmatprep.subr.mxu0 0.0
        %1972 = vmatpush1.msra.mxu0 0.0
        %1973 = vmatprep.subr.mxu0 0.0
        %1974 = vmatpush1.msra.mxu0 0.0
        %1975 = vmatprep.subr.mxu0 0.0
        %1976 = vmatpush1.msra.mxu0 0.0
        %1977 = vmatprep.subr.mxu0 0.0
        %1978 = vmatpush1.msra.mxu0 0.0
        %1979 = vmatprep.subr.mxu0 0.0
        %1980 = vmatpush1.msra.mxu0 0.0
        %1981 = vmatprep.subr.mxu0 0.0
        %1982 = vmatpush1.msra.mxu0 0.0
        %1983 = vmatprep.subr.mxu0 0.0
        %1984 = vmatpush1.msra.mxu0 0.0
        %1985 = vmatprep.subr.mxu0 0.0
        %1986 = vmatpush1.msra.mxu0 0.0
        %1987 = vmatprep.subr.mxu0 0.0
        %1988 = vmatpush1.msra.mxu0 0.0
        %1989 = vmatprep.subr.mxu0 0.0
        %1990 = vmatpush1.msra.mxu0 0.0
        %1991 = vmatprep.subr.mxu0 0.0
        %1992 = vmatpush1.msra.mxu0 0.0
        %1993 = vmatprep.subr.mxu0 0.0
        %1994 = vmatpush1.msra.mxu0 0.0
        %1995 = vmatprep.subr.mxu0 0.0
        %1996 = vmatpush1.msra.mxu0 0.0
        %1997 = vmatprep.mubr.f32.mxu0 0.0
        %v1998 = vand.u32 %v1519, 4294901760
        %v1999 = vsub.f32 %v1519, %v1998
        %v2000 = vand.u32 %v1999, 4294901760
        %2001 = vmatmul.mubr.f32.gmra.mrb[0].mxu0 %v2000
        %v2002 = vpop.f32.mrb[0].mxu0
        %v2003 = vadd.f32 %v1903, %v2002
        %v2004 = vpop.f32.mrb[0].mxu0
        %v2005 = vadd.f32 %v1905, %v2004
        %2006 = vmatprep.mubr.f32.mxu0 0.0
        %v2007 = vand.u32 %v1522, 4294901760
        %v2008 = vsub.f32 %v1522, %v2007
        %v2009 = vand.u32 %v2008, 4294901760
        %2010 = vmatmul.mubr.f32.gmra.mrb[0].mxu0 %v2009
        %v2011 = vpop.f32.mrb[0].mxu0
        %v2012 = vadd.f32 %v1911, %v2011
        %v2013 = vpop.f32.mrb[0].mxu0
        %v2014 = vadd.f32 %v1913, %v2013
        %2015 = vdwg.mxu0
        %v2016 = vand.u32 %v1429, 4294901760
        %v2017 = vsub.f32 %v1429, %v2016
        %v2018 = vand.u32 %v2017, 4294901760
        %2019 = vmatprep.subr.mxu0 %v2018
        %v2020 = vand.u32 %v1428, 4294901760
        %v2021 = vsub.f32 %v1428, %v2020
        %v2022 = vand.u32 %v2021, 4294901760
        %2023 = vmatpush1.msra.mxu0 %v2022
        %v2024 = vand.u32 %v1435, 4294901760
        %v2025 = vsub.f32 %v1435, %v2024
        %v2026 = vand.u32 %v2025, 4294901760
        %2027 = vmatprep.subr.mxu0 %v2026
        %v2028 = vand.u32 %v1438, 4294901760
        %v2029 = vsub.f32 %v1438, %v2028
        %v2030 = vand.u32 %v2029, 4294901760
        %2031 = vmatpush1.msra.mxu0 %v2030
        %v2032 = vand.u32 %v1449, 4294901760
        %v2033 = vsub.f32 %v1449, %v2032
        %v2034 = vand.u32 %v2033, 4294901760
        %2035 = vmatprep.subr.mxu0 %v2034
        %v2036 = vand.u32 %v1448, 4294901760
        %v2037 = vsub.f32 %v1448, %v2036
        %v2038 = vand.u32 %v2037, 4294901760
        %2039 = vmatpush1.msra.mxu0 %v2038
        %v2040 = vand.u32 %v1460, 4294901760
        %v2041 = vsub.f32 %v1460, %v2040
        %v2042 = vand.u32 %v2041, 4294901760
        %2043 = vmatprep.subr.mxu0 %v2042
        %v2044 = vand.u32 %v1459, 4294901760
        %v2045 = vsub.f32 %v1459, %v2044
        %v2046 = vand.u32 %v2045, 4294901760
        %2047 = vmatpush1.msra.mxu0 %v2046
        %v2048 = vand.u32 %v798, 4294901760
        %v2049 = vsub.f32 %v798, %v2048
        %v2050 = vand.u32 %v2049, 4294901760
        %2051 = vmatprep.subr.mxu0 %v2050
        %v2052 = vand.u32 %v797, 4294901760
        %v2053 = vsub.f32 %v797, %v2052
        %v2054 = vand.u32 %v2053, 4294901760
        %2055 = vmatpush1.msra.mxu0 %v2054
        %v2056 = vand.u32 %v1471, 4294901760
        %v2057 = vsub.f32 %v1471, %v2056
        %v2058 = vand.u32 %v2057, 4294901760
        %2059 = vmatprep.subr.mxu0 %v2058
        %v2060 = vand.u32 %v1470, 4294901760
        %v2061 = vsub.f32 %v1470, %v2060
        %v2062 = vand.u32 %v2061, 4294901760
        %2063 = vmatpush1.msra.mxu0 %v2062
        %v2064 = vand.u32 %v1482, 4294901760
        %v2065 = vsub.f32 %v1482, %v2064
        %v2066 = vand.u32 %v2065, 4294901760
        %2067 = vmatprep.subr.mxu0 %v2066
        %v2068 = vand.u32 %v1481, 4294901760
        %v2069 = vsub.f32 %v1481, %v2068
        %v2070 = vand.u32 %v2069, 4294901760
        %2071 = vmatpush1.msra.mxu0 %v2070
        %v2072 = vand.u32 %v1491, 4294901760
        %v2073 = vsub.f32 %v1491, %v2072
        %v2074 = vand.u32 %v2073, 4294901760
        %2075 = vmatprep.subr.mxu0 %v2074
        %v2076 = vand.u32 %v1488, 4294901760
        %v2077 = vsub.f32 %v1488, %v2076
        %v2078 = vand.u32 %v2077, 4294901760
        %2079 = vmatpush1.msra.mxu0 %v2078
        %v2080 = vand.u32 %v1502, 4294901760
        %v2081 = vsub.f32 %v1502, %v2080
        %v2082 = vand.u32 %v2081, 4294901760
        %2083 = vmatprep.subr.mxu0 %v2082
        %v2084 = vand.u32 %v1501, 4294901760
        %v2085 = vsub.f32 %v1501, %v2084
        %v2086 = vand.u32 %v2085, 4294901760
        %2087 = vmatpush1.msra.mxu0 %v2086
        %2088 = vmatprep.subr.mxu0 0.0
        %2089 = vmatpush1.msra.mxu0 0.0
        %2090 = vmatprep.subr.mxu0 0.0
        %2091 = vmatpush1.msra.mxu0 0.0
        %2092 = vmatprep.subr.mxu0 0.0
        %2093 = vmatpush1.msra.mxu0 0.0
        %2094 = vmatprep.subr.mxu0 0.0
        %2095 = vmatpush1.msra.mxu0 0.0
        %2096 = vmatprep.subr.mxu0 0.0
        %2097 = vmatpush1.msra.mxu0 0.0
        %2098 = vmatprep.subr.mxu0 0.0
        %2099 = vmatpush1.msra.mxu0 0.0
        %2100 = vmatprep.subr.mxu0 0.0
        %2101 = vmatpush1.msra.mxu0 0.0
        %2102 = vmatprep.subr.mxu0 0.0
        %2103 = vmatpush1.msra.mxu0 0.0
        %2104 = vmatprep.subr.mxu0 0.0
        %2105 = vmatpush1.msra.mxu0 0.0
        %2106 = vmatprep.subr.mxu0 0.0
        %2107 = vmatpush1.msra.mxu0 0.0
        %2108 = vmatprep.subr.mxu0 0.0
        %2109 = vmatpush1.msra.mxu0 0.0
        %2110 = vmatprep.subr.mxu0 0.0
        %2111 = vmatpush1.msra.mxu0 0.0
        %2112 = vmatprep.subr.mxu0 0.0
        %2113 = vmatpush1.msra.mxu0 0.0
        %2114 = vmatprep.subr.mxu0 0.0
        %2115 = vmatpush1.msra.mxu0 0.0
        %2116 = vmatprep.subr.mxu0 0.0
        %2117 = vmatpush1.msra.mxu0 0.0
        %2118 = vmatprep.subr.mxu0 0.0
        %2119 = vmatpush1.msra.mxu0 0.0
        %2120 = vmatprep.subr.mxu0 0.0
        %2121 = vmatpush1.msra.mxu0 0.0
        %2122 = vmatprep.subr.mxu0 0.0
        %2123 = vmatpush1.msra.mxu0 0.0
        %2124 = vmatprep.subr.mxu0 0.0
        %2125 = vmatpush1.msra.mxu0 0.0
        %2126 = vmatprep.subr.mxu0 0.0
        %2127 = vmatpush1.msra.mxu0 0.0
        %2128 = vmatprep.subr.mxu0 0.0
        %2129 = vmatpush1.msra.mxu0 0.0
        %2130 = vmatprep.subr.mxu0 0.0
        %2131 = vmatpush1.msra.mxu0 0.0
        %2132 = vmatprep.subr.mxu0 0.0
        %2133 = vmatpush1.msra.mxu0 0.0
        %2134 = vmatprep.mubr.f32.mxu0 0.0
        %v2135 = vand.u32 %v1519, 4294901760
        %2136 = vmatmul.mubr.f32.gmra.mrb[0].mxu0 %v2135
        %v2137 = vpop.f32.mrb[0].mxu0
        %v2138 = vadd.f32 %v2003, %v2137
        %v2139 = vpop.f32.mrb[0].mxu0
        %v2140 = vadd.f32 %v2005, %v2139
        %2141 = vmatprep.mubr.f32.mxu0 0.0
        %v2142 = vand.u32 %v1522, 4294901760
        %2143 = vmatmul.mubr.f32.gmra.mrb[0].mxu0 %v2142
        %v2144 = vpop.f32.mrb[0].mxu0
        %v2145 = vadd.f32 %v2012, %v2144
        %v2146 = vpop.f32.mrb[0].mxu0
        %v2147 = vadd.f32 %v2014, %v2146
        %2148 = vdwg.mxu0
        %v2149 = vand.u32 %v1429, 4294901760
        %2150 = vmatprep.subr.mxu0 %v2149
        %v2151 = vand.u32 %v1428, 4294901760
        %2152 = vmatpush1.msra.mxu0 %v2151
        %v2153 = vand.u32 %v1435, 4294901760
        %2154 = vmatprep.subr.mxu0 %v2153
        %v2155 = vand.u32 %v1438, 4294901760
        %2156 = vmatpush1.msra.mxu0 %v2155
        %v2157 = vand.u32 %v1449, 4294901760
        %2158 = vmatprep.subr.mxu0 %v2157
        %v2159 = vand.u32 %v1448, 4294901760
        %2160 = vmatpush1.msra.mxu0 %v2159
        %v2161 = vand.u32 %v1460, 4294901760
        %2162 = vmatprep.subr.mxu0 %v2161
        %v2163 = vand.u32 %v1459, 4294901760
        %2164 = vmatpush1.msra.mxu0 %v2163
        %v2165 = vand.u32 %v798, 4294901760
        %2166 = vmatprep.subr.mxu0 %v2165
        %v2167 = vand.u32 %v797, 4294901760
        %2168 = vmatpush1.msra.mxu0 %v2167
        %v2169 = vand.u32 %v1471, 4294901760
        %2170 = vmatprep.subr.mxu0 %v2169
        %v2171 = vand.u32 %v1470, 4294901760
        %2172 = vmatpush1.msra.mxu0 %v2171
        %v2173 = vand.u32 %v1482, 4294901760
        %2174 = vmatprep.subr.mxu0 %v2173
        %v2175 = vand.u32 %v1481, 4294901760
        %2176 = vmatpush1.msra.mxu0 %v2175
        %v2177 = vand.u32 %v1491, 4294901760
        %2178 = vmatprep.subr.mxu0 %v2177
        %v2179 = vand.u32 %v1488, 4294901760
        %2180 = vmatpush1.msra.mxu0 %v2179
        %v2181 = vand.u32 %v1502, 4294901760
        %2182 = vmatprep.subr.mxu0 %v2181
        %v2183 = vand.u32 %v1501, 4294901760
        %2184 = vmatpush1.msra.mxu0 %v2183
        %2185 = vmatprep.subr.mxu0 0.0
        %2186 = vmatpush1.msra.mxu0 0.0
        %2187 = vmatprep.subr.mxu0 0.0
        %2188 = vmatpush1.msra.mxu0 0.0
        %2189 = vmatprep.subr.mxu0 0.0
        %2190 = vmatpush1.msra.mxu0 0.0
        %2191 = vmatprep.subr.mxu0 0.0
        %2192 = vmatpush1.msra.mxu0 0.0
        %2193 = vmatprep.subr.mxu0 0.0
        %2194 = vmatpush1.msra.mxu0 0.0
        %2195 = vmatprep.subr.mxu0 0.0
        %2196 = vmatpush1.msra.mxu0 0.0
        %2197 = vmatprep.subr.mxu0 0.0
        %2198 = vmatpush1.msra.mxu0 0.0
        %2199 = vmatprep.subr.mxu0 0.0
        %2200 = vmatpush1.msra.mxu0 0.0
        %2201 = vmatprep.subr.mxu0 0.0
        %2202 = vmatpush1.msra.mxu0 0.0
        %2203 = vmatprep.subr.mxu0 0.0
        %2204 = vmatpush1.msra.mxu0 0.0
        %2205 = vmatprep.subr.mxu0 0.0
        %2206 = vmatpush1.msra.mxu0 0.0
        %2207 = vmatprep.subr.mxu0 0.0
        %2208 = vmatpush1.msra.mxu0 0.0
        %2209 = vmatprep.subr.mxu0 0.0
        %2210 = vmatpush1.msra.mxu0 0.0
        %2211 = vmatprep.subr.mxu0 0.0
        %2212 = vmatpush1.msra.mxu0 0.0
        %2213 = vmatprep.subr.mxu0 0.0
        %2214 = vmatpush1.msra.mxu0 0.0
        %2215 = vmatprep.subr.mxu0 0.0
        %2216 = vmatpush1.msra.mxu0 0.0
        %2217 = vmatprep.subr.mxu0 0.0
        %2218 = vmatpush1.msra.mxu0 0.0
        %2219 = vmatprep.subr.mxu0 0.0
        %2220 = vmatpush1.msra.mxu0 0.0
        %2221 = vmatprep.subr.mxu0 0.0
        %2222 = vmatpush1.msra.mxu0 0.0
        %2223 = vmatprep.subr.mxu0 0.0
        %2224 = vmatpush1.msra.mxu0 0.0
        %2225 = vmatprep.subr.mxu0 0.0
        %2226 = vmatpush1.msra.mxu0 0.0
        %2227 = vmatprep.subr.mxu0 0.0
        %2228 = vmatpush1.msra.mxu0 0.0
        %2229 = vmatprep.subr.mxu0 0.0
        %2230 = vmatpush1.msra.mxu0 0.0
        %2231 = vmatprep.mubr.f32.mxu0 0.0
        %v2232 = vand.u32 %v1519, 4294901760
        %2233 = vmatmul.mubr.f32.gmra.mrb[0].mxu0 %v2232
        %v2234 = vpop.f32.mrb[0].mxu0
        %v2235 = vadd.f32 %v2138, %v2234
        %v2236 = vpop.f32.mrb[0].mxu0
        %v2237 = vadd.f32 %v2140, %v2236
        %2238 = vmatprep.mubr.f32.mxu0 0.0
        %v2239 = vand.u32 %v1522, 4294901760
        %2240 = vmatmul.mubr.f32.gmra.mrb[0].mxu0 %v2239
        %v2241 = vpop.f32.mrb[0].mxu0
        %v2242 = vadd.f32 %v2145, %v2241
        %v2243 = vpop.f32.mrb[0].mxu0
        %v2244 = vadd.f32 %v2147, %v2243
        %2245 = vdwg.mxu0
        %v2246 = vadd.f32 %v2235, %v2237
        %2247 = vadd.xlane.f32.xlu0 %v2246
        %v2248 = vpop.xlane.xlu0 %2247
        %v2249 = vadd.f32 %v2242, %v2244
        %2250 = vadd.xlane.f32.xlu0 %v2249
        %v2251 = vpop.xlane.xlu0 %2250
        %v2252 = vrcp.pop 256.0
        %v2253 = vmul.f32 %v2248, %v2252
        %v2254 = vmul.f32 %v2251, %v2252
        %v2255 = vmul.f32 %v2235, %v2235
        %v2256 = vmul.f32 %v2237, %v2237
        %v2257 = vmul.f32 %v2242, %v2242
        %v2258 = vmul.f32 %v2244, %v2244
        %v2259 = vadd.f32 %v2255, %v2256
        %2260 = vadd.xlane.f32.xlu0 %v2259
        %v2261 = vpop.xlane.xlu0 %2260
        %v2262 = vadd.f32 %v2257, %v2258
        %2263 = vadd.xlane.f32.xlu0 %v2262
        %v2264 = vpop.xlane.xlu0 %2263
        %v2265 = vmul.f32 %v2261, %v2252
        %v2266 = vmul.f32 %v2264, %v2252
        %v2267 = vsel %vm1454, %v2253, %v2265
        %v2268 = vsel %vm1454, %v2254, %v2266
        %v2269 = vld [vmem:[%s22] sm:$0xff]
        %v2270 = vld [vmem:[%s22 + $0x8] sm:$0xff]
        %v2272 = vsel %vm1434, %v2269, 0
        %v2275 = vsel %vm1434, %v2270, 0
        %2277 = vmatprep.subr.mxu0 0.0
        %v2278 = vand.u32 %v2267, 4294901760
        %2279 = vmatpush1.msra.mxu0 %v2278
        %2280 = vmatprep.subr.mxu0 0.0
        %v2281 = vand.u32 %v2268, 4294901760
        %2282 = vmatpush1.msra.mxu0 %v2281
        %2283 = vmatprep.subr.mxu0 0.0
        %2284 = vmatpush1.msra.mxu0 0.0
        %2285 = vmatprep.subr.mxu0 0.0
        %2286 = vmatpush1.msra.mxu0 0.0
        %2287 = vmatprep.subr.mxu0 0.0
        %2288 = vmatpush1.msra.mxu0 0.0
        %2289 = vmatprep.subr.mxu0 0.0
        %2290 = vmatpush1.msra.mxu0 0.0
        %2291 = vmatprep.subr.mxu0 0.0
        %2292 = vmatpush1.msra.mxu0 0.0
        %2293 = vmatprep.subr.mxu0 0.0
        %2294 = vmatpush1.msra.mxu0 0.0
        %2295 = vmatprep.subr.mxu0 0.0
        %2296 = vmatpush1.msra.mxu0 0.0
        %2297 = vmatprep.subr.mxu0 0.0
        %2298 = vmatpush1.msra.mxu0 0.0
        %2299 = vmatprep.subr.mxu0 0.0
        %2300 = vmatpush1.msra.mxu0 0.0
        %2301 = vmatprep.subr.mxu0 0.0
        %2302 = vmatpush1.msra.mxu0 0.0
        %2303 = vmatprep.subr.mxu0 0.0
        %2304 = vmatpush1.msra.mxu0 0.0
        %2305 = vmatprep.subr.mxu0 0.0
        %2306 = vmatpush1.msra.mxu0 0.0
        %2307 = vmatprep.subr.mxu0 0.0
        %2308 = vmatpush1.msra.mxu0 0.0
        %2309 = vmatprep.subr.mxu0 0.0
        %2310 = vmatpush1.msra.mxu0 0.0
        %2311 = vmatprep.subr.mxu0 0.0
        %2312 = vmatpush1.msra.mxu0 0.0
        %2313 = vmatprep.subr.mxu0 0.0
        %2314 = vmatpush1.msra.mxu0 0.0
        %2315 = vmatprep.subr.mxu0 0.0
        %2316 = vmatpush1.msra.mxu0 0.0
        %2317 = vmatprep.subr.mxu0 0.0
        %2318 = vmatpush1.msra.mxu0 0.0
        %2319 = vmatprep.subr.mxu0 0.0
        %2320 = vmatpush1.msra.mxu0 0.0
        %2321 = vmatprep.subr.mxu0 0.0
        %2322 = vmatpush1.msra.mxu0 0.0
        %2323 = vmatprep.subr.mxu0 0.0
        %2324 = vmatpush1.msra.mxu0 0.0
        %2325 = vmatprep.subr.mxu0 0.0
        %2326 = vmatpush1.msra.mxu0 0.0
        %2327 = vmatprep.subr.mxu0 0.0
        %2328 = vmatpush1.msra.mxu0 0.0
        %2329 = vmatprep.subr.mxu0 0.0
        %2330 = vmatpush1.msra.mxu0 0.0
        %2331 = vmatprep.subr.mxu0 0.0
        %2332 = vmatpush1.msra.mxu0 0.0
        %2333 = vmatprep.subr.mxu0 0.0
        %2334 = vmatpush1.msra.mxu0 0.0
        %2335 = vmatprep.subr.mxu0 0.0
        %2336 = vmatpush1.msra.mxu0 0.0
        %2337 = vmatprep.subr.mxu0 0.0
        %2338 = vmatpush1.msra.mxu0 0.0
        %2339 = vmatprep.subr.mxu0 0.0
        %2340 = vmatpush1.msra.mxu0 0.0
        %2341 = vmatprep.subr.mxu0 0.0
        %2342 = vmatpush1.msra.mxu0 0.0
        %2343 = vmatprep.mubr.f32.mxu0 0.0
        %v2344 = vand.u32 %v2272, 4294901760
        %v2345 = vsub.f32 %v2272, %v2344
        %v2346 = vand.u32 %v2345, 4294901760
        %v2347 = vsub.f32 %v2345, %v2346
        %v2348 = vand.u32 %v2347, 4294901760
        %2349 = vmatmul.mubr.f32.gmra.mrb[0].mxu0 %v2348
        %v2350 = vpop.f32.mrb[0].mxu0
        %v2351 = vadd.f32 0.0, %v2350
        %v2352 = vpop.f32.mrb[0].mxu0
        %2353 = vmatprep.mubr.f32.mxu0 0.0
        %v2354 = vand.u32 %v2275, 4294901760
        %v2355 = vsub.f32 %v2275, %v2354
        %v2356 = vand.u32 %v2355, 4294901760
        %v2357 = vsub.f32 %v2355, %v2356
        %v2358 = vand.u32 %v2357, 4294901760
        %2359 = vmatmul.mubr.f32.gmra.mrb[0].mxu0 %v2358
        %v2360 = vpop.f32.mrb[0].mxu0
        %v2361 = vadd.f32 0.0, %v2360
        %v2362 = vpop.f32.mrb[0].mxu0
        %2363 = vdwg.mxu0
        %2364 = vmatprep.subr.mxu0 0.0
        %v2365 = vand.u32 %v2267, 4294901760
        %v2366 = vsub.f32 %v2267, %v2365
        %v2367 = vand.u32 %v2366, 4294901760
        %v2368 = vsub.f32 %v2366, %v2367
        %v2369 = vand.u32 %v2368, 4294901760
        %2370 = vmatpush1.msra.mxu0 %v2369
        %2371 = vmatprep.subr.mxu0 0.0
        %v2372 = vand.u32 %v2268, 4294901760
        %v2373 = vsub.f32 %v2268, %v2372
        %v2374 = vand.u32 %v2373, 4294901760
        %v2375 = vsub.f32 %v2373, %v2374
        %v2376 = vand.u32 %v2375, 4294901760
        %2377 = vmatpush1.msra.mxu0 %v2376
        %2378 = vmatprep.subr.mxu0 0.0
        %2379 = vmatpush1.msra.mxu0 0.0
        %2380 = vmatprep.subr.mxu0 0.0
        %2381 = vmatpush1.msra.mxu0 0.0
        %2382 = vmatprep.subr.mxu0 0.0
        %2383 = vmatpush1.msra.mxu0 0.0
        %2384 = vmatprep.subr.mxu0 0.0
        %2385 = vmatpush1.msra.mxu0 0.0
        %2386 = vmatprep.subr.mxu0 0.0
        %2387 = vmatpush1.msra.mxu0 0.0
        %2388 = vmatprep.subr.mxu0 0.0
        %2389 = vmatpush1.msra.mxu0 0.0
        %2390 = vmatprep.subr.mxu0 0.0
        %2391 = vmatpush1.msra.mxu0 0.0
        %2392 = vmatprep.subr.mxu0 0.0
        %2393 = vmatpush1.msra.mxu0 0.0
        %2394 = vmatprep.subr.mxu0 0.0
        %2395 = vmatpush1.msra.mxu0 0.0
        %2396 = vmatprep.subr.mxu0 0.0
        %2397 = vmatpush1.msra.mxu0 0.0
        %2398 = vmatprep.subr.mxu0 0.0
        %2399 = vmatpush1.msra.mxu0 0.0
        %2400 = vmatprep.subr.mxu0 0.0
        %2401 = vmatpush1.msra.mxu0 0.0
        %2402 = vmatprep.subr.mxu0 0.0
        %2403 = vmatpush1.msra.mxu0 0.0
        %2404 = vmatprep.subr.mxu0 0.0
        %2405 = vmatpush1.msra.mxu0 0.0
        %2406 = vmatprep.subr.mxu0 0.0
        %2407 = vmatpush1.msra.mxu0 0.0
        %2408 = vmatprep.subr.mxu0 0.0
        %2409 = vmatpush1.msra.mxu0 0.0
        %2410 = vmatprep.subr.mxu0 0.0
        %2411 = vmatpush1.msra.mxu0 0.0
        %2412 = vmatprep.subr.mxu0 0.0
        %2413 = vmatpush1.msra.mxu0 0.0
        %2414 = vmatprep.subr.mxu0 0.0
        %2415 = vmatpush1.msra.mxu0 0.0
        %2416 = vmatprep.subr.mxu0 0.0
        %2417 = vmatpush1.msra.mxu0 0.0
        %2418 = vmatprep.subr.mxu0 0.0
        %2419 = vmatpush1.msra.mxu0 0.0
        %2420 = vmatprep.subr.mxu0 0.0
        %2421 = vmatpush1.msra.mxu0 0.0
        %2422 = vmatprep.subr.mxu0 0.0
        %2423 = vmatpush1.msra.mxu0 0.0
        %2424 = vmatprep.subr.mxu0 0.0
        %2425 = vmatpush1.msra.mxu0 0.0
        %2426 = vmatprep.subr.mxu0 0.0
        %2427 = vmatpush1.msra.mxu0 0.0
        %2428 = vmatprep.subr.mxu0 0.0
        %2429 = vmatpush1.msra.mxu0 0.0
        %2430 = vmatprep.subr.mxu0 0.0
        %2431 = vmatpush1.msra.mxu0 0.0
        %2432 = vmatprep.subr.mxu0 0.0
        %2433 = vmatpush1.msra.mxu0 0.0
        %2434 = vmatprep.subr.mxu0 0.0
        %2435 = vmatpush1.msra.mxu0 0.0
        %2436 = vmatprep.subr.mxu0 0.0
        %2437 = vmatpush1.msra.mxu0 0.0
        %2438 = vmatprep.mubr.f32.mxu0 0.0
        %v2439 = vand.u32 %v2272, 4294901760
        %2440 = vmatmul.mubr.f32.gmra.mrb[0].mxu0 %v2439
        %v2441 = vpop.f32.mrb[0].mxu0
        %v2442 = vadd.f32 %v2351, %v2441
        %v2443 = vpop.f32.mrb[0].mxu0
        %2444 = vmatprep.mubr.f32.mxu0 0.0
        %v2445 = vand.u32 %v2275, 4294901760
        %2446 = vmatmul.mubr.f32.gmra.mrb[0].mxu0 %v2445
        %v2447 = vpop.f32.mrb[0].mxu0
        %v2448 = vadd.f32 %v2361, %v2447
        %v2449 = vpop.f32.mrb[0].mxu0
        %2450 = vdwg.mxu0
        %2451 = vmatprep.subr.mxu0 0.0
        %v2452 = vand.u32 %v2267, 4294901760
        %v2453 = vsub.f32 %v2267, %v2452
        %2454 = vmatpush1.msra.mxu0 %v2453
        %2455 = vmatprep.subr.mxu0 0.0
        %v2456 = vand.u32 %v2268, 4294901760
        %v2457 = vsub.f32 %v2268, %v2456
        %2458 = vmatpush1.msra.mxu0 %v2457
        %2459 = vmatprep.subr.mxu0 0.0
        %2460 = vmatpush1.msra.mxu0 0.0
        %2461 = vmatprep.subr.mxu0 0.0
        %2462 = vmatpush1.msra.mxu0 0.0
        %2463 = vmatprep.subr.mxu0 0.0
        %2464 = vmatpush1.msra.mxu0 0.0
        %2465 = vmatprep.subr.mxu0 0.0
        %2466 = vmatpush1.msra.mxu0 0.0
        %2467 = vmatprep.subr.mxu0 0.0
        %2468 = vmatpush1.msra.mxu0 0.0
        %2469 = vmatprep.subr.mxu0 0.0
        %2470 = vmatpush1.msra.mxu0 0.0
        %2471 = vmatprep.subr.mxu0 0.0
        %2472 = vmatpush1.msra.mxu0 0.0
        %2473 = vmatprep.subr.mxu0 0.0
        %2474 = vmatpush1.msra.mxu0 0.0
        %2475 = vmatprep.subr.mxu0 0.0
        %2476 = vmatpush1.msra.mxu0 0.0
        %2477 = vmatprep.subr.mxu0 0.0
        %2478 = vmatpush1.msra.mxu0 0.0
        %2479 = vmatprep.subr.mxu0 0.0
        %2480 = vmatpush1.msra.mxu0 0.0
        %2481 = vmatprep.subr.mxu0 0.0
        %2482 = vmatpush1.msra.mxu0 0.0
        %2483 = vmatprep.subr.mxu0 0.0
        %2484 = vmatpush1.msra.mxu0 0.0
        %2485 = vmatprep.subr.mxu0 0.0
        %2486 = vmatpush1.msra.mxu0 0.0
        %2487 = vmatprep.subr.mxu0 0.0
        %2488 = vmatpush1.msra.mxu0 0.0
        %2489 = vmatprep.subr.mxu0 0.0
        %2490 = vmatpush1.msra.mxu0 0.0
        %2491 = vmatprep.subr.mxu0 0.0
        %2492 = vmatpush1.msra.mxu0 0.0
        %2493 = vmatprep.subr.mxu0 0.0
        %2494 = vmatpush1.msra.mxu0 0.0
        %2495 = vmatprep.subr.mxu0 0.0
        %2496 = vmatpush1.msra.mxu0 0.0
        %2497 = vmatprep.subr.mxu0 0.0
        %2498 = vmatpush1.msra.mxu0 0.0
        %2499 = vmatprep.subr.mxu0 0.0
        %2500 = vmatpush1.msra.mxu0 0.0
        %2501 = vmatprep.subr.mxu0 0.0
        %2502 = vmatpush1.msra.mxu0 0.0
        %2503 = vmatprep.subr.mxu0 0.0
        %2504 = vmatpush1.msra.mxu0 0.0
        %2505 = vmatprep.subr.mxu0 0.0
        %2506 = vmatpush1.msra.mxu0 0.0
        %2507 = vmatprep.subr.mxu0 0.0
        %2508 = vmatpush1.msra.mxu0 0.0
        %2509 = vmatprep.subr.mxu0 0.0
        %2510 = vmatpush1.msra.mxu0 0.0
        %2511 = vmatprep.subr.mxu0 0.0
        %2512 = vmatpush1.msra.mxu0 0.0
        %2513 = vmatprep.subr.mxu0 0.0
        %2514 = vmatpush1.msra.mxu0 0.0
        %2515 = vmatprep.subr.mxu0 0.0
        %2516 = vmatpush1.msra.mxu0 0.0
        %2517 = vmatprep.subr.mxu0 0.0
        %2518 = vmatpush1.msra.mxu0 0.0
        %2519 = vmatprep.mubr.f32.mxu0 0.0
        %v2520 = vand.u32 %v2272, 4294901760
        %v2521 = vsub.f32 %v2272, %v2520
        %2522 = vmatmul.mubr.f32.gmra.mrb[0].mxu0 %v2521
        %v2523 = vpop.f32.mrb[0].mxu0
        %v2524 = vadd.f32 %v2442, %v2523
        %v2525 = vpop.f32.mrb[0].mxu0
        %2526 = vmatprep.mubr.f32.mxu0 0.0
        %v2527 = vand.u32 %v2275, 4294901760
        %v2528 = vsub.f32 %v2275, %v2527
        %2529 = vmatmul.mubr.f32.gmra.mrb[0].mxu0 %v2528
        %v2530 = vpop.f32.mrb[0].mxu0
        %v2531 = vadd.f32 %v2448, %v2530
        %v2532 = vpop.f32.mrb[0].mxu0
        %2533 = vdwg.mxu0
        %2534 = vmatprep.subr.mxu0 0.0
        %v2535 = vand.u32 %v2267, 4294901760
        %2536 = vmatpush1.msra.mxu0 %v2535
        %2537 = vmatprep.subr.mxu0 0.0
        %v2538 = vand.u32 %v2268, 4294901760
        %2539 = vmatpush1.msra.mxu0 %v2538
        %2540 = vmatprep.subr.mxu0 0.0
        %2541 = vmatpush1.msra.mxu0 0.0
        %2542 = vmatprep.subr.mxu0 0.0
        %2543 = vmatpush1.msra.mxu0 0.0
        %2544 = vmatprep.subr.mxu0 0.0
        %2545 = vmatpush1.msra.mxu0 0.0
        %2546 = vmatprep.subr.mxu0 0.0
        %2547 = vmatpush1.msra.mxu0 0.0
        %2548 = vmatprep.subr.mxu0 0.0
        %2549 = vmatpush1.msra.mxu0 0.0
        %2550 = vmatprep.subr.mxu0 0.0
        %2551 = vmatpush1.msra.mxu0 0.0
        %2552 = vmatprep.subr.mxu0 0.0
        %2553 = vmatpush1.msra.mxu0 0.0
        %2554 = vmatprep.subr.mxu0 0.0
        %2555 = vmatpush1.msra.mxu0 0.0
        %2556 = vmatprep.subr.mxu0 0.0
        %2557 = vmatpush1.msra.mxu0 0.0
        %2558 = vmatprep.subr.mxu0 0.0
        %2559 = vmatpush1.msra.mxu0 0.0
        %2560 = vmatprep.subr.mxu0 0.0
        %2561 = vmatpush1.msra.mxu0 0.0
        %2562 = vmatprep.subr.mxu0 0.0
        %2563 = vmatpush1.msra.mxu0 0.0
        %2564 = vmatprep.subr.mxu0 0.0
        %2565 = vmatpush1.msra.mxu0 0.0
        %2566 = vmatprep.subr.mxu0 0.0
        %2567 = vmatpush1.msra.mxu0 0.0
        %2568 = vmatprep.subr.mxu0 0.0
        %2569 = vmatpush1.msra.mxu0 0.0
        %2570 = vmatprep.subr.mxu0 0.0
        %2571 = vmatpush1.msra.mxu0 0.0
        %2572 = vmatprep.subr.mxu0 0.0
        %2573 = vmatpush1.msra.mxu0 0.0
        %2574 = vmatprep.subr.mxu0 0.0
        %2575 = vmatpush1.msra.mxu0 0.0
        %2576 = vmatprep.subr.mxu0 0.0
        %2577 = vmatpush1.msra.mxu0 0.0
        %2578 = vmatprep.subr.mxu0 0.0
        %2579 = vmatpush1.msra.mxu0 0.0
        %2580 = vmatprep.subr.mxu0 0.0
        %2581 = vmatpush1.msra.mxu0 0.0
        %2582 = vmatprep.subr.mxu0 0.0
        %2583 = vmatpush1.msra.mxu0 0.0
        %2584 = vmatprep.subr.mxu0 0.0
        %2585 = vmatpush1.msra.mxu0 0.0
        %2586 = vmatprep.subr.mxu0 0.0
        %2587 = vmatpush1.msra.mxu0 0.0
        %2588 = vmatprep.subr.mxu0 0.0
        %2589 = vmatpush1.msra.mxu0 0.0
        %2590 = vmatprep.subr.mxu0 0.0
        %2591 = vmatpush1.msra.mxu0 0.0
        %2592 = vmatprep.subr.mxu0 0.0
        %2593 = vmatpush1.msra.mxu0 0.0
        %2594 = vmatprep.subr.mxu0 0.0
        %2595 = vmatpush1.msra.mxu0 0.0
        %2596 = vmatprep.subr.mxu0 0.0
        %2597 = vmatpush1.msra.mxu0 0.0
        %2598 = vmatprep.subr.mxu0 0.0
        %2599 = vmatpush1.msra.mxu0 0.0
        %2600 = vmatprep.mubr.f32.mxu0 0.0
        %v2601 = vand.u32 %v2272, 4294901760
        %v2602 = vsub.f32 %v2272, %v2601
        %v2603 = vand.u32 %v2602, 4294901760
        %2604 = vmatmul.mubr.f32.gmra.mrb[0].mxu0 %v2603
        %v2605 = vpop.f32.mrb[0].mxu0
        %v2606 = vadd.f32 %v2524, %v2605
        %v2607 = vpop.f32.mrb[0].mxu0
        %2608 = vmatprep.mubr.f32.mxu0 0.0
        %v2609 = vand.u32 %v2275, 4294901760
        %v2610 = vsub.f32 %v2275, %v2609
        %v2611 = vand.u32 %v2610, 4294901760
        %2612 = vmatmul.mubr.f32.gmra.mrb[0].mxu0 %v2611
        %v2613 = vpop.f32.mrb[0].mxu0
        %v2614 = vadd.f32 %v2531, %v2613
        %v2615 = vpop.f32.mrb[0].mxu0
        %2616 = vdwg.mxu0
        %2617 = vmatprep.subr.mxu0 0.0
        %v2618 = vand.u32 %v2267, 4294901760
        %v2619 = vsub.f32 %v2267, %v2618
        %v2620 = vand.u32 %v2619, 4294901760
        %2621 = vmatpush1.msra.mxu0 %v2620
        %2622 = vmatprep.subr.mxu0 0.0
        %v2623 = vand.u32 %v2268, 4294901760
        %v2624 = vsub.f32 %v2268, %v2623
        %v2625 = vand.u32 %v2624, 4294901760
        %2626 = vmatpush1.msra.mxu0 %v2625
        %2627 = vmatprep.subr.mxu0 0.0
        %2628 = vmatpush1.msra.mxu0 0.0
        %2629 = vmatprep.subr.mxu0 0.0
        %2630 = vmatpush1.msra.mxu0 0.0
        %2631 = vmatprep.subr.mxu0 0.0
        %2632 = vmatpush1.msra.mxu0 0.0
        %2633 = vmatprep.subr.mxu0 0.0
        %2634 = vmatpush1.msra.mxu0 0.0
        %2635 = vmatprep.subr.mxu0 0.0
        %2636 = vmatpush1.msra.mxu0 0.0
        %2637 = vmatprep.subr.mxu0 0.0
        %2638 = vmatpush1.msra.mxu0 0.0
        %2639 = vmatprep.subr.mxu0 0.0
        %2640 = vmatpush1.msra.mxu0 0.0
        %2641 = vmatprep.subr.mxu0 0.0
        %2642 = vmatpush1.msra.mxu0 0.0
        %2643 = vmatprep.subr.mxu0 0.0
        %2644 = vmatpush1.msra.mxu0 0.0
        %2645 = vmatprep.subr.mxu0 0.0
        %2646 = vmatpush1.msra.mxu0 0.0
        %2647 = vmatprep.subr.mxu0 0.0
        %2648 = vmatpush1.msra.mxu0 0.0
        %2649 = vmatprep.subr.mxu0 0.0
        %2650 = vmatpush1.msra.mxu0 0.0
        %2651 = vmatprep.subr.mxu0 0.0
        %2652 = vmatpush1.msra.mxu0 0.0
        %2653 = vmatprep.subr.mxu0 0.0
        %2654 = vmatpush1.msra.mxu0 0.0
        %2655 = vmatprep.subr.mxu0 0.0
        %2656 = vmatpush1.msra.mxu0 0.0
        %2657 = vmatprep.subr.mxu0 0.0
        %2658 = vmatpush1.msra.mxu0 0.0
        %2659 = vmatprep.subr.mxu0 0.0
        %2660 = vmatpush1.msra.mxu0 0.0
        %2661 = vmatprep.subr.mxu0 0.0
        %2662 = vmatpush1.msra.mxu0 0.0
        %2663 = vmatprep.subr.mxu0 0.0
        %2664 = vmatpush1.msra.mxu0 0.0
        %2665 = vmatprep.subr.mxu0 0.0
        %2666 = vmatpush1.msra.mxu0 0.0
        %2667 = vmatprep.subr.mxu0 0.0
        %2668 = vmatpush1.msra.mxu0 0.0
        %2669 = vmatprep.subr.mxu0 0.0
        %2670 = vmatpush1.msra.mxu0 0.0
        %2671 = vmatprep.subr.mxu0 0.0
        %2672 = vmatpush1.msra.mxu0 0.0
        %2673 = vmatprep.subr.mxu0 0.0
        %2674 = vmatpush1.msra.mxu0 0.0
        %2675 = vmatprep.subr.mxu0 0.0
        %2676 = vmatpush1.msra.mxu0 0.0
        %2677 = vmatprep.subr.mxu0 0.0
        %2678 = vmatpush1.msra.mxu0 0.0
        %2679 = vmatprep.subr.mxu0 0.0
        %2680 = vmatpush1.msra.mxu0 0.0
        %2681 = vmatprep.subr.mxu0 0.0
        %2682 = vmatpush1.msra.mxu0 0.0
        %2683 = vmatprep.subr.mxu0 0.0
        %2684 = vmatpush1.msra.mxu0 0.0
        %2685 = vmatprep.subr.mxu0 0.0
        %2686 = vmatpush1.msra.mxu0 0.0
        %2687 = vmatprep.mubr.f32.mxu0 0.0
        %v2688 = vand.u32 %v2272, 4294901760
        %2689 = vmatmul.mubr.f32.gmra.mrb[0].mxu0 %v2688
        %v2690 = vpop.f32.mrb[0].mxu0
        %v2691 = vadd.f32 %v2606, %v2690
        %v2692 = vpop.f32.mrb[0].mxu0
        %2693 = vmatprep.mubr.f32.mxu0 0.0
        %v2694 = vand.u32 %v2275, 4294901760
        %2695 = vmatmul.mubr.f32.gmra.mrb[0].mxu0 %v2694
        %v2696 = vpop.f32.mrb[0].mxu0
        %v2697 = vadd.f32 %v2614, %v2696
        %v2698 = vpop.f32.mrb[0].mxu0
        %2699 = vdwg.mxu0
        %2700 = vmatprep.subr.mxu0 0.0
        %v2701 = vand.u32 %v2267, 4294901760
        %2702 = vmatpush1.msra.mxu0 %v2701
        %2703 = vmatprep.subr.mxu0 0.0
        %v2704 = vand.u32 %v2268, 4294901760
        %2705 = vmatpush1.msra.mxu0 %v2704
        %2706 = vmatprep.subr.mxu0 0.0
        %2707 = vmatpush1.msra.mxu0 0.0
        %2708 = vmatprep.subr.mxu0 0.0
        %2709 = vmatpush1.msra.mxu0 0.0
        %2710 = vmatprep.subr.mxu0 0.0
        %2711 = vmatpush1.msra.mxu0 0.0
        %2712 = vmatprep.subr.mxu0 0.0
        %2713 = vmatpush1.msra.mxu0 0.0
        %2714 = vmatprep.subr.mxu0 0.0
        %2715 = vmatpush1.msra.mxu0 0.0
        %2716 = vmatprep.subr.mxu0 0.0
        %2717 = vmatpush1.msra.mxu0 0.0
        %2718 = vmatprep.subr.mxu0 0.0
        %2719 = vmatpush1.msra.mxu0 0.0
        %2720 = vmatprep.subr.mxu0 0.0
        %2721 = vmatpush1.msra.mxu0 0.0
        %2722 = vmatprep.subr.mxu0 0.0
        %2723 = vmatpush1.msra.mxu0 0.0
        %2724 = vmatprep.subr.mxu0 0.0
        %2725 = vmatpush1.msra.mxu0 0.0
        %2726 = vmatprep.subr.mxu0 0.0
        %2727 = vmatpush1.msra.mxu0 0.0
        %2728 = vmatprep.subr.mxu0 0.0
        %2729 = vmatpush1.msra.mxu0 0.0
        %2730 = vmatprep.subr.mxu0 0.0
        %2731 = vmatpush1.msra.mxu0 0.0
        %2732 = vmatprep.subr.mxu0 0.0
        %2733 = vmatpush1.msra.mxu0 0.0
        %2734 = vmatprep.subr.mxu0 0.0
        %2735 = vmatpush1.msra.mxu0 0.0
        %2736 = vmatprep.subr.mxu0 0.0
        %2737 = vmatpush1.msra.mxu0 0.0
        %2738 = vmatprep.subr.mxu0 0.0
        %2739 = vmatpush1.msra.mxu0 0.0
        %2740 = vmatprep.subr.mxu0 0.0
        %2741 = vmatpush1.msra.mxu0 0.0
        %2742 = vmatprep.subr.mxu0 0.0
        %2743 = vmatpush1.msra.mxu0 0.0
        %2744 = vmatprep.subr.mxu0 0.0
        %2745 = vmatpush1.msra.mxu0 0.0
        %2746 = vmatprep.subr.mxu0 0.0
        %2747 = vmatpush1.msra.mxu0 0.0
        %2748 = vmatprep.subr.mxu0 0.0
        %2749 = vmatpush1.msra.mxu0 0.0
        %2750 = vmatprep.subr.mxu0 0.0
        %2751 = vmatpush1.msra.mxu0 0.0
        %2752 = vmatprep.subr.mxu0 0.0
        %2753 = vmatpush1.msra.mxu0 0.0
        %2754 = vmatprep.subr.mxu0 0.0
        %2755 = vmatpush1.msra.mxu0 0.0
        %2756 = vmatprep.subr.mxu0 0.0
        %2757 = vmatpush1.msra.mxu0 0.0
        %2758 = vmatprep.subr.mxu0 0.0
        %2759 = vmatpush1.msra.mxu0 0.0
        %2760 = vmatprep.subr.mxu0 0.0
        %2761 = vmatpush1.msra.mxu0 0.0
        %2762 = vmatprep.subr.mxu0 0.0
        %2763 = vmatpush1.msra.mxu0 0.0
        %2764 = vmatprep.subr.mxu0 0.0
        %2765 = vmatpush1.msra.mxu0 0.0
        %2766 = vmatprep.mubr.f32.mxu0 0.0
        %v2767 = vand.u32 %v2272, 4294901760
        %2768 = vmatmul.mubr.f32.gmra.mrb[0].mxu0 %v2767
        %v2769 = vpop.f32.mrb[0].mxu0
        %v2770 = vadd.f32 %v2691, %v2769
        %v2771 = vpop.f32.mrb[0].mxu0
        %2772 = vmatprep.mubr.f32.mxu0 0.0
        %v2773 = vand.u32 %v2275, 4294901760
        %2774 = vmatmul.mubr.f32.gmra.mrb[0].mxu0 %v2773
        %v2775 = vpop.f32.mrb[0].mxu0
        %v2776 = vadd.f32 %v2697, %v2775
        %v2777 = vpop.f32.mrb[0].mxu0
        %2778 = vdwg.mxu0
        %v2779 = vmul.f32 %v2770, %v2770
        %v2780 = vmul.f32 %v2776, %v2776
        %2783 = vrot.lane.b32.xlu0 %v2779, 1
        %v2784 = vpop.permute.xlu0 %2783
        %2785 = vrot.lane.b32.xlu0 %v2780, 1
        %v2786 = vpop.permute.xlu0 %2785
        %v2789 = vsub.f32 %v2770, %v2784
        %v2790 = vsub.f32 %v2776, %v2786
        %v2791 = vadd.f32 %v2789, 1e-05
        %v2792 = vadd.f32 %v2790, 1e-05
        %v2793 = vrsqrt.pop %v2791
        %v2794 = vrsqrt.pop %v2792
        %2796 = vset.pattern.permute.xlu0 0
        %2797 = vperm.xlu0 %2796, %v2770
        %v2798 = vpop.permute.xlu0 %2797
        %2801 = vset.pattern.permute.xlu0 0
        %2802 = vperm.xlu0 %2801, %v2776
        %v2803 = vpop.permute.xlu0 %2802
        %v2805 = vsub.f32 %v2235, %v2798
        %v2806 = vsub.f32 %v2237, %v2798
        %v2807 = vsub.f32 %v2242, %v2803
        %v2808 = vsub.f32 %v2244, %v2803
        %2810 = vset.pattern.permute.xlu0 1
        %2811 = vperm.xlu0 %2810, %v2793
        %v2812 = vpop.permute.xlu0 %2811
        %2815 = vset.pattern.permute.xlu0 1
        %2816 = vperm.xlu0 %2815, %v2794
        %v2817 = vpop.permute.xlu0 %2816
        %v2819 = vmul.f32 %v2805, %v2812
        %v2820 = vmul.f32 %v2806, %v2812
        %v2821 = vmul.f32 %v2807, %v2817
        %v2822 = vmul.f32 %v2808, %v2817
        %v2823 = vld [vmem:[%s6] sm:$0xff]
        %v2824 = vld [vmem:[%s6 + $0x8] sm:$0xff]
        %2826 = vset.pattern.permute.xlu0 0
        %2827 = vperm.xlu0 %2826, %v2823
        %v2828 = vpop.permute.xlu0 %2827
        %2831 = vset.pattern.permute.xlu0 0
        %2832 = vperm.xlu0 %2831, %v2824
        %v2833 = vpop.permute.xlu0 %2832
        %v2835 = vmul.f32 %v2819, %v2828
        %v2836 = vmul.f32 %v2820, %v2828
        %v2837 = vmul.f32 %v2821, %v2833
        %v2838 = vmul.f32 %v2822, %v2833
        %v2839 = vld [vmem:[%s7] sm:$0xff]
        %v2840 = vld [vmem:[%s7 + $0x8] sm:$0xff]
        %2842 = vset.pattern.permute.xlu0 0
        %2843 = vperm.xlu0 %2842, %v2839
        %v2844 = vpop.permute.xlu0 %2843
        %2847 = vset.pattern.permute.xlu0 0
        %2848 = vperm.xlu0 %2847, %v2840
        %v2849 = vpop.permute.xlu0 %2848
        %v2851 = vadd.f32 %v2835, %v2844
        %v2852 = vadd.f32 %v2836, %v2844
        %v2853 = vadd.f32 %v2837, %v2849
        %v2854 = vadd.f32 %v2838, %v2849
        %v2855 = vxor.u32 %v2851, 2147483648
        %v2856 = vxor.u32 %v2852, 2147483648
        %v2857 = vxor.u32 %v2853, 2147483648
        %v2858 = vxor.u32 %v2854, 2147483648
        %v2859 = vmul.f32 %v2855, 1.442695
        %v2860 = vpow.pop %v2859
        %v2861 = vmul.f32 %v2856, 1.442695
        %v2862 = vpow.pop %v2861
        %v2863 = vmul.f32 %v2857, 1.442695
        %v2864 = vpow.pop %v2863
        %v2865 = vmul.f32 %v2858, 1.442695
        %v2866 = vpow.pop %v2865
        %v2867 = vadd.f32 %v2860, 1.0
        %v2868 = vadd.f32 %v2862, 1.0
        %v2869 = vadd.f32 %v2864, 1.0
        %v2870 = vadd.f32 %v2866, 1.0
        %v2871 = vrcp.pop %v2867
        %v2872 = vmul.f32 1.0, %v2871
        %v2873 = vrcp.pop %v2868
        %v2874 = vmul.f32 1.0, %v2873
        %v2875 = vrcp.pop %v2869
        %v2876 = vmul.f32 1.0, %v2875
        %v2877 = vrcp.pop %v2870
        %v2878 = vmul.f32 1.0, %v2877
        %v2879 = vmul.f32 %v2851, %v2872
        %v2880 = vmul.f32 %v2852, %v2874
        %v2881 = vmul.f32 %v2853, %v2876
        %v2882 = vmul.f32 %v2854, %v2878
        %v2883 = vld [vmem:[%s757] sm:$0xff]
        %v2884 = vld [vmem:[%s757 + $0x8] sm:$0xff]
        %v2885 = vld [vmem:[%s757 + $0x10] sm:$0xff]
        %v2886 = vld [vmem:[%s757 + $0x18] sm:$0xff]
        %v2887 = vld [vmem:[%s8] sm:$0xff]
        %v2888 = vld [vmem:[%s8 + $0x8] sm:$0xff]
        %v2889 = vld [vmem:[%s8 + $0x10] sm:$0xff]
        %v2890 = vld [vmem:[%s8 + $0x18] sm:$0xff]
        %v2891 = vld [vmem:[%s9] sm:$0xff]
        %v2892 = vld [vmem:[%s9 + $0x8] sm:$0xff]
        %v2893 = vld [vmem:[%s9 + $0x10] sm:$0xff]
        %v2894 = vld [vmem:[%s9 + $0x18] sm:$0xff]
        %vm2895 = vcmask 261120
        %v2897 = vsel %vm2895, %v2887, 0
        %v2900 = vsel %vm2895, %v2888, 0
        %v2903 = vsel %vm2895, %v2889, 0
        %v2906 = vsel %vm2895, %v2890, 0
        %2908 = vmatprep.subr.mxu0 0.0
        %v2909 = vand.u32 %v2883, 4294901760
        %2910 = vmatpush1.msra.mxu0 %v2909
        %2911 = vmatprep.subr.mxu0 0.0
        %v2912 = vand.u32 %v2884, 4294901760
        %2913 = vmatpush1.msra.mxu0 %v2912
        %2914 = vmatprep.subr.mxu0 0.0
        %v2915 = vand.u32 %v2885, 4294901760
        %2916 = vmatpush1.msra.mxu0 %v2915
        %2917 = vmatprep.subr.mxu0 0.0
        %v2918 = vand.u32 %v2886, 4294901760
        %2919 = vmatpush1.msra.mxu0 %v2918
        %2920 = vmatprep.subr.mxu0 0.0
        %2921 = vmatpush1.msra.mxu0 0.0
        %2922 = vmatprep.subr.mxu0 0.0
        %2923 = vmatpush1.msra.mxu0 0.0
        %2924 = vmatprep.subr.mxu0 0.0
        %2925 = vmatpush1.msra.mxu0 0.0
        %2926 = vmatprep.subr.mxu0 0.0
        %2927 = vmatpush1.msra.mxu0 0.0
        %2928 = vmatprep.subr.mxu0 0.0
        %2929 = vmatpush1.msra.mxu0 0.0
        %2930 = vmatprep.subr.mxu0 0.0
        %2931 = vmatpush1.msra.mxu0 0.0
        %2932 = vmatprep.subr.mxu0 0.0
        %2933 = vmatpush1.msra.mxu0 0.0
        %2934 = vmatprep.subr.mxu0 0.0
        %2935 = vmatpush1.msra.mxu0 0.0
        %2936 = vmatprep.subr.mxu0 0.0
        %2937 = vmatpush1.msra.mxu0 0.0
        %2938 = vmatprep.subr.mxu0 0.0
        %2939 = vmatpush1.msra.mxu0 0.0
        %2940 = vmatprep.subr.mxu0 0.0
        %2941 = vmatpush1.msra.mxu0 0.0
        %2942 = vmatprep.subr.mxu0 0.0
        %2943 = vmatpush1.msra.mxu0 0.0
        %2944 = vmatprep.subr.mxu0 0.0
        %2945 = vmatpush1.msra.mxu0 0.0
        %2946 = vmatprep.subr.mxu0 0.0
        %2947 = vmatpush1.msra.mxu0 0.0
        %2948 = vmatprep.subr.mxu0 0.0
        %2949 = vmatpush1.msra.mxu0 0.0
        %2950 = vmatprep.subr.mxu0 0.0
        %2951 = vmatpush1.msra.mxu0 0.0
        %2952 = vmatprep.subr.mxu0 0.0
        %2953 = vmatpush1.msra.mxu0 0.0
        %2954 = vmatprep.subr.mxu0 0.0
        %2955 = vmatpush1.msra.mxu0 0.0
        %2956 = vmatprep.subr.mxu0 0.0
        %2957 = vmatpush1.msra.mxu0 0.0
        %2958 = vmatprep.subr.mxu0 0.0
        %2959 = vmatpush1.msra.mxu0 0.0
        %2960 = vmatprep.subr.mxu0 0.0
        %2961 = vmatpush1.msra.mxu0 0.0
        %2962 = vmatprep.subr.mxu0 0.0
        %2963 = vmatpush1.msra.mxu0 0.0
        %2964 = vmatprep.subr.mxu0 0.0
        %2965 = vmatpush1.msra.mxu0 0.0
        %2966 = vmatprep.subr.mxu0 0.0
        %2967 = vmatpush1.msra.mxu0 0.0
        %2968 = vmatprep.subr.mxu0 0.0
        %2969 = vmatpush1.msra.mxu0 0.0
        %2970 = vmatprep.subr.mxu0 0.0
        %2971 = vmatpush1.msra.mxu0 0.0
        %2972 = vmatprep.subr.mxu0 0.0
        %2973 = vmatpush1.msra.mxu0 0.0
        %2974 = vmatprep.subr.mxu0 0.0
        %2975 = vmatpush1.msra.mxu0 0.0
        %2976 = vmatprep.mubr.f32.mxu0 0.0
        %v2977 = vand.u32 %v2897, 4294901760
        %v2978 = vsub.f32 %v2897, %v2977
        %v2979 = vand.u32 %v2978, 4294901760
        %v2980 = vsub.f32 %v2978, %v2979
        %v2981 = vand.u32 %v2980, 4294901760
        %2982 = vmatmul.mubr.f32.gmra.mrb[0].mxu0 %v2981
        %v2983 = vpop.f32.mrb[0].mxu0
        %v2984 = vadd.f32 %v2891, %v2983
        %v2985 = vpop.f32.mrb[0].mxu0
        %2986 = vmatprep.mubr.f32.mxu0 0.0
        %v2987 = vand.u32 %v2900, 4294901760
        %v2988 = vsub.f32 %v2900, %v2987
        %v2989 = vand.u32 %v2988, 4294901760
        %v2990 = vsub.f32 %v2988, %v2989
        %v2991 = vand.u32 %v2990, 4294901760
        %2992 = vmatmul.mubr.f32.gmra.mrb[0].mxu0 %v2991
        %v2993 = vpop.f32.mrb[0].mxu0
        %v2994 = vadd.f32 %v2892, %v2993
        %v2995 = vpop.f32.mrb[0].mxu0
        %2996 = vmatprep.mubr.f32.mxu0 0.0
        %v2997 = vand.u32 %v2903, 4294901760
        %v2998 = vsub.f32 %v2903, %v2997
        %v2999 = vand.u32 %v2998, 4294901760
        %v3000 = vsub.f32 %v2998, %v2999
        %v3001 = vand.u32 %v3000, 4294901760
        %3002 = vmatmul.mubr.f32.gmra.mrb[0].mxu0 %v3001
        %v3003 = vpop.f32.mrb[0].mxu0
        %v3004 = vadd.f32 %v2893, %v3003
        %v3005 = vpop.f32.mrb[0].mxu0
        %3006 = vmatprep.mubr.f32.mxu0 0.0
        %v3007 = vand.u32 %v2906, 4294901760
        %v3008 = vsub.f32 %v2906, %v3007
        %v3009 = vand.u32 %v3008, 4294901760
        %v3010 = vsub.f32 %v3008, %v3009
        %v3011 = vand.u32 %v3010, 4294901760
        %3012 = vmatmul.mubr.f32.gmra.mrb[0].mxu0 %v3011
        %v3013 = vpop.f32.mrb[0].mxu0
        %v3014 = vadd.f32 %v2894, %v3013
        %v3015 = vpop.f32.mrb[0].mxu0
        %3016 = vdwg.mxu0
        %3017 = vmatprep.subr.mxu0 0.0
        %v3018 = vand.u32 %v2883, 4294901760
        %v3019 = vsub.f32 %v2883, %v3018
        %v3020 = vand.u32 %v3019, 4294901760
        %v3021 = vsub.f32 %v3019, %v3020
        %v3022 = vand.u32 %v3021, 4294901760
        %3023 = vmatpush1.msra.mxu0 %v3022
        %3024 = vmatprep.subr.mxu0 0.0
        %v3025 = vand.u32 %v2884, 4294901760
        %v3026 = vsub.f32 %v2884, %v3025
        %v3027 = vand.u32 %v3026, 4294901760
        %v3028 = vsub.f32 %v3026, %v3027
        %v3029 = vand.u32 %v3028, 4294901760
        %3030 = vmatpush1.msra.mxu0 %v3029
        %3031 = vmatprep.subr.mxu0 0.0
        %v3032 = vand.u32 %v2885, 4294901760
        %v3033 = vsub.f32 %v2885, %v3032
        %v3034 = vand.u32 %v3033, 4294901760
        %v3035 = vsub.f32 %v3033, %v3034
        %v3036 = vand.u32 %v3035, 4294901760
        %3037 = vmatpush1.msra.mxu0 %v3036
        %3038 = vmatprep.subr.mxu0 0.0
        %v3039 = vand.u32 %v2886, 4294901760
        %v3040 = vsub.f32 %v2886, %v3039
        %v3041 = vand.u32 %v3040, 4294901760
        %v3042 = vsub.f32 %v3040, %v3041
        %v3043 = vand.u32 %v3042, 4294901760
        %3044 = vmatpush1.msra.mxu0 %v3043
        %3045 = vmatprep.subr.mxu0 0.0
        %3046 = vmatpush1.msra.mxu0 0.0
        %3047 = vmatprep.subr.mxu0 0.0
        %3048 = vmatpush1.msra.mxu0 0.0
        %3049 = vmatprep.subr.mxu0 0.0
        %3050 = vmatpush1.msra.mxu0 0.0
        %3051 = vmatprep.subr.mxu0 0.0
        %3052 = vmatpush1.msra.mxu0 0.0
        %3053 = vmatprep.subr.mxu0 0.0
        %3054 = vmatpush1.msra.mxu0 0.0
        %3055 = vmatprep.subr.mxu0 0.0
        %3056 = vmatpush1.msra.mxu0 0.0
        %3057 = vmatprep.subr.mxu0 0.0
        %3058 = vmatpush1.msra.mxu0 0.0
        %3059 = vmatprep.subr.mxu0 0.0
        %3060 = vmatpush1.msra.mxu0 0.0
        %3061 = vmatprep.subr.mxu0 0.0
        %3062 = vmatpush1.msra.mxu0 0.0
        %3063 = vmatprep.subr.mxu0 0.0
        %3064 = vmatpush1.msra.mxu0 0.0
        %3065 = vmatprep.subr.mxu0 0.0
        %3066 = vmatpush1.msra.mxu0 0.0
        %3067 = vmatprep.subr.mxu0 0.0
        %3068 = vmatpush1.msra.mxu0 0.0
        %3069 = vmatprep.subr.mxu0 0.0
        %3070 = vmatpush1.msra.mxu0 0.0
        %3071 = vmatprep.subr.mxu0 0.0
        %3072 = vmatpush1.msra.mxu0 0.0
        %3073 = vmatprep.subr.mxu0 0.0
        %3074 = vmatpush1.msra.mxu0 0.0
        %3075 = vmatprep.subr.mxu0 0.0
        %3076 = vmatpush1.msra.mxu0 0.0
        %3077 = vmatprep.subr.mxu0 0.0
        %3078 = vmatpush1.msra.mxu0 0.0
        %3079 = vmatprep.subr.mxu0 0.0
        %3080 = vmatpush1.msra.mxu0 0.0
        %3081 = vmatprep.subr.mxu0 0.0
        %3082 = vmatpush1.msra.mxu0 0.0
        %3083 = vmatprep.subr.mxu0 0.0
        %3084 = vmatpush1.msra.mxu0 0.0
        %3085 = vmatprep.subr.mxu0 0.0
        %3086 = vmatpush1.msra.mxu0 0.0
        %3087 = vmatprep.subr.mxu0 0.0
        %3088 = vmatpush1.msra.mxu0 0.0
        %3089 = vmatprep.subr.mxu0 0.0
        %3090 = vmatpush1.msra.mxu0 0.0
        %3091 = vmatprep.subr.mxu0 0.0
        %3092 = vmatpush1.msra.mxu0 0.0
        %3093 = vmatprep.subr.mxu0 0.0
        %3094 = vmatpush1.msra.mxu0 0.0
        %3095 = vmatprep.subr.mxu0 0.0
        %3096 = vmatpush1.msra.mxu0 0.0
        %3097 = vmatprep.subr.mxu0 0.0
        %3098 = vmatpush1.msra.mxu0 0.0
        %3099 = vmatprep.subr.mxu0 0.0
        %3100 = vmatpush1.msra.mxu0 0.0
        %3101 = vmatprep.mubr.f32.mxu0 0.0
        %v3102 = vand.u32 %v2897, 4294901760
        %3103 = vmatmul.mubr.f32.gmra.mrb[0].mxu0 %v3102
        %v3104 = vpop.f32.mrb[0].mxu0
        %v3105 = vadd.f32 %v2984, %v3104
        %v3106 = vpop.f32.mrb[0].mxu0
        %3107 = vmatprep.mubr.f32.mxu0 0.0
        %v3108 = vand.u32 %v2900, 4294901760
        %3109 = vmatmul.mubr.f32.gmra.mrb[0].mxu0 %v3108
        %v3110 = vpop.f32.mrb[0].mxu0
        %v3111 = vadd.f32 %v2994, %v3110
        %v3112 = vpop.f32.mrb[0].mxu0
        %3113 = vmatprep.mubr.f32.mxu0 0.0
        %v3114 = vand.u32 %v2903, 4294901760
        %3115 = vmatmul.mubr.f32.gmra.mrb[0].mxu0 %v3114
        %v3116 = vpop.f32.mrb[0].mxu0
        %v3117 = vadd.f32 %v3004, %v3116
        %v3118 = vpop.f32.mrb[0].mxu0
        %3119 = vmatprep.mubr.f32.mxu0 0.0
        %v3120 = vand.u32 %v2906, 4294901760
        %3121 = vmatmul.mubr.f32.gmra.mrb[0].mxu0 %v3120
        %v3122 = vpop.f32.mrb[0].mxu0
        %v3123 = vadd.f32 %v3014, %v3122
        %v3124 = vpop.f32.mrb[0].mxu0
        %3125 = vdwg.mxu0
        %3126 = vmatprep.subr.mxu0 0.0
        %v3127 = vand.u32 %v2883, 4294901760
        %v3128 = vsub.f32 %v2883, %v3127
        %3129 = vmatpush1.msra.mxu0 %v3128
        %3130 = vmatprep.subr.mxu0 0.0
        %v3131 = vand.u32 %v2884, 4294901760
        %v3132 = vsub.f32 %v2884, %v3131
        %3133 = vmatpush1.msra.mxu0 %v3132
        %3134 = vmatprep.subr.mxu0 0.0
        %v3135 = vand.u32 %v2885, 4294901760
        %v3136 = vsub.f32 %v2885, %v3135
        %3137 = vmatpush1.msra.mxu0 %v3136
        %3138 = vmatprep.subr.mxu0 0.0
        %v3139 = vand.u32 %v2886, 4294901760
        %v3140 = vsub.f32 %v2886, %v3139
        %3141 = vmatpush1.msra.mxu0 %v3140
        %3142 = vmatprep.subr.mxu0 0.0
        %3143 = vmatpush1.msra.mxu0 0.0
        %3144 = vmatprep.subr.mxu0 0.0
        %3145 = vmatpush1.msra.mxu0 0.0
        %3146 = vmatprep.subr.mxu0 0.0
        %3147 = vmatpush1.msra.mxu0 0.0
        %3148 = vmatprep.subr.mxu0 0.0
        %3149 = vmatpush1.msra.mxu0 0.0
        %3150 = vmatprep.subr.mxu0 0.0
        %3151 = vmatpush1.msra.mxu0 0.0
        %3152 = vmatprep.subr.mxu0 0.0
        %3153 = vmatpush1.msra.mxu0 0.0
        %3154 = vmatprep.subr.mxu0 0.0
        %3155 = vmatpush1.msra.mxu0 0.0
        %3156 = vmatprep.subr.mxu0 0.0
        %3157 = vmatpush1.msra.mxu0 0.0
        %3158 = vmatprep.subr.mxu0 0.0
        %3159 = vmatpush1.msra.mxu0 0.0
        %3160 = vmatprep.subr.mxu0 0.0
        %3161 = vmatpush1.msra.mxu0 0.0
        %3162 = vmatprep.subr.mxu0 0.0
        %3163 = vmatpush1.msra.mxu0 0.0
        %3164 = vmatprep.subr.mxu0 0.0
        %3165 = vmatpush1.msra.mxu0 0.0
        %3166 = vmatprep.subr.mxu0 0.0
        %3167 = vmatpush1.msra.mxu0 0.0
        %3168 = vmatprep.subr.mxu0 0.0
        %3169 = vmatpush1.msra.mxu0 0.0
        %3170 = vmatprep.subr.mxu0 0.0
        %3171 = vmatpush1.msra.mxu0 0.0
        %3172 = vmatprep.subr.mxu0 0.0
        %3173 = vmatpush1.msra.mxu0 0.0
        %3174 = vmatprep.subr.mxu0 0.0
        %3175 = vmatpush1.msra.mxu0 0.0
        %3176 = vmatprep.subr.mxu0 0.0
        %3177 = vmatpush1.msra.mxu0 0.0
        %3178 = vmatprep.subr.mxu0 0.0
        %3179 = vmatpush1.msra.mxu0 0.0
        %3180 = vmatprep.subr.mxu0 0.0
        %3181 = vmatpush1.msra.mxu0 0.0
        %3182 = vmatprep.subr.mxu0 0.0
        %3183 = vmatpush1.msra.mxu0 0.0
        %3184 = vmatprep.subr.mxu0 0.0
        %3185 = vmatpush1.msra.mxu0 0.0
        %3186 = vmatprep.subr.mxu0 0.0
        %3187 = vmatpush1.msra.mxu0 0.0
        %3188 = vmatprep.subr.mxu0 0.0
        %3189 = vmatpush1.msra.mxu0 0.0
        %3190 = vmatprep.subr.mxu0 0.0
        %3191 = vmatpush1.msra.mxu0 0.0
        %3192 = vmatprep.subr.mxu0 0.0
        %3193 = vmatpush1.msra.mxu0 0.0
        %3194 = vmatprep.subr.mxu0 0.0
        %3195 = vmatpush1.msra.mxu0 0.0
        %3196 = vmatprep.subr.mxu0 0.0
        %3197 = vmatpush1.msra.mxu0 0.0
        %3198 = vmatprep.mubr.f32.mxu0 0.0
        %v3199 = vand.u32 %v2897, 4294901760
        %v3200 = vsub.f32 %v2897, %v3199
        %3201 = vmatmul.mubr.f32.gmra.mrb[0].mxu0 %v3200
        %v3202 = vpop.f32.mrb[0].mxu0
        %v3203 = vadd.f32 %v3105, %v3202
        %v3204 = vpop.f32.mrb[0].mxu0
        %3205 = vmatprep.mubr.f32.mxu0 0.0
        %v3206 = vand.u32 %v2900, 4294901760
        %v3207 = vsub.f32 %v2900, %v3206
        %3208 = vmatmul.mubr.f32.gmra.mrb[0].mxu0 %v3207
        %v3209 = vpop.f32.mrb[0].mxu0
        %v3210 = vadd.f32 %v3111, %v3209
        %v3211 = vpop.f32.mrb[0].mxu0
        %3212 = vmatprep.mubr.f32.mxu0 0.0
        %v3213 = vand.u32 %v2903, 4294901760
        %v3214 = vsub.f32 %v2903, %v3213
        %3215 = vmatmul.mubr.f32.gmra.mrb[0].mxu0 %v3214
        %v3216 = vpop.f32.mrb[0].mxu0
        %v3217 = vadd.f32 %v3117, %v3216
        %v3218 = vpop.f32.mrb[0].mxu0
        %3219 = vmatprep.mubr.f32.mxu0 0.0
        %v3220 = vand.u32 %v2906, 4294901760
        %v3221 = vsub.f32 %v2906, %v3220
        %3222 = vmatmul.mubr.f32.gmra.mrb[0].mxu0 %v3221
        %v3223 = vpop.f32.mrb[0].mxu0
        %v3224 = vadd.f32 %v3123, %v3223
        %v3225 = vpop.f32.mrb[0].mxu0
        %3226 = vdwg.mxu0
        %3227 = vmatprep.subr.mxu0 0.0
        %v3228 = vand.u32 %v2883, 4294901760
        %3229 = vmatpush1.msra.mxu0 %v3228
        %3230 = vmatprep.subr.mxu0 0.0
        %v3231 = vand.u32 %v2884, 4294901760
        %3232 = vmatpush1.msra.mxu0 %v3231
        %3233 = vmatprep.subr.mxu0 0.0
        %v3234 = vand.u32 %v2885, 4294901760
        %3235 = vmatpush1.msra.mxu0 %v3234
        %3236 = vmatprep.subr.mxu0 0.0
        %v3237 = vand.u32 %v2886, 4294901760
        %3238 = vmatpush1.msra.mxu0 %v3237
        %3239 = vmatprep.subr.mxu0 0.0
        %3240 = vmatpush1.msra.mxu0 0.0
        %3241 = vmatprep.subr.mxu0 0.0
        %3242 = vmatpush1.msra.mxu0 0.0
        %3243 = vmatprep.subr.mxu0 0.0
        %3244 = vmatpush1.msra.mxu0 0.0
        %3245 = vmatprep.subr.mxu0 0.0
        %3246 = vmatpush1.msra.mxu0 0.0
        %3247 = vmatprep.subr.mxu0 0.0
        %3248 = vmatpush1.msra.mxu0 0.0
        %3249 = vmatprep.subr.mxu0 0.0
        %3250 = vmatpush1.msra.mxu0 0.0
        %3251 = vmatprep.subr.mxu0 0.0
        %3252 = vmatpush1.msra.mxu0 0.0
        %3253 = vmatprep.subr.mxu0 0.0
        %3254 = vmatpush1.msra.mxu0 0.0
        %3255 = vmatprep.subr.mxu0 0.0
        %3256 = vmatpush1.msra.mxu0 0.0
        %3257 = vmatprep.subr.mxu0 0.0
        %3258 = vmatpush1.msra.mxu0 0.0
        %3259 = vmatprep.subr.mxu0 0.0
        %3260 = vmatpush1.msra.mxu0 0.0
        %3261 = vmatprep.subr.mxu0 0.0
        %3262 = vmatpush1.msra.mxu0 0.0
        %3263 = vmatprep.subr.mxu0 0.0
        %3264 = vmatpush1.msra.mxu0 0.0
        %3265 = vmatprep.subr.mxu0 0.0
        %3266 = vmatpush1.msra.mxu0 0.0
        %3267 = vmatprep.subr.mxu0 0.0
        %3268 = vmatpush1.msra.mxu0 0.0
        %3269 = vmatprep.subr.mxu0 0.0
        %3270 = vmatpush1.msra.mxu0 0.0
        %3271 = vmatprep.subr.mxu0 0.0
        %3272 = vmatpush1.msra.mxu0 0.0
        %3273 = vmatprep.subr.mxu0 0.0
        %3274 = vmatpush1.msra.mxu0 0.0
        %3275 = vmatprep.subr.mxu0 0.0
        %3276 = vmatpush1.msra.mxu0 0.0
        %3277 = vmatprep.subr.mxu0 0.0
        %3278 = vmatpush1.msra.mxu0 0.0
        %3279 = vmatprep.subr.mxu0 0.0
        %3280 = vmatpush1.msra.mxu0 0.0
        %3281 = vmatprep.subr.mxu0 0.0
        %3282 = vmatpush1.msra.mxu0 0.0
        %3283 = vmatprep.subr.mxu0 0.0
        %3284 = vmatpush1.msra.mxu0 0.0
        %3285 = vmatprep.subr.mxu0 0.0
        %3286 = vmatpush1.msra.mxu0 0.0
        %3287 = vmatprep.subr.mxu0 0.0
        %3288 = vmatpush1.msra.mxu0 0.0
        %3289 = vmatprep.subr.mxu0 0.0
        %3290 = vmatpush1.msra.mxu0 0.0
        %3291 = vmatprep.subr.mxu0 0.0
        %3292 = vmatpush1.msra.mxu0 0.0
        %3293 = vmatprep.subr.mxu0 0.0
        %3294 = vmatpush1.msra.mxu0 0.0
        %3295 = vmatprep.mubr.f32.mxu0 0.0
        %v3296 = vand.u32 %v2897, 4294901760
        %v3297 = vsub.f32 %v2897, %v3296
        %v3298 = vand.u32 %v3297, 4294901760
        %3299 = vmatmul.mubr.f32.gmra.mrb[0].mxu0 %v3298
        %v3300 = vpop.f32.mrb[0].mxu0
        %v3301 = vadd.f32 %v3203, %v3300
        %v3302 = vpop.f32.mrb[0].mxu0
        %3303 = vmatprep.mubr.f32.mxu0 0.0
        %v3304 = vand.u32 %v2900, 4294901760
        %v3305 = vsub.f32 %v2900, %v3304
        %v3306 = vand.u32 %v3305, 4294901760
        %3307 = vmatmul.mubr.f32.gmra.mrb[0].mxu0 %v3306
        %v3308 = vpop.f32.mrb[0].mxu0
        %v3309 = vadd.f32 %v3210, %v3308
        %v3310 = vpop.f32.mrb[0].mxu0
        %3311 = vmatprep.mubr.f32.mxu0 0.0
        %v3312 = vand.u32 %v2903, 4294901760
        %v3313 = vsub.f32 %v2903, %v3312
        %v3314 = vand.u32 %v3313, 4294901760
        %3315 = vmatmul.mubr.f32.gmra.mrb[0].mxu0 %v3314
        %v3316 = vpop.f32.mrb[0].mxu0
        %v3317 = vadd.f32 %v3217, %v3316
        %v3318 = vpop.f32.mrb[0].mxu0
        %3319 = vmatprep.mubr.f32.mxu0 0.0
        %v3320 = vand.u32 %v2906, 4294901760
        %v3321 = vsub.f32 %v2906, %v3320
        %v3322 = vand.u32 %v3321, 4294901760
        %3323 = vmatmul.mubr.f32.gmra.mrb[0].mxu0 %v3322
        %v3324 = vpop.f32.mrb[0].mxu0
        %v3325 = vadd.f32 %v3224, %v3324
        %v3326 = vpop.f32.mrb[0].mxu0
        %3327 = vdwg.mxu0
        %3328 = vmatprep.subr.mxu0 0.0
        %v3329 = vand.u32 %v2883, 4294901760
        %v3330 = vsub.f32 %v2883, %v3329
        %v3331 = vand.u32 %v3330, 4294901760
        %3332 = vmatpush1.msra.mxu0 %v3331
        %3333 = vmatprep.subr.mxu0 0.0
        %v3334 = vand.u32 %v2884, 4294901760
        %v3335 = vsub.f32 %v2884, %v3334
        %v3336 = vand.u32 %v3335, 4294901760
        %3337 = vmatpush1.msra.mxu0 %v3336
        %3338 = vmatprep.subr.mxu0 0.0
        %v3339 = vand.u32 %v2885, 4294901760
        %v3340 = vsub.f32 %v2885, %v3339
        %v3341 = vand.u32 %v3340, 4294901760
        %3342 = vmatpush1.msra.mxu0 %v3341
        %3343 = vmatprep.subr.mxu0 0.0
        %v3344 = vand.u32 %v2886, 4294901760
        %v3345 = vsub.f32 %v2886, %v3344
        %v3346 = vand.u32 %v3345, 4294901760
        %3347 = vmatpush1.msra.mxu0 %v3346
        %3348 = vmatprep.subr.mxu0 0.0
        %3349 = vmatpush1.msra.mxu0 0.0
        %3350 = vmatprep.subr.mxu0 0.0
        %3351 = vmatpush1.msra.mxu0 0.0
        %3352 = vmatprep.subr.mxu0 0.0
        %3353 = vmatpush1.msra.mxu0 0.0
        %3354 = vmatprep.subr.mxu0 0.0
        %3355 = vmatpush1.msra.mxu0 0.0
        %3356 = vmatprep.subr.mxu0 0.0
        %3357 = vmatpush1.msra.mxu0 0.0
        %3358 = vmatprep.subr.mxu0 0.0
        %3359 = vmatpush1.msra.mxu0 0.0
        %3360 = vmatprep.subr.mxu0 0.0
        %3361 = vmatpush1.msra.mxu0 0.0
        %3362 = vmatprep.subr.mxu0 0.0
        %3363 = vmatpush1.msra.mxu0 0.0
        %3364 = vmatprep.subr.mxu0 0.0
        %3365 = vmatpush1.msra.mxu0 0.0
        %3366 = vmatprep.subr.mxu0 0.0
        %3367 = vmatpush1.msra.mxu0 0.0
        %3368 = vmatprep.subr.mxu0 0.0
        %3369 = vmatpush1.msra.mxu0 0.0
        %3370 = vmatprep.subr.mxu0 0.0
        %3371 = vmatpush1.msra.mxu0 0.0
        %3372 = vmatprep.subr.mxu0 0.0
        %3373 = vmatpush1.msra.mxu0 0.0
        %3374 = vmatprep.subr.mxu0 0.0
        %3375 = vmatpush1.msra.mxu0 0.0
        %3376 = vmatprep.subr.mxu0 0.0
        %3377 = vmatpush1.msra.mxu0 0.0
        %3378 = vmatprep.subr.mxu0 0.0
        %3379 = vmatpush1.msra.mxu0 0.0
        %3380 = vmatprep.subr.mxu0 0.0
        %3381 = vmatpush1.msra.mxu0 0.0
        %3382 = vmatprep.subr.mxu0 0.0
        %3383 = vmatpush1.msra.mxu0 0.0
        %3384 = vmatprep.subr.mxu0 0.0
        %3385 = vmatpush1.msra.mxu0 0.0
        %3386 = vmatprep.subr.mxu0 0.0
        %3387 = vmatpush1.msra.mxu0 0.0
        %3388 = vmatprep.subr.mxu0 0.0
        %3389 = vmatpush1.msra.mxu0 0.0
        %3390 = vmatprep.subr.mxu0 0.0
        %3391 = vmatpush1.msra.mxu0 0.0
        %3392 = vmatprep.subr.mxu0 0.0
        %3393 = vmatpush1.msra.mxu0 0.0
        %3394 = vmatprep.subr.mxu0 0.0
        %3395 = vmatpush1.msra.mxu0 0.0
        %3396 = vmatprep.subr.mxu0 0.0
        %3397 = vmatpush1.msra.mxu0 0.0
        %3398 = vmatprep.subr.mxu0 0.0
        %3399 = vmatpush1.msra.mxu0 0.0
        %3400 = vmatprep.subr.mxu0 0.0
        %3401 = vmatpush1.msra.mxu0 0.0
        %3402 = vmatprep.subr.mxu0 0.0
        %3403 = vmatpush1.msra.mxu0 0.0
        %3404 = vmatprep.mubr.f32.mxu0 0.0
        %v3405 = vand.u32 %v2897, 4294901760
        %3406 = vmatmul.mubr.f32.gmra.mrb[0].mxu0 %v3405
        %v3407 = vpop.f32.mrb[0].mxu0
        %v3408 = vadd.f32 %v3301, %v3407
        %v3409 = vpop.f32.mrb[0].mxu0
        %3410 = vmatprep.mubr.f32.mxu0 0.0
        %v3411 = vand.u32 %v2900, 4294901760
        %3412 = vmatmul.mubr.f32.gmra.mrb[0].mxu0 %v3411
        %v3413 = vpop.f32.mrb[0].mxu0
        %v3414 = vadd.f32 %v3309, %v3413
        %v3415 = vpop.f32.mrb[0].mxu0
        %3416 = vmatprep.mubr.f32.mxu0 0.0
        %v3417 = vand.u32 %v2903, 4294901760
        %3418 = vmatmul.mubr.f32.gmra.mrb[0].mxu0 %v3417
        %v3419 = vpop.f32.mrb[0].mxu0
        %v3420 = vadd.f32 %v3317, %v3419
        %v3421 = vpop.f32.mrb[0].mxu0
        %3422 = vmatprep.mubr.f32.mxu0 0.0
        %v3423 = vand.u32 %v2906, 4294901760
        %3424 = vmatmul.mubr.f32.gmra.mrb[0].mxu0 %v3423
        %v3425 = vpop.f32.mrb[0].mxu0
        %v3426 = vadd.f32 %v3325, %v3425
        %v3427 = vpop.f32.mrb[0].mxu0
        %3428 = vdwg.mxu0
        %3429 = vmatprep.subr.mxu0 0.0
        %v3430 = vand.u32 %v2883, 4294901760
        %3431 = vmatpush1.msra.mxu0 %v3430
        %3432 = vmatprep.subr.mxu0 0.0
        %v3433 = vand.u32 %v2884, 4294901760
        %3434 = vmatpush1.msra.mxu0 %v3433
        %3435 = vmatprep.subr.mxu0 0.0
        %v3436 = vand.u32 %v2885, 4294901760
        %3437 = vmatpush1.msra.mxu0 %v3436
        %3438 = vmatprep.subr.mxu0 0.0
        %v3439 = vand.u32 %v2886, 4294901760
        %3440 = vmatpush1.msra.mxu0 %v3439
        %3441 = vmatprep.subr.mxu0 0.0
        %3442 = vmatpush1.msra.mxu0 0.0
        %3443 = vmatprep.subr.mxu0 0.0
        %3444 = vmatpush1.msra.mxu0 0.0
        %3445 = vmatprep.subr.mxu0 0.0
        %3446 = vmatpush1.msra.mxu0 0.0
        %3447 = vmatprep.subr.mxu0 0.0
        %3448 = vmatpush1.msra.mxu0 0.0
        %3449 = vmatprep.subr.mxu0 0.0
        %3450 = vmatpush1.msra.mxu0 0.0
        %3451 = vmatprep.subr.mxu0 0.0
        %3452 = vmatpush1.msra.mxu0 0.0
        %3453 = vmatprep.subr.mxu0 0.0
        %3454 = vmatpush1.msra.mxu0 0.0
        %3455 = vmatprep.subr.mxu0 0.0
        %3456 = vmatpush1.msra.mxu0 0.0
        %3457 = vmatprep.subr.mxu0 0.0
        %3458 = vmatpush1.msra.mxu0 0.0
        %3459 = vmatprep.subr.mxu0 0.0
        %3460 = vmatpush1.msra.mxu0 0.0
        %3461 = vmatprep.subr.mxu0 0.0
        %3462 = vmatpush1.msra.mxu0 0.0
        %3463 = vmatprep.subr.mxu0 0.0
        %3464 = vmatpush1.msra.mxu0 0.0
        %3465 = vmatprep.subr.mxu0 0.0
        %3466 = vmatpush1.msra.mxu0 0.0
        %3467 = vmatprep.subr.mxu0 0.0
        %3468 = vmatpush1.msra.mxu0 0.0
        %3469 = vmatprep.subr.mxu0 0.0
        %3470 = vmatpush1.msra.mxu0 0.0
        %3471 = vmatprep.subr.mxu0 0.0
        %3472 = vmatpush1.msra.mxu0 0.0
        %3473 = vmatprep.subr.mxu0 0.0
        %3474 = vmatpush1.msra.mxu0 0.0
        %3475 = vmatprep.subr.mxu0 0.0
        %3476 = vmatpush1.msra.mxu0 0.0
        %3477 = vmatprep.subr.mxu0 0.0
        %3478 = vmatpush1.msra.mxu0 0.0
        %3479 = vmatprep.subr.mxu0 0.0
        %3480 = vmatpush1.msra.mxu0 0.0
        %3481 = vmatprep.subr.mxu0 0.0
        %3482 = vmatpush1.msra.mxu0 0.0
        %3483 = vmatprep.subr.mxu0 0.0
        %3484 = vmatpush1.msra.mxu0 0.0
        %3485 = vmatprep.subr.mxu0 0.0
        %3486 = vmatpush1.msra.mxu0 0.0
        %3487 = vmatprep.subr.mxu0 0.0
        %3488 = vmatpush1.msra.mxu0 0.0
        %3489 = vmatprep.subr.mxu0 0.0
        %3490 = vmatpush1.msra.mxu0 0.0
        %3491 = vmatprep.subr.mxu0 0.0
        %3492 = vmatpush1.msra.mxu0 0.0
        %3493 = vmatprep.subr.mxu0 0.0
        %3494 = vmatpush1.msra.mxu0 0.0
        %3495 = vmatprep.subr.mxu0 0.0
        %3496 = vmatpush1.msra.mxu0 0.0
        %3497 = vmatprep.mubr.f32.mxu0 0.0
        %v3498 = vand.u32 %v2897, 4294901760
        %3499 = vmatmul.mubr.f32.gmra.mrb[0].mxu0 %v3498
        %v3500 = vpop.f32.mrb[0].mxu0
        %v3501 = vadd.f32 %v3408, %v3500
        %v3502 = vpop.f32.mrb[0].mxu0
        %3503 = vmatprep.mubr.f32.mxu0 0.0
        %v3504 = vand.u32 %v2900, 4294901760
        %3505 = vmatmul.mubr.f32.gmra.mrb[0].mxu0 %v3504
        %v3506 = vpop.f32.mrb[0].mxu0
        %v3507 = vadd.f32 %v3414, %v3506
        %v3508 = vpop.f32.mrb[0].mxu0
        %3509 = vmatprep.mubr.f32.mxu0 0.0
        %v3510 = vand.u32 %v2903, 4294901760
        %3511 = vmatmul.mubr.f32.gmra.mrb[0].mxu0 %v3510
        %v3512 = vpop.f32.mrb[0].mxu0
        %v3513 = vadd.f32 %v3420, %v3512
        %v3514 = vpop.f32.mrb[0].mxu0
        %3515 = vmatprep.mubr.f32.mxu0 0.0
        %v3516 = vand.u32 %v2906, 4294901760
        %3517 = vmatmul.mubr.f32.gmra.mrb[0].mxu0 %v3516
        %v3518 = vpop.f32.mrb[0].mxu0
        %v3519 = vadd.f32 %v3426, %v3518
        %v3520 = vpop.f32.mrb[0].mxu0
        %3521 = vdwg.mxu0
        %v3522 = vxor.u32 %v3501, 2147483648
        %v3523 = vxor.u32 %v3507, 2147483648
        %v3524 = vxor.u32 %v3513, 2147483648
        %v3525 = vxor.u32 %v3519, 2147483648
        %v3526 = vmul.f32 %v3522, 1.442695
        %v3527 = vpow.pop %v3526
        %v3528 = vmul.f32 %v3523, 1.442695
        %v3529 = vpow.pop %v3528
        %v3530 = vmul.f32 %v3524, 1.442695
        %v3531 = vpow.pop %v3530
        %v3532 = vmul.f32 %v3525, 1.442695
        %v3533 = vpow.pop %v3532
        %v3534 = vadd.f32 %v3527, 1.0
        %v3535 = vadd.f32 %v3529, 1.0
        %v3536 = vadd.f32 %v3531, 1.0
        %v3537 = vadd.f32 %v3533, 1.0
        %v3538 = vrcp.pop %v3534
        %v3539 = vmul.f32 1.0, %v3538
        %v3540 = vrcp.pop %v3535
        %v3541 = vmul.f32 1.0, %v3540
        %v3542 = vrcp.pop %v3536
        %v3543 = vmul.f32 1.0, %v3542
        %v3544 = vrcp.pop %v3537
        %v3545 = vmul.f32 1.0, %v3544
        %v3546 = vmul.f32 %v3501, %v3539
        %v3547 = vmul.f32 %v3507, %v3541
        %v3548 = vmul.f32 %v3513, %v3543
        %v3549 = vmul.f32 %v3519, %v3545
        %v3550 = vadd.f32 %v3546, 1.0
        %v3551 = vadd.f32 %v3547, 1.0
        %3553 = vset.pattern.permute.xlu0 0
        %3554 = vperm.xlu0 %3553, %v3550
        %v3555 = vpop.permute.xlu0 %3554
        %3558 = vset.pattern.permute.xlu0 0
        %3559 = vperm.xlu0 %3558, %v3551
        %v3560 = vpop.permute.xlu0 %3559
        %v3562 = vmul.f32 %v2879, %v3555
        %v3563 = vmul.f32 %v2880, %v3555
        %v3564 = vmul.f32 %v2881, %v3560
        %v3565 = vmul.f32 %v2882, %v3560
        %3567 = vset.pattern.permute.xlu0 0
        %3568 = vperm.xlu0 %3567, %v3548
        %v3569 = vpop.permute.xlu0 %3568
        %3572 = vset.pattern.permute.xlu0 0
        %3573 = vperm.xlu0 %3572, %v3549
        %v3574 = vpop.permute.xlu0 %3573
        %v3576 = vadd.f32 %v3562, %v3569
        %v3577 = vadd.f32 %v3563, %v3569
        %v3578 = vadd.f32 %v3564, %v3574
        %v3579 = vadd.f32 %v3565, %v3574
        %3584 = vrot.lane.b32.xlu0 %v3576, 17
        %v3585 = vpop.permute.xlu0 %3584
        %3586 = vrot.lane.b32.xlu0 %v3577, 17
        %v3587 = vpop.permute.xlu0 %3586
        %3588 = vrot.lane.b32.xlu0 %v3578, 17
        %v3589 = vpop.permute.xlu0 %3588
        %3590 = vrot.lane.b32.xlu0 %v3579, 17
        %v3591 = vpop.permute.xlu0 %3590
        %v3592 = vsel %vm1423, %v3585, %v3587
        %v3593 = vsel %vm1423, %v3589, %v3591
        %v3598 = vsel %vm1423, 0.0, %v3585
        %v3599 = vsel %vm1423, 0.0, %v3589
        %v3600 = vmul.f32 %v3598, %v789
        %v3601 = vmul.f32 %v3592, %v790
        %v3602 = vmul.f32 %v3599, %v789
        %v3603 = vmul.f32 %v3593, %v790
        %3604 = vrot.lane.b32.xlu0 %v3576, 16
        %v3605 = vpop.permute.xlu0 %3604
        %3606 = vrot.lane.b32.xlu0 %v3577, 16
        %v3607 = vpop.permute.xlu0 %3606
        %3608 = vrot.lane.b32.xlu0 %v3578, 16
        %v3609 = vpop.permute.xlu0 %3608
        %3610 = vrot.lane.b32.xlu0 %v3579, 16
        %v3611 = vpop.permute.xlu0 %3610
        %v3612 = vsel %vm1434, %v3605, %v3607
        %v3613 = vsel %vm1434, %v3609, %v3611
        %v3618 = vsel %vm1434, 0.0, %v3605
        %v3619 = vsel %vm1434, 0.0, %v3609
        %3620 = vrot.lane.b32.xlu0 %v3576, 15
        %v3621 = vpop.permute.xlu0 %3620
        %3622 = vrot.lane.b32.xlu0 %v3577, 15
        %v3623 = vpop.permute.xlu0 %3622
        %3624 = vrot.lane.b32.xlu0 %v3578, 15
        %v3625 = vpop.permute.xlu0 %3624
        %3626 = vrot.lane.b32.xlu0 %v3579, 15
        %v3627 = vpop.permute.xlu0 %3626
        %v3628 = vsel %vm1443, %v3621, %v3623
        %v3629 = vsel %vm1443, %v3625, %v3627
        %v3634 = vsel %vm1443, 0.0, %v3621
        %v3635 = vsel %vm1443, 0.0, %v3625
        %v3636 = vmul.f32 %v3634, %v795
        %v3637 = vmul.f32 %v3628, %v796
        %v3638 = vmul.f32 %v3635, %v795
        %v3639 = vmul.f32 %v3629, %v796
        %3640 = vrot.lane.b32.xlu0 %v3576, 1
        %v3641 = vpop.permute.xlu0 %3640
        %3642 = vrot.lane.b32.xlu0 %v3577, 1
        %v3643 = vpop.permute.xlu0 %3642
        %3644 = vrot.lane.b32.xlu0 %v3578, 1
        %v3645 = vpop.permute.xlu0 %3644
        %3646 = vrot.lane.b32.xlu0 %v3579, 1
        %v3647 = vpop.permute.xlu0 %3646
        %v3648 = vsel %vm1454, %v3641, %v3643
        %v3649 = vsel %vm1454, %v3645, %v3647
        %v3654 = vsel %vm1454, 0.0, %v3641
        %v3655 = vsel %vm1454, 0.0, %v3645
        %v3656 = vmul.f32 %v3654, %v789
        %v3657 = vmul.f32 %v3648, %v790
        %v3658 = vmul.f32 %v3655, %v789
        %v3659 = vmul.f32 %v3649, %v790
        %3660 = vrot.lane.b32.xlu0 %v3576, 127
        %v3661 = vpop.permute.xlu0 %3660
        %3662 = vrot.lane.b32.xlu0 %v3577, 127
        %v3663 = vpop.permute.xlu0 %3662
        %3664 = vrot.lane.b32.xlu0 %v3578, 127
        %v3665 = vpop.permute.xlu0 %3664
        %3666 = vrot.lane.b32.xlu0 %v3579, 127
        %v3667 = vpop.permute.xlu0 %3666
        %v3668 = vsel %vm1465, %v3661, %v3663
        %v3669 = vsel %vm1465, %v3665, %v3667
        %v3674 = vsel %vm1465, %v3663, 0.0
        %v3675 = vsel %vm1465, %v3667, 0.0
        %v3676 = vmul.f32 %v3668, %v795
        %v3677 = vmul.f32 %v3674, %v796
        %v3678 = vmul.f32 %v3669, %v795
        %v3679 = vmul.f32 %v3675, %v796
        %3680 = vrot.lane.b32.xlu0 %v3576, 113
        %v3681 = vpop.permute.xlu0 %3680
        %3682 = vrot.lane.b32.xlu0 %v3577, 113
        %v3683 = vpop.permute.xlu0 %3682
        %3684 = vrot.lane.b32.xlu0 %v3578, 113
        %v3685 = vpop.permute.xlu0 %3684
        %3686 = vrot.lane.b32.xlu0 %v3579, 113
        %v3687 = vpop.permute.xlu0 %3686
        %v3688 = vsel %vm1476, %v3681, %v3683
        %v3689 = vsel %vm1476, %v3685, %v3687
        %v3694 = vsel %vm1476, %v3683, 0.0
        %v3695 = vsel %vm1476, %v3687, 0.0
        %v3696 = vmul.f32 %v3688, %v789
        %v3697 = vmul.f32 %v3694, %v790
        %v3698 = vmul.f32 %v3689, %v789
        %v3699 = vmul.f32 %v3695, %v790
        %3700 = vrot.lane.b32.xlu0 %v3576, 112
        %v3701 = vpop.permute.xlu0 %3700
        %3702 = vrot.lane.b32.xlu0 %v3577, 112
        %v3703 = vpop.permute.xlu0 %3702
        %3704 = vrot.lane.b32.xlu0 %v3578, 112
        %v3705 = vpop.permute.xlu0 %3704
        %3706 = vrot.lane.b32.xlu0 %v3579, 112
        %v3707 = vpop.permute.xlu0 %3706
        %v3708 = vsel %vm1487, %v3701, %v3703
        %v3709 = vsel %vm1487, %v3705, %v3707
        %v3714 = vsel %vm1487, %v3703, 0.0
        %v3715 = vsel %vm1487, %v3707, 0.0
        %3716 = vrot.lane.b32.xlu0 %v3576, 111
        %v3717 = vpop.permute.xlu0 %3716
        %3718 = vrot.lane.b32.xlu0 %v3577, 111
        %v3719 = vpop.permute.xlu0 %3718
        %3720 = vrot.lane.b32.xlu0 %v3578, 111
        %v3721 = vpop.permute.xlu0 %3720
        %3722 = vrot.lane.b32.xlu0 %v3579, 111
        %v3723 = vpop.permute.xlu0 %3722
        %v3724 = vsel %vm1496, %v3717, %v3719
        %v3725 = vsel %vm1496, %v3721, %v3723
        %v3730 = vsel %vm1496, %v3719, 0.0
        %v3731 = vsel %vm1496, %v3723, 0.0
        %v3732 = vmul.f32 %v3724, %v795
        %v3733 = vmul.f32 %v3730, %v796
        %v3734 = vmul.f32 %v3725, %v795
        %v3735 = vmul.f32 %v3731, %v796
        %v3736 = vld [vmem:[%s10] sm:$0xff]
        %v3737 = vld [vmem:[%s10 + $0x8] sm:$0xff]
        %v3738 = vld [vmem:[%s10 + $0x10] sm:$0xff]
        %v3739 = vld [vmem:[%s10 + $0x18] sm:$0xff]
        %v3740 = vld [vmem:[%s11] sm:$0xff]
        %v3741 = vld [vmem:[%s11 + $0x8] sm:$0xff]
        %3743 = vset.pattern.permute.xlu0 0
        %3744 = vperm.xlu0 %3743, %v3740
        %v3745 = vpop.permute.xlu0 %3744
        %3748 = vset.pattern.permute.xlu0 0
        %3749 = vperm.xlu0 %3748, %v3741
        %v3750 = vpop.permute.xlu0 %3749
        %v3753 = vsel %vm1434, %v3737, 0
        %v3756 = vsel %vm1434, %v3739, 0
        %v3758 = vand.u32 %v3601, 4294901760
        %3759 = vmatprep.subr.mxu0 %v3758
        %v3760 = vand.u32 %v3600, 4294901760
        %3761 = vmatpush1.msra.mxu0 %v3760
        %v3762 = vand.u32 %v3603, 4294901760
        %3763 = vmatprep.subr.mxu0 %v3762
        %v3764 = vand.u32 %v3602, 4294901760
        %3765 = vmatpush1.msra.mxu0 %v3764
        %v3766 = vand.u32 %v3612, 4294901760
        %3767 = vmatprep.subr.mxu0 %v3766
        %v3768 = vand.u32 %v3618, 4294901760
        %3769 = vmatpush1.msra.mxu0 %v3768
        %v3770 = vand.u32 %v3613, 4294901760
        %3771 = vmatprep.subr.mxu0 %v3770
        %v3772 = vand.u32 %v3619, 4294901760
        %3773 = vmatpush1.msra.mxu0 %v3772
        %v3774 = vand.u32 %v3637, 4294901760
        %3775 = vmatprep.subr.mxu0 %v3774
        %v3776 = vand.u32 %v3636, 4294901760
        %3777 = vmatpush1.msra.mxu0 %v3776
        %v3778 = vand.u32 %v3639, 4294901760
        %3779 = vmatprep.subr.mxu0 %v3778
        %v3780 = vand.u32 %v3638, 4294901760
        %3781 = vmatpush1.msra.mxu0 %v3780
        %v3782 = vand.u32 %v3657, 4294901760
        %3783 = vmatprep.subr.mxu0 %v3782
        %v3784 = vand.u32 %v3656, 4294901760
        %3785 = vmatpush1.msra.mxu0 %v3784
        %v3786 = vand.u32 %v3659, 4294901760
        %3787 = vmatprep.subr.mxu0 %v3786
        %v3788 = vand.u32 %v3658, 4294901760
        %3789 = vmatpush1.msra.mxu0 %v3788
        %v3790 = vand.u32 %v3577, 4294901760
        %3791 = vmatprep.subr.mxu0 %v3790
        %v3792 = vand.u32 %v3576, 4294901760
        %3793 = vmatpush1.msra.mxu0 %v3792
        %v3794 = vand.u32 %v3579, 4294901760
        %3795 = vmatprep.subr.mxu0 %v3794
        %v3796 = vand.u32 %v3578, 4294901760
        %3797 = vmatpush1.msra.mxu0 %v3796
        %v3798 = vand.u32 %v3677, 4294901760
        %3799 = vmatprep.subr.mxu0 %v3798
        %v3800 = vand.u32 %v3676, 4294901760
        %3801 = vmatpush1.msra.mxu0 %v3800
        %v3802 = vand.u32 %v3679, 4294901760
        %3803 = vmatprep.subr.mxu0 %v3802
        %v3804 = vand.u32 %v3678, 4294901760
        %3805 = vmatpush1.msra.mxu0 %v3804
        %v3806 = vand.u32 %v3697, 4294901760
        %3807 = vmatprep.subr.mxu0 %v3806
        %v3808 = vand.u32 %v3696, 4294901760
        %3809 = vmatpush1.msra.mxu0 %v3808
        %v3810 = vand.u32 %v3699, 4294901760
        %3811 = vmatprep.subr.mxu0 %v3810
        %v3812 = vand.u32 %v3698, 4294901760
        %3813 = vmatpush1.msra.mxu0 %v3812
        %v3814 = vand.u32 %v3714, 4294901760
        %3815 = vmatprep.subr.mxu0 %v3814
        %v3816 = vand.u32 %v3708, 4294901760
        %3817 = vmatpush1.msra.mxu0 %v3816
        %v3818 = vand.u32 %v3715, 4294901760
        %3819 = vmatprep.subr.mxu0 %v3818
        %v3820 = vand.u32 %v3709, 4294901760
        %3821 = vmatpush1.msra.mxu0 %v3820
        %v3822 = vand.u32 %v3733, 4294901760
        %3823 = vmatprep.subr.mxu0 %v3822
        %v3824 = vand.u32 %v3732, 4294901760
        %3825 = vmatpush1.msra.mxu0 %v3824
        %v3826 = vand.u32 %v3735, 4294901760
        %3827 = vmatprep.subr.mxu0 %v3826
        %v3828 = vand.u32 %v3734, 4294901760
        %3829 = vmatpush1.msra.mxu0 %v3828
        %3830 = vmatprep.subr.mxu0 0.0
        %3831 = vmatpush1.msra.mxu0 0.0
        %3832 = vmatprep.subr.mxu0 0.0
        %3833 = vmatpush1.msra.mxu0 0.0
        %3834 = vmatprep.subr.mxu0 0.0
        %3835 = vmatpush1.msra.mxu0 0.0
        %3836 = vmatprep.subr.mxu0 0.0
        %3837 = vmatpush1.msra.mxu0 0.0
        %3838 = vmatprep.subr.mxu0 0.0
        %3839 = vmatpush1.msra.mxu0 0.0
        %3840 = vmatprep.subr.mxu0 0.0
        %3841 = vmatpush1.msra.mxu0 0.0
        %3842 = vmatprep.subr.mxu0 0.0
        %3843 = vmatpush1.msra.mxu0 0.0
        %3844 = vmatprep.subr.mxu0 0.0
        %3845 = vmatpush1.msra.mxu0 0.0
        %3846 = vmatprep.subr.mxu0 0.0
        %3847 = vmatpush1.msra.mxu0 0.0
        %3848 = vmatprep.subr.mxu0 0.0
        %3849 = vmatpush1.msra.mxu0 0.0
        %3850 = vmatprep.subr.mxu0 0.0
        %3851 = vmatpush1.msra.mxu0 0.0
        %3852 = vmatprep.subr.mxu0 0.0
        %3853 = vmatpush1.msra.mxu0 0.0
        %3854 = vmatprep.subr.mxu0 0.0
        %3855 = vmatpush1.msra.mxu0 0.0
        %3856 = vmatprep.subr.mxu0 0.0
        %3857 = vmatpush1.msra.mxu0 0.0
        %v3858 = vand.u32 %v3753, 4294901760
        %v3859 = vsub.f32 %v3753, %v3858
        %v3860 = vand.u32 %v3859, 4294901760
        %v3861 = vsub.f32 %v3859, %v3860
        %v3862 = vand.u32 %v3861, 4294901760
        %3863 = vmatprep.mubr.f32.mxu0 %v3862
        %v3864 = vand.u32 %v3736, 4294901760
        %v3865 = vsub.f32 %v3736, %v3864
        %v3866 = vand.u32 %v3865, 4294901760
        %v3867 = vsub.f32 %v3865, %v3866
        %v3868 = vand.u32 %v3867, 4294901760
        %3869 = vmatmul.mubr.f32.gmra.mrb[0].mxu0 %v3868
        %v3870 = vpop.f32.mrb[0].mxu0
        %v3871 = vadd.f32 %v3745, %v3870
        %v3872 = vpop.f32.mrb[0].mxu0
        %v3873 = vadd.f32 %v3745, %v3872
        %v3874 = vand.u32 %v3756, 4294901760
        %v3875 = vsub.f32 %v3756, %v3874
        %v3876 = vand.u32 %v3875, 4294901760
        %v3877 = vsub.f32 %v3875, %v3876
        %v3878 = vand.u32 %v3877, 4294901760
        %3879 = vmatprep.mubr.f32.mxu0 %v3878
        %v3880 = vand.u32 %v3738, 4294901760
        %v3881 = vsub.f32 %v3738, %v3880
        %v3882 = vand.u32 %v3881, 4294901760
        %v3883 = vsub.f32 %v3881, %v3882
        %v3884 = vand.u32 %v3883, 4294901760
        %3885 = vmatmul.mubr.f32.gmra.mrb[0].mxu0 %v3884
        %v3886 = vpop.f32.mrb[0].mxu0
        %v3887 = vadd.f32 %v3750, %v3886
        %v3888 = vpop.f32.mrb[0].mxu0
        %v3889 = vadd.f32 %v3750, %v3888
        %3890 = vdwg.mxu0
        %v3891 = vand.u32 %v3601, 4294901760
        %v3892 = vsub.f32 %v3601, %v3891
        %v3893 = vand.u32 %v3892, 4294901760
        %v3894 = vsub.f32 %v3892, %v3893
        %v3895 = vand.u32 %v3894, 4294901760
        %3896 = vmatprep.subr.mxu0 %v3895
        %v3897 = vand.u32 %v3600, 4294901760
        %v3898 = vsub.f32 %v3600, %v3897
        %v3899 = vand.u32 %v3898, 4294901760
        %v3900 = vsub.f32 %v3898, %v3899
        %v3901 = vand.u32 %v3900, 4294901760
        %3902 = vmatpush1.msra.mxu0 %v3901
        %v3903 = vand.u32 %v3603, 4294901760
        %v3904 = vsub.f32 %v3603, %v3903
        %v3905 = vand.u32 %v3904, 4294901760
        %v3906 = vsub.f32 %v3904, %v3905
        %v3907 = vand.u32 %v3906, 4294901760
        %3908 = vmatprep.subr.mxu0 %v3907
        %v3909 = vand.u32 %v3602, 4294901760
        %v3910 = vsub.f32 %v3602, %v3909
        %v3911 = vand.u32 %v3910, 4294901760
        %v3912 = vsub.f32 %v3910, %v3911
        %v3913 = vand.u32 %v3912, 4294901760
        %3914 = vmatpush1.msra.mxu0 %v3913
        %v3915 = vand.u32 %v3612, 4294901760
        %v3916 = vsub.f32 %v3612, %v3915
        %v3917 = vand.u32 %v3916, 4294901760
        %v3918 = vsub.f32 %v3916, %v3917
        %v3919 = vand.u32 %v3918, 4294901760
        %3920 = vmatprep.subr.mxu0 %v3919
        %v3921 = vand.u32 %v3618, 4294901760
        %v3922 = vsub.f32 %v3618, %v3921
        %v3923 = vand.u32 %v3922, 4294901760
        %v3924 = vsub.f32 %v3922, %v3923
        %v3925 = vand.u32 %v3924, 4294901760
        %3926 = vmatpush1.msra.mxu0 %v3925
        %v3927 = vand.u32 %v3613, 4294901760
        %v3928 = vsub.f32 %v3613, %v3927
        %v3929 = vand.u32 %v3928, 4294901760
        %v3930 = vsub.f32 %v3928, %v3929
        %v3931 = vand.u32 %v3930, 4294901760
        %3932 = vmatprep.subr.mxu0 %v3931
        %v3933 = vand.u32 %v3619, 4294901760
        %v3934 = vsub.f32 %v3619, %v3933
        %v3935 = vand.u32 %v3934, 4294901760
        %v3936 = vsub.f32 %v3934, %v3935
        %v3937 = vand.u32 %v3936, 4294901760
        %3938 = vmatpush1.msra.mxu0 %v3937
        %v3939 = vand.u32 %v3637, 4294901760
        %v3940 = vsub.f32 %v3637, %v3939
        %v3941 = vand.u32 %v3940, 4294901760
        %v3942 = vsub.f32 %v3940, %v3941
        %v3943 = vand.u32 %v3942, 4294901760
        %3944 = vmatprep.subr.mxu0 %v3943
        %v3945 = vand.u32 %v3636, 4294901760
        %v3946 = vsub.f32 %v3636, %v3945
        %v3947 = vand.u32 %v3946, 4294901760
        %v3948 = vsub.f32 %v3946, %v3947
        %v3949 = vand.u32 %v3948, 4294901760
        %3950 = vmatpush1.msra.mxu0 %v3949
        %v3951 = vand.u32 %v3639, 4294901760
        %v3952 = vsub.f32 %v3639, %v3951
        %v3953 = vand.u32 %v3952, 4294901760
        %v3954 = vsub.f32 %v3952, %v3953
        %v3955 = vand.u32 %v3954, 4294901760
        %3956 = vmatprep.subr.mxu0 %v3955
        %v3957 = vand.u32 %v3638, 4294901760
        %v3958 = vsub.f32 %v3638, %v3957
        %v3959 = vand.u32 %v3958, 4294901760
        %v3960 = vsub.f32 %v3958, %v3959
        %v3961 = vand.u32 %v3960, 4294901760
        %3962 = vmatpush1.msra.mxu0 %v3961
        %v3963 = vand.u32 %v3657, 4294901760
        %v3964 = vsub.f32 %v3657, %v3963
        %v3965 = vand.u32 %v3964, 4294901760
        %v3966 = vsub.f32 %v3964, %v3965
        %v3967 = vand.u32 %v3966, 4294901760
        %3968 = vmatprep.subr.mxu0 %v3967
        %v3969 = vand.u32 %v3656, 4294901760
        %v3970 = vsub.f32 %v3656, %v3969
        %v3971 = vand.u32 %v3970, 4294901760
        %v3972 = vsub.f32 %v3970, %v3971
        %v3973 = vand.u32 %v3972, 4294901760
        %3974 = vmatpush1.msra.mxu0 %v3973
        %v3975 = vand.u32 %v3659, 4294901760
        %v3976 = vsub.f32 %v3659, %v3975
        %v3977 = vand.u32 %v3976, 4294901760
        %v3978 = vsub.f32 %v3976, %v3977
        %v3979 = vand.u32 %v3978, 4294901760
        %3980 = vmatprep.subr.mxu0 %v3979
        %v3981 = vand.u32 %v3658, 4294901760
        %v3982 = vsub.f32 %v3658, %v3981
        %v3983 = vand.u32 %v3982, 4294901760
        %v3984 = vsub.f32 %v3982, %v3983
        %v3985 = vand.u32 %v3984, 4294901760
        %3986 = vmatpush1.msra.mxu0 %v3985
        %v3987 = vand.u32 %v3577, 4294901760
        %v3988 = vsub.f32 %v3577, %v3987
        %v3989 = vand.u32 %v3988, 4294901760
        %v3990 = vsub.f32 %v3988, %v3989
        %v3991 = vand.u32 %v3990, 4294901760
        %3992 = vmatprep.subr.mxu0 %v3991
        %v3993 = vand.u32 %v3576, 4294901760
        %v3994 = vsub.f32 %v3576, %v3993
        %v3995 = vand.u32 %v3994, 4294901760
        %v3996 = vsub.f32 %v3994, %v3995
        %v3997 = vand.u32 %v3996, 4294901760
        %3998 = vmatpush1.msra.mxu0 %v3997
        %v3999 = vand.u32 %v3579, 4294901760
        %v4000 = vsub.f32 %v3579, %v3999
        %v4001 = vand.u32 %v4000, 4294901760
        %v4002 = vsub.f32 %v4000, %v4001
        %v4003 = vand.u32 %v4002, 4294901760
        %4004 = vmatprep.subr.mxu0 %v4003
        %v4005 = vand.u32 %v3578, 4294901760
        %v4006 = vsub.f32 %v3578, %v4005
        %v4007 = vand.u32 %v4006, 4294901760
        %v4008 = vsub.f32 %v4006, %v4007
        %v4009 = vand.u32 %v4008, 4294901760
        %4010 = vmatpush1.msra.mxu0 %v4009
        %v4011 = vand.u32 %v3677, 4294901760
        %v4012 = vsub.f32 %v3677, %v4011
        %v4013 = vand.u32 %v4012, 4294901760
        %v4014 = vsub.f32 %v4012, %v4013
        %v4015 = vand.u32 %v4014, 4294901760
        %4016 = vmatprep.subr.mxu0 %v4015
        %v4017 = vand.u32 %v3676, 4294901760
        %v4018 = vsub.f32 %v3676, %v4017
        %v4019 = vand.u32 %v4018, 4294901760
        %v4020 = vsub.f32 %v4018, %v4019
        %v4021 = vand.u32 %v4020, 4294901760
        %4022 = vmatpush1.msra.mxu0 %v4021
        %v4023 = vand.u32 %v3679, 4294901760
        %v4024 = vsub.f32 %v3679, %v4023
        %v4025 = vand.u32 %v4024, 4294901760
        %v4026 = vsub.f32 %v4024, %v4025
        %v4027 = vand.u32 %v4026, 4294901760
        %4028 = vmatprep.subr.mxu0 %v4027
        %v4029 = vand.u32 %v3678, 4294901760
        %v4030 = vsub.f32 %v3678, %v4029
        %v4031 = vand.u32 %v4030, 4294901760
        %v4032 = vsub.f32 %v4030, %v4031
        %v4033 = vand.u32 %v4032, 4294901760
        %4034 = vmatpush1.msra.mxu0 %v4033
        %v4035 = vand.u32 %v3697, 4294901760
        %v4036 = vsub.f32 %v3697, %v4035
        %v4037 = vand.u32 %v4036, 4294901760
        %v4038 = vsub.f32 %v4036, %v4037
        %v4039 = vand.u32 %v4038, 4294901760
        %4040 = vmatprep.subr.mxu0 %v4039
        %v4041 = vand.u32 %v3696, 4294901760
        %v4042 = vsub.f32 %v3696, %v4041
        %v4043 = vand.u32 %v4042, 4294901760
        %v4044 = vsub.f32 %v4042, %v4043
        %v4045 = vand.u32 %v4044, 4294901760
        %4046 = vmatpush1.msra.mxu0 %v4045
        %v4047 = vand.u32 %v3699, 4294901760
        %v4048 = vsub.f32 %v3699, %v4047
        %v4049 = vand.u32 %v4048, 4294901760
        %v4050 = vsub.f32 %v4048, %v4049
        %v4051 = vand.u32 %v4050, 4294901760
        %4052 = vmatprep.subr.mxu0 %v4051
        %v4053 = vand.u32 %v3698, 4294901760
        %v4054 = vsub.f32 %v3698, %v4053
        %v4055 = vand.u32 %v4054, 4294901760
        %v4056 = vsub.f32 %v4054, %v4055
        %v4057 = vand.u32 %v4056, 4294901760
        %4058 = vmatpush1.msra.mxu0 %v4057
        %v4059 = vand.u32 %v3714, 4294901760
        %v4060 = vsub.f32 %v3714, %v4059
        %v4061 = vand.u32 %v4060, 4294901760
        %v4062 = vsub.f32 %v4060, %v4061
        %v4063 = vand.u32 %v4062, 4294901760
        %4064 = vmatprep.subr.mxu0 %v4063
        %v4065 = vand.u32 %v3708, 4294901760
        %v4066 = vsub.f32 %v3708, %v4065
        %v4067 = vand.u32 %v4066, 4294901760
        %v4068 = vsub.f32 %v4066, %v4067
        %v4069 = vand.u32 %v4068, 4294901760
        %4070 = vmatpush1.msra.mxu0 %v4069
        %v4071 = vand.u32 %v3715, 4294901760
        %v4072 = vsub.f32 %v3715, %v4071
        %v4073 = vand.u32 %v4072, 4294901760
        %v4074 = vsub.f32 %v4072, %v4073
        %v4075 = vand.u32 %v4074, 4294901760
        %4076 = vmatprep.subr.mxu0 %v4075
        %v4077 = vand.u32 %v3709, 4294901760
        %v4078 = vsub.f32 %v3709, %v4077
        %v4079 = vand.u32 %v4078, 4294901760
        %v4080 = vsub.f32 %v4078, %v4079
        %v4081 = vand.u32 %v4080, 4294901760
        %4082 = vmatpush1.msra.mxu0 %v4081
        %v4083 = vand.u32 %v3733, 4294901760
        %v4084 = vsub.f32 %v3733, %v4083
        %v4085 = vand.u32 %v4084, 4294901760
        %v4086 = vsub.f32 %v4084, %v4085
        %v4087 = vand.u32 %v4086, 4294901760
        %4088 = vmatprep.subr.mxu0 %v4087
        %v4089 = vand.u32 %v3732, 4294901760
        %v4090 = vsub.f32 %v3732, %v4089
        %v4091 = vand.u32 %v4090, 4294901760
        %v4092 = vsub.f32 %v4090, %v4091
        %v4093 = vand.u32 %v4092, 4294901760
        %4094 = vmatpush1.msra.mxu0 %v4093
        %v4095 = vand.u32 %v3735, 4294901760
        %v4096 = vsub.f32 %v3735, %v4095
        %v4097 = vand.u32 %v4096, 4294901760
        %v4098 = vsub.f32 %v4096, %v4097
        %v4099 = vand.u32 %v4098, 4294901760
        %4100 = vmatprep.subr.mxu0 %v4099
        %v4101 = vand.u32 %v3734, 4294901760
        %v4102 = vsub.f32 %v3734, %v4101
        %v4103 = vand.u32 %v4102, 4294901760
        %v4104 = vsub.f32 %v4102, %v4103
        %v4105 = vand.u32 %v4104, 4294901760
        %4106 = vmatpush1.msra.mxu0 %v4105
        %4107 = vmatprep.subr.mxu0 0.0
        %4108 = vmatpush1.msra.mxu0 0.0
        %4109 = vmatprep.subr.mxu0 0.0
        %4110 = vmatpush1.msra.mxu0 0.0
        %4111 = vmatprep.subr.mxu0 0.0
        %4112 = vmatpush1.msra.mxu0 0.0
        %4113 = vmatprep.subr.mxu0 0.0
        %4114 = vmatpush1.msra.mxu0 0.0
        %4115 = vmatprep.subr.mxu0 0.0
        %4116 = vmatpush1.msra.mxu0 0.0
        %4117 = vmatprep.subr.mxu0 0.0
        %4118 = vmatpush1.msra.mxu0 0.0
        %4119 = vmatprep.subr.mxu0 0.0
        %4120 = vmatpush1.msra.mxu0 0.0
        %4121 = vmatprep.subr.mxu0 0.0
        %4122 = vmatpush1.msra.mxu0 0.0
        %4123 = vmatprep.subr.mxu0 0.0
        %4124 = vmatpush1.msra.mxu0 0.0
        %4125 = vmatprep.subr.mxu0 0.0
        %4126 = vmatpush1.msra.mxu0 0.0
        %4127 = vmatprep.subr.mxu0 0.0
        %4128 = vmatpush1.msra.mxu0 0.0
        %4129 = vmatprep.subr.mxu0 0.0
        %4130 = vmatpush1.msra.mxu0 0.0
        %4131 = vmatprep.subr.mxu0 0.0
        %4132 = vmatpush1.msra.mxu0 0.0
        %4133 = vmatprep.subr.mxu0 0.0
        %4134 = vmatpush1.msra.mxu0 0.0
        %v4135 = vand.u32 %v3753, 4294901760
        %4136 = vmatprep.mubr.f32.mxu0 %v4135
        %v4137 = vand.u32 %v3736, 4294901760
        %4138 = vmatmul.mubr.f32.gmra.mrb[0].mxu0 %v4137
        %v4139 = vpop.f32.mrb[0].mxu0
        %v4140 = vadd.f32 %v3871, %v4139
        %v4141 = vpop.f32.mrb[0].mxu0
        %v4142 = vadd.f32 %v3873, %v4141
        %v4143 = vand.u32 %v3756, 4294901760
        %4144 = vmatprep.mubr.f32.mxu0 %v4143
        %v4145 = vand.u32 %v3738, 4294901760
        %4146 = vmatmul.mubr.f32.gmra.mrb[0].mxu0 %v4145
        %v4147 = vpop.f32.mrb[0].mxu0
        %v4148 = vadd.f32 %v3887, %v4147
        %v4149 = vpop.f32.mrb[0].mxu0
        %v4150 = vadd.f32 %v3889, %v4149
        %4151 = vdwg.mxu0
        %v4152 = vand.u32 %v3601, 4294901760
        %v4153 = vsub.f32 %v3601, %v4152
        %4154 = vmatprep.subr.mxu0 %v4153
        %v4155 = vand.u32 %v3600, 4294901760
        %v4156 = vsub.f32 %v3600, %v4155
        %4157 = vmatpush1.msra.mxu0 %v4156
        %v4158 = vand.u32 %v3603, 4294901760
        %v4159 = vsub.f32 %v3603, %v4158
        %4160 = vmatprep.subr.mxu0 %v4159
        %v4161 = vand.u32 %v3602, 4294901760
        %v4162 = vsub.f32 %v3602, %v4161
        %4163 = vmatpush1.msra.mxu0 %v4162
        %v4164 = vand.u32 %v3612, 4294901760
        %v4165 = vsub.f32 %v3612, %v4164
        %4166 = vmatprep.subr.mxu0 %v4165
        %v4167 = vand.u32 %v3618, 4294901760
        %v4168 = vsub.f32 %v3618, %v4167
        %4169 = vmatpush1.msra.mxu0 %v4168
        %v4170 = vand.u32 %v3613, 4294901760
        %v4171 = vsub.f32 %v3613, %v4170
        %4172 = vmatprep.subr.mxu0 %v4171
        %v4173 = vand.u32 %v3619, 4294901760
        %v4174 = vsub.f32 %v3619, %v4173
        %4175 = vmatpush1.msra.mxu0 %v4174
        %v4176 = vand.u32 %v3637, 4294901760
        %v4177 = vsub.f32 %v3637, %v4176
        %4178 = vmatprep.subr.mxu0 %v4177
        %v4179 = vand.u32 %v3636, 4294901760
        %v4180 = vsub.f32 %v3636, %v4179
        %4181 = vmatpush1.msra.mxu0 %v4180
        %v4182 = vand.u32 %v3639, 4294901760
        %v4183 = vsub.f32 %v3639, %v4182
        %4184 = vmatprep.subr.mxu0 %v4183
        %v4185 = vand.u32 %v3638, 4294901760
        %v4186 = vsub.f32 %v3638, %v4185
        %4187 = vmatpush1.msra.mxu0 %v4186
        %v4188 = vand.u32 %v3657, 4294901760
        %v4189 = vsub.f32 %v3657, %v4188
        %4190 = vmatprep.subr.mxu0 %v4189
        %v4191 = vand.u32 %v3656, 4294901760
        %v4192 = vsub.f32 %v3656, %v4191
        %4193 = vmatpush1.msra.mxu0 %v4192
        %v4194 = vand.u32 %v3659, 4294901760
        %v4195 = vsub.f32 %v3659, %v4194
        %4196 = vmatprep.subr.mxu0 %v4195
        %v4197 = vand.u32 %v3658, 4294901760
        %v4198 = vsub.f32 %v3658, %v4197
        %4199 = vmatpush1.msra.mxu0 %v4198
        %v4200 = vand.u32 %v3577, 4294901760
        %v4201 = vsub.f32 %v3577, %v4200
        %4202 = vmatprep.subr.mxu0 %v4201
        %v4203 = vand.u32 %v3576, 4294901760
        %v4204 = vsub.f32 %v3576, %v4203
        %4205 = vmatpush1.msra.mxu0 %v4204
        %v4206 = vand.u32 %v3579, 4294901760
        %v4207 = vsub.f32 %v3579, %v4206
        %4208 = vmatprep.subr.mxu0 %v4207
        %v4209 = vand.u32 %v3578, 4294901760
        %v4210 = vsub.f32 %v3578, %v4209
        %4211 = vmatpush1.msra.mxu0 %v4210
        %v4212 = vand.u32 %v3677, 4294901760
        %v4213 = vsub.f32 %v3677, %v4212
        %4214 = vmatprep.subr.mxu0 %v4213
        %v4215 = vand.u32 %v3676, 4294901760
        %v4216 = vsub.f32 %v3676, %v4215
        %4217 = vmatpush1.msra.mxu0 %v4216
        %v4218 = vand.u32 %v3679, 4294901760
        %v4219 = vsub.f32 %v3679, %v4218
        %4220 = vmatprep.subr.mxu0 %v4219
        %v4221 = vand.u32 %v3678, 4294901760
        %v4222 = vsub.f32 %v3678, %v4221
        %4223 = vmatpush1.msra.mxu0 %v4222
        %v4224 = vand.u32 %v3697, 4294901760
        %v4225 = vsub.f32 %v3697, %v4224
        %4226 = vmatprep.subr.mxu0 %v4225
        %v4227 = vand.u32 %v3696, 4294901760
        %v4228 = vsub.f32 %v3696, %v4227
        %4229 = vmatpush1.msra.mxu0 %v4228
        %v4230 = vand.u32 %v3699, 4294901760
        %v4231 = vsub.f32 %v3699, %v4230
        %4232 = vmatprep.subr.mxu0 %v4231
        %v4233 = vand.u32 %v3698, 4294901760
        %v4234 = vsub.f32 %v3698, %v4233
        %4235 = vmatpush1.msra.mxu0 %v4234
        %v4236 = vand.u32 %v3714, 4294901760
        %v4237 = vsub.f32 %v3714, %v4236
        %4238 = vmatprep.subr.mxu0 %v4237
        %v4239 = vand.u32 %v3708, 4294901760
        %v4240 = vsub.f32 %v3708, %v4239
        %4241 = vmatpush1.msra.mxu0 %v4240
        %v4242 = vand.u32 %v3715, 4294901760
        %v4243 = vsub.f32 %v3715, %v4242
        %4244 = vmatprep.subr.mxu0 %v4243
        %v4245 = vand.u32 %v3709, 4294901760
        %v4246 = vsub.f32 %v3709, %v4245
        %4247 = vmatpush1.msra.mxu0 %v4246
        %v4248 = vand.u32 %v3733, 4294901760
        %v4249 = vsub.f32 %v3733, %v4248
        %4250 = vmatprep.subr.mxu0 %v4249
        %v4251 = vand.u32 %v3732, 4294901760
        %v4252 = vsub.f32 %v3732, %v4251
        %4253 = vmatpush1.msra.mxu0 %v4252
        %v4254 = vand.u32 %v3735, 4294901760
        %v4255 = vsub.f32 %v3735, %v4254
        %4256 = vmatprep.subr.mxu0 %v4255
        %v4257 = vand.u32 %v3734, 4294901760
        %v4258 = vsub.f32 %v3734, %v4257
        %4259 = vmatpush1.msra.mxu0 %v4258
        %4260 = vmatprep.subr.mxu0 0.0
        %4261 = vmatpush1.msra.mxu0 0.0
        %4262 = vmatprep.subr.mxu0 0.0
        %4263 = vmatpush1.msra.mxu0 0.0
        %4264 = vmatprep.subr.mxu0 0.0
        %4265 = vmatpush1.msra.mxu0 0.0
        %4266 = vmatprep.subr.mxu0 0.0
        %4267 = vmatpush1.msra.mxu0 0.0
        %4268 = vmatprep.subr.mxu0 0.0
        %4269 = vmatpush1.msra.mxu0 0.0
        %4270 = vmatprep.subr.mxu0 0.0
        %4271 = vmatpush1.msra.mxu0 0.0
        %4272 = vmatprep.subr.mxu0 0.0
        %4273 = vmatpush1.msra.mxu0 0.0
        %4274 = vmatprep.subr.mxu0 0.0
        %4275 = vmatpush1.msra.mxu0 0.0
        %4276 = vmatprep.subr.mxu0 0.0
        %4277 = vmatpush1.msra.mxu0 0.0
        %4278 = vmatprep.subr.mxu0 0.0
        %4279 = vmatpush1.msra.mxu0 0.0
        %4280 = vmatprep.subr.mxu0 0.0
        %4281 = vmatpush1.msra.mxu0 0.0
        %4282 = vmatprep.subr.mxu0 0.0
        %4283 = vmatpush1.msra.mxu0 0.0
        %4284 = vmatprep.subr.mxu0 0.0
        %4285 = vmatpush1.msra.mxu0 0.0
        %4286 = vmatprep.subr.mxu0 0.0
        %4287 = vmatpush1.msra.mxu0 0.0
        %v4288 = vand.u32 %v3753, 4294901760
        %v4289 = vsub.f32 %v3753, %v4288
        %4290 = vmatprep.mubr.f32.mxu0 %v4289
        %v4291 = vand.u32 %v3736, 4294901760
        %v4292 = vsub.f32 %v3736, %v4291
        %4293 = vmatmul.mubr.f32.gmra.mrb[0].mxu0 %v4292
        %v4294 = vpop.f32.mrb[0].mxu0
        %v4295 = vadd.f32 %v4140, %v4294
        %v4296 = vpop.f32.mrb[0].mxu0
        %v4297 = vadd.f32 %v4142, %v4296
        %v4298 = vand.u32 %v3756, 4294901760
        %v4299 = vsub.f32 %v3756, %v4298
        %4300 = vmatprep.mubr.f32.mxu0 %v4299
        %v4301 = vand.u32 %v3738, 4294901760
        %v4302 = vsub.f32 %v3738, %v4301
        %4303 = vmatmul.mubr.f32.gmra.mrb[0].mxu0 %v4302
        %v4304 = vpop.f32.mrb[0].mxu0
        %v4305 = vadd.f32 %v4148, %v4304
        %v4306 = vpop.f32.mrb[0].mxu0
        %v4307 = vadd.f32 %v4150, %v4306
        %4308 = vdwg.mxu0
        %v4309 = vand.u32 %v3601, 4294901760
        %4310 = vmatprep.subr.mxu0 %v4309
        %v4311 = vand.u32 %v3600, 4294901760
        %4312 = vmatpush1.msra.mxu0 %v4311
        %v4313 = vand.u32 %v3603, 4294901760
        %4314 = vmatprep.subr.mxu0 %v4313
        %v4315 = vand.u32 %v3602, 4294901760
        %4316 = vmatpush1.msra.mxu0 %v4315
        %v4317 = vand.u32 %v3612, 4294901760
        %4318 = vmatprep.subr.mxu0 %v4317
        %v4319 = vand.u32 %v3618, 4294901760
        %4320 = vmatpush1.msra.mxu0 %v4319
        %v4321 = vand.u32 %v3613, 4294901760
        %4322 = vmatprep.subr.mxu0 %v4321
        %v4323 = vand.u32 %v3619, 4294901760
        %4324 = vmatpush1.msra.mxu0 %v4323
        %v4325 = vand.u32 %v3637, 4294901760
        %4326 = vmatprep.subr.mxu0 %v4325
        %v4327 = vand.u32 %v3636, 4294901760
        %4328 = vmatpush1.msra.mxu0 %v4327
        %v4329 = vand.u32 %v3639, 4294901760
        %4330 = vmatprep.subr.mxu0 %v4329
        %v4331 = vand.u32 %v3638, 4294901760
        %4332 = vmatpush1.msra.mxu0 %v4331
        %v4333 = vand.u32 %v3657, 4294901760
        %4334 = vmatprep.subr.mxu0 %v4333
        %v4335 = vand.u32 %v3656, 4294901760
        %4336 = vmatpush1.msra.mxu0 %v4335
        %v4337 = vand.u32 %v3659, 4294901760
        %4338 = vmatprep.subr.mxu0 %v4337
        %v4339 = vand.u32 %v3658, 4294901760
        %4340 = vmatpush1.msra.mxu0 %v4339
        %v4341 = vand.u32 %v3577, 4294901760
        %4342 = vmatprep.subr.mxu0 %v4341
        %v4343 = vand.u32 %v3576, 4294901760
        %4344 = vmatpush1.msra.mxu0 %v4343
        %v4345 = vand.u32 %v3579, 4294901760
        %4346 = vmatprep.subr.mxu0 %v4345
        %v4347 = vand.u32 %v3578, 4294901760
        %4348 = vmatpush1.msra.mxu0 %v4347
        %v4349 = vand.u32 %v3677, 4294901760
        %4350 = vmatprep.subr.mxu0 %v4349
        %v4351 = vand.u32 %v3676, 4294901760
        %4352 = vmatpush1.msra.mxu0 %v4351
        %v4353 = vand.u32 %v3679, 4294901760
        %4354 = vmatprep.subr.mxu0 %v4353
        %v4355 = vand.u32 %v3678, 4294901760
        %4356 = vmatpush1.msra.mxu0 %v4355
        %v4357 = vand.u32 %v3697, 4294901760
        %4358 = vmatprep.subr.mxu0 %v4357
        %v4359 = vand.u32 %v3696, 4294901760
        %4360 = vmatpush1.msra.mxu0 %v4359
        %v4361 = vand.u32 %v3699, 4294901760
        %4362 = vmatprep.subr.mxu0 %v4361
        %v4363 = vand.u32 %v3698, 4294901760
        %4364 = vmatpush1.msra.mxu0 %v4363
        %v4365 = vand.u32 %v3714, 4294901760
        %4366 = vmatprep.subr.mxu0 %v4365
        %v4367 = vand.u32 %v3708, 4294901760
        %4368 = vmatpush1.msra.mxu0 %v4367
        %v4369 = vand.u32 %v3715, 4294901760
        %4370 = vmatprep.subr.mxu0 %v4369
        %v4371 = vand.u32 %v3709, 4294901760
        %4372 = vmatpush1.msra.mxu0 %v4371
        %v4373 = vand.u32 %v3733, 4294901760
        %4374 = vmatprep.subr.mxu0 %v4373
        %v4375 = vand.u32 %v3732, 4294901760
        %4376 = vmatpush1.msra.mxu0 %v4375
        %v4377 = vand.u32 %v3735, 4294901760
        %4378 = vmatprep.subr.mxu0 %v4377
        %v4379 = vand.u32 %v3734, 4294901760
        %4380 = vmatpush1.msra.mxu0 %v4379
        %4381 = vmatprep.subr.mxu0 0.0
        %4382 = vmatpush1.msra.mxu0 0.0
        %4383 = vmatprep.subr.mxu0 0.0
        %4384 = vmatpush1.msra.mxu0 0.0
        %4385 = vmatprep.subr.mxu0 0.0
        %4386 = vmatpush1.msra.mxu0 0.0
        %4387 = vmatprep.subr.mxu0 0.0
        %4388 = vmatpush1.msra.mxu0 0.0
        %4389 = vmatprep.subr.mxu0 0.0
        %4390 = vmatpush1.msra.mxu0 0.0
        %4391 = vmatprep.subr.mxu0 0.0
        %4392 = vmatpush1.msra.mxu0 0.0
        %4393 = vmatprep.subr.mxu0 0.0
        %4394 = vmatpush1.msra.mxu0 0.0
        %4395 = vmatprep.subr.mxu0 0.0
        %4396 = vmatpush1.msra.mxu0 0.0
        %4397 = vmatprep.subr.mxu0 0.0
        %4398 = vmatpush1.msra.mxu0 0.0
        %4399 = vmatprep.subr.mxu0 0.0
        %4400 = vmatpush1.msra.mxu0 0.0
        %4401 = vmatprep.subr.mxu0 0.0
        %4402 = vmatpush1.msra.mxu0 0.0
        %4403 = vmatprep.subr.mxu0 0.0
        %4404 = vmatpush1.msra.mxu0 0.0
        %4405 = vmatprep.subr.mxu0 0.0
        %4406 = vmatpush1.msra.mxu0 0.0
        %4407 = vmatprep.subr.mxu0 0.0
        %4408 = vmatpush1.msra.mxu0 0.0
        %v4409 = vand.u32 %v3753, 4294901760
        %v4410 = vsub.f32 %v3753, %v4409
        %v4411 = vand.u32 %v4410, 4294901760
        %4412 = vmatprep.mubr.f32.mxu0 %v4411
        %v4413 = vand.u32 %v3736, 4294901760
        %v4414 = vsub.f32 %v3736, %v4413
        %v4415 = vand.u32 %v4414, 4294901760
        %4416 = vmatmul.mubr.f32.gmra.mrb[0].mxu0 %v4415
        %v4417 = vpop.f32.mrb[0].mxu0
        %v4418 = vadd.f32 %v4295, %v4417
        %v4419 = vpop.f32.mrb[0].mxu0
        %v4420 = vadd.f32 %v4297, %v4419
        %v4421 = vand.u32 %v3756, 4294901760
        %v4422 = vsub.f32 %v3756, %v4421
        %v4423 = vand.u32 %v4422, 4294901760
        %4424 = vmatprep.mubr.f32.mxu0 %v4423
        %v4425 = vand.u32 %v3738, 4294901760
        %v4426 = vsub.f32 %v3738, %v4425
        %v4427 = vand.u32 %v4426, 4294901760
        %4428 = vmatmul.mubr.f32.gmra.mrb[0].mxu0 %v4427
        %v4429 = vpop.f32.mrb[0].mxu0
        %v4430 = vadd.f32 %v4305, %v4429
        %v4431 = vpop.f32.mrb[0].mxu0
        %v4432 = vadd.f32 %v4307, %v4431
        %4433 = vdwg.mxu0
        %v4434 = vand.u32 %v3601, 4294901760
        %v4435 = vsub.f32 %v3601, %v4434
        %v4436 = vand.u32 %v4435, 4294901760
        %4437 = vmatprep.subr.mxu0 %v4436
        %v4438 = vand.u32 %v3600, 4294901760
        %v4439 = vsub.f32 %v3600, %v4438
        %v4440 = vand.u32 %v4439, 4294901760
        %4441 = vmatpush1.msra.mxu0 %v4440
        %v4442 = vand.u32 %v3603, 4294901760
        %v4443 = vsub.f32 %v3603, %v4442
        %v4444 = vand.u32 %v4443, 4294901760
        %4445 = vmatprep.subr.mxu0 %v4444
        %v4446 = vand.u32 %v3602, 4294901760
        %v4447 = vsub.f32 %v3602, %v4446
        %v4448 = vand.u32 %v4447, 4294901760
        %4449 = vmatpush1.msra.mxu0 %v4448
        %v4450 = vand.u32 %v3612, 4294901760
        %v4451 = vsub.f32 %v3612, %v4450
        %v4452 = vand.u32 %v4451, 4294901760
        %4453 = vmatprep.subr.mxu0 %v4452
        %v4454 = vand.u32 %v3618, 4294901760
        %v4455 = vsub.f32 %v3618, %v4454
        %v4456 = vand.u32 %v4455, 4294901760
        %4457 = vmatpush1.msra.mxu0 %v4456
        %v4458 = vand.u32 %v3613, 4294901760
        %v4459 = vsub.f32 %v3613, %v4458
        %v4460 = vand.u32 %v4459, 4294901760
        %4461 = vmatprep.subr.mxu0 %v4460
        %v4462 = vand.u32 %v3619, 4294901760
        %v4463 = vsub.f32 %v3619, %v4462
        %v4464 = vand.u32 %v4463, 4294901760
        %4465 = vmatpush1.msra.mxu0 %v4464
        %v4466 = vand.u32 %v3637, 4294901760
        %v4467 = vsub.f32 %v3637, %v4466
        %v4468 = vand.u32 %v4467, 4294901760
        %4469 = vmatprep.subr.mxu0 %v4468
        %v4470 = vand.u32 %v3636, 4294901760
        %v4471 = vsub.f32 %v3636, %v4470
        %v4472 = vand.u32 %v4471, 4294901760
        %4473 = vmatpush1.msra.mxu0 %v4472
        %v4474 = vand.u32 %v3639, 4294901760
        %v4475 = vsub.f32 %v3639, %v4474
        %v4476 = vand.u32 %v4475, 4294901760
        %4477 = vmatprep.subr.mxu0 %v4476
        %v4478 = vand.u32 %v3638, 4294901760
        %v4479 = vsub.f32 %v3638, %v4478
        %v4480 = vand.u32 %v4479, 4294901760
        %4481 = vmatpush1.msra.mxu0 %v4480
        %v4482 = vand.u32 %v3657, 4294901760
        %v4483 = vsub.f32 %v3657, %v4482
        %v4484 = vand.u32 %v4483, 4294901760
        %4485 = vmatprep.subr.mxu0 %v4484
        %v4486 = vand.u32 %v3656, 4294901760
        %v4487 = vsub.f32 %v3656, %v4486
        %v4488 = vand.u32 %v4487, 4294901760
        %4489 = vmatpush1.msra.mxu0 %v4488
        %v4490 = vand.u32 %v3659, 4294901760
        %v4491 = vsub.f32 %v3659, %v4490
        %v4492 = vand.u32 %v4491, 4294901760
        %4493 = vmatprep.subr.mxu0 %v4492
        %v4494 = vand.u32 %v3658, 4294901760
        %v4495 = vsub.f32 %v3658, %v4494
        %v4496 = vand.u32 %v4495, 4294901760
        %4497 = vmatpush1.msra.mxu0 %v4496
        %v4498 = vand.u32 %v3577, 4294901760
        %v4499 = vsub.f32 %v3577, %v4498
        %v4500 = vand.u32 %v4499, 4294901760
        %4501 = vmatprep.subr.mxu0 %v4500
        %v4502 = vand.u32 %v3576, 4294901760
        %v4503 = vsub.f32 %v3576, %v4502
        %v4504 = vand.u32 %v4503, 4294901760
        %4505 = vmatpush1.msra.mxu0 %v4504
        %v4506 = vand.u32 %v3579, 4294901760
        %v4507 = vsub.f32 %v3579, %v4506
        %v4508 = vand.u32 %v4507, 4294901760
        %4509 = vmatprep.subr.mxu0 %v4508
        %v4510 = vand.u32 %v3578, 4294901760
        %v4511 = vsub.f32 %v3578, %v4510
        %v4512 = vand.u32 %v4511, 4294901760
        %4513 = vmatpush1.msra.mxu0 %v4512
        %v4514 = vand.u32 %v3677, 4294901760
        %v4515 = vsub.f32 %v3677, %v4514
        %v4516 = vand.u32 %v4515, 4294901760
        %4517 = vmatprep.subr.mxu0 %v4516
        %v4518 = vand.u32 %v3676, 4294901760
        %v4519 = vsub.f32 %v3676, %v4518
        %v4520 = vand.u32 %v4519, 4294901760
        %4521 = vmatpush1.msra.mxu0 %v4520
        %v4522 = vand.u32 %v3679, 4294901760
        %v4523 = vsub.f32 %v3679, %v4522
        %v4524 = vand.u32 %v4523, 4294901760
        %4525 = vmatprep.subr.mxu0 %v4524
        %v4526 = vand.u32 %v3678, 4294901760
        %v4527 = vsub.f32 %v3678, %v4526
        %v4528 = vand.u32 %v4527, 4294901760
        %4529 = vmatpush1.msra.mxu0 %v4528
        %v4530 = vand.u32 %v3697, 4294901760
        %v4531 = vsub.f32 %v3697, %v4530
        %v4532 = vand.u32 %v4531, 4294901760
        %4533 = vmatprep.subr.mxu0 %v4532
        %v4534 = vand.u32 %v3696, 4294901760
        %v4535 = vsub.f32 %v3696, %v4534
        %v4536 = vand.u32 %v4535, 4294901760
        %4537 = vmatpush1.msra.mxu0 %v4536
        %v4538 = vand.u32 %v3699, 4294901760
        %v4539 = vsub.f32 %v3699, %v4538
        %v4540 = vand.u32 %v4539, 4294901760
        %4541 = vmatprep.subr.mxu0 %v4540
        %v4542 = vand.u32 %v3698, 4294901760
        %v4543 = vsub.f32 %v3698, %v4542
        %v4544 = vand.u32 %v4543, 4294901760
        %4545 = vmatpush1.msra.mxu0 %v4544
        %v4546 = vand.u32 %v3714, 4294901760
        %v4547 = vsub.f32 %v3714, %v4546
        %v4548 = vand.u32 %v4547, 4294901760
        %4549 = vmatprep.subr.mxu0 %v4548
        %v4550 = vand.u32 %v3708, 4294901760
        %v4551 = vsub.f32 %v3708, %v4550
        %v4552 = vand.u32 %v4551, 4294901760
        %4553 = vmatpush1.msra.mxu0 %v4552
        %v4554 = vand.u32 %v3715, 4294901760
        %v4555 = vsub.f32 %v3715, %v4554
        %v4556 = vand.u32 %v4555, 4294901760
        %4557 = vmatprep.subr.mxu0 %v4556
        %v4558 = vand.u32 %v3709, 4294901760
        %v4559 = vsub.f32 %v3709, %v4558
        %v4560 = vand.u32 %v4559, 4294901760
        %4561 = vmatpush1.msra.mxu0 %v4560
        %v4562 = vand.u32 %v3733, 4294901760
        %v4563 = vsub.f32 %v3733, %v4562
        %v4564 = vand.u32 %v4563, 4294901760
        %4565 = vmatprep.subr.mxu0 %v4564
        %v4566 = vand.u32 %v3732, 4294901760
        %v4567 = vsub.f32 %v3732, %v4566
        %v4568 = vand.u32 %v4567, 4294901760
        %4569 = vmatpush1.msra.mxu0 %v4568
        %v4570 = vand.u32 %v3735, 4294901760
        %v4571 = vsub.f32 %v3735, %v4570
        %v4572 = vand.u32 %v4571, 4294901760
        %4573 = vmatprep.subr.mxu0 %v4572
        %v4574 = vand.u32 %v3734, 4294901760
        %v4575 = vsub.f32 %v3734, %v4574
        %v4576 = vand.u32 %v4575, 4294901760
        %4577 = vmatpush1.msra.mxu0 %v4576
        %4578 = vmatprep.subr.mxu0 0.0
        %4579 = vmatpush1.msra.mxu0 0.0
        %4580 = vmatprep.subr.mxu0 0.0
        %4581 = vmatpush1.msra.mxu0 0.0
        %4582 = vmatprep.subr.mxu0 0.0
        %4583 = vmatpush1.msra.mxu0 0.0
        %4584 = vmatprep.subr.mxu0 0.0
        %4585 = vmatpush1.msra.mxu0 0.0
        %4586 = vmatprep.subr.mxu0 0.0
        %4587 = vmatpush1.msra.mxu0 0.0
        %4588 = vmatprep.subr.mxu0 0.0
        %4589 = vmatpush1.msra.mxu0 0.0
        %4590 = vmatprep.subr.mxu0 0.0
        %4591 = vmatpush1.msra.mxu0 0.0
        %4592 = vmatprep.subr.mxu0 0.0
        %4593 = vmatpush1.msra.mxu0 0.0
        %4594 = vmatprep.subr.mxu0 0.0
        %4595 = vmatpush1.msra.mxu0 0.0
        %4596 = vmatprep.subr.mxu0 0.0
        %4597 = vmatpush1.msra.mxu0 0.0
        %4598 = vmatprep.subr.mxu0 0.0
        %4599 = vmatpush1.msra.mxu0 0.0
        %4600 = vmatprep.subr.mxu0 0.0
        %4601 = vmatpush1.msra.mxu0 0.0
        %4602 = vmatprep.subr.mxu0 0.0
        %4603 = vmatpush1.msra.mxu0 0.0
        %4604 = vmatprep.subr.mxu0 0.0
        %4605 = vmatpush1.msra.mxu0 0.0
        %v4606 = vand.u32 %v3753, 4294901760
        %4607 = vmatprep.mubr.f32.mxu0 %v4606
        %v4608 = vand.u32 %v3736, 4294901760
        %4609 = vmatmul.mubr.f32.gmra.mrb[0].mxu0 %v4608
        %v4610 = vpop.f32.mrb[0].mxu0
        %v4611 = vadd.f32 %v4418, %v4610
        %v4612 = vpop.f32.mrb[0].mxu0
        %v4613 = vadd.f32 %v4420, %v4612
        %v4614 = vand.u32 %v3756, 4294901760
        %4615 = vmatprep.mubr.f32.mxu0 %v4614
        %v4616 = vand.u32 %v3738, 4294901760
        %4617 = vmatmul.mubr.f32.gmra.mrb[0].mxu0 %v4616
        %v4618 = vpop.f32.mrb[0].mxu0
        %v4619 = vadd.f32 %v4430, %v4618
        %v4620 = vpop.f32.mrb[0].mxu0
        %v4621 = vadd.f32 %v4432, %v4620
        %4622 = vdwg.mxu0
        %v4623 = vand.u32 %v3601, 4294901760
        %4624 = vmatprep.subr.mxu0 %v4623
        %v4625 = vand.u32 %v3600, 4294901760
        %4626 = vmatpush1.msra.mxu0 %v4625
        %v4627 = vand.u32 %v3603, 4294901760
        %4628 = vmatprep.subr.mxu0 %v4627
        %v4629 = vand.u32 %v3602, 4294901760
        %4630 = vmatpush1.msra.mxu0 %v4629
        %v4631 = vand.u32 %v3612, 4294901760
        %4632 = vmatprep.subr.mxu0 %v4631
        %v4633 = vand.u32 %v3618, 4294901760
        %4634 = vmatpush1.msra.mxu0 %v4633
        %v4635 = vand.u32 %v3613, 4294901760
        %4636 = vmatprep.subr.mxu0 %v4635
        %v4637 = vand.u32 %v3619, 4294901760
        %4638 = vmatpush1.msra.mxu0 %v4637
        %v4639 = vand.u32 %v3637, 4294901760
        %4640 = vmatprep.subr.mxu0 %v4639
        %v4641 = vand.u32 %v3636, 4294901760
        %4642 = vmatpush1.msra.mxu0 %v4641
        %v4643 = vand.u32 %v3639, 4294901760
        %4644 = vmatprep.subr.mxu0 %v4643
        %v4645 = vand.u32 %v3638, 4294901760
        %4646 = vmatpush1.msra.mxu0 %v4645
        %v4647 = vand.u32 %v3657, 4294901760
        %4648 = vmatprep.subr.mxu0 %v4647
        %v4649 = vand.u32 %v3656, 4294901760
        %4650 = vmatpush1.msra.mxu0 %v4649
        %v4651 = vand.u32 %v3659, 4294901760
        %4652 = vmatprep.subr.mxu0 %v4651
        %v4653 = vand.u32 %v3658, 4294901760
        %4654 = vmatpush1.msra.mxu0 %v4653
        %v4655 = vand.u32 %v3577, 4294901760
        %4656 = vmatprep.subr.mxu0 %v4655
        %v4657 = vand.u32 %v3576, 4294901760
        %4658 = vmatpush1.msra.mxu0 %v4657
        %v4659 = vand.u32 %v3579, 4294901760
        %4660 = vmatprep.subr.mxu0 %v4659
        %v4661 = vand.u32 %v3578, 4294901760
        %4662 = vmatpush1.msra.mxu0 %v4661
        %v4663 = vand.u32 %v3677, 4294901760
        %4664 = vmatprep.subr.mxu0 %v4663
        %v4665 = vand.u32 %v3676, 4294901760
        %4666 = vmatpush1.msra.mxu0 %v4665
        %v4667 = vand.u32 %v3679, 4294901760
        %4668 = vmatprep.subr.mxu0 %v4667
        %v4669 = vand.u32 %v3678, 4294901760
        %4670 = vmatpush1.msra.mxu0 %v4669
        %v4671 = vand.u32 %v3697, 4294901760
        %4672 = vmatprep.subr.mxu0 %v4671
        %v4673 = vand.u32 %v3696, 4294901760
        %4674 = vmatpush1.msra.mxu0 %v4673
        %v4675 = vand.u32 %v3699, 4294901760
        %4676 = vmatprep.subr.mxu0 %v4675
        %v4677 = vand.u32 %v3698, 4294901760
        %4678 = vmatpush1.msra.mxu0 %v4677
        %v4679 = vand.u32 %v3714, 4294901760
        %4680 = vmatprep.subr.mxu0 %v4679
        %v4681 = vand.u32 %v3708, 4294901760
        %4682 = vmatpush1.msra.mxu0 %v4681
        %v4683 = vand.u32 %v3715, 4294901760
        %4684 = vmatprep.subr.mxu0 %v4683
        %v4685 = vand.u32 %v3709, 4294901760
        %4686 = vmatpush1.msra.mxu0 %v4685
        %v4687 = vand.u32 %v3733, 4294901760
        %4688 = vmatprep.subr.mxu0 %v4687
        %v4689 = vand.u32 %v3732, 4294901760
        %4690 = vmatpush1.msra.mxu0 %v4689
        %v4691 = vand.u32 %v3735, 4294901760
        %4692 = vmatprep.subr.mxu0 %v4691
        %v4693 = vand.u32 %v3734, 4294901760
        %4694 = vmatpush1.msra.mxu0 %v4693
        %4695 = vmatprep.subr.mxu0 0.0
        %4696 = vmatpush1.msra.mxu0 0.0
        %4697 = vmatprep.subr.mxu0 0.0
        %4698 = vmatpush1.msra.mxu0 0.0
        %4699 = vmatprep.subr.mxu0 0.0
        %4700 = vmatpush1.msra.mxu0 0.0
        %4701 = vmatprep.subr.mxu0 0.0
        %4702 = vmatpush1.msra.mxu0 0.0
        %4703 = vmatprep.subr.mxu0 0.0
        %4704 = vmatpush1.msra.mxu0 0.0
        %4705 = vmatprep.subr.mxu0 0.0
        %4706 = vmatpush1.msra.mxu0 0.0
        %4707 = vmatprep.subr.mxu0 0.0
        %4708 = vmatpush1.msra.mxu0 0.0
        %4709 = vmatprep.subr.mxu0 0.0
        %4710 = vmatpush1.msra.mxu0 0.0
        %4711 = vmatprep.subr.mxu0 0.0
        %4712 = vmatpush1.msra.mxu0 0.0
        %4713 = vmatprep.subr.mxu0 0.0
        %4714 = vmatpush1.msra.mxu0 0.0
        %4715 = vmatprep.subr.mxu0 0.0
        %4716 = vmatpush1.msra.mxu0 0.0
        %4717 = vmatprep.subr.mxu0 0.0
        %4718 = vmatpush1.msra.mxu0 0.0
        %4719 = vmatprep.subr.mxu0 0.0
        %4720 = vmatpush1.msra.mxu0 0.0
        %4721 = vmatprep.subr.mxu0 0.0
        %4722 = vmatpush1.msra.mxu0 0.0
        %v4723 = vand.u32 %v3753, 4294901760
        %4724 = vmatprep.mubr.f32.mxu0 %v4723
        %v4725 = vand.u32 %v3736, 4294901760
        %4726 = vmatmul.mubr.f32.gmra.mrb[0].mxu0 %v4725
        %v4727 = vpop.f32.mrb[0].mxu0
        %v4728 = vadd.f32 %v4611, %v4727
        %v4729 = vpop.f32.mrb[0].mxu0
        %v4730 = vadd.f32 %v4613, %v4729
        %v4731 = vand.u32 %v3756, 4294901760
        %4732 = vmatprep.mubr.f32.mxu0 %v4731
        %v4733 = vand.u32 %v3738, 4294901760
        %4734 = vmatmul.mubr.f32.gmra.mrb[0].mxu0 %v4733
        %v4735 = vpop.f32.mrb[0].mxu0
        %v4736 = vadd.f32 %v4619, %v4735
        %v4737 = vpop.f32.mrb[0].mxu0
        %v4738 = vadd.f32 %v4621, %v4737
        %4739 = vdwg.mxu0
        %v4740 = vadd.f32 %v4728, %v4730
        %4741 = vadd.xlane.f32.xlu0 %v4740
        %v4742 = vpop.xlane.xlu0 %4741
        %v4743 = vadd.f32 %v4736, %v4738
        %4744 = vadd.xlane.f32.xlu0 %v4743
        %v4745 = vpop.xlane.xlu0 %4744
        %v4746 = vmul.f32 %v4742, %v2252
        %v4747 = vmul.f32 %v4745, %v2252
        %v4748 = vmul.f32 %v4728, %v4728
        %v4749 = vmul.f32 %v4730, %v4730
        %v4750 = vmul.f32 %v4736, %v4736
        %v4751 = vmul.f32 %v4738, %v4738
        %v4752 = vadd.f32 %v4748, %v4749
        %4753 = vadd.xlane.f32.xlu0 %v4752
        %v4754 = vpop.xlane.xlu0 %4753
        %v4755 = vadd.f32 %v4750, %v4751
        %4756 = vadd.xlane.f32.xlu0 %v4755
        %v4757 = vpop.xlane.xlu0 %4756
        %v4758 = vmul.f32 %v4754, %v2252
        %v4759 = vmul.f32 %v4757, %v2252
        %v4760 = vsel %vm1454, %v4746, %v4758
        %v4761 = vsel %vm1454, %v4747, %v4759
        %4762 = vmatprep.subr.mxu0 0.0
        %v4763 = vand.u32 %v4760, 4294901760
        %4764 = vmatpush1.msra.mxu0 %v4763
        %4765 = vmatprep.subr.mxu0 0.0
        %v4766 = vand.u32 %v4761, 4294901760
        %4767 = vmatpush1.msra.mxu0 %v4766
        %4768 = vmatprep.subr.mxu0 0.0
        %4769 = vmatpush1.msra.mxu0 0.0
        %4770 = vmatprep.subr.mxu0 0.0
        %4771 = vmatpush1.msra.mxu0 0.0
        %4772 = vmatprep.subr.mxu0 0.0
        %4773 = vmatpush1.msra.mxu0 0.0
        %4774 = vmatprep.subr.mxu0 0.0
        %4775 = vmatpush1.msra.mxu0 0.0
        %4776 = vmatprep.subr.mxu0 0.0
        %4777 = vmatpush1.msra.mxu0 0.0
        %4778 = vmatprep.subr.mxu0 0.0
        %4779 = vmatpush1.msra.mxu0 0.0
        %4780 = vmatprep.subr.mxu0 0.0
        %4781 = vmatpush1.msra.mxu0 0.0
        %4782 = vmatprep.subr.mxu0 0.0
        %4783 = vmatpush1.msra.mxu0 0.0
        %4784 = vmatprep.subr.mxu0 0.0
        %4785 = vmatpush1.msra.mxu0 0.0
        %4786 = vmatprep.subr.mxu0 0.0
        %4787 = vmatpush1.msra.mxu0 0.0
        %4788 = vmatprep.subr.mxu0 0.0
        %4789 = vmatpush1.msra.mxu0 0.0
        %4790 = vmatprep.subr.mxu0 0.0
        %4791 = vmatpush1.msra.mxu0 0.0
        %4792 = vmatprep.subr.mxu0 0.0
        %4793 = vmatpush1.msra.mxu0 0.0
        %4794 = vmatprep.subr.mxu0 0.0
        %4795 = vmatpush1.msra.mxu0 0.0
        %4796 = vmatprep.subr.mxu0 0.0
        %4797 = vmatpush1.msra.mxu0 0.0
        %4798 = vmatprep.subr.mxu0 0.0
        %4799 = vmatpush1.msra.mxu0 0.0
        %4800 = vmatprep.subr.mxu0 0.0
        %4801 = vmatpush1.msra.mxu0 0.0
        %4802 = vmatprep.subr.mxu0 0.0
        %4803 = vmatpush1.msra.mxu0 0.0
        %4804 = vmatprep.subr.mxu0 0.0
        %4805 = vmatpush1.msra.mxu0 0.0
        %4806 = vmatprep.subr.mxu0 0.0
        %4807 = vmatpush1.msra.mxu0 0.0
        %4808 = vmatprep.subr.mxu0 0.0
        %4809 = vmatpush1.msra.mxu0 0.0
        %4810 = vmatprep.subr.mxu0 0.0
        %4811 = vmatpush1.msra.mxu0 0.0
        %4812 = vmatprep.subr.mxu0 0.0
        %4813 = vmatpush1.msra.mxu0 0.0
        %4814 = vmatprep.subr.mxu0 0.0
        %4815 = vmatpush1.msra.mxu0 0.0
        %4816 = vmatprep.subr.mxu0 0.0
        %4817 = vmatpush1.msra.mxu0 0.0
        %4818 = vmatprep.subr.mxu0 0.0
        %4819 = vmatpush1.msra.mxu0 0.0
        %4820 = vmatprep.subr.mxu0 0.0
        %4821 = vmatpush1.msra.mxu0 0.0
        %4822 = vmatprep.subr.mxu0 0.0
        %4823 = vmatpush1.msra.mxu0 0.0
        %4824 = vmatprep.subr.mxu0 0.0
        %4825 = vmatpush1.msra.mxu0 0.0
        %4826 = vmatprep.subr.mxu0 0.0
        %4827 = vmatpush1.msra.mxu0 0.0
        %4828 = vmatprep.mubr.f32.mxu0 0.0
        %v4829 = vand.u32 %v2272, 4294901760
        %v4830 = vsub.f32 %v2272, %v4829
        %v4831 = vand.u32 %v4830, 4294901760
        %v4832 = vsub.f32 %v4830, %v4831
        %v4833 = vand.u32 %v4832, 4294901760
        %4834 = vmatmul.mubr.f32.gmra.mrb[0].mxu0 %v4833
        %v4835 = vpop.f32.mrb[0].mxu0
        %v4836 = vadd.f32 0.0, %v4835
        %v4837 = vpop.f32.mrb[0].mxu0
        %4838 = vmatprep.mubr.f32.mxu0 0.0
        %v4839 = vand.u32 %v2275, 4294901760
        %v4840 = vsub.f32 %v2275, %v4839
        %v4841 = vand.u32 %v4840, 4294901760
        %v4842 = vsub.f32 %v4840, %v4841
        %v4843 = vand.u32 %v4842, 4294901760
        %4844 = vmatmul.mubr.f32.gmra.mrb[0].mxu0 %v4843
        %v4845 = vpop.f32.mrb[0].mxu0
        %v4846 = vadd.f32 0.0, %v4845
        %v4847 = vpop.f32.mrb[0].mxu0
        %4848 = vdwg.mxu0
        %4849 = vmatprep.subr.mxu0 0.0
        %v4850 = vand.u32 %v4760, 4294901760
        %v4851 = vsub.f32 %v4760, %v4850
        %v4852 = vand.u32 %v4851, 4294901760
        %v4853 = vsub.f32 %v4851, %v4852
        %v4854 = vand.u32 %v4853, 4294901760
        %4855 = vmatpush1.msra.mxu0 %v4854
        %4856 = vmatprep.subr.mxu0 0.0
        %v4857 = vand.u32 %v4761, 4294901760
        %v4858 = vsub.f32 %v4761, %v4857
        %v4859 = vand.u32 %v4858, 4294901760
        %v4860 = vsub.f32 %v4858, %v4859
        %v4861 = vand.u32 %v4860, 4294901760
        %4862 = vmatpush1.msra.mxu0 %v4861
        %4863 = vmatprep.subr.mxu0 0.0
        %4864 = vmatpush1.msra.mxu0 0.0
        %4865 = vmatprep.subr.mxu0 0.0
        %4866 = vmatpush1.msra.mxu0 0.0
        %4867 = vmatprep.subr.mxu0 0.0
        %4868 = vmatpush1.msra.mxu0 0.0
        %4869 = vmatprep.subr.mxu0 0.0
        %4870 = vmatpush1.msra.mxu0 0.0
        %4871 = vmatprep.subr.mxu0 0.0
        %4872 = vmatpush1.msra.mxu0 0.0
        %4873 = vmatprep.subr.mxu0 0.0
        %4874 = vmatpush1.msra.mxu0 0.0
        %4875 = vmatprep.subr.mxu0 0.0
        %4876 = vmatpush1.msra.mxu0 0.0
        %4877 = vmatprep.subr.mxu0 0.0
        %4878 = vmatpush1.msra.mxu0 0.0
        %4879 = vmatprep.subr.mxu0 0.0
        %4880 = vmatpush1.msra.mxu0 0.0
        %4881 = vmatprep.subr.mxu0 0.0
        %4882 = vmatpush1.msra.mxu0 0.0
        %4883 = vmatprep.subr.mxu0 0.0
        %4884 = vmatpush1.msra.mxu0 0.0
        %4885 = vmatprep.subr.mxu0 0.0
        %4886 = vmatpush1.msra.mxu0 0.0
        %4887 = vmatprep.subr.mxu0 0.0
        %4888 = vmatpush1.msra.mxu0 0.0
        %4889 = vmatprep.subr.mxu0 0.0
        %4890 = vmatpush1.msra.mxu0 0.0
        %4891 = vmatprep.subr.mxu0 0.0
        %4892 = vmatpush1.msra.mxu0 0.0
        %4893 = vmatprep.subr.mxu0 0.0
        %4894 = vmatpush1.msra.mxu0 0.0
        %4895 = vmatprep.subr.mxu0 0.0
        %4896 = vmatpush1.msra.mxu0 0.0
        %4897 = vmatprep.subr.mxu0 0.0
        %4898 = vmatpush1.msra.mxu0 0.0
        %4899 = vmatprep.subr.mxu0 0.0
        %4900 = vmatpush1.msra.mxu0 0.0
        %4901 = vmatprep.subr.mxu0 0.0
        %4902 = vmatpush1.msra.mxu0 0.0
        %4903 = vmatprep.subr.mxu0 0.0
        %4904 = vmatpush1.msra.mxu0 0.0
        %4905 = vmatprep.subr.mxu0 0.0
        %4906 = vmatpush1.msra.mxu0 0.0
        %4907 = vmatprep.subr.mxu0 0.0
        %4908 = vmatpush1.msra.mxu0 0.0
        %4909 = vmatprep.subr.mxu0 0.0
        %4910 = vmatpush1.msra.mxu0 0.0
        %4911 = vmatprep.subr.mxu0 0.0
        %4912 = vmatpush1.msra.mxu0 0.0
        %4913 = vmatprep.subr.mxu0 0.0
        %4914 = vmatpush1.msra.mxu0 0.0
        %4915 = vmatprep.subr.mxu0 0.0
        %4916 = vmatpush1.msra.mxu0 0.0
        %4917 = vmatprep.subr.mxu0 0.0
        %4918 = vmatpush1.msra.mxu0 0.0
        %4919 = vmatprep.subr.mxu0 0.0
        %4920 = vmatpush1.msra.mxu0 0.0
        %4921 = vmatprep.subr.mxu0 0.0
        %4922 = vmatpush1.msra.mxu0 0.0
        %4923 = vmatprep.mubr.f32.mxu0 0.0
        %v4924 = vand.u32 %v2272, 4294901760
        %4925 = vmatmul.mubr.f32.gmra.mrb[0].mxu0 %v4924
        %v4926 = vpop.f32.mrb[0].mxu0
        %v4927 = vadd.f32 %v4836, %v4926
        %v4928 = vpop.f32.mrb[0].mxu0
        %4929 = vmatprep.mubr.f32.mxu0 0.0
        %v4930 = vand.u32 %v2275, 4294901760
        %4931 = vmatmul.mubr.f32.gmra.mrb[0].mxu0 %v4930
        %v4932 = vpop.f32.mrb[0].mxu0
        %v4933 = vadd.f32 %v4846, %v4932
        %v4934 = vpop.f32.mrb[0].mxu0
        %4935 = vdwg.mxu0
        %4936 = vmatprep.subr.mxu0 0.0
        %v4937 = vand.u32 %v4760, 4294901760
        %v4938 = vsub.f32 %v4760, %v4937
        %4939 = vmatpush1.msra.mxu0 %v4938
        %4940 = vmatprep.subr.mxu0 0.0
        %v4941 = vand.u32 %v4761, 4294901760
        %v4942 = vsub.f32 %v4761, %v4941
        %4943 = vmatpush1.msra.mxu0 %v4942
        %4944 = vmatprep.subr.mxu0 0.0
        %4945 = vmatpush1.msra.mxu0 0.0
        %4946 = vmatprep.subr.mxu0 0.0
        %4947 = vmatpush1.msra.mxu0 0.0
        %4948 = vmatprep.subr.mxu0 0.0
        %4949 = vmatpush1.msra.mxu0 0.0
        %4950 = vmatprep.subr.mxu0 0.0
        %4951 = vmatpush1.msra.mxu0 0.0
        %4952 = vmatprep.subr.mxu0 0.0
        %4953 = vmatpush1.msra.mxu0 0.0
        %4954 = vmatprep.subr.mxu0 0.0
        %4955 = vmatpush1.msra.mxu0 0.0
        %4956 = vmatprep.subr.mxu0 0.0
        %4957 = vmatpush1.msra.mxu0 0.0
        %4958 = vmatprep.subr.mxu0 0.0
        %4959 = vmatpush1.msra.mxu0 0.0
        %4960 = vmatprep.subr.mxu0 0.0
        %4961 = vmatpush1.msra.mxu0 0.0
        %4962 = vmatprep.subr.mxu0 0.0
        %4963 = vmatpush1.msra.mxu0 0.0
        %4964 = vmatprep.subr.mxu0 0.0
        %4965 = vmatpush1.msra.mxu0 0.0
        %4966 = vmatprep.subr.mxu0 0.0
        %4967 = vmatpush1.msra.mxu0 0.0
        %4968 = vmatprep.subr.mxu0 0.0
        %4969 = vmatpush1.msra.mxu0 0.0
        %4970 = vmatprep.subr.mxu0 0.0
        %4971 = vmatpush1.msra.mxu0 0.0
        %4972 = vmatprep.subr.mxu0 0.0
        %4973 = vmatpush1.msra.mxu0 0.0
        %4974 = vmatprep.subr.mxu0 0.0
        %4975 = vmatpush1.msra.mxu0 0.0
        %4976 = vmatprep.subr.mxu0 0.0
        %4977 = vmatpush1.msra.mxu0 0.0
        %4978 = vmatprep.subr.mxu0 0.0
        %4979 = vmatpush1.msra.mxu0 0.0
        %4980 = vmatprep.subr.mxu0 0.0
        %4981 = vmatpush1.msra.mxu0 0.0
        %4982 = vmatprep.subr.mxu0 0.0
        %4983 = vmatpush1.msra.mxu0 0.0
        %4984 = vmatprep.subr.mxu0 0.0
        %4985 = vmatpush1.msra.mxu0 0.0
        %4986 = vmatprep.subr.mxu0 0.0
        %4987 = vmatpush1.msra.mxu0 0.0
        %4988 = vmatprep.subr.mxu0 0.0
        %4989 = vmatpush1.msra.mxu0 0.0
        %4990 = vmatprep.subr.mxu0 0.0
        %4991 = vmatpush1.msra.mxu0 0.0
        %4992 = vmatprep.subr.mxu0 0.0
        %4993 = vmatpush1.msra.mxu0 0.0
        %4994 = vmatprep.subr.mxu0 0.0
        %4995 = vmatpush1.msra.mxu0 0.0
        %4996 = vmatprep.subr.mxu0 0.0
        %4997 = vmatpush1.msra.mxu0 0.0
        %4998 = vmatprep.subr.mxu0 0.0
        %4999 = vmatpush1.msra.mxu0 0.0
        %5000 = vmatprep.subr.mxu0 0.0
        %5001 = vmatpush1.msra.mxu0 0.0
        %5002 = vmatprep.subr.mxu0 0.0
        %5003 = vmatpush1.msra.mxu0 0.0
        %5004 = vmatprep.mubr.f32.mxu0 0.0
        %v5005 = vand.u32 %v2272, 4294901760
        %v5006 = vsub.f32 %v2272, %v5005
        %5007 = vmatmul.mubr.f32.gmra.mrb[0].mxu0 %v5006
        %v5008 = vpop.f32.mrb[0].mxu0
        %v5009 = vadd.f32 %v4927, %v5008
        %v5010 = vpop.f32.mrb[0].mxu0
        %5011 = vmatprep.mubr.f32.mxu0 0.0
        %v5012 = vand.u32 %v2275, 4294901760
        %v5013 = vsub.f32 %v2275, %v5012
        %5014 = vmatmul.mubr.f32.gmra.mrb[0].mxu0 %v5013
        %v5015 = vpop.f32.mrb[0].mxu0
        %v5016 = vadd.f32 %v4933, %v5015
        %v5017 = vpop.f32.mrb[0].mxu0
        %5018 = vdwg.mxu0
        %5019 = vmatprep.subr.mxu0 0.0
        %v5020 = vand.u32 %v4760, 4294901760
        %5021 = vmatpush1.msra.mxu0 %v5020
        %5022 = vmatprep.subr.mxu0 0.0
        %v5023 = vand.u32 %v4761, 4294901760
        %5024 = vmatpush1.msra.mxu0 %v5023
        %5025 = vmatprep.subr.mxu0 0.0
        %5026 = vmatpush1.msra.mxu0 0.0
        %5027 = vmatprep.subr.mxu0 0.0
        %5028 = vmatpush1.msra.mxu0 0.0
        %5029 = vmatprep.subr.mxu0 0.0
        %5030 = vmatpush1.msra.mxu0 0.0
        %5031 = vmatprep.subr.mxu0 0.0
        %5032 = vmatpush1.msra.mxu0 0.0
        %5033 = vmatprep.subr.mxu0 0.0
        %5034 = vmatpush1.msra.mxu0 0.0
        %5035 = vmatprep.subr.mxu0 0.0
        %5036 = vmatpush1.msra.mxu0 0.0
        %5037 = vmatprep.subr.mxu0 0.0
        %5038 = vmatpush1.msra.mxu0 0.0
        %5039 = vmatprep.subr.mxu0 0.0
        %5040 = vmatpush1.msra.mxu0 0.0
        %5041 = vmatprep.subr.mxu0 0.0
        %5042 = vmatpush1.msra.mxu0 0.0
        %5043 = vmatprep.subr.mxu0 0.0
        %5044 = vmatpush1.msra.mxu0 0.0
        %5045 = vmatprep.subr.mxu0 0.0
        %5046 = vmatpush1.msra.mxu0 0.0
        %5047 = vmatprep.subr.mxu0 0.0
        %5048 = vmatpush1.msra.mxu0 0.0
        %5049 = vmatprep.subr.mxu0 0.0
        %5050 = vmatpush1.msra.mxu0 0.0
        %5051 = vmatprep.subr.mxu0 0.0
        %5052 = vmatpush1.msra.mxu0 0.0
        %5053 = vmatprep.subr.mxu0 0.0
        %5054 = vmatpush1.msra.mxu0 0.0
        %5055 = vmatprep.subr.mxu0 0.0
        %5056 = vmatpush1.msra.mxu0 0.0
        %5057 = vmatprep.subr.mxu0 0.0
        %5058 = vmatpush1.msra.mxu0 0.0
        %5059 = vmatprep.subr.mxu0 0.0
        %5060 = vmatpush1.msra.mxu0 0.0
        %5061 = vmatprep.subr.mxu0 0.0
        %5062 = vmatpush1.msra.mxu0 0.0
        %5063 = vmatprep.subr.mxu0 0.0
        %5064 = vmatpush1.msra.mxu0 0.0
        %5065 = vmatprep.subr.mxu0 0.0
        %5066 = vmatpush1.msra.mxu0 0.0
        %5067 = vmatprep.subr.mxu0 0.0
        %5068 = vmatpush1.msra.mxu0 0.0
        %5069 = vmatprep.subr.mxu0 0.0
        %5070 = vmatpush1.msra.mxu0 0.0
        %5071 = vmatprep.subr.mxu0 0.0
        %5072 = vmatpush1.msra.mxu0 0.0
        %5073 = vmatprep.subr.mxu0 0.0
        %5074 = vmatpush1.msra.mxu0 0.0
        %5075 = vmatprep.subr.mxu0 0.0
        %5076 = vmatpush1.msra.mxu0 0.0
        %5077 = vmatprep.subr.mxu0 0.0
        %5078 = vmatpush1.msra.mxu0 0.0
        %5079 = vmatprep.subr.mxu0 0.0
        %5080 = vmatpush1.msra.mxu0 0.0
        %5081 = vmatprep.subr.mxu0 0.0
        %5082 = vmatpush1.msra.mxu0 0.0
        %5083 = vmatprep.subr.mxu0 0.0
        %5084 = vmatpush1.msra.mxu0 0.0
        %5085 = vmatprep.mubr.f32.mxu0 0.0
        %v5086 = vand.u32 %v2272, 4294901760
        %v5087 = vsub.f32 %v2272, %v5086
        %v5088 = vand.u32 %v5087, 4294901760
        %5089 = vmatmul.mubr.f32.gmra.mrb[0].mxu0 %v5088
        %v5090 = vpop.f32.mrb[0].mxu0
        %v5091 = vadd.f32 %v5009, %v5090
        %v5092 = vpop.f32.mrb[0].mxu0
        %5093 = vmatprep.mubr.f32.mxu0 0.0
        %v5094 = vand.u32 %v2275, 4294901760
        %v5095 = vsub.f32 %v2275, %v5094
        %v5096 = vand.u32 %v5095, 4294901760
        %5097 = vmatmul.mubr.f32.gmra.mrb[0].mxu0 %v5096
        %v5098 = vpop.f32.mrb[0].mxu0
        %v5099 = vadd.f32 %v5016, %v5098
        %v5100 = vpop.f32.mrb[0].mxu0
        %5101 = vdwg.mxu0
        %5102 = vmatprep.subr.mxu0 0.0
        %v5103 = vand.u32 %v4760, 4294901760
        %v5104 = vsub.f32 %v4760, %v5103
        %v5105 = vand.u32 %v5104, 4294901760
        %5106 = vmatpush1.msra.mxu0 %v5105
        %5107 = vmatprep.subr.mxu0 0.0
        %v5108 = vand.u32 %v4761, 4294901760
        %v5109 = vsub.f32 %v4761, %v5108
        %v5110 = vand.u32 %v5109, 4294901760
        %5111 = vmatpush1.msra.mxu0 %v5110
        %5112 = vmatprep.subr.mxu0 0.0
        %5113 = vmatpush1.msra.mxu0 0.0
        %5114 = vmatprep.subr.mxu0 0.0
        %5115 = vmatpush1.msra.mxu0 0.0
        %5116 = vmatprep.subr.mxu0 0.0
        %5117 = vmatpush1.msra.mxu0 0.0
        %5118 = vmatprep.subr.mxu0 0.0
        %5119 = vmatpush1.msra.mxu0 0.0
        %5120 = vmatprep.subr.mxu0 0.0
        %5121 = vmatpush1.msra.mxu0 0.0
        %5122 = vmatprep.subr.mxu0 0.0
        %5123 = vmatpush1.msra.mxu0 0.0
        %5124 = vmatprep.subr.mxu0 0.0
        %5125 = vmatpush1.msra.mxu0 0.0
        %5126 = vmatprep.subr.mxu0 0.0
        %5127 = vmatpush1.msra.mxu0 0.0
        %5128 = vmatprep.subr.mxu0 0.0
        %5129 = vmatpush1.msra.mxu0 0.0
        %5130 = vmatprep.subr.mxu0 0.0
        %5131 = vmatpush1.msra.mxu0 0.0
        %5132 = vmatprep.subr.mxu0 0.0
        %5133 = vmatpush1.msra.mxu0 0.0
        %5134 = vmatprep.subr.mxu0 0.0
        %5135 = vmatpush1.msra.mxu0 0.0
        %5136 = vmatprep.subr.mxu0 0.0
        %5137 = vmatpush1.msra.mxu0 0.0
        %5138 = vmatprep.subr.mxu0 0.0
        %5139 = vmatpush1.msra.mxu0 0.0
        %5140 = vmatprep.subr.mxu0 0.0
        %5141 = vmatpush1.msra.mxu0 0.0
        %5142 = vmatprep.subr.mxu0 0.0
        %5143 = vmatpush1.msra.mxu0 0.0
        %5144 = vmatprep.subr.mxu0 0.0
        %5145 = vmatpush1.msra.mxu0 0.0
        %5146 = vmatprep.subr.mxu0 0.0
        %5147 = vmatpush1.msra.mxu0 0.0
        %5148 = vmatprep.subr.mxu0 0.0
        %5149 = vmatpush1.msra.mxu0 0.0
        %5150 = vmatprep.subr.mxu0 0.0
        %5151 = vmatpush1.msra.mxu0 0.0
        %5152 = vmatprep.subr.mxu0 0.0
        %5153 = vmatpush1.msra.mxu0 0.0
        %5154 = vmatprep.subr.mxu0 0.0
        %5155 = vmatpush1.msra.mxu0 0.0
        %5156 = vmatprep.subr.mxu0 0.0
        %5157 = vmatpush1.msra.mxu0 0.0
        %5158 = vmatprep.subr.mxu0 0.0
        %5159 = vmatpush1.msra.mxu0 0.0
        %5160 = vmatprep.subr.mxu0 0.0
        %5161 = vmatpush1.msra.mxu0 0.0
        %5162 = vmatprep.subr.mxu0 0.0
        %5163 = vmatpush1.msra.mxu0 0.0
        %5164 = vmatprep.subr.mxu0 0.0
        %5165 = vmatpush1.msra.mxu0 0.0
        %5166 = vmatprep.subr.mxu0 0.0
        %5167 = vmatpush1.msra.mxu0 0.0
        %5168 = vmatprep.subr.mxu0 0.0
        %5169 = vmatpush1.msra.mxu0 0.0
        %5170 = vmatprep.subr.mxu0 0.0
        %5171 = vmatpush1.msra.mxu0 0.0
        %5172 = vmatprep.mubr.f32.mxu0 0.0
        %v5173 = vand.u32 %v2272, 4294901760
        %5174 = vmatmul.mubr.f32.gmra.mrb[0].mxu0 %v5173
        %v5175 = vpop.f32.mrb[0].mxu0
        %v5176 = vadd.f32 %v5091, %v5175
        %v5177 = vpop.f32.mrb[0].mxu0
        %5178 = vmatprep.mubr.f32.mxu0 0.0
        %v5179 = vand.u32 %v2275, 4294901760
        %5180 = vmatmul.mubr.f32.gmra.mrb[0].mxu0 %v5179
        %v5181 = vpop.f32.mrb[0].mxu0
        %v5182 = vadd.f32 %v5099, %v5181
        %v5183 = vpop.f32.mrb[0].mxu0
        %5184 = vdwg.mxu0
        %5185 = vmatprep.subr.mxu0 0.0
        %v5186 = vand.u32 %v4760, 4294901760
        %5187 = vmatpush1.msra.mxu0 %v5186
        %5188 = vmatprep.subr.mxu0 0.0
        %v5189 = vand.u32 %v4761, 4294901760
        %5190 = vmatpush1.msra.mxu0 %v5189
        %5191 = vmatprep.subr.mxu0 0.0
        %5192 = vmatpush1.msra.mxu0 0.0
        %5193 = vmatprep.subr.mxu0 0.0
        %5194 = vmatpush1.msra.mxu0 0.0
        %5195 = vmatprep.subr.mxu0 0.0
        %5196 = vmatpush1.msra.mxu0 0.0
        %5197 = vmatprep.subr.mxu0 0.0
        %5198 = vmatpush1.msra.mxu0 0.0
        %5199 = vmatprep.subr.mxu0 0.0
        %5200 = vmatpush1.msra.mxu0 0.0
        %5201 = vmatprep.subr.mxu0 0.0
        %5202 = vmatpush1.msra.mxu0 0.0
        %5203 = vmatprep.subr.mxu0 0.0
        %5204 = vmatpush1.msra.mxu0 0.0
        %5205 = vmatprep.subr.mxu0 0.0
        %5206 = vmatpush1.msra.mxu0 0.0
        %5207 = vmatprep.subr.mxu0 0.0
        %5208 = vmatpush1.msra.mxu0 0.0
        %5209 = vmatprep.subr.mxu0 0.0
        %5210 = vmatpush1.msra.mxu0 0.0
        %5211 = vmatprep.subr.mxu0 0.0
        %5212 = vmatpush1.msra.mxu0 0.0
        %5213 = vmatprep.subr.mxu0 0.0
        %5214 = vmatpush1.msra.mxu0 0.0
        %5215 = vmatprep.subr.mxu0 0.0
        %5216 = vmatpush1.msra.mxu0 0.0
        %5217 = vmatprep.subr.mxu0 0.0
        %5218 = vmatpush1.msra.mxu0 0.0
        %5219 = vmatprep.subr.mxu0 0.0
        %5220 = vmatpush1.msra.mxu0 0.0
        %5221 = vmatprep.subr.mxu0 0.0
        %5222 = vmatpush1.msra.mxu0 0.0
        %5223 = vmatprep.subr.mxu0 0.0
        %5224 = vmatpush1.msra.mxu0 0.0
        %5225 = vmatprep.subr.mxu0 0.0
        %5226 = vmatpush1.msra.mxu0 0.0
        %5227 = vmatprep.subr.mxu0 0.0
        %5228 = vmatpush1.msra.mxu0 0.0
        %5229 = vmatprep.subr.mxu0 0.0
        %5230 = vmatpush1.msra.mxu0 0.0
        %5231 = vmatprep.subr.mxu0 0.0
        %5232 = vmatpush1.msra.mxu0 0.0
        %5233 = vmatprep.subr.mxu0 0.0
        %5234 = vmatpush1.msra.mxu0 0.0
        %5235 = vmatprep.subr.mxu0 0.0
        %5236 = vmatpush1.msra.mxu0 0.0
        %5237 = vmatprep.subr.mxu0 0.0
        %5238 = vmatpush1.msra.mxu0 0.0
        %5239 = vmatprep.subr.mxu0 0.0
        %5240 = vmatpush1.msra.mxu0 0.0
        %5241 = vmatprep.subr.mxu0 0.0
        %5242 = vmatpush1.msra.mxu0 0.0
        %5243 = vmatprep.subr.mxu0 0.0
        %5244 = vmatpush1.msra.mxu0 0.0
        %5245 = vmatprep.subr.mxu0 0.0
        %5246 = vmatpush1.msra.mxu0 0.0
        %5247 = vmatprep.subr.mxu0 0.0
        %5248 = vmatpush1.msra.mxu0 0.0
        %5249 = vmatprep.subr.mxu0 0.0
        %5250 = vmatpush1.msra.mxu0 0.0
        %5251 = vmatprep.mubr.f32.mxu0 0.0
        %v5252 = vand.u32 %v2272, 4294901760
        %5253 = vmatmul.mubr.f32.gmra.mrb[0].mxu0 %v5252
        %v5254 = vpop.f32.mrb[0].mxu0
        %v5255 = vadd.f32 %v5176, %v5254
        %v5256 = vpop.f32.mrb[0].mxu0
        %5257 = vmatprep.mubr.f32.mxu0 0.0
        %v5258 = vand.u32 %v2275, 4294901760
        %5259 = vmatmul.mubr.f32.gmra.mrb[0].mxu0 %v5258
        %v5260 = vpop.f32.mrb[0].mxu0
        %v5261 = vadd.f32 %v5182, %v5260
        %v5262 = vpop.f32.mrb[0].mxu0
        %5263 = vdwg.mxu0
        %v5264 = vmul.f32 %v5255, %v5255
        %v5265 = vmul.f32 %v5261, %v5261
        %5268 = vrot.lane.b32.xlu0 %v5264, 1
        %v5269 = vpop.permute.xlu0 %5268
        %5270 = vrot.lane.b32.xlu0 %v5265, 1
        %v5271 = vpop.permute.xlu0 %5270
        %v5274 = vsub.f32 %v5255, %v5269
        %v5275 = vsub.f32 %v5261, %v5271
        %v5276 = vadd.f32 %v5274, 1e-05
        %v5277 = vadd.f32 %v5275, 1e-05
        %v5278 = vrsqrt.pop %v5276
        %v5279 = vrsqrt.pop %v5277
        %5281 = vset.pattern.permute.xlu0 0
        %5282 = vperm.xlu0 %5281, %v5255
        %v5283 = vpop.permute.xlu0 %5282
        %5286 = vset.pattern.permute.xlu0 0
        %5287 = vperm.xlu0 %5286, %v5261
        %v5288 = vpop.permute.xlu0 %5287
        %v5290 = vsub.f32 %v4728, %v5283
        %v5291 = vsub.f32 %v4730, %v5283
        %v5292 = vsub.f32 %v4736, %v5288
        %v5293 = vsub.f32 %v4738, %v5288
        %5295 = vset.pattern.permute.xlu0 1
        %5296 = vperm.xlu0 %5295, %v5278
        %v5297 = vpop.permute.xlu0 %5296
        %5300 = vset.pattern.permute.xlu0 1
        %5301 = vperm.xlu0 %5300, %v5279
        %v5302 = vpop.permute.xlu0 %5301
        %v5304 = vmul.f32 %v5290, %v5297
        %v5305 = vmul.f32 %v5291, %v5297
        %v5306 = vmul.f32 %v5292, %v5302
        %v5307 = vmul.f32 %v5293, %v5302
        %v5308 = vld [vmem:[%s12] sm:$0xff]
        %v5309 = vld [vmem:[%s12 + $0x8] sm:$0xff]
        %5311 = vset.pattern.permute.xlu0 0
        %5312 = vperm.xlu0 %5311, %v5308
        %v5313 = vpop.permute.xlu0 %5312
        %5316 = vset.pattern.permute.xlu0 0
        %5317 = vperm.xlu0 %5316, %v5309
        %v5318 = vpop.permute.xlu0 %5317
        %v5320 = vmul.f32 %v5304, %v5313
        %v5321 = vmul.f32 %v5305, %v5313
        %v5322 = vmul.f32 %v5306, %v5318
        %v5323 = vmul.f32 %v5307, %v5318
        %v5324 = vld [vmem:[%s13] sm:$0xff]
        %v5325 = vld [vmem:[%s13 + $0x8] sm:$0xff]
        %5327 = vset.pattern.permute.xlu0 0
        %5328 = vperm.xlu0 %5327, %v5324
        %v5329 = vpop.permute.xlu0 %5328
        %5332 = vset.pattern.permute.xlu0 0
        %5333 = vperm.xlu0 %5332, %v5325
        %v5334 = vpop.permute.xlu0 %5333
        %v5336 = vadd.f32 %v5320, %v5329
        %v5337 = vadd.f32 %v5321, %v5329
        %v5338 = vadd.f32 %v5322, %v5334
        %v5339 = vadd.f32 %v5323, %v5334
        %v5340 = vxor.u32 %v5336, 2147483648
        %v5341 = vxor.u32 %v5337, 2147483648
        %v5342 = vxor.u32 %v5338, 2147483648
        %v5343 = vxor.u32 %v5339, 2147483648
        %v5344 = vmul.f32 %v5340, 1.442695
        %v5345 = vpow.pop %v5344
        %v5346 = vmul.f32 %v5341, 1.442695
        %v5347 = vpow.pop %v5346
        %v5348 = vmul.f32 %v5342, 1.442695
        %v5349 = vpow.pop %v5348
        %v5350 = vmul.f32 %v5343, 1.442695
        %v5351 = vpow.pop %v5350
        %v5352 = vadd.f32 %v5345, 1.0
        %v5353 = vadd.f32 %v5347, 1.0
        %v5354 = vadd.f32 %v5349, 1.0
        %v5355 = vadd.f32 %v5351, 1.0
        %v5356 = vrcp.pop %v5352
        %v5357 = vmul.f32 1.0, %v5356
        %v5358 = vrcp.pop %v5353
        %v5359 = vmul.f32 1.0, %v5358
        %v5360 = vrcp.pop %v5354
        %v5361 = vmul.f32 1.0, %v5360
        %v5362 = vrcp.pop %v5355
        %v5363 = vmul.f32 1.0, %v5362
        %v5364 = vmul.f32 %v5336, %v5357
        %v5365 = vmul.f32 %v5337, %v5359
        %v5366 = vmul.f32 %v5338, %v5361
        %v5367 = vmul.f32 %v5339, %v5363
        %v5368 = vadd.f32 %v5364, %v5365
        %5369 = vadd.xlane.f32.xlu0 %v5368
        %v5370 = vpop.xlane.xlu0 %5369
        %v5371 = vadd.f32 %v5366, %v5367
        %5372 = vadd.xlane.f32.xlu0 %v5371
        %v5373 = vpop.xlane.xlu0 %5372
        %v5374 = vmul.f32 %v5370, %v2252
        %v5375 = vmul.f32 %v5373, %v2252
        %v5376 = vld [vmem:[%s14] sm:$0x3]
        %v5377 = vld [vmem:[%s15] sm:$0x3]
        %v5379 = vsel %vm1434, %v5376, 0
        %5381 = vmatprep.subr.mxu0 0.0
        %v5382 = vand.u32 %v5374, 4294901760
        %5383 = vmatpush1.msra.mxu0 %v5382
        %5384 = vmatprep.subr.mxu0 0.0
        %v5385 = vand.u32 %v5375, 4294901760
        %5386 = vmatpush1.msra.mxu0 %v5385
        %5387 = vmatprep.subr.mxu0 0.0
        %5388 = vmatpush1.msra.mxu0 0.0
        %5389 = vmatprep.subr.mxu0 0.0
        %5390 = vmatpush1.msra.mxu0 0.0
        %5391 = vmatprep.subr.mxu0 0.0
        %5392 = vmatpush1.msra.mxu0 0.0
        %5393 = vmatprep.subr.mxu0 0.0
        %5394 = vmatpush1.msra.mxu0 0.0
        %5395 = vmatprep.subr.mxu0 0.0
        %5396 = vmatpush1.msra.mxu0 0.0
        %5397 = vmatprep.subr.mxu0 0.0
        %5398 = vmatpush1.msra.mxu0 0.0
        %5399 = vmatprep.subr.mxu0 0.0
        %5400 = vmatpush1.msra.mxu0 0.0
        %5401 = vmatprep.subr.mxu0 0.0
        %5402 = vmatpush1.msra.mxu0 0.0
        %5403 = vmatprep.subr.mxu0 0.0
        %5404 = vmatpush1.msra.mxu0 0.0
        %5405 = vmatprep.subr.mxu0 0.0
        %5406 = vmatpush1.msra.mxu0 0.0
        %5407 = vmatprep.subr.mxu0 0.0
        %5408 = vmatpush1.msra.mxu0 0.0
        %5409 = vmatprep.subr.mxu0 0.0
        %5410 = vmatpush1.msra.mxu0 0.0
        %5411 = vmatprep.subr.mxu0 0.0
        %5412 = vmatpush1.msra.mxu0 0.0
        %5413 = vmatprep.subr.mxu0 0.0
        %5414 = vmatpush1.msra.mxu0 0.0
        %5415 = vmatprep.subr.mxu0 0.0
        %5416 = vmatpush1.msra.mxu0 0.0
        %5417 = vmatprep.subr.mxu0 0.0
        %5418 = vmatpush1.msra.mxu0 0.0
        %5419 = vmatprep.subr.mxu0 0.0
        %5420 = vmatpush1.msra.mxu0 0.0
        %5421 = vmatprep.subr.mxu0 0.0
        %5422 = vmatpush1.msra.mxu0 0.0
        %5423 = vmatprep.subr.mxu0 0.0
        %5424 = vmatpush1.msra.mxu0 0.0
        %5425 = vmatprep.subr.mxu0 0.0
        %5426 = vmatpush1.msra.mxu0 0.0
        %5427 = vmatprep.subr.mxu0 0.0
        %5428 = vmatpush1.msra.mxu0 0.0
        %5429 = vmatprep.subr.mxu0 0.0
        %5430 = vmatpush1.msra.mxu0 0.0
        %5431 = vmatprep.subr.mxu0 0.0
        %5432 = vmatpush1.msra.mxu0 0.0
        %5433 = vmatprep.subr.mxu0 0.0
        %5434 = vmatpush1.msra.mxu0 0.0
        %5435 = vmatprep.subr.mxu0 0.0
        %5436 = vmatpush1.msra.mxu0 0.0
        %5437 = vmatprep.subr.mxu0 0.0
        %5438 = vmatpush1.msra.mxu0 0.0
        %5439 = vmatprep.subr.mxu0 0.0
        %5440 = vmatpush1.msra.mxu0 0.0
        %5441 = vmatprep.subr.mxu0 0.0
        %5442 = vmatpush1.msra.mxu0 0.0
        %5443 = vmatprep.subr.mxu0 0.0
        %5444 = vmatpush1.msra.mxu0 0.0
        %5445 = vmatprep.subr.mxu0 0.0
        %5446 = vmatpush1.msra.mxu0 0.0
        %5447 = vmatprep.mubr.f32.mxu0 0.0
        %v5448 = vand.u32 %v5379, 4294901760
        %v5449 = vsub.f32 %v5379, %v5448
        %v5450 = vand.u32 %v5449, 4294901760
        %v5451 = vsub.f32 %v5449, %v5450
        %v5452 = vand.u32 %v5451, 4294901760
        %5453 = vmatmul.mubr.f32.gmra.mrb[0].mxu0 %v5452
        %v5454 = vpop.f32.mrb[0].mxu0
        %v5455 = vadd.f32 %v5377, %v5454
        %v5456 = vpop.f32.mrb[0].mxu0
        %5457 = vdwg.mxu0
        %5458 = vmatprep.subr.mxu0 0.0
        %v5459 = vand.u32 %v5374, 4294901760
        %v5460 = vsub.f32 %v5374, %v5459
        %v5461 = vand.u32 %v5460, 4294901760
        %v5462 = vsub.f32 %v5460, %v5461
        %v5463 = vand.u32 %v5462, 4294901760
        %5464 = vmatpush1.msra.mxu0 %v5463
        %5465 = vmatprep.subr.mxu0 0.0
        %v5466 = vand.u32 %v5375, 4294901760
        %v5467 = vsub.f32 %v5375, %v5466
        %v5468 = vand.u32 %v5467, 4294901760
        %v5469 = vsub.f32 %v5467, %v5468
        %v5470 = vand.u32 %v5469, 4294901760
        %5471 = vmatpush1.msra.mxu0 %v5470
        %5472 = vmatprep.subr.mxu0 0.0
        %5473 = vmatpush1.msra.mxu0 0.0
        %5474 = vmatprep.subr.mxu0 0.0
        %5475 = vmatpush1.msra.mxu0 0.0
        %5476 = vmatprep.subr.mxu0 0.0
        %5477 = vmatpush1.msra.mxu0 0.0
        %5478 = vmatprep.subr.mxu0 0.0
        %5479 = vmatpush1.msra.mxu0 0.0
        %5480 = vmatprep.subr.mxu0 0.0
        %5481 = vmatpush1.msra.mxu0 0.0
        %5482 = vmatprep.subr.mxu0 0.0
        %5483 = vmatpush1.msra.mxu0 0.0
        %5484 = vmatprep.subr.mxu0 0.0
        %5485 = vmatpush1.msra.mxu0 0.0
        %5486 = vmatprep.subr.mxu0 0.0
        %5487 = vmatpush1.msra.mxu0 0.0
        %5488 = vmatprep.subr.mxu0 0.0
        %5489 = vmatpush1.msra.mxu0 0.0
        %5490 = vmatprep.subr.mxu0 0.0
        %5491 = vmatpush1.msra.mxu0 0.0
        %5492 = vmatprep.subr.mxu0 0.0
        %5493 = vmatpush1.msra.mxu0 0.0
        %5494 = vmatprep.subr.mxu0 0.0
        %5495 = vmatpush1.msra.mxu0 0.0
        %5496 = vmatprep.subr.mxu0 0.0
        %5497 = vmatpush1.msra.mxu0 0.0
        %5498 = vmatprep.subr.mxu0 0.0
        %5499 = vmatpush1.msra.mxu0 0.0
        %5500 = vmatprep.subr.mxu0 0.0
        %5501 = vmatpush1.msra.mxu0 0.0
        %5502 = vmatprep.subr.mxu0 0.0
        %5503 = vmatpush1.msra.mxu0 0.0
        %5504 = vmatprep.subr.mxu0 0.0
        %5505 = vmatpush1.msra.mxu0 0.0
        %5506 = vmatprep.subr.mxu0 0.0
        %5507 = vmatpush1.msra.mxu0 0.0
        %5508 = vmatprep.subr.mxu0 0.0
        %5509 = vmatpush1.msra.mxu0 0.0
        %5510 = vmatprep.subr.mxu0 0.0
        %5511 = vmatpush1.msra.mxu0 0.0
        %5512 = vmatprep.subr.mxu0 0.0
        %5513 = vmatpush1.msra.mxu0 0.0
        %5514 = vmatprep.subr.mxu0 0.0
        %5515 = vmatpush1.msra.mxu0 0.0
        %5516 = vmatprep.subr.mxu0 0.0
        %5517 = vmatpush1.msra.mxu0 0.0
        %5518 = vmatprep.subr.mxu0 0.0
        %5519 = vmatpush1.msra.mxu0 0.0
        %5520 = vmatprep.subr.mxu0 0.0
        %5521 = vmatpush1.msra.mxu0 0.0
        %5522 = vmatprep.subr.mxu0 0.0
        %5523 = vmatpush1.msra.mxu0 0.0
        %5524 = vmatprep.subr.mxu0 0.0
        %5525 = vmatpush1.msra.mxu0 0.0
        %5526 = vmatprep.subr.mxu0 0.0
        %5527 = vmatpush1.msra.mxu0 0.0
        %5528 = vmatprep.subr.mxu0 0.0
        %5529 = vmatpush1.msra.mxu0 0.0
        %5530 = vmatprep.subr.mxu0 0.0
        %5531 = vmatpush1.msra.mxu0 0.0
        %5532 = vmatprep.mubr.f32.mxu0 0.0
        %v5533 = vand.u32 %v5379, 4294901760
        %5534 = vmatmul.mubr.f32.gmra.mrb[0].mxu0 %v5533
        %v5535 = vpop.f32.mrb[0].mxu0
        %v5536 = vadd.f32 %v5455, %v5535
        %v5537 = vpop.f32.mrb[0].mxu0
        %5538 = vdwg.mxu0
        %5539 = vmatprep.subr.mxu0 0.0
        %v5540 = vand.u32 %v5374, 4294901760
        %v5541 = vsub.f32 %v5374, %v5540
        %5542 = vmatpush1.msra.mxu0 %v5541
        %5543 = vmatprep.subr.mxu0 0.0
        %v5544 = vand.u32 %v5375, 4294901760
        %v5545 = vsub.f32 %v5375, %v5544
        %5546 = vmatpush1.msra.mxu0 %v5545
        %5547 = vmatprep.subr.mxu0 0.0
        %5548 = vmatpush1.msra.mxu0 0.0
        %5549 = vmatprep.subr.mxu0 0.0
        %5550 = vmatpush1.msra.mxu0 0.0
        %5551 = vmatprep.subr.mxu0 0.0
        %5552 = vmatpush1.msra.mxu0 0.0
        %5553 = vmatprep.subr.mxu0 0.0
        %5554 = vmatpush1.msra.mxu0 0.0
        %5555 = vmatprep.subr.mxu0 0.0
        %5556 = vmatpush1.msra.mxu0 0.0
        %5557 = vmatprep.subr.mxu0 0.0
        %5558 = vmatpush1.msra.mxu0 0.0
        %5559 = vmatprep.subr.mxu0 0.0
        %5560 = vmatpush1.msra.mxu0 0.0
        %5561 = vmatprep.subr.mxu0 0.0
        %5562 = vmatpush1.msra.mxu0 0.0
        %5563 = vmatprep.subr.mxu0 0.0
        %5564 = vmatpush1.msra.mxu0 0.0
        %5565 = vmatprep.subr.mxu0 0.0
        %5566 = vmatpush1.msra.mxu0 0.0
        %5567 = vmatprep.subr.mxu0 0.0
        %5568 = vmatpush1.msra.mxu0 0.0
        %5569 = vmatprep.subr.mxu0 0.0
        %5570 = vmatpush1.msra.mxu0 0.0
        %5571 = vmatprep.subr.mxu0 0.0
        %5572 = vmatpush1.msra.mxu0 0.0
        %5573 = vmatprep.subr.mxu0 0.0
        %5574 = vmatpush1.msra.mxu0 0.0
        %5575 = vmatprep.subr.mxu0 0.0
        %5576 = vmatpush1.msra.mxu0 0.0
        %5577 = vmatprep.subr.mxu0 0.0
        %5578 = vmatpush1.msra.mxu0 0.0
        %5579 = vmatprep.subr.mxu0 0.0
        %5580 = vmatpush1.msra.mxu0 0.0
        %5581 = vmatprep.subr.mxu0 0.0
        %5582 = vmatpush1.msra.mxu0 0.0
        %5583 = vmatprep.subr.mxu0 0.0
        %5584 = vmatpush1.msra.mxu0 0.0
        %5585 = vmatprep.subr.mxu0 0.0
        %5586 = vmatpush1.msra.mxu0 0.0
        %5587 = vmatprep.subr.mxu0 0.0
        %5588 = vmatpush1.msra.mxu0 0.0
        %5589 = vmatprep.subr.mxu0 0.0
        %5590 = vmatpush1.msra.mxu0 0.0
        %5591 = vmatprep.subr.mxu0 0.0
        %5592 = vmatpush1.msra.mxu0 0.0
        %5593 = vmatprep.subr.mxu0 0.0
        %5594 = vmatpush1.msra.mxu0 0.0
        %5595 = vmatprep.subr.mxu0 0.0
        %5596 = vmatpush1.msra.mxu0 0.0
        %5597 = vmatprep.subr.mxu0 0.0
        %5598 = vmatpush1.msra.mxu0 0.0
        %5599 = vmatprep.subr.mxu0 0.0
        %5600 = vmatpush1.msra.mxu0 0.0
        %5601 = vmatprep.subr.mxu0 0.0
        %5602 = vmatpush1.msra.mxu0 0.0
        %5603 = vmatprep.subr.mxu0 0.0
        %5604 = vmatpush1.msra.mxu0 0.0
        %5605 = vmatprep.subr.mxu0 0.0
        %5606 = vmatpush1.msra.mxu0 0.0
        %5607 = vmatprep.mubr.f32.mxu0 0.0
        %v5608 = vand.u32 %v5379, 4294901760
        %v5609 = vsub.f32 %v5379, %v5608
        %5610 = vmatmul.mubr.f32.gmra.mrb[0].mxu0 %v5609
        %v5611 = vpop.f32.mrb[0].mxu0
        %v5612 = vadd.f32 %v5536, %v5611
        %v5613 = vpop.f32.mrb[0].mxu0
        %5614 = vdwg.mxu0
        %5615 = vmatprep.subr.mxu0 0.0
        %v5616 = vand.u32 %v5374, 4294901760
        %5617 = vmatpush1.msra.mxu0 %v5616
        %5618 = vmatprep.subr.mxu0 0.0
        %v5619 = vand.u32 %v5375, 4294901760
        %5620 = vmatpush1.msra.mxu0 %v5619
        %5621 = vmatprep.subr.mxu0 0.0
        %5622 = vmatpush1.msra.mxu0 0.0
        %5623 = vmatprep.subr.mxu0 0.0
        %5624 = vmatpush1.msra.mxu0 0.0
        %5625 = vmatprep.subr.mxu0 0.0
        %5626 = vmatpush1.msra.mxu0 0.0
        %5627 = vmatprep.subr.mxu0 0.0
        %5628 = vmatpush1.msra.mxu0 0.0
        %5629 = vmatprep.subr.mxu0 0.0
        %5630 = vmatpush1.msra.mxu0 0.0
        %5631 = vmatprep.subr.mxu0 0.0
        %5632 = vmatpush1.msra.mxu0 0.0
        %5633 = vmatprep.subr.mxu0 0.0
        %5634 = vmatpush1.msra.mxu0 0.0
        %5635 = vmatprep.subr.mxu0 0.0
        %5636 = vmatpush1.msra.mxu0 0.0
        %5637 = vmatprep.subr.mxu0 0.0
        %5638 = vmatpush1.msra.mxu0 0.0
        %5639 = vmatprep.subr.mxu0 0.0
        %5640 = vmatpush1.msra.mxu0 0.0
        %5641 = vmatprep.subr.mxu0 0.0
        %5642 = vmatpush1.msra.mxu0 0.0
        %5643 = vmatprep.subr.mxu0 0.0
        %5644 = vmatpush1.msra.mxu0 0.0
        %5645 = vmatprep.subr.mxu0 0.0
        %5646 = vmatpush1.msra.mxu0 0.0
        %5647 = vmatprep.subr.mxu0 0.0
        %5648 = vmatpush1.msra.mxu0 0.0
        %5649 = vmatprep.subr.mxu0 0.0
        %5650 = vmatpush1.msra.mxu0 0.0
        %5651 = vmatprep.subr.mxu0 0.0
        %5652 = vmatpush1.msra.mxu0 0.0
        %5653 = vmatprep.subr.mxu0 0.0
        %5654 = vmatpush1.msra.mxu0 0.0
        %5655 = vmatprep.subr.mxu0 0.0
        %5656 = vmatpush1.msra.mxu0 0.0
        %5657 = vmatprep.subr.mxu0 0.0
        %5658 = vmatpush1.msra.mxu0 0.0
        %5659 = vmatprep.subr.mxu0 0.0
        %5660 = vmatpush1.msra.mxu0 0.0
        %5661 = vmatprep.subr.mxu0 0.0
        %5662 = vmatpush1.msra.mxu0 0.0
        %5663 = vmatprep.subr.mxu0 0.0
        %5664 = vmatpush1.msra.mxu0 0.0
        %5665 = vmatprep.subr.mxu0 0.0
        %5666 = vmatpush1.msra.mxu0 0.0
        %5667 = vmatprep.subr.mxu0 0.0
        %5668 = vmatpush1.msra.mxu0 0.0
        %5669 = vmatprep.subr.mxu0 0.0
        %5670 = vmatpush1.msra.mxu0 0.0
        %5671 = vmatprep.subr.mxu0 0.0
        %5672 = vmatpush1.msra.mxu0 0.0
        %5673 = vmatprep.subr.mxu0 0.0
        %5674 = vmatpush1.msra.mxu0 0.0
        %5675 = vmatprep.subr.mxu0 0.0
        %5676 = vmatpush1.msra.mxu0 0.0
        %5677 = vmatprep.subr.mxu0 0.0
        %5678 = vmatpush1.msra.mxu0 0.0
        %5679 = vmatprep.subr.mxu0 0.0
        %5680 = vmatpush1.msra.mxu0 0.0
        %5681 = vmatprep.mubr.f32.mxu0 0.0
        %v5682 = vand.u32 %v5379, 4294901760
        %v5683 = vsub.f32 %v5379, %v5682
        %v5684 = vand.u32 %v5683, 4294901760
        %5685 = vmatmul.mubr.f32.gmra.mrb[0].mxu0 %v5684
        %v5686 = vpop.f32.mrb[0].mxu0
        %v5687 = vadd.f32 %v5612, %v5686
        %v5688 = vpop.f32.mrb[0].mxu0
        %5689 = vdwg.mxu0
        %5690 = vmatprep.subr.mxu0 0.0
        %v5691 = vand.u32 %v5374, 4294901760
        %v5692 = vsub.f32 %v5374, %v5691
        %v5693 = vand.u32 %v5692, 4294901760
        %5694 = vmatpush1.msra.mxu0 %v5693
        %5695 = vmatprep.subr.mxu0 0.0
        %v5696 = vand.u32 %v5375, 4294901760
        %v5697 = vsub.f32 %v5375, %v5696
        %v5698 = vand.u32 %v5697, 4294901760
        %5699 = vmatpush1.msra.mxu0 %v5698
        %5700 = vmatprep.subr.mxu0 0.0
        %5701 = vmatpush1.msra.mxu0 0.0
        %5702 = vmatprep.subr.mxu0 0.0
        %5703 = vmatpush1.msra.mxu0 0.0
        %5704 = vmatprep.subr.mxu0 0.0
        %5705 = vmatpush1.msra.mxu0 0.0
        %5706 = vmatprep.subr.mxu0 0.0
        %5707 = vmatpush1.msra.mxu0 0.0
        %5708 = vmatprep.subr.mxu0 0.0
        %5709 = vmatpush1.msra.mxu0 0.0
        %5710 = vmatprep.subr.mxu0 0.0
        %5711 = vmatpush1.msra.mxu0 0.0
        %5712 = vmatprep.subr.mxu0 0.0
        %5713 = vmatpush1.msra.mxu0 0.0
        %5714 = vmatprep.subr.mxu0 0.0
        %5715 = vmatpush1.msra.mxu0 0.0
        %5716 = vmatprep.subr.mxu0 0.0
        %5717 = vmatpush1.msra.mxu0 0.0
        %5718 = vmatprep.subr.mxu0 0.0
        %5719 = vmatpush1.msra.mxu0 0.0
        %5720 = vmatprep.subr.mxu0 0.0
        %5721 = vmatpush1.msra.mxu0 0.0
        %5722 = vmatprep.subr.mxu0 0.0
        %5723 = vmatpush1.msra.mxu0 0.0
        %5724 = vmatprep.subr.mxu0 0.0
        %5725 = vmatpush1.msra.mxu0 0.0
        %5726 = vmatprep.subr.mxu0 0.0
        %5727 = vmatpush1.msra.mxu0 0.0
        %5728 = vmatprep.subr.mxu0 0.0
        %5729 = vmatpush1.msra.mxu0 0.0
        %5730 = vmatprep.subr.mxu0 0.0
        %5731 = vmatpush1.msra.mxu0 0.0
        %5732 = vmatprep.subr.mxu0 0.0
        %5733 = vmatpush1.msra.mxu0 0.0
        %5734 = vmatprep.subr.mxu0 0.0
        %5735 = vmatpush1.msra.mxu0 0.0
        %5736 = vmatprep.subr.mxu0 0.0
        %5737 = vmatpush1.msra.mxu0 0.0
        %5738 = vmatprep.subr.mxu0 0.0
        %5739 = vmatpush1.msra.mxu0 0.0
        %5740 = vmatprep.subr.mxu0 0.0
        %5741 = vmatpush1.msra.mxu0 0.0
        %5742 = vmatprep.subr.mxu0 0.0
        %5743 = vmatpush1.msra.mxu0 0.0
        %5744 = vmatprep.subr.mxu0 0.0
        %5745 = vmatpush1.msra.mxu0 0.0
        %5746 = vmatprep.subr.mxu0 0.0
        %5747 = vmatpush1.msra.mxu0 0.0
        %5748 = vmatprep.subr.mxu0 0.0
        %5749 = vmatpush1.msra.mxu0 0.0
        %5750 = vmatprep.subr.mxu0 0.0
        %5751 = vmatpush1.msra.mxu0 0.0
        %5752 = vmatprep.subr.mxu0 0.0
        %5753 = vmatpush1.msra.mxu0 0.0
        %5754 = vmatprep.subr.mxu0 0.0
        %5755 = vmatpush1.msra.mxu0 0.0
        %5756 = vmatprep.subr.mxu0 0.0
        %5757 = vmatpush1.msra.mxu0 0.0
        %5758 = vmatprep.subr.mxu0 0.0
        %5759 = vmatpush1.msra.mxu0 0.0
        %5760 = vmatprep.mubr.f32.mxu0 0.0
        %v5761 = vand.u32 %v5379, 4294901760
        %5762 = vmatmul.mubr.f32.gmra.mrb[0].mxu0 %v5761
        %v5763 = vpop.f32.mrb[0].mxu0
        %v5764 = vadd.f32 %v5687, %v5763
        %v5765 = vpop.f32.mrb[0].mxu0
        %5766 = vdwg.mxu0
        %5767 = vmatprep.subr.mxu0 0.0
        %v5768 = vand.u32 %v5374, 4294901760
        %5769 = vmatpush1.msra.mxu0 %v5768
        %5770 = vmatprep.subr.mxu0 0.0
        %v5771 = vand.u32 %v5375, 4294901760
        %5772 = vmatpush1.msra.mxu0 %v5771
        %5773 = vmatprep.subr.mxu0 0.0
        %5774 = vmatpush1.msra.mxu0 0.0
        %5775 = vmatprep.subr.mxu0 0.0
        %5776 = vmatpush1.msra.mxu0 0.0
        %5777 = vmatprep.subr.mxu0 0.0
        %5778 = vmatpush1.msra.mxu0 0.0
        %5779 = vmatprep.subr.mxu0 0.0
        %5780 = vmatpush1.msra.mxu0 0.0
        %5781 = vmatprep.subr.mxu0 0.0
        %5782 = vmatpush1.msra.mxu0 0.0
        %5783 = vmatprep.subr.mxu0 0.0
        %5784 = vmatpush1.msra.mxu0 0.0
        %5785 = vmatprep.subr.mxu0 0.0
        %5786 = vmatpush1.msra.mxu0 0.0
        %5787 = vmatprep.subr.mxu0 0.0
        %5788 = vmatpush1.msra.mxu0 0.0
        %5789 = vmatprep.subr.mxu0 0.0
        %5790 = vmatpush1.msra.mxu0 0.0
        %5791 = vmatprep.subr.mxu0 0.0
        %5792 = vmatpush1.msra.mxu0 0.0
        %5793 = vmatprep.subr.mxu0 0.0
        %5794 = vmatpush1.msra.mxu0 0.0
        %5795 = vmatprep.subr.mxu0 0.0
        %5796 = vmatpush1.msra.mxu0 0.0
        %5797 = vmatprep.subr.mxu0 0.0
        %5798 = vmatpush1.msra.mxu0 0.0
        %5799 = vmatprep.subr.mxu0 0.0
        %5800 = vmatpush1.msra.mxu0 0.0
        %5801 = vmatprep.subr.mxu0 0.0
        %5802 = vmatpush1.msra.mxu0 0.0
        %5803 = vmatprep.subr.mxu0 0.0
        %5804 = vmatpush1.msra.mxu0 0.0
        %5805 = vmatprep.subr.mxu0 0.0
        %5806 = vmatpush1.msra.mxu0 0.0
        %5807 = vmatprep.subr.mxu0 0.0
        %5808 = vmatpush1.msra.mxu0 0.0
        %5809 = vmatprep.subr.mxu0 0.0
        %5810 = vmatpush1.msra.mxu0 0.0
        %5811 = vmatprep.subr.mxu0 0.0
        %5812 = vmatpush1.msra.mxu0 0.0
        %5813 = vmatprep.subr.mxu0 0.0
        %5814 = vmatpush1.msra.mxu0 0.0
        %5815 = vmatprep.subr.mxu0 0.0
        %5816 = vmatpush1.msra.mxu0 0.0
        %5817 = vmatprep.subr.mxu0 0.0
        %5818 = vmatpush1.msra.mxu0 0.0
        %5819 = vmatprep.subr.mxu0 0.0
        %5820 = vmatpush1.msra.mxu0 0.0
        %5821 = vmatprep.subr.mxu0 0.0
        %5822 = vmatpush1.msra.mxu0 0.0
        %5823 = vmatprep.subr.mxu0 0.0
        %5824 = vmatpush1.msra.mxu0 0.0
        %5825 = vmatprep.subr.mxu0 0.0
        %5826 = vmatpush1.msra.mxu0 0.0
        %5827 = vmatprep.subr.mxu0 0.0
        %5828 = vmatpush1.msra.mxu0 0.0
        %5829 = vmatprep.subr.mxu0 0.0
        %5830 = vmatpush1.msra.mxu0 0.0
        %5831 = vmatprep.subr.mxu0 0.0
        %5832 = vmatpush1.msra.mxu0 0.0
        %5833 = vmatprep.mubr.f32.mxu0 0.0
        %v5834 = vand.u32 %v5379, 4294901760
        %5835 = vmatmul.mubr.f32.gmra.mrb[0].mxu0 %v5834
        %v5836 = vpop.f32.mrb[0].mxu0
        %v5837 = vadd.f32 %v5764, %v5836
        %v5838 = vpop.f32.mrb[0].mxu0
        %5839 = vdwg.mxu0
        %v5840 = vxor.u32 %v5837, 2147483648
        %v5841 = vmul.f32 %v5840, 1.442695
        %v5842 = vpow.pop %v5841
        %v5843 = vadd.f32 %v5842, 1.0
        %v5844 = vrcp.pop %v5843
        %v5845 = vmul.f32 1.0, %v5844
        %v5846 = vmul.f32 %v5837, %v5845
        %v5847 = vld [vmem:[%s16] sm:$0xff]
        %v5848 = vld [vmem:[%s16 + $0x8] sm:$0xff]
        %v5849 = vld [vmem:[%s17] sm:$0xff]
        %v5850 = vld [vmem:[%s17 + $0x8] sm:$0xff]
        %vm5851 = vcmask 15360
        %v5853 = vsel %vm5851, %v5847, 0
        %v5856 = vsel %vm5851, %v5848, 0
        %vm5858 = vcmask 1041408
        %v5860 = vsel %vm5858, %v5846, 0
        %5862 = vmatprep.subr.mxu0 0.0
        %v5863 = vand.u32 %v5860, 4294901760
        %5864 = vmatpush1.msra.mxu0 %v5863
        %5865 = vmatprep.subr.mxu0 0.0
        %5866 = vmatpush1.msra.mxu0 0.0
        %5867 = vmatprep.subr.mxu0 0.0
        %5868 = vmatpush1.msra.mxu0 0.0
        %5869 = vmatprep.subr.mxu0 0.0
        %5870 = vmatpush1.msra.mxu0 0.0
        %5871 = vmatprep.subr.mxu0 0.0
        %5872 = vmatpush1.msra.mxu0 0.0
        %5873 = vmatprep.subr.mxu0 0.0
        %5874 = vmatpush1.msra.mxu0 0.0
        %5875 = vmatprep.subr.mxu0 0.0
        %5876 = vmatpush1.msra.mxu0 0.0
        %5877 = vmatprep.subr.mxu0 0.0
        %5878 = vmatpush1.msra.mxu0 0.0
        %5879 = vmatprep.subr.mxu0 0.0
        %5880 = vmatpush1.msra.mxu0 0.0
        %5881 = vmatprep.subr.mxu0 0.0
        %5882 = vmatpush1.msra.mxu0 0.0
        %5883 = vmatprep.subr.mxu0 0.0
        %5884 = vmatpush1.msra.mxu0 0.0
        %5885 = vmatprep.subr.mxu0 0.0
        %5886 = vmatpush1.msra.mxu0 0.0
        %5887 = vmatprep.subr.mxu0 0.0
        %5888 = vmatpush1.msra.mxu0 0.0
        %5889 = vmatprep.subr.mxu0 0.0
        %5890 = vmatpush1.msra.mxu0 0.0
        %5891 = vmatprep.subr.mxu0 0.0
        %5892 = vmatpush1.msra.mxu0 0.0
        %5893 = vmatprep.subr.mxu0 0.0
        %5894 = vmatpush1.msra.mxu0 0.0
        %5895 = vmatprep.subr.mxu0 0.0
        %5896 = vmatpush1.msra.mxu0 0.0
        %5897 = vmatprep.subr.mxu0 0.0
        %5898 = vmatpush1.msra.mxu0 0.0
        %5899 = vmatprep.subr.mxu0 0.0
        %5900 = vmatpush1.msra.mxu0 0.0
        %5901 = vmatprep.subr.mxu0 0.0
        %5902 = vmatpush1.msra.mxu0 0.0
        %5903 = vmatprep.subr.mxu0 0.0
        %5904 = vmatpush1.msra.mxu0 0.0
        %5905 = vmatprep.subr.mxu0 0.0
        %5906 = vmatpush1.msra.mxu0 0.0
        %5907 = vmatprep.subr.mxu0 0.0
        %5908 = vmatpush1.msra.mxu0 0.0
        %5909 = vmatprep.subr.mxu0 0.0
        %5910 = vmatpush1.msra.mxu0 0.0
        %5911 = vmatprep.subr.mxu0 0.0
        %5912 = vmatpush1.msra.mxu0 0.0
        %5913 = vmatprep.subr.mxu0 0.0
        %5914 = vmatpush1.msra.mxu0 0.0
        %5915 = vmatprep.subr.mxu0 0.0
        %5916 = vmatpush1.msra.mxu0 0.0
        %5917 = vmatprep.subr.mxu0 0.0
        %5918 = vmatpush1.msra.mxu0 0.0
        %5919 = vmatprep.subr.mxu0 0.0
        %5920 = vmatpush1.msra.mxu0 0.0
        %5921 = vmatprep.subr.mxu0 0.0
        %5922 = vmatpush1.msra.mxu0 0.0
        %5923 = vmatprep.subr.mxu0 0.0
        %5924 = vmatpush1.msra.mxu0 0.0
        %5925 = vmatprep.subr.mxu0 0.0
        %5926 = vmatpush1.msra.mxu0 0.0
        %5927 = vmatprep.mubr.f32.mxu0 0.0
        %v5928 = vand.u32 %v5853, 4294901760
        %v5929 = vsub.f32 %v5853, %v5928
        %v5930 = vand.u32 %v5929, 4294901760
        %v5931 = vsub.f32 %v5929, %v5930
        %v5932 = vand.u32 %v5931, 4294901760
        %5933 = vmatmul.mubr.f32.gmra.mrb[0].mxu0 %v5932
        %v5934 = vpop.f32.mrb[0].mxu0
        %v5935 = vadd.f32 %v5849, %v5934
        %v5936 = vpop.f32.mrb[0].mxu0
        %5937 = vmatprep.mubr.f32.mxu0 0.0
        %v5938 = vand.u32 %v5856, 4294901760
        %v5939 = vsub.f32 %v5856, %v5938
        %v5940 = vand.u32 %v5939, 4294901760
        %v5941 = vsub.f32 %v5939, %v5940
        %v5942 = vand.u32 %v5941, 4294901760
        %5943 = vmatmul.mubr.f32.gmra.mrb[0].mxu0 %v5942
        %v5944 = vpop.f32.mrb[0].mxu0
        %v5945 = vadd.f32 %v5850, %v5944
        %v5946 = vpop.f32.mrb[0].mxu0
        %5947 = vdwg.mxu0
        %5948 = vmatprep.subr.mxu0 0.0
        %v5949 = vand.u32 %v5860, 4294901760
        %v5950 = vsub.f32 %v5860, %v5949
        %v5951 = vand.u32 %v5950, 4294901760
        %v5952 = vsub.f32 %v5950, %v5951
        %v5953 = vand.u32 %v5952, 4294901760
        %5954 = vmatpush1.msra.mxu0 %v5953
        %5955 = vmatprep.subr.mxu0 0.0
        %5956 = vmatpush1.msra.mxu0 0.0
        %5957 = vmatprep.subr.mxu0 0.0
        %5958 = vmatpush1.msra.mxu0 0.0
        %5959 = vmatprep.subr.mxu0 0.0
        %5960 = vmatpush1.msra.mxu0 0.0
        %5961 = vmatprep.subr.mxu0 0.0
        %5962 = vmatpush1.msra.mxu0 0.0
        %5963 = vmatprep.subr.mxu0 0.0
        %5964 = vmatpush1.msra.mxu0 0.0
        %5965 = vmatprep.subr.mxu0 0.0
        %5966 = vmatpush1.msra.mxu0 0.0
        %5967 = vmatprep.subr.mxu0 0.0
        %5968 = vmatpush1.msra.mxu0 0.0
        %5969 = vmatprep.subr.mxu0 0.0
        %5970 = vmatpush1.msra.mxu0 0.0
        %5971 = vmatprep.subr.mxu0 0.0
        %5972 = vmatpush1.msra.mxu0 0.0
        %5973 = vmatprep.subr.mxu0 0.0
        %5974 = vmatpush1.msra.mxu0 0.0
        %5975 = vmatprep.subr.mxu0 0.0
        %5976 = vmatpush1.msra.mxu0 0.0
        %5977 = vmatprep.subr.mxu0 0.0
        %5978 = vmatpush1.msra.mxu0 0.0
        %5979 = vmatprep.subr.mxu0 0.0
        %5980 = vmatpush1.msra.mxu0 0.0
        %5981 = vmatprep.subr.mxu0 0.0
        %5982 = vmatpush1.msra.mxu0 0.0
        %5983 = vmatprep.subr.mxu0 0.0
        %5984 = vmatpush1.msra.mxu0 0.0
        %5985 = vmatprep.subr.mxu0 0.0
        %5986 = vmatpush1.msra.mxu0 0.0
        %5987 = vmatprep.subr.mxu0 0.0
        %5988 = vmatpush1.msra.mxu0 0.0
        %5989 = vmatprep.subr.mxu0 0.0
        %5990 = vmatpush1.msra.mxu0 0.0
        %5991 = vmatprep.subr.mxu0 0.0
        %5992 = vmatpush1.msra.mxu0 0.0
        %5993 = vmatprep.subr.mxu0 0.0
        %5994 = vmatpush1.msra.mxu0 0.0
        %5995 = vmatprep.subr.mxu0 0.0
        %5996 = vmatpush1.msra.mxu0 0.0
        %5997 = vmatprep.subr.mxu0 0.0
        %5998 = vmatpush1.msra.mxu0 0.0
        %5999 = vmatprep.subr.mxu0 0.0
        %6000 = vmatpush1.msra.mxu0 0.0
        %6001 = vmatprep.subr.mxu0 0.0
        %6002 = vmatpush1.msra.mxu0 0.0
        %6003 = vmatprep.subr.mxu0 0.0
        %6004 = vmatpush1.msra.mxu0 0.0
        %6005 = vmatprep.subr.mxu0 0.0
        %6006 = vmatpush1.msra.mxu0 0.0
        %6007 = vmatprep.subr.mxu0 0.0
        %6008 = vmatpush1.msra.mxu0 0.0
        %6009 = vmatprep.subr.mxu0 0.0
        %6010 = vmatpush1.msra.mxu0 0.0
        %6011 = vmatprep.subr.mxu0 0.0
        %6012 = vmatpush1.msra.mxu0 0.0
        %6013 = vmatprep.subr.mxu0 0.0
        %6014 = vmatpush1.msra.mxu0 0.0
        %6015 = vmatprep.subr.mxu0 0.0
        %6016 = vmatpush1.msra.mxu0 0.0
        %6017 = vmatprep.mubr.f32.mxu0 0.0
        %v6018 = vand.u32 %v5853, 4294901760
        %6019 = vmatmul.mubr.f32.gmra.mrb[0].mxu0 %v6018
        %v6020 = vpop.f32.mrb[0].mxu0
        %v6021 = vadd.f32 %v5935, %v6020
        %v6022 = vpop.f32.mrb[0].mxu0
        %6023 = vmatprep.mubr.f32.mxu0 0.0
        %v6024 = vand.u32 %v5856, 4294901760
        %6025 = vmatmul.mubr.f32.gmra.mrb[0].mxu0 %v6024
        %v6026 = vpop.f32.mrb[0].mxu0
        %v6027 = vadd.f32 %v5945, %v6026
        %v6028 = vpop.f32.mrb[0].mxu0
        %6029 = vdwg.mxu0
        %6030 = vmatprep.subr.mxu0 0.0
        %v6031 = vand.u32 %v5860, 4294901760
        %v6032 = vsub.f32 %v5860, %v6031
        %6033 = vmatpush1.msra.mxu0 %v6032
        %6034 = vmatprep.subr.mxu0 0.0
        %6035 = vmatpush1.msra.mxu0 0.0
        %6036 = vmatprep.subr.mxu0 0.0
        %6037 = vmatpush1.msra.mxu0 0.0
        %6038 = vmatprep.subr.mxu0 0.0
        %6039 = vmatpush1.msra.mxu0 0.0
        %6040 = vmatprep.subr.mxu0 0.0
        %6041 = vmatpush1.msra.mxu0 0.0
        %6042 = vmatprep.subr.mxu0 0.0
        %6043 = vmatpush1.msra.mxu0 0.0
        %6044 = vmatprep.subr.mxu0 0.0
        %6045 = vmatpush1.msra.mxu0 0.0
        %6046 = vmatprep.subr.mxu0 0.0
        %6047 = vmatpush1.msra.mxu0 0.0
        %6048 = vmatprep.subr.mxu0 0.0
        %6049 = vmatpush1.msra.mxu0 0.0
        %6050 = vmatprep.subr.mxu0 0.0
        %6051 = vmatpush1.msra.mxu0 0.0
        %6052 = vmatprep.subr.mxu0 0.0
        %6053 = vmatpush1.msra.mxu0 0.0
        %6054 = vmatprep.subr.mxu0 0.0
        %6055 = vmatpush1.msra.mxu0 0.0
        %6056 = vmatprep.subr.mxu0 0.0
        %6057 = vmatpush1.msra.mxu0 0.0
        %6058 = vmatprep.subr.mxu0 0.0
        %6059 = vmatpush1.msra.mxu0 0.0
        %6060 = vmatprep.subr.mxu0 0.0
        %6061 = vmatpush1.msra.mxu0 0.0
        %6062 = vmatprep.subr.mxu0 0.0
        %6063 = vmatpush1.msra.mxu0 0.0
        %6064 = vmatprep.subr.mxu0 0.0
        %6065 = vmatpush1.msra.mxu0 0.0
        %6066 = vmatprep.subr.mxu0 0.0
        %6067 = vmatpush1.msra.mxu0 0.0
        %6068 = vmatprep.subr.mxu0 0.0
        %6069 = vmatpush1.msra.mxu0 0.0
        %6070 = vmatprep.subr.mxu0 0.0
        %6071 = vmatpush1.msra.mxu0 0.0
        %6072 = vmatprep.subr.mxu0 0.0
        %6073 = vmatpush1.msra.mxu0 0.0
        %6074 = vmatprep.subr.mxu0 0.0
        %6075 = vmatpush1.msra.mxu0 0.0
        %6076 = vmatprep.subr.mxu0 0.0
        %6077 = vmatpush1.msra.mxu0 0.0
        %6078 = vmatprep.subr.mxu0 0.0
        %6079 = vmatpush1.msra.mxu0 0.0
        %6080 = vmatprep.subr.mxu0 0.0
        %6081 = vmatpush1.msra.mxu0 0.0
        %6082 = vmatprep.subr.mxu0 0.0
        %6083 = vmatpush1.msra.mxu0 0.0
        %6084 = vmatprep.subr.mxu0 0.0
        %6085 = vmatpush1.msra.mxu0 0.0
        %6086 = vmatprep.subr.mxu0 0.0
        %6087 = vmatpush1.msra.mxu0 0.0
        %6088 = vmatprep.subr.mxu0 0.0
        %6089 = vmatpush1.msra.mxu0 0.0
        %6090 = vmatprep.subr.mxu0 0.0
        %6091 = vmatpush1.msra.mxu0 0.0
        %6092 = vmatprep.subr.mxu0 0.0
        %6093 = vmatpush1.msra.mxu0 0.0
        %6094 = vmatprep.subr.mxu0 0.0
        %6095 = vmatpush1.msra.mxu0 0.0
        %6096 = vmatprep.mubr.f32.mxu0 0.0
        %v6097 = vand.u32 %v5853, 4294901760
        %v6098 = vsub.f32 %v5853, %v6097
        %6099 = vmatmul.mubr.f32.gmra.mrb[0].mxu0 %v6098
        %v6100 = vpop.f32.mrb[0].mxu0
        %v6101 = vadd.f32 %v6021, %v6100
        %v6102 = vpop.f32.mrb[0].mxu0
        %6103 = vmatprep.mubr.f32.mxu0 0.0
        %v6104 = vand.u32 %v5856, 4294901760
        %v6105 = vsub.f32 %v5856, %v6104
        %6106 = vmatmul.mubr.f32.gmra.mrb[0].mxu0 %v6105
        %v6107 = vpop.f32.mrb[0].mxu0
        %v6108 = vadd.f32 %v6027, %v6107
        %v6109 = vpop.f32.mrb[0].mxu0
        %6110 = vdwg.mxu0
        %6111 = vmatprep.subr.mxu0 0.0
        %v6112 = vand.u32 %v5860, 4294901760
        %6113 = vmatpush1.msra.mxu0 %v6112
        %6114 = vmatprep.subr.mxu0 0.0
        %6115 = vmatpush1.msra.mxu0 0.0
        %6116 = vmatprep.subr.mxu0 0.0
        %6117 = vmatpush1.msra.mxu0 0.0
        %6118 = vmatprep.subr.mxu0 0.0
        %6119 = vmatpush1.msra.mxu0 0.0
        %6120 = vmatprep.subr.mxu0 0.0
        %6121 = vmatpush1.msra.mxu0 0.0
        %6122 = vmatprep.subr.mxu0 0.0
        %6123 = vmatpush1.msra.mxu0 0.0
        %6124 = vmatprep.subr.mxu0 0.0
        %6125 = vmatpush1.msra.mxu0 0.0
        %6126 = vmatprep.subr.mxu0 0.0
        %6127 = vmatpush1.msra.mxu0 0.0
        %6128 = vmatprep.subr.mxu0 0.0
        %6129 = vmatpush1.msra.mxu0 0.0
        %6130 = vmatprep.subr.mxu0 0.0
        %6131 = vmatpush1.msra.mxu0 0.0
        %6132 = vmatprep.subr.mxu0 0.0
        %6133 = vmatpush1.msra.mxu0 0.0
        %6134 = vmatprep.subr.mxu0 0.0
        %6135 = vmatpush1.msra.mxu0 0.0
        %6136 = vmatprep.subr.mxu0 0.0
        %6137 = vmatpush1.msra.mxu0 0.0
        %6138 = vmatprep.subr.mxu0 0.0
        %6139 = vmatpush1.msra.mxu0 0.0
        %6140 = vmatprep.subr.mxu0 0.0
        %6141 = vmatpush1.msra.mxu0 0.0
        %6142 = vmatprep.subr.mxu0 0.0
        %6143 = vmatpush1.msra.mxu0 0.0
        %6144 = vmatprep.subr.mxu0 0.0
        %6145 = vmatpush1.msra.mxu0 0.0
        %6146 = vmatprep.subr.mxu0 0.0
        %6147 = vmatpush1.msra.mxu0 0.0
        %6148 = vmatprep.subr.mxu0 0.0
        %6149 = vmatpush1.msra.mxu0 0.0
        %6150 = vmatprep.subr.mxu0 0.0
        %6151 = vmatpush1.msra.mxu0 0.0
        %6152 = vmatprep.subr.mxu0 0.0
        %6153 = vmatpush1.msra.mxu0 0.0
        %6154 = vmatprep.subr.mxu0 0.0
        %6155 = vmatpush1.msra.mxu0 0.0
        %6156 = vmatprep.subr.mxu0 0.0
        %6157 = vmatpush1.msra.mxu0 0.0
        %6158 = vmatprep.subr.mxu0 0.0
        %6159 = vmatpush1.msra.mxu0 0.0
        %6160 = vmatprep.subr.mxu0 0.0
        %6161 = vmatpush1.msra.mxu0 0.0
        %6162 = vmatprep.subr.mxu0 0.0
        %6163 = vmatpush1.msra.mxu0 0.0
        %6164 = vmatprep.subr.mxu0 0.0
        %6165 = vmatpush1.msra.mxu0 0.0
        %6166 = vmatprep.subr.mxu0 0.0
        %6167 = vmatpush1.msra.mxu0 0.0
        %6168 = vmatprep.subr.mxu0 0.0
        %6169 = vmatpush1.msra.mxu0 0.0
        %6170 = vmatprep.subr.mxu0 0.0
        %6171 = vmatpush1.msra.mxu0 0.0
        %6172 = vmatprep.subr.mxu0 0.0
        %6173 = vmatpush1.msra.mxu0 0.0
        %6174 = vmatprep.subr.mxu0 0.0
        %6175 = vmatpush1.msra.mxu0 0.0
        %6176 = vmatprep.mubr.f32.mxu0 0.0
        %v6177 = vand.u32 %v5853, 4294901760
        %v6178 = vsub.f32 %v5853, %v6177
        %v6179 = vand.u32 %v6178, 4294901760
        %6180 = vmatmul.mubr.f32.gmra.mrb[0].mxu0 %v6179
        %v6181 = vpop.f32.mrb[0].mxu0
        %v6182 = vadd.f32 %v6101, %v6181
        %v6183 = vpop.f32.mrb[0].mxu0
        %6184 = vmatprep.mubr.f32.mxu0 0.0
        %v6185 = vand.u32 %v5856, 4294901760
        %v6186 = vsub.f32 %v5856, %v6185
        %v6187 = vand.u32 %v6186, 4294901760
        %6188 = vmatmul.mubr.f32.gmra.mrb[0].mxu0 %v6187
        %v6189 = vpop.f32.mrb[0].mxu0
        %v6190 = vadd.f32 %v6108, %v6189
        %v6191 = vpop.f32.mrb[0].mxu0
        %6192 = vdwg.mxu0
        %6193 = vmatprep.subr.mxu0 0.0
        %v6194 = vand.u32 %v5860, 4294901760
        %v6195 = vsub.f32 %v5860, %v6194
        %v6196 = vand.u32 %v6195, 4294901760
        %6197 = vmatpush1.msra.mxu0 %v6196
        %6198 = vmatprep.subr.mxu0 0.0
        %6199 = vmatpush1.msra.mxu0 0.0
        %6200 = vmatprep.subr.mxu0 0.0
        %6201 = vmatpush1.msra.mxu0 0.0
        %6202 = vmatprep.subr.mxu0 0.0
        %6203 = vmatpush1.msra.mxu0 0.0
        %6204 = vmatprep.subr.mxu0 0.0
        %6205 = vmatpush1.msra.mxu0 0.0
        %6206 = vmatprep.subr.mxu0 0.0
        %6207 = vmatpush1.msra.mxu0 0.0
        %6208 = vmatprep.subr.mxu0 0.0
        %6209 = vmatpush1.msra.mxu0 0.0
        %6210 = vmatprep.subr.mxu0 0.0
        %6211 = vmatpush1.msra.mxu0 0.0
        %6212 = vmatprep.subr.mxu0 0.0
        %6213 = vmatpush1.msra.mxu0 0.0
        %6214 = vmatprep.subr.mxu0 0.0
        %6215 = vmatpush1.msra.mxu0 0.0
        %6216 = vmatprep.subr.mxu0 0.0
        %6217 = vmatpush1.msra.mxu0 0.0
        %6218 = vmatprep.subr.mxu0 0.0
        %6219 = vmatpush1.msra.mxu0 0.0
        %6220 = vmatprep.subr.mxu0 0.0
        %6221 = vmatpush1.msra.mxu0 0.0
        %6222 = vmatprep.subr.mxu0 0.0
        %6223 = vmatpush1.msra.mxu0 0.0
        %6224 = vmatprep.subr.mxu0 0.0
        %6225 = vmatpush1.msra.mxu0 0.0
        %6226 = vmatprep.subr.mxu0 0.0
        %6227 = vmatpush1.msra.mxu0 0.0
        %6228 = vmatprep.subr.mxu0 0.0
        %6229 = vmatpush1.msra.mxu0 0.0
        %6230 = vmatprep.subr.mxu0 0.0
        %6231 = vmatpush1.msra.mxu0 0.0
        %6232 = vmatprep.subr.mxu0 0.0
        %6233 = vmatpush1.msra.mxu0 0.0
        %6234 = vmatprep.subr.mxu0 0.0
        %6235 = vmatpush1.msra.mxu0 0.0
        %6236 = vmatprep.subr.mxu0 0.0
        %6237 = vmatpush1.msra.mxu0 0.0
        %6238 = vmatprep.subr.mxu0 0.0
        %6239 = vmatpush1.msra.mxu0 0.0
        %6240 = vmatprep.subr.mxu0 0.0
        %6241 = vmatpush1.msra.mxu0 0.0
        %6242 = vmatprep.subr.mxu0 0.0
        %6243 = vmatpush1.msra.mxu0 0.0
        %6244 = vmatprep.subr.mxu0 0.0
        %6245 = vmatpush1.msra.mxu0 0.0
        %6246 = vmatprep.subr.mxu0 0.0
        %6247 = vmatpush1.msra.mxu0 0.0
        %6248 = vmatprep.subr.mxu0 0.0
        %6249 = vmatpush1.msra.mxu0 0.0
        %6250 = vmatprep.subr.mxu0 0.0
        %6251 = vmatpush1.msra.mxu0 0.0
        %6252 = vmatprep.subr.mxu0 0.0
        %6253 = vmatpush1.msra.mxu0 0.0
        %6254 = vmatprep.subr.mxu0 0.0
        %6255 = vmatpush1.msra.mxu0 0.0
        %6256 = vmatprep.subr.mxu0 0.0
        %6257 = vmatpush1.msra.mxu0 0.0
        %6258 = vmatprep.subr.mxu0 0.0
        %6259 = vmatpush1.msra.mxu0 0.0
        %6260 = vmatprep.mubr.f32.mxu0 0.0
        %v6261 = vand.u32 %v5853, 4294901760
        %6262 = vmatmul.mubr.f32.gmra.mrb[0].mxu0 %v6261
        %v6263 = vpop.f32.mrb[0].mxu0
        %v6264 = vadd.f32 %v6182, %v6263
        %v6265 = vpop.f32.mrb[0].mxu0
        %6266 = vmatprep.mubr.f32.mxu0 0.0
        %v6267 = vand.u32 %v5856, 4294901760
        %6268 = vmatmul.mubr.f32.gmra.mrb[0].mxu0 %v6267
        %v6269 = vpop.f32.mrb[0].mxu0
        %v6270 = vadd.f32 %v6190, %v6269
        %v6271 = vpop.f32.mrb[0].mxu0
        %6272 = vdwg.mxu0
        %6273 = vmatprep.subr.mxu0 0.0
        %v6274 = vand.u32 %v5860, 4294901760
        %6275 = vmatpush1.msra.mxu0 %v6274
        %6276 = vmatprep.subr.mxu0 0.0
        %6277 = vmatpush1.msra.mxu0 0.0
        %6278 = vmatprep.subr.mxu0 0.0
        %6279 = vmatpush1.msra.mxu0 0.0
        %6280 = vmatprep.subr.mxu0 0.0
        %6281 = vmatpush1.msra.mxu0 0.0
        %6282 = vmatprep.subr.mxu0 0.0
        %6283 = vmatpush1.msra.mxu0 0.0
        %6284 = vmatprep.subr.mxu0 0.0
        %6285 = vmatpush1.msra.mxu0 0.0
        %6286 = vmatprep.subr.mxu0 0.0
        %6287 = vmatpush1.msra.mxu0 0.0
        %6288 = vmatprep.subr.mxu0 0.0
        %6289 = vmatpush1.msra.mxu0 0.0
        %6290 = vmatprep.subr.mxu0 0.0
        %6291 = vmatpush1.msra.mxu0 0.0
        %6292 = vmatprep.subr.mxu0 0.0
        %6293 = vmatpush1.msra.mxu0 0.0
        %6294 = vmatprep.subr.mxu0 0.0
        %6295 = vmatpush1.msra.mxu0 0.0
        %6296 = vmatprep.subr.mxu0 0.0
        %6297 = vmatpush1.msra.mxu0 0.0
        %6298 = vmatprep.subr.mxu0 0.0
        %6299 = vmatpush1.msra.mxu0 0.0
        %6300 = vmatprep.subr.mxu0 0.0
        %6301 = vmatpush1.msra.mxu0 0.0
        %6302 = vmatprep.subr.mxu0 0.0
        %6303 = vmatpush1.msra.mxu0 0.0
        %6304 = vmatprep.subr.mxu0 0.0
        %6305 = vmatpush1.msra.mxu0 0.0
        %6306 = vmatprep.subr.mxu0 0.0
        %6307 = vmatpush1.msra.mxu0 0.0
        %6308 = vmatprep.subr.mxu0 0.0
        %6309 = vmatpush1.msra.mxu0 0.0
        %6310 = vmatprep.subr.mxu0 0.0
        %6311 = vmatpush1.msra.mxu0 0.0
        %6312 = vmatprep.subr.mxu0 0.0
        %6313 = vmatpush1.msra.mxu0 0.0
        %6314 = vmatprep.subr.mxu0 0.0
        %6315 = vmatpush1.msra.mxu0 0.0
        %6316 = vmatprep.subr.mxu0 0.0
        %6317 = vmatpush1.msra.mxu0 0.0
        %6318 = vmatprep.subr.mxu0 0.0
        %6319 = vmatpush1.msra.mxu0 0.0
        %6320 = vmatprep.subr.mxu0 0.0
        %6321 = vmatpush1.msra.mxu0 0.0
        %6322 = vmatprep.subr.mxu0 0.0
        %6323 = vmatpush1.msra.mxu0 0.0
        %6324 = vmatprep.subr.mxu0 0.0
        %6325 = vmatpush1.msra.mxu0 0.0
        %6326 = vmatprep.subr.mxu0 0.0
        %6327 = vmatpush1.msra.mxu0 0.0
        %6328 = vmatprep.subr.mxu0 0.0
        %6329 = vmatpush1.msra.mxu0 0.0
        %6330 = vmatprep.subr.mxu0 0.0
        %6331 = vmatpush1.msra.mxu0 0.0
        %6332 = vmatprep.subr.mxu0 0.0
        %6333 = vmatpush1.msra.mxu0 0.0
        %6334 = vmatprep.subr.mxu0 0.0
        %6335 = vmatpush1.msra.mxu0 0.0
        %6336 = vmatprep.subr.mxu0 0.0
        %6337 = vmatpush1.msra.mxu0 0.0
        %6338 = vmatprep.mubr.f32.mxu0 0.0
        %v6339 = vand.u32 %v5853, 4294901760
        %6340 = vmatmul.mubr.f32.gmra.mrb[0].mxu0 %v6339
        %v6341 = vpop.f32.mrb[0].mxu0
        %v6342 = vadd.f32 %v6264, %v6341
        %v6343 = vpop.f32.mrb[0].mxu0
        %6344 = vmatprep.mubr.f32.mxu0 0.0
        %v6345 = vand.u32 %v5856, 4294901760
        %6346 = vmatmul.mubr.f32.gmra.mrb[0].mxu0 %v6345
        %v6347 = vpop.f32.mrb[0].mxu0
        %v6348 = vadd.f32 %v6270, %v6347
        %v6349 = vpop.f32.mrb[0].mxu0
        %6350 = vdwg.mxu0
        %v6351 = vxor.u32 %v6342, 2147483648
        %v6352 = vxor.u32 %v6348, 2147483648
        %v6353 = vmul.f32 %v6351, 1.442695
        %v6354 = vpow.pop %v6353
        %v6355 = vmul.f32 %v6352, 1.442695
        %v6356 = vpow.pop %v6355
        %v6357 = vadd.f32 %v6354, 1.0
        %v6358 = vadd.f32 %v6356, 1.0
        %v6359 = vrcp.pop %v6357
        %v6360 = vmul.f32 1.0, %v6359
        %v6361 = vrcp.pop %v6358
        %v6362 = vmul.f32 1.0, %v6361
        %6364 = vset.pattern.permute.xlu0 0
        %6365 = vperm.xlu0 %6364, %v6360
        %v6366 = vpop.permute.xlu0 %6365
        %6369 = vset.pattern.permute.xlu0 0
        %6370 = vperm.xlu0 %6369, %v6362
        %v6371 = vpop.permute.xlu0 %6370
        %v6373 = vmul.f32 %v5364, %v6366
        %v6374 = vmul.f32 %v5365, %v6366
        %v6375 = vmul.f32 %v5366, %v6371
        %v6376 = vmul.f32 %v5367, %v6371
        %6381 = vrot.lane.b32.xlu0 %v6373, 17
        %v6382 = vpop.permute.xlu0 %6381
        %6383 = vrot.lane.b32.xlu0 %v6374, 17
        %v6384 = vpop.permute.xlu0 %6383
        %6385 = vrot.lane.b32.xlu0 %v6375, 17
        %v6386 = vpop.permute.xlu0 %6385
        %6387 = vrot.lane.b32.xlu0 %v6376, 17
        %v6388 = vpop.permute.xlu0 %6387
        %v6389 = vsel %vm1423, %v6382, %v6384
        %v6390 = vsel %vm1423, %v6386, %v6388
        %v6395 = vsel %vm1423, 0.0, %v6382
        %v6396 = vsel %vm1423, 0.0, %v6386
        %v6397 = vmul.f32 %v6395, %v789
        %v6398 = vmul.f32 %v6389, %v790
        %v6399 = vmul.f32 %v6396, %v789
        %v6400 = vmul.f32 %v6390, %v790
        %6401 = vrot.lane.b32.xlu0 %v6373, 16
        %v6402 = vpop.permute.xlu0 %6401
        %6403 = vrot.lane.b32.xlu0 %v6374, 16
        %v6404 = vpop.permute.xlu0 %6403
        %6405 = vrot.lane.b32.xlu0 %v6375, 16
        %v6406 = vpop.permute.xlu0 %6405
        %6407 = vrot.lane.b32.xlu0 %v6376, 16
        %v6408 = vpop.permute.xlu0 %6407
        %v6409 = vsel %vm1434, %v6402, %v6404
        %v6410 = vsel %vm1434, %v6406, %v6408
        %v6415 = vsel %vm1434, 0.0, %v6402
        %v6416 = vsel %vm1434, 0.0, %v6406
        %6417 = vrot.lane.b32.xlu0 %v6373, 15
        %v6418 = vpop.permute.xlu0 %6417
        %6419 = vrot.lane.b32.xlu0 %v6374, 15
        %v6420 = vpop.permute.xlu0 %6419
        %6421 = vrot.lane.b32.xlu0 %v6375, 15
        %v6422 = vpop.permute.xlu0 %6421
        %6423 = vrot.lane.b32.xlu0 %v6376, 15
        %v6424 = vpop.permute.xlu0 %6423
        %v6425 = vsel %vm1443, %v6418, %v6420
        %v6426 = vsel %vm1443, %v6422, %v6424
        %v6431 = vsel %vm1443, 0.0, %v6418
        %v6432 = vsel %vm1443, 0.0, %v6422
        %v6433 = vmul.f32 %v6431, %v795
        %v6434 = vmul.f32 %v6425, %v796
        %v6435 = vmul.f32 %v6432, %v795
        %v6436 = vmul.f32 %v6426, %v796
        %6437 = vrot.lane.b32.xlu0 %v6373, 1
        %v6438 = vpop.permute.xlu0 %6437
        %6439 = vrot.lane.b32.xlu0 %v6374, 1
        %v6440 = vpop.permute.xlu0 %6439
        %6441 = vrot.lane.b32.xlu0 %v6375, 1
        %v6442 = vpop.permute.xlu0 %6441
        %6443 = vrot.lane.b32.xlu0 %v6376, 1
        %v6444 = vpop.permute.xlu0 %6443
        %v6445 = vsel %vm1454, %v6438, %v6440
        %v6446 = vsel %vm1454, %v6442, %v6444
        %v6451 = vsel %vm1454, 0.0, %v6438
        %v6452 = vsel %vm1454, 0.0, %v6442
        %v6453 = vmul.f32 %v6451, %v789
        %v6454 = vmul.f32 %v6445, %v790
        %v6455 = vmul.f32 %v6452, %v789
        %v6456 = vmul.f32 %v6446, %v790
        %6457 = vrot.lane.b32.xlu0 %v6373, 127
        %v6458 = vpop.permute.xlu0 %6457
        %6459 = vrot.lane.b32.xlu0 %v6374, 127
        %v6460 = vpop.permute.xlu0 %6459
        %6461 = vrot.lane.b32.xlu0 %v6375, 127
        %v6462 = vpop.permute.xlu0 %6461
        %6463 = vrot.lane.b32.xlu0 %v6376, 127
        %v6464 = vpop.permute.xlu0 %6463
        %v6465 = vsel %vm1465, %v6458, %v6460
        %v6466 = vsel %vm1465, %v6462, %v6464
        %v6471 = vsel %vm1465, %v6460, 0.0
        %v6472 = vsel %vm1465, %v6464, 0.0
        %v6473 = vmul.f32 %v6465, %v795
        %v6474 = vmul.f32 %v6471, %v796
        %v6475 = vmul.f32 %v6466, %v795
        %v6476 = vmul.f32 %v6472, %v796
        %6477 = vrot.lane.b32.xlu0 %v6373, 113
        %v6478 = vpop.permute.xlu0 %6477
        %6479 = vrot.lane.b32.xlu0 %v6374, 113
        %v6480 = vpop.permute.xlu0 %6479
        %6481 = vrot.lane.b32.xlu0 %v6375, 113
        %v6482 = vpop.permute.xlu0 %6481
        %6483 = vrot.lane.b32.xlu0 %v6376, 113
        %v6484 = vpop.permute.xlu0 %6483
        %v6485 = vsel %vm1476, %v6478, %v6480
        %v6486 = vsel %vm1476, %v6482, %v6484
        %v6491 = vsel %vm1476, %v6480, 0.0
        %v6492 = vsel %vm1476, %v6484, 0.0
        %v6493 = vmul.f32 %v6485, %v789
        %v6494 = vmul.f32 %v6491, %v790
        %v6495 = vmul.f32 %v6486, %v789
        %v6496 = vmul.f32 %v6492, %v790
        %6497 = vrot.lane.b32.xlu0 %v6373, 112
        %v6498 = vpop.permute.xlu0 %6497
        %6499 = vrot.lane.b32.xlu0 %v6374, 112
        %v6500 = vpop.permute.xlu0 %6499
        %6501 = vrot.lane.b32.xlu0 %v6375, 112
        %v6502 = vpop.permute.xlu0 %6501
        %6503 = vrot.lane.b32.xlu0 %v6376, 112
        %v6504 = vpop.permute.xlu0 %6503
        %v6505 = vsel %vm1487, %v6498, %v6500
        %v6506 = vsel %vm1487, %v6502, %v6504
        %v6511 = vsel %vm1487, %v6500, 0.0
        %v6512 = vsel %vm1487, %v6504, 0.0
        %6513 = vrot.lane.b32.xlu0 %v6373, 111
        %v6514 = vpop.permute.xlu0 %6513
        %6515 = vrot.lane.b32.xlu0 %v6374, 111
        %v6516 = vpop.permute.xlu0 %6515
        %6517 = vrot.lane.b32.xlu0 %v6375, 111
        %v6518 = vpop.permute.xlu0 %6517
        %6519 = vrot.lane.b32.xlu0 %v6376, 111
        %v6520 = vpop.permute.xlu0 %6519
        %v6521 = vsel %vm1496, %v6514, %v6516
        %v6522 = vsel %vm1496, %v6518, %v6520
        %v6527 = vsel %vm1496, %v6516, 0.0
        %v6528 = vsel %vm1496, %v6520, 0.0
        %v6529 = vmul.f32 %v6521, %v795
        %v6530 = vmul.f32 %v6527, %v796
        %v6531 = vmul.f32 %v6522, %v795
        %v6532 = vmul.f32 %v6528, %v796
        %v6533 = vld [vmem:[%s18] sm:$0xff]
        %v6534 = vld [vmem:[%s18 + $0x8] sm:$0xff]
        %v6535 = vld [vmem:[%s18 + $0x10] sm:$0xff]
        %v6536 = vld [vmem:[%s18 + $0x18] sm:$0xff]
        %v6537 = vld [vmem:[%s19] sm:$0xff]
        %v6538 = vld [vmem:[%s19 + $0x8] sm:$0xff]
        %6540 = vset.pattern.permute.xlu0 0
        %6541 = vperm.xlu0 %6540, %v6537
        %v6542 = vpop.permute.xlu0 %6541
        %6545 = vset.pattern.permute.xlu0 0
        %6546 = vperm.xlu0 %6545, %v6538
        %v6547 = vpop.permute.xlu0 %6546
        %v6550 = vsel %vm1434, %v6534, 0
        %v6553 = vsel %vm1434, %v6536, 0
        %v6555 = vand.u32 %v6398, 4294901760
        %6556 = vmatprep.subr.mxu0 %v6555
        %v6557 = vand.u32 %v6397, 4294901760
        %6558 = vmatpush1.msra.mxu0 %v6557
        %v6559 = vand.u32 %v6400, 4294901760
        %6560 = vmatprep.subr.mxu0 %v6559
        %v6561 = vand.u32 %v6399, 4294901760
        %6562 = vmatpush1.msra.mxu0 %v6561
        %v6563 = vand.u32 %v6409, 4294901760
        %6564 = vmatprep.subr.mxu0 %v6563
        %v6565 = vand.u32 %v6415, 4294901760
        %6566 = vmatpush1.msra.mxu0 %v6565
        %v6567 = vand.u32 %v6410, 4294901760
        %6568 = vmatprep.subr.mxu0 %v6567
        %v6569 = vand.u32 %v6416, 4294901760
        %6570 = vmatpush1.msra.mxu0 %v6569
        %v6571 = vand.u32 %v6434, 4294901760
        %6572 = vmatprep.subr.mxu0 %v6571
        %v6573 = vand.u32 %v6433, 4294901760
        %6574 = vmatpush1.msra.mxu0 %v6573
        %v6575 = vand.u32 %v6436, 4294901760
        %6576 = vmatprep.subr.mxu0 %v6575
        %v6577 = vand.u32 %v6435, 4294901760
        %6578 = vmatpush1.msra.mxu0 %v6577
        %v6579 = vand.u32 %v6454, 4294901760
        %6580 = vmatprep.subr.mxu0 %v6579
        %v6581 = vand.u32 %v6453, 4294901760
        %6582 = vmatpush1.msra.mxu0 %v6581
        %v6583 = vand.u32 %v6456, 4294901760
        %6584 = vmatprep.subr.mxu0 %v6583
        %v6585 = vand.u32 %v6455, 4294901760
        %6586 = vmatpush1.msra.mxu0 %v6585
        %v6587 = vand.u32 %v6374, 4294901760
        %6588 = vmatprep.subr.mxu0 %v6587
        %v6589 = vand.u32 %v6373, 4294901760
        %6590 = vmatpush1.msra.mxu0 %v6589
        %v6591 = vand.u32 %v6376, 4294901760
        %6592 = vmatprep.subr.mxu0 %v6591
        %v6593 = vand.u32 %v6375, 4294901760
        %6594 = vmatpush1.msra.mxu0 %v6593
        %v6595 = vand.u32 %v6474, 4294901760
        %6596 = vmatprep.subr.mxu0 %v6595
        %v6597 = vand.u32 %v6473, 4294901760
        %6598 = vmatpush1.msra.mxu0 %v6597
        %v6599 = vand.u32 %v6476, 4294901760
        %6600 = vmatprep.subr.mxu0 %v6599
        %v6601 = vand.u32 %v6475, 4294901760
        %6602 = vmatpush1.msra.mxu0 %v6601
        %v6603 = vand.u32 %v6494, 4294901760
        %6604 = vmatprep.subr.mxu0 %v6603
        %v6605 = vand.u32 %v6493, 4294901760
        %6606 = vmatpush1.msra.mxu0 %v6605
        %v6607 = vand.u32 %v6496, 4294901760
        %6608 = vmatprep.subr.mxu0 %v6607
        %v6609 = vand.u32 %v6495, 4294901760
        %6610 = vmatpush1.msra.mxu0 %v6609
        %v6611 = vand.u32 %v6511, 4294901760
        %6612 = vmatprep.subr.mxu0 %v6611
        %v6613 = vand.u32 %v6505, 4294901760
        %6614 = vmatpush1.msra.mxu0 %v6613
        %v6615 = vand.u32 %v6512, 4294901760
        %6616 = vmatprep.subr.mxu0 %v6615
        %v6617 = vand.u32 %v6506, 4294901760
        %6618 = vmatpush1.msra.mxu0 %v6617
        %v6619 = vand.u32 %v6530, 4294901760
        %6620 = vmatprep.subr.mxu0 %v6619
        %v6621 = vand.u32 %v6529, 4294901760
        %6622 = vmatpush1.msra.mxu0 %v6621
        %v6623 = vand.u32 %v6532, 4294901760
        %6624 = vmatprep.subr.mxu0 %v6623
        %v6625 = vand.u32 %v6531, 4294901760
        %6626 = vmatpush1.msra.mxu0 %v6625
        %6627 = vmatprep.subr.mxu0 0.0
        %6628 = vmatpush1.msra.mxu0 0.0
        %6629 = vmatprep.subr.mxu0 0.0
        %6630 = vmatpush1.msra.mxu0 0.0
        %6631 = vmatprep.subr.mxu0 0.0
        %6632 = vmatpush1.msra.mxu0 0.0
        %6633 = vmatprep.subr.mxu0 0.0
        %6634 = vmatpush1.msra.mxu0 0.0
        %6635 = vmatprep.subr.mxu0 0.0
        %6636 = vmatpush1.msra.mxu0 0.0
        %6637 = vmatprep.subr.mxu0 0.0
        %6638 = vmatpush1.msra.mxu0 0.0
        %6639 = vmatprep.subr.mxu0 0.0
        %6640 = vmatpush1.msra.mxu0 0.0
        %6641 = vmatprep.subr.mxu0 0.0
        %6642 = vmatpush1.msra.mxu0 0.0
        %6643 = vmatprep.subr.mxu0 0.0
        %6644 = vmatpush1.msra.mxu0 0.0
        %6645 = vmatprep.subr.mxu0 0.0
        %6646 = vmatpush1.msra.mxu0 0.0
        %6647 = vmatprep.subr.mxu0 0.0
        %6648 = vmatpush1.msra.mxu0 0.0
        %6649 = vmatprep.subr.mxu0 0.0
        %6650 = vmatpush1.msra.mxu0 0.0
        %6651 = vmatprep.subr.mxu0 0.0
        %6652 = vmatpush1.msra.mxu0 0.0
        %6653 = vmatprep.subr.mxu0 0.0
        %6654 = vmatpush1.msra.mxu0 0.0
        %v6655 = vand.u32 %v6550, 4294901760
        %v6656 = vsub.f32 %v6550, %v6655
        %v6657 = vand.u32 %v6656, 4294901760
        %v6658 = vsub.f32 %v6656, %v6657
        %v6659 = vand.u32 %v6658, 4294901760
        %6660 = vmatprep.mubr.f32.mxu0 %v6659
        %v6661 = vand.u32 %v6533, 4294901760
        %v6662 = vsub.f32 %v6533, %v6661
        %v6663 = vand.u32 %v6662, 4294901760
        %v6664 = vsub.f32 %v6662, %v6663
        %v6665 = vand.u32 %v6664, 4294901760
        %6666 = vmatmul.mubr.f32.gmra.mrb[0].mxu0 %v6665
        %v6667 = vpop.f32.mrb[0].mxu0
        %v6668 = vadd.f32 %v6542, %v6667
        %v6669 = vpop.f32.mrb[0].mxu0
        %v6670 = vadd.f32 %v6542, %v6669
        %v6671 = vand.u32 %v6553, 4294901760
        %v6672 = vsub.f32 %v6553, %v6671
        %v6673 = vand.u32 %v6672, 4294901760
        %v6674 = vsub.f32 %v6672, %v6673
        %v6675 = vand.u32 %v6674, 4294901760
        %6676 = vmatprep.mubr.f32.mxu0 %v6675
        %v6677 = vand.u32 %v6535, 4294901760
        %v6678 = vsub.f32 %v6535, %v6677
        %v6679 = vand.u32 %v6678, 4294901760
        %v6680 = vsub.f32 %v6678, %v6679
        %v6681 = vand.u32 %v6680, 4294901760
        %6682 = vmatmul.mubr.f32.gmra.mrb[0].mxu0 %v6681
        %v6683 = vpop.f32.mrb[0].mxu0
        %v6684 = vadd.f32 %v6547, %v6683
        %v6685 = vpop.f32.mrb[0].mxu0
        %v6686 = vadd.f32 %v6547, %v6685
        %6687 = vdwg.mxu0
        %v6688 = vand.u32 %v6398, 4294901760
        %v6689 = vsub.f32 %v6398, %v6688
        %v6690 = vand.u32 %v6689, 4294901760
        %v6691 = vsub.f32 %v6689, %v6690
        %v6692 = vand.u32 %v6691, 4294901760
        %6693 = vmatprep.subr.mxu0 %v6692
        %v6694 = vand.u32 %v6397, 4294901760
        %v6695 = vsub.f32 %v6397, %v6694
        %v6696 = vand.u32 %v6695, 4294901760
        %v6697 = vsub.f32 %v6695, %v6696
        %v6698 = vand.u32 %v6697, 4294901760
        %6699 = vmatpush1.msra.mxu0 %v6698
        %v6700 = vand.u32 %v6400, 4294901760
        %v6701 = vsub.f32 %v6400, %v6700
        %v6702 = vand.u32 %v6701, 4294901760
        %v6703 = vsub.f32 %v6701, %v6702
        %v6704 = vand.u32 %v6703, 4294901760
        %6705 = vmatprep.subr.mxu0 %v6704
        %v6706 = vand.u32 %v6399, 4294901760
        %v6707 = vsub.f32 %v6399, %v6706
        %v6708 = vand.u32 %v6707, 4294901760
        %v6709 = vsub.f32 %v6707, %v6708
        %v6710 = vand.u32 %v6709, 4294901760
        %6711 = vmatpush1.msra.mxu0 %v6710
        %v6712 = vand.u32 %v6409, 4294901760
        %v6713 = vsub.f32 %v6409, %v6712
        %v6714 = vand.u32 %v6713, 4294901760
        %v6715 = vsub.f32 %v6713, %v6714
        %v6716 = vand.u32 %v6715, 4294901760
        %6717 = vmatprep.subr.mxu0 %v6716
        %v6718 = vand.u32 %v6415, 4294901760
        %v6719 = vsub.f32 %v6415, %v6718
        %v6720 = vand.u32 %v6719, 4294901760
        %v6721 = vsub.f32 %v6719, %v6720
        %v6722 = vand.u32 %v6721, 4294901760
        %6723 = vmatpush1.msra.mxu0 %v6722
        %v6724 = vand.u32 %v6410, 4294901760
        %v6725 = vsub.f32 %v6410, %v6724
        %v6726 = vand.u32 %v6725, 4294901760
        %v6727 = vsub.f32 %v6725, %v6726
        %v6728 = vand.u32 %v6727, 4294901760
        %6729 = vmatprep.subr.mxu0 %v6728
        %v6730 = vand.u32 %v6416, 4294901760
        %v6731 = vsub.f32 %v6416, %v6730
        %v6732 = vand.u32 %v6731, 4294901760
        %v6733 = vsub.f32 %v6731, %v6732
        %v6734 = vand.u32 %v6733, 4294901760
        %6735 = vmatpush1.msra.mxu0 %v6734
        %v6736 = vand.u32 %v6434, 4294901760
        %v6737 = vsub.f32 %v6434, %v6736
        %v6738 = vand.u32 %v6737, 4294901760
        %v6739 = vsub.f32 %v6737, %v6738
        %v6740 = vand.u32 %v6739, 4294901760
        %6741 = vmatprep.subr.mxu0 %v6740
        %v6742 = vand.u32 %v6433, 4294901760
        %v6743 = vsub.f32 %v6433, %v6742
        %v6744 = vand.u32 %v6743, 4294901760
        %v6745 = vsub.f32 %v6743, %v6744
        %v6746 = vand.u32 %v6745, 4294901760
        %6747 = vmatpush1.msra.mxu0 %v6746
        %v6748 = vand.u32 %v6436, 4294901760
        %v6749 = vsub.f32 %v6436, %v6748
        %v6750 = vand.u32 %v6749, 4294901760
        %v6751 = vsub.f32 %v6749, %v6750
        %v6752 = vand.u32 %v6751, 4294901760
        %6753 = vmatprep.subr.mxu0 %v6752
        %v6754 = vand.u32 %v6435, 4294901760
        %v6755 = vsub.f32 %v6435, %v6754
        %v6756 = vand.u32 %v6755, 4294901760
        %v6757 = vsub.f32 %v6755, %v6756
        %v6758 = vand.u32 %v6757, 4294901760
        %6759 = vmatpush1.msra.mxu0 %v6758
        %v6760 = vand.u32 %v6454, 4294901760
        %v6761 = vsub.f32 %v6454, %v6760
        %v6762 = vand.u32 %v6761, 4294901760
        %v6763 = vsub.f32 %v6761, %v6762
        %v6764 = vand.u32 %v6763, 4294901760
        %6765 = vmatprep.subr.mxu0 %v6764
        %v6766 = vand.u32 %v6453, 4294901760
        %v6767 = vsub.f32 %v6453, %v6766
        %v6768 = vand.u32 %v6767, 4294901760
        %v6769 = vsub.f32 %v6767, %v6768
        %v6770 = vand.u32 %v6769, 4294901760
        %6771 = vmatpush1.msra.mxu0 %v6770
        %v6772 = vand.u32 %v6456, 4294901760
        %v6773 = vsub.f32 %v6456, %v6772
        %v6774 = vand.u32 %v6773, 4294901760
        %v6775 = vsub.f32 %v6773, %v6774
        %v6776 = vand.u32 %v6775, 4294901760
        %6777 = vmatprep.subr.mxu0 %v6776
        %v6778 = vand.u32 %v6455, 4294901760
        %v6779 = vsub.f32 %v6455, %v6778
        %v6780 = vand.u32 %v6779, 4294901760
        %v6781 = vsub.f32 %v6779, %v6780
        %v6782 = vand.u32 %v6781, 4294901760
        %6783 = vmatpush1.msra.mxu0 %v6782
        %v6784 = vand.u32 %v6374, 4294901760
        %v6785 = vsub.f32 %v6374, %v6784
        %v6786 = vand.u32 %v6785, 4294901760
        %v6787 = vsub.f32 %v6785, %v6786
        %v6788 = vand.u32 %v6787, 4294901760
        %6789 = vmatprep.subr.mxu0 %v6788
        %v6790 = vand.u32 %v6373, 4294901760
        %v6791 = vsub.f32 %v6373, %v6790
        %v6792 = vand.u32 %v6791, 4294901760
        %v6793 = vsub.f32 %v6791, %v6792
        %v6794 = vand.u32 %v6793, 4294901760
        %6795 = vmatpush1.msra.mxu0 %v6794
        %v6796 = vand.u32 %v6376, 4294901760
        %v6797 = vsub.f32 %v6376, %v6796
        %v6798 = vand.u32 %v6797, 4294901760
        %v6799 = vsub.f32 %v6797, %v6798
        %v6800 = vand.u32 %v6799, 4294901760
        %6801 = vmatprep.subr.mxu0 %v6800
        %v6802 = vand.u32 %v6375, 4294901760
        %v6803 = vsub.f32 %v6375, %v6802
        %v6804 = vand.u32 %v6803, 4294901760
        %v6805 = vsub.f32 %v6803, %v6804
        %v6806 = vand.u32 %v6805, 4294901760
        %6807 = vmatpush1.msra.mxu0 %v6806
        %v6808 = vand.u32 %v6474, 4294901760
        %v6809 = vsub.f32 %v6474, %v6808
        %v6810 = vand.u32 %v6809, 4294901760
        %v6811 = vsub.f32 %v6809, %v6810
        %v6812 = vand.u32 %v6811, 4294901760
        %6813 = vmatprep.subr.mxu0 %v6812
        %v6814 = vand.u32 %v6473, 4294901760
        %v6815 = vsub.f32 %v6473, %v6814
        %v6816 = vand.u32 %v6815, 4294901760
        %v6817 = vsub.f32 %v6815, %v6816
        %v6818 = vand.u32 %v6817, 4294901760
        %6819 = vmatpush1.msra.mxu0 %v6818
        %v6820 = vand.u32 %v6476, 4294901760
        %v6821 = vsub.f32 %v6476, %v6820
        %v6822 = vand.u32 %v6821, 4294901760
        %v6823 = vsub.f32 %v6821, %v6822
        %v6824 = vand.u32 %v6823, 4294901760
        %6825 = vmatprep.subr.mxu0 %v6824
        %v6826 = vand.u32 %v6475, 4294901760
        %v6827 = vsub.f32 %v6475, %v6826
        %v6828 = vand.u32 %v6827, 4294901760
        %v6829 = vsub.f32 %v6827, %v6828
        %v6830 = vand.u32 %v6829, 4294901760
        %6831 = vmatpush1.msra.mxu0 %v6830
        %v6832 = vand.u32 %v6494, 4294901760
        %v6833 = vsub.f32 %v6494, %v6832
        %v6834 = vand.u32 %v6833, 4294901760
        %v6835 = vsub.f32 %v6833, %v6834
        %v6836 = vand.u32 %v6835, 4294901760
        %6837 = vmatprep.subr.mxu0 %v6836
        %v6838 = vand.u32 %v6493, 4294901760
        %v6839 = vsub.f32 %v6493, %v6838
        %v6840 = vand.u32 %v6839, 4294901760
        %v6841 = vsub.f32 %v6839, %v6840
        %v6842 = vand.u32 %v6841, 4294901760
        %6843 = vmatpush1.msra.mxu0 %v6842
        %v6844 = vand.u32 %v6496, 4294901760
        %v6845 = vsub.f32 %v6496, %v6844
        %v6846 = vand.u32 %v6845, 4294901760
        %v6847 = vsub.f32 %v6845, %v6846
        %v6848 = vand.u32 %v6847, 4294901760
        %6849 = vmatprep.subr.mxu0 %v6848
        %v6850 = vand.u32 %v6495, 4294901760
        %v6851 = vsub.f32 %v6495, %v6850
        %v6852 = vand.u32 %v6851, 4294901760
        %v6853 = vsub.f32 %v6851, %v6852
        %v6854 = vand.u32 %v6853, 4294901760
        %6855 = vmatpush1.msra.mxu0 %v6854
        %v6856 = vand.u32 %v6511, 4294901760
        %v6857 = vsub.f32 %v6511, %v6856
        %v6858 = vand.u32 %v6857, 4294901760
        %v6859 = vsub.f32 %v6857, %v6858
        %v6860 = vand.u32 %v6859, 4294901760
        %6861 = vmatprep.subr.mxu0 %v6860
        %v6862 = vand.u32 %v6505, 4294901760
        %v6863 = vsub.f32 %v6505, %v6862
        %v6864 = vand.u32 %v6863, 4294901760
        %v6865 = vsub.f32 %v6863, %v6864
        %v6866 = vand.u32 %v6865, 4294901760
        %6867 = vmatpush1.msra.mxu0 %v6866
        %v6868 = vand.u32 %v6512, 4294901760
        %v6869 = vsub.f32 %v6512, %v6868
        %v6870 = vand.u32 %v6869, 4294901760
        %v6871 = vsub.f32 %v6869, %v6870
        %v6872 = vand.u32 %v6871, 4294901760
        %6873 = vmatprep.subr.mxu0 %v6872
        %v6874 = vand.u32 %v6506, 4294901760
        %v6875 = vsub.f32 %v6506, %v6874
        %v6876 = vand.u32 %v6875, 4294901760
        %v6877 = vsub.f32 %v6875, %v6876
        %v6878 = vand.u32 %v6877, 4294901760
        %6879 = vmatpush1.msra.mxu0 %v6878
        %v6880 = vand.u32 %v6530, 4294901760
        %v6881 = vsub.f32 %v6530, %v6880
        %v6882 = vand.u32 %v6881, 4294901760
        %v6883 = vsub.f32 %v6881, %v6882
        %v6884 = vand.u32 %v6883, 4294901760
        %6885 = vmatprep.subr.mxu0 %v6884
        %v6886 = vand.u32 %v6529, 4294901760
        %v6887 = vsub.f32 %v6529, %v6886
        %v6888 = vand.u32 %v6887, 4294901760
        %v6889 = vsub.f32 %v6887, %v6888
        %v6890 = vand.u32 %v6889, 4294901760
        %6891 = vmatpush1.msra.mxu0 %v6890
        %v6892 = vand.u32 %v6532, 4294901760
        %v6893 = vsub.f32 %v6532, %v6892
        %v6894 = vand.u32 %v6893, 4294901760
        %v6895 = vsub.f32 %v6893, %v6894
        %v6896 = vand.u32 %v6895, 4294901760
        %6897 = vmatprep.subr.mxu0 %v6896
        %v6898 = vand.u32 %v6531, 4294901760
        %v6899 = vsub.f32 %v6531, %v6898
        %v6900 = vand.u32 %v6899, 4294901760
        %v6901 = vsub.f32 %v6899, %v6900
        %v6902 = vand.u32 %v6901, 4294901760
        %6903 = vmatpush1.msra.mxu0 %v6902
        %6904 = vmatprep.subr.mxu0 0.0
        %6905 = vmatpush1.msra.mxu0 0.0
        %6906 = vmatprep.subr.mxu0 0.0
        %6907 = vmatpush1.msra.mxu0 0.0
        %6908 = vmatprep.subr.mxu0 0.0
        %6909 = vmatpush1.msra.mxu0 0.0
        %6910 = vmatprep.subr.mxu0 0.0
        %6911 = vmatpush1.msra.mxu0 0.0
        %6912 = vmatprep.subr.mxu0 0.0
        %6913 = vmatpush1.msra.mxu0 0.0
        %6914 = vmatprep.subr.mxu0 0.0
        %6915 = vmatpush1.msra.mxu0 0.0
        %6916 = vmatprep.subr.mxu0 0.0
        %6917 = vmatpush1.msra.mxu0 0.0
        %6918 = vmatprep.subr.mxu0 0.0
        %6919 = vmatpush1.msra.mxu0 0.0
        %6920 = vmatprep.subr.mxu0 0.0
        %6921 = vmatpush1.msra.mxu0 0.0
        %6922 = vmatprep.subr.mxu0 0.0
        %6923 = vmatpush1.msra.mxu0 0.0
        %6924 = vmatprep.subr.mxu0 0.0
        %6925 = vmatpush1.msra.mxu0 0.0
        %6926 = vmatprep.subr.mxu0 0.0
        %6927 = vmatpush1.msra.mxu0 0.0
        %6928 = vmatprep.subr.mxu0 0.0
        %6929 = vmatpush1.msra.mxu0 0.0
        %6930 = vmatprep.subr.mxu0 0.0
        %6931 = vmatpush1.msra.mxu0 0.0
        %v6932 = vand.u32 %v6550, 4294901760
        %6933 = vmatprep.mubr.f32.mxu0 %v6932
        %v6934 = vand.u32 %v6533, 4294901760
        %6935 = vmatmul.mubr.f32.gmra.mrb[0].mxu0 %v6934
        %v6936 = vpop.f32.mrb[0].mxu0
        %v6937 = vadd.f32 %v6668, %v6936
        %v6938 = vpop.f32.mrb[0].mxu0
        %v6939 = vadd.f32 %v6670, %v6938
        %v6940 = vand.u32 %v6553, 4294901760
        %6941 = vmatprep.mubr.f32.mxu0 %v6940
        %v6942 = vand.u32 %v6535, 4294901760
        %6943 = vmatmul.mubr.f32.gmra.mrb[0].mxu0 %v6942
        %v6944 = vpop.f32.mrb[0].mxu0
        %v6945 = vadd.f32 %v6684, %v6944
        %v6946 = vpop.f32.mrb[0].mxu0
        %v6947 = vadd.f32 %v6686, %v6946
        %6948 = vdwg.mxu0
        %v6949 = vand.u32 %v6398, 4294901760
        %v6950 = vsub.f32 %v6398, %v6949
        %6951 = vmatprep.subr.mxu0 %v6950
        %v6952 = vand.u32 %v6397, 4294901760
        %v6953 = vsub.f32 %v6397, %v6952
        %6954 = vmatpush1.msra.mxu0 %v6953
        %v6955 = vand.u32 %v6400, 4294901760
        %v6956 = vsub.f32 %v6400, %v6955
        %6957 = vmatprep.subr.mxu0 %v6956
        %v6958 = vand.u32 %v6399, 4294901760
        %v6959 = vsub.f32 %v6399, %v6958
        %6960 = vmatpush1.msra.mxu0 %v6959
        %v6961 = vand.u32 %v6409, 4294901760
        %v6962 = vsub.f32 %v6409, %v6961
        %6963 = vmatprep.subr.mxu0 %v6962
        %v6964 = vand.u32 %v6415, 4294901760
        %v6965 = vsub.f32 %v6415, %v6964
        %6966 = vmatpush1.msra.mxu0 %v6965
        %v6967 = vand.u32 %v6410, 4294901760
        %v6968 = vsub.f32 %v6410, %v6967
        %6969 = vmatprep.subr.mxu0 %v6968
        %v6970 = vand.u32 %v6416, 4294901760
        %v6971 = vsub.f32 %v6416, %v6970
        %6972 = vmatpush1.msra.mxu0 %v6971
        %v6973 = vand.u32 %v6434, 4294901760
        %v6974 = vsub.f32 %v6434, %v6973
        %6975 = vmatprep.subr.mxu0 %v6974
        %v6976 = vand.u32 %v6433, 4294901760
        %v6977 = vsub.f32 %v6433, %v6976
        %6978 = vmatpush1.msra.mxu0 %v6977
        %v6979 = vand.u32 %v6436, 4294901760
        %v6980 = vsub.f32 %v6436, %v6979
        %6981 = vmatprep.subr.mxu0 %v6980
        %v6982 = vand.u32 %v6435, 4294901760
        %v6983 = vsub.f32 %v6435, %v6982
        %6984 = vmatpush1.msra.mxu0 %v6983
        %v6985 = vand.u32 %v6454, 4294901760
        %v6986 = vsub.f32 %v6454, %v6985
        %6987 = vmatprep.subr.mxu0 %v6986
        %v6988 = vand.u32 %v6453, 4294901760
        %v6989 = vsub.f32 %v6453, %v6988
        %6990 = vmatpush1.msra.mxu0 %v6989
        %v6991 = vand.u32 %v6456, 4294901760
        %v6992 = vsub.f32 %v6456, %v6991
        %6993 = vmatprep.subr.mxu0 %v6992
        %v6994 = vand.u32 %v6455, 4294901760
        %v6995 = vsub.f32 %v6455, %v6994
        %6996 = vmatpush1.msra.mxu0 %v6995
        %v6997 = vand.u32 %v6374, 4294901760
        %v6998 = vsub.f32 %v6374, %v6997
        %6999 = vmatprep.subr.mxu0 %v6998
        %v7000 = vand.u32 %v6373, 4294901760
        %v7001 = vsub.f32 %v6373, %v7000
        %7002 = vmatpush1.msra.mxu0 %v7001
        %v7003 = vand.u32 %v6376, 4294901760
        %v7004 = vsub.f32 %v6376, %v7003
        %7005 = vmatprep.subr.mxu0 %v7004
        %v7006 = vand.u32 %v6375, 4294901760
        %v7007 = vsub.f32 %v6375, %v7006
        %7008 = vmatpush1.msra.mxu0 %v7007
        %v7009 = vand.u32 %v6474, 4294901760
        %v7010 = vsub.f32 %v6474, %v7009
        %7011 = vmatprep.subr.mxu0 %v7010
        %v7012 = vand.u32 %v6473, 4294901760
        %v7013 = vsub.f32 %v6473, %v7012
        %7014 = vmatpush1.msra.mxu0 %v7013
        %v7015 = vand.u32 %v6476, 4294901760
        %v7016 = vsub.f32 %v6476, %v7015
        %7017 = vmatprep.subr.mxu0 %v7016
        %v7018 = vand.u32 %v6475, 4294901760
        %v7019 = vsub.f32 %v6475, %v7018
        %7020 = vmatpush1.msra.mxu0 %v7019
        %v7021 = vand.u32 %v6494, 4294901760
        %v7022 = vsub.f32 %v6494, %v7021
        %7023 = vmatprep.subr.mxu0 %v7022
        %v7024 = vand.u32 %v6493, 4294901760
        %v7025 = vsub.f32 %v6493, %v7024
        %7026 = vmatpush1.msra.mxu0 %v7025
        %v7027 = vand.u32 %v6496, 4294901760
        %v7028 = vsub.f32 %v6496, %v7027
        %7029 = vmatprep.subr.mxu0 %v7028
        %v7030 = vand.u32 %v6495, 4294901760
        %v7031 = vsub.f32 %v6495, %v7030
        %7032 = vmatpush1.msra.mxu0 %v7031
        %v7033 = vand.u32 %v6511, 4294901760
        %v7034 = vsub.f32 %v6511, %v7033
        %7035 = vmatprep.subr.mxu0 %v7034
        %v7036 = vand.u32 %v6505, 4294901760
        %v7037 = vsub.f32 %v6505, %v7036
        %7038 = vmatpush1.msra.mxu0 %v7037
        %v7039 = vand.u32 %v6512, 4294901760
        %v7040 = vsub.f32 %v6512, %v7039
        %7041 = vmatprep.subr.mxu0 %v7040
        %v7042 = vand.u32 %v6506, 4294901760
        %v7043 = vsub.f32 %v6506, %v7042
        %7044 = vmatpush1.msra.mxu0 %v7043
        %v7045 = vand.u32 %v6530, 4294901760
        %v7046 = vsub.f32 %v6530, %v7045
        %7047 = vmatprep.subr.mxu0 %v7046
        %v7048 = vand.u32 %v6529, 4294901760
        %v7049 = vsub.f32 %v6529, %v7048
        %7050 = vmatpush1.msra.mxu0 %v7049
        %v7051 = vand.u32 %v6532, 4294901760
        %v7052 = vsub.f32 %v6532, %v7051
        %7053 = vmatprep.subr.mxu0 %v7052
        %v7054 = vand.u32 %v6531, 4294901760
        %v7055 = vsub.f32 %v6531, %v7054
        %7056 = vmatpush1.msra.mxu0 %v7055
        %7057 = vmatprep.subr.mxu0 0.0
        %7058 = vmatpush1.msra.mxu0 0.0
        %7059 = vmatprep.subr.mxu0 0.0
        %7060 = vmatpush1.msra.mxu0 0.0
        %7061 = vmatprep.subr.mxu0 0.0
        %7062 = vmatpush1.msra.mxu0 0.0
        %7063 = vmatprep.subr.mxu0 0.0
        %7064 = vmatpush1.msra.mxu0 0.0
        %7065 = vmatprep.subr.mxu0 0.0
        %7066 = vmatpush1.msra.mxu0 0.0
        %7067 = vmatprep.subr.mxu0 0.0
        %7068 = vmatpush1.msra.mxu0 0.0
        %7069 = vmatprep.subr.mxu0 0.0
        %7070 = vmatpush1.msra.mxu0 0.0
        %7071 = vmatprep.subr.mxu0 0.0
        %7072 = vmatpush1.msra.mxu0 0.0
        %7073 = vmatprep.subr.mxu0 0.0
        %7074 = vmatpush1.msra.mxu0 0.0
        %7075 = vmatprep.subr.mxu0 0.0
        %7076 = vmatpush1.msra.mxu0 0.0
        %7077 = vmatprep.subr.mxu0 0.0
        %7078 = vmatpush1.msra.mxu0 0.0
        %7079 = vmatprep.subr.mxu0 0.0
        %7080 = vmatpush1.msra.mxu0 0.0
        %7081 = vmatprep.subr.mxu0 0.0
        %7082 = vmatpush1.msra.mxu0 0.0
        %7083 = vmatprep.subr.mxu0 0.0
        %7084 = vmatpush1.msra.mxu0 0.0
        %v7085 = vand.u32 %v6550, 4294901760
        %v7086 = vsub.f32 %v6550, %v7085
        %7087 = vmatprep.mubr.f32.mxu0 %v7086
        %v7088 = vand.u32 %v6533, 4294901760
        %v7089 = vsub.f32 %v6533, %v7088
        %7090 = vmatmul.mubr.f32.gmra.mrb[0].mxu0 %v7089
        %v7091 = vpop.f32.mrb[0].mxu0
        %v7092 = vadd.f32 %v6937, %v7091
        %v7093 = vpop.f32.mrb[0].mxu0
        %v7094 = vadd.f32 %v6939, %v7093
        %v7095 = vand.u32 %v6553, 4294901760
        %v7096 = vsub.f32 %v6553, %v7095
        %7097 = vmatprep.mubr.f32.mxu0 %v7096
        %v7098 = vand.u32 %v6535, 4294901760
        %v7099 = vsub.f32 %v6535, %v7098
        %7100 = vmatmul.mubr.f32.gmra.mrb[0].mxu0 %v7099
        %v7101 = vpop.f32.mrb[0].mxu0
        %v7102 = vadd.f32 %v6945, %v7101
        %v7103 = vpop.f32.mrb[0].mxu0
        %v7104 = vadd.f32 %v6947, %v7103
        %7105 = vdwg.mxu0
        %v7106 = vand.u32 %v6398, 4294901760
        %7107 = vmatprep.subr.mxu0 %v7106
        %v7108 = vand.u32 %v6397, 4294901760
        %7109 = vmatpush1.msra.mxu0 %v7108
        %v7110 = vand.u32 %v6400, 4294901760
        %7111 = vmatprep.subr.mxu0 %v7110
        %v7112 = vand.u32 %v6399, 4294901760
        %7113 = vmatpush1.msra.mxu0 %v7112
        %v7114 = vand.u32 %v6409, 4294901760
        %7115 = vmatprep.subr.mxu0 %v7114
        %v7116 = vand.u32 %v6415, 4294901760
        %7117 = vmatpush1.msra.mxu0 %v7116
        %v7118 = vand.u32 %v6410, 4294901760
        %7119 = vmatprep.subr.mxu0 %v7118
        %v7120 = vand.u32 %v6416, 4294901760
        %7121 = vmatpush1.msra.mxu0 %v7120
        %v7122 = vand.u32 %v6434, 4294901760
        %7123 = vmatprep.subr.mxu0 %v7122
        %v7124 = vand.u32 %v6433, 4294901760
        %7125 = vmatpush1.msra.mxu0 %v7124
        %v7126 = vand.u32 %v6436, 4294901760
        %7127 = vmatprep.subr.mxu0 %v7126
        %v7128 = vand.u32 %v6435, 4294901760
        %7129 = vmatpush1.msra.mxu0 %v7128
        %v7130 = vand.u32 %v6454, 4294901760
        %7131 = vmatprep.subr.mxu0 %v7130
        %v7132 = vand.u32 %v6453, 4294901760
        %7133 = vmatpush1.msra.mxu0 %v7132
        %v7134 = vand.u32 %v6456, 4294901760
        %7135 = vmatprep.subr.mxu0 %v7134
        %v7136 = vand.u32 %v6455, 4294901760
        %7137 = vmatpush1.msra.mxu0 %v7136
        %v7138 = vand.u32 %v6374, 4294901760
        %7139 = vmatprep.subr.mxu0 %v7138
        %v7140 = vand.u32 %v6373, 4294901760
        %7141 = vmatpush1.msra.mxu0 %v7140
        %v7142 = vand.u32 %v6376, 4294901760
        %7143 = vmatprep.subr.mxu0 %v7142
        %v7144 = vand.u32 %v6375, 4294901760
        %7145 = vmatpush1.msra.mxu0 %v7144
        %v7146 = vand.u32 %v6474, 4294901760
        %7147 = vmatprep.subr.mxu0 %v7146
        %v7148 = vand.u32 %v6473, 4294901760
        %7149 = vmatpush1.msra.mxu0 %v7148
        %v7150 = vand.u32 %v6476, 4294901760
        %7151 = vmatprep.subr.mxu0 %v7150
        %v7152 = vand.u32 %v6475, 4294901760
        %7153 = vmatpush1.msra.mxu0 %v7152
        %v7154 = vand.u32 %v6494, 4294901760
        %7155 = vmatprep.subr.mxu0 %v7154
        %v7156 = vand.u32 %v6493, 4294901760
        %7157 = vmatpush1.msra.mxu0 %v7156
        %v7158 = vand.u32 %v6496, 4294901760
        %7159 = vmatprep.subr.mxu0 %v7158
        %v7160 = vand.u32 %v6495, 4294901760
        %7161 = vmatpush1.msra.mxu0 %v7160
        %v7162 = vand.u32 %v6511, 4294901760
        %7163 = vmatprep.subr.mxu0 %v7162
        %v7164 = vand.u32 %v6505, 4294901760
        %7165 = vmatpush1.msra.mxu0 %v7164
        %v7166 = vand.u32 %v6512, 4294901760
        %7167 = vmatprep.subr.mxu0 %v7166
        %v7168 = vand.u32 %v6506, 4294901760
        %7169 = vmatpush1.msra.mxu0 %v7168
        %v7170 = vand.u32 %v6530, 4294901760
        %7171 = vmatprep.subr.mxu0 %v7170
        %v7172 = vand.u32 %v6529, 4294901760
        %7173 = vmatpush1.msra.mxu0 %v7172
        %v7174 = vand.u32 %v6532, 4294901760
        %7175 = vmatprep.subr.mxu0 %v7174
        %v7176 = vand.u32 %v6531, 4294901760
        %7177 = vmatpush1.msra.mxu0 %v7176
        %7178 = vmatprep.subr.mxu0 0.0
        %7179 = vmatpush1.msra.mxu0 0.0
        %7180 = vmatprep.subr.mxu0 0.0
        %7181 = vmatpush1.msra.mxu0 0.0
        %7182 = vmatprep.subr.mxu0 0.0
        %7183 = vmatpush1.msra.mxu0 0.0
        %7184 = vmatprep.subr.mxu0 0.0
        %7185 = vmatpush1.msra.mxu0 0.0
        %7186 = vmatprep.subr.mxu0 0.0
        %7187 = vmatpush1.msra.mxu0 0.0
        %7188 = vmatprep.subr.mxu0 0.0
        %7189 = vmatpush1.msra.mxu0 0.0
        %7190 = vmatprep.subr.mxu0 0.0
        %7191 = vmatpush1.msra.mxu0 0.0
        %7192 = vmatprep.subr.mxu0 0.0
        %7193 = vmatpush1.msra.mxu0 0.0
        %7194 = vmatprep.subr.mxu0 0.0
        %7195 = vmatpush1.msra.mxu0 0.0
        %7196 = vmatprep.subr.mxu0 0.0
        %7197 = vmatpush1.msra.mxu0 0.0
        %7198 = vmatprep.subr.mxu0 0.0
        %7199 = vmatpush1.msra.mxu0 0.0
        %7200 = vmatprep.subr.mxu0 0.0
        %7201 = vmatpush1.msra.mxu0 0.0
        %7202 = vmatprep.subr.mxu0 0.0
        %7203 = vmatpush1.msra.mxu0 0.0
        %7204 = vmatprep.subr.mxu0 0.0
        %7205 = vmatpush1.msra.mxu0 0.0
        %v7206 = vand.u32 %v6550, 4294901760
        %v7207 = vsub.f32 %v6550, %v7206
        %v7208 = vand.u32 %v7207, 4294901760
        %7209 = vmatprep.mubr.f32.mxu0 %v7208
        %v7210 = vand.u32 %v6533, 4294901760
        %v7211 = vsub.f32 %v6533, %v7210
        %v7212 = vand.u32 %v7211, 4294901760
        %7213 = vmatmul.mubr.f32.gmra.mrb[0].mxu0 %v7212
        %v7214 = vpop.f32.mrb[0].mxu0
        %v7215 = vadd.f32 %v7092, %v7214
        %v7216 = vpop.f32.mrb[0].mxu0
        %v7217 = vadd.f32 %v7094, %v7216
        %v7218 = vand.u32 %v6553, 4294901760
        %v7219 = vsub.f32 %v6553, %v7218
        %v7220 = vand.u32 %v7219, 4294901760
        %7221 = vmatprep.mubr.f32.mxu0 %v7220
        %v7222 = vand.u32 %v6535, 4294901760
        %v7223 = vsub.f32 %v6535, %v7222
        %v7224 = vand.u32 %v7223, 4294901760
        %7225 = vmatmul.mubr.f32.gmra.mrb[0].mxu0 %v7224
        %v7226 = vpop.f32.mrb[0].mxu0
        %v7227 = vadd.f32 %v7102, %v7226
        %v7228 = vpop.f32.mrb[0].mxu0
        %v7229 = vadd.f32 %v7104, %v7228
        %7230 = vdwg.mxu0
        %v7231 = vand.u32 %v6398, 4294901760
        %v7232 = vsub.f32 %v6398, %v7231
        %v7233 = vand.u32 %v7232, 4294901760
        %7234 = vmatprep.subr.mxu0 %v7233
        %v7235 = vand.u32 %v6397, 4294901760
        %v7236 = vsub.f32 %v6397, %v7235
        %v7237 = vand.u32 %v7236, 4294901760
        %7238 = vmatpush1.msra.mxu0 %v7237
        %v7239 = vand.u32 %v6400, 4294901760
        %v7240 = vsub.f32 %v6400, %v7239
        %v7241 = vand.u32 %v7240, 4294901760
        %7242 = vmatprep.subr.mxu0 %v7241
        %v7243 = vand.u32 %v6399, 4294901760
        %v7244 = vsub.f32 %v6399, %v7243
        %v7245 = vand.u32 %v7244, 4294901760
        %7246 = vmatpush1.msra.mxu0 %v7245
        %v7247 = vand.u32 %v6409, 4294901760
        %v7248 = vsub.f32 %v6409, %v7247
        %v7249 = vand.u32 %v7248, 4294901760
        %7250 = vmatprep.subr.mxu0 %v7249
        %v7251 = vand.u32 %v6415, 4294901760
        %v7252 = vsub.f32 %v6415, %v7251
        %v7253 = vand.u32 %v7252, 4294901760
        %7254 = vmatpush1.msra.mxu0 %v7253
        %v7255 = vand.u32 %v6410, 4294901760
        %v7256 = vsub.f32 %v6410, %v7255
        %v7257 = vand.u32 %v7256, 4294901760
        %7258 = vmatprep.subr.mxu0 %v7257
        %v7259 = vand.u32 %v6416, 4294901760
        %v7260 = vsub.f32 %v6416, %v7259
        %v7261 = vand.u32 %v7260, 4294901760
        %7262 = vmatpush1.msra.mxu0 %v7261
        %v7263 = vand.u32 %v6434, 4294901760
        %v7264 = vsub.f32 %v6434, %v7263
        %v7265 = vand.u32 %v7264, 4294901760
        %7266 = vmatprep.subr.mxu0 %v7265
        %v7267 = vand.u32 %v6433, 4294901760
        %v7268 = vsub.f32 %v6433, %v7267
        %v7269 = vand.u32 %v7268, 4294901760
        %7270 = vmatpush1.msra.mxu0 %v7269
        %v7271 = vand.u32 %v6436, 4294901760
        %v7272 = vsub.f32 %v6436, %v7271
        %v7273 = vand.u32 %v7272, 4294901760
        %7274 = vmatprep.subr.mxu0 %v7273
        %v7275 = vand.u32 %v6435, 4294901760
        %v7276 = vsub.f32 %v6435, %v7275
        %v7277 = vand.u32 %v7276, 4294901760
        %7278 = vmatpush1.msra.mxu0 %v7277
        %v7279 = vand.u32 %v6454, 4294901760
        %v7280 = vsub.f32 %v6454, %v7279
        %v7281 = vand.u32 %v7280, 4294901760
        %7282 = vmatprep.subr.mxu0 %v7281
        %v7283 = vand.u32 %v6453, 4294901760
        %v7284 = vsub.f32 %v6453, %v7283
        %v7285 = vand.u32 %v7284, 4294901760
        %7286 = vmatpush1.msra.mxu0 %v7285
        %v7287 = vand.u32 %v6456, 4294901760
        %v7288 = vsub.f32 %v6456, %v7287
        %v7289 = vand.u32 %v7288, 4294901760
        %7290 = vmatprep.subr.mxu0 %v7289
        %v7291 = vand.u32 %v6455, 4294901760
        %v7292 = vsub.f32 %v6455, %v7291
        %v7293 = vand.u32 %v7292, 4294901760
        %7294 = vmatpush1.msra.mxu0 %v7293
        %v7295 = vand.u32 %v6374, 4294901760
        %v7296 = vsub.f32 %v6374, %v7295
        %v7297 = vand.u32 %v7296, 4294901760
        %7298 = vmatprep.subr.mxu0 %v7297
        %v7299 = vand.u32 %v6373, 4294901760
        %v7300 = vsub.f32 %v6373, %v7299
        %v7301 = vand.u32 %v7300, 4294901760
        %7302 = vmatpush1.msra.mxu0 %v7301
        %v7303 = vand.u32 %v6376, 4294901760
        %v7304 = vsub.f32 %v6376, %v7303
        %v7305 = vand.u32 %v7304, 4294901760
        %7306 = vmatprep.subr.mxu0 %v7305
        %v7307 = vand.u32 %v6375, 4294901760
        %v7308 = vsub.f32 %v6375, %v7307
        %v7309 = vand.u32 %v7308, 4294901760
        %7310 = vmatpush1.msra.mxu0 %v7309
        %v7311 = vand.u32 %v6474, 4294901760
        %v7312 = vsub.f32 %v6474, %v7311
        %v7313 = vand.u32 %v7312, 4294901760
        %7314 = vmatprep.subr.mxu0 %v7313
        %v7315 = vand.u32 %v6473, 4294901760
        %v7316 = vsub.f32 %v6473, %v7315
        %v7317 = vand.u32 %v7316, 4294901760
        %7318 = vmatpush1.msra.mxu0 %v7317
        %v7319 = vand.u32 %v6476, 4294901760
        %v7320 = vsub.f32 %v6476, %v7319
        %v7321 = vand.u32 %v7320, 4294901760
        %7322 = vmatprep.subr.mxu0 %v7321
        %v7323 = vand.u32 %v6475, 4294901760
        %v7324 = vsub.f32 %v6475, %v7323
        %v7325 = vand.u32 %v7324, 4294901760
        %7326 = vmatpush1.msra.mxu0 %v7325
        %v7327 = vand.u32 %v6494, 4294901760
        %v7328 = vsub.f32 %v6494, %v7327
        %v7329 = vand.u32 %v7328, 4294901760
        %7330 = vmatprep.subr.mxu0 %v7329
        %v7331 = vand.u32 %v6493, 4294901760
        %v7332 = vsub.f32 %v6493, %v7331
        %v7333 = vand.u32 %v7332, 4294901760
        %7334 = vmatpush1.msra.mxu0 %v7333
        %v7335 = vand.u32 %v6496, 4294901760
        %v7336 = vsub.f32 %v6496, %v7335
        %v7337 = vand.u32 %v7336, 4294901760
        %7338 = vmatprep.subr.mxu0 %v7337
        %v7339 = vand.u32 %v6495, 4294901760
        %v7340 = vsub.f32 %v6495, %v7339
        %v7341 = vand.u32 %v7340, 4294901760
        %7342 = vmatpush1.msra.mxu0 %v7341
        %v7343 = vand.u32 %v6511, 4294901760
        %v7344 = vsub.f32 %v6511, %v7343
        %v7345 = vand.u32 %v7344, 4294901760
        %7346 = vmatprep.subr.mxu0 %v7345
        %v7347 = vand.u32 %v6505, 4294901760
        %v7348 = vsub.f32 %v6505, %v7347
        %v7349 = vand.u32 %v7348, 4294901760
        %7350 = vmatpush1.msra.mxu0 %v7349
        %v7351 = vand.u32 %v6512, 4294901760
        %v7352 = vsub.f32 %v6512, %v7351
        %v7353 = vand.u32 %v7352, 4294901760
        %7354 = vmatprep.subr.mxu0 %v7353
        %v7355 = vand.u32 %v6506, 4294901760
        %v7356 = vsub.f32 %v6506, %v7355
        %v7357 = vand.u32 %v7356, 4294901760
        %7358 = vmatpush1.msra.mxu0 %v7357
        %v7359 = vand.u32 %v6530, 4294901760
        %v7360 = vsub.f32 %v6530, %v7359
        %v7361 = vand.u32 %v7360, 4294901760
        %7362 = vmatprep.subr.mxu0 %v7361
        %v7363 = vand.u32 %v6529, 4294901760
        %v7364 = vsub.f32 %v6529, %v7363
        %v7365 = vand.u32 %v7364, 4294901760
        %7366 = vmatpush1.msra.mxu0 %v7365
        %v7367 = vand.u32 %v6532, 4294901760
        %v7368 = vsub.f32 %v6532, %v7367
        %v7369 = vand.u32 %v7368, 4294901760
        %7370 = vmatprep.subr.mxu0 %v7369
        %v7371 = vand.u32 %v6531, 4294901760
        %v7372 = vsub.f32 %v6531, %v7371
        %v7373 = vand.u32 %v7372, 4294901760
        %7374 = vmatpush1.msra.mxu0 %v7373
        %7375 = vmatprep.subr.mxu0 0.0
        %7376 = vmatpush1.msra.mxu0 0.0
        %7377 = vmatprep.subr.mxu0 0.0
        %7378 = vmatpush1.msra.mxu0 0.0
        %7379 = vmatprep.subr.mxu0 0.0
        %7380 = vmatpush1.msra.mxu0 0.0
        %7381 = vmatprep.subr.mxu0 0.0
        %7382 = vmatpush1.msra.mxu0 0.0
        %7383 = vmatprep.subr.mxu0 0.0
        %7384 = vmatpush1.msra.mxu0 0.0
        %7385 = vmatprep.subr.mxu0 0.0
        %7386 = vmatpush1.msra.mxu0 0.0
        %7387 = vmatprep.subr.mxu0 0.0
        %7388 = vmatpush1.msra.mxu0 0.0
        %7389 = vmatprep.subr.mxu0 0.0
        %7390 = vmatpush1.msra.mxu0 0.0
        %7391 = vmatprep.subr.mxu0 0.0
        %7392 = vmatpush1.msra.mxu0 0.0
        %7393 = vmatprep.subr.mxu0 0.0
        %7394 = vmatpush1.msra.mxu0 0.0
        %7395 = vmatprep.subr.mxu0 0.0
        %7396 = vmatpush1.msra.mxu0 0.0
        %7397 = vmatprep.subr.mxu0 0.0
        %7398 = vmatpush1.msra.mxu0 0.0
        %7399 = vmatprep.subr.mxu0 0.0
        %7400 = vmatpush1.msra.mxu0 0.0
        %7401 = vmatprep.subr.mxu0 0.0
        %7402 = vmatpush1.msra.mxu0 0.0
        %v7403 = vand.u32 %v6550, 4294901760
        %7404 = vmatprep.mubr.f32.mxu0 %v7403
        %v7405 = vand.u32 %v6533, 4294901760
        %7406 = vmatmul.mubr.f32.gmra.mrb[0].mxu0 %v7405
        %v7407 = vpop.f32.mrb[0].mxu0
        %v7408 = vadd.f32 %v7215, %v7407
        %v7409 = vpop.f32.mrb[0].mxu0
        %v7410 = vadd.f32 %v7217, %v7409
        %v7411 = vand.u32 %v6553, 4294901760
        %7412 = vmatprep.mubr.f32.mxu0 %v7411
        %v7413 = vand.u32 %v6535, 4294901760
        %7414 = vmatmul.mubr.f32.gmra.mrb[0].mxu0 %v7413
        %v7415 = vpop.f32.mrb[0].mxu0
        %v7416 = vadd.f32 %v7227, %v7415
        %v7417 = vpop.f32.mrb[0].mxu0
        %v7418 = vadd.f32 %v7229, %v7417
        %7419 = vdwg.mxu0
        %v7420 = vand.u32 %v6398, 4294901760
        %7421 = vmatprep.subr.mxu0 %v7420
        %v7422 = vand.u32 %v6397, 4294901760
        %7423 = vmatpush1.msra.mxu0 %v7422
        %v7424 = vand.u32 %v6400, 4294901760
        %7425 = vmatprep.subr.mxu0 %v7424
        %v7426 = vand.u32 %v6399, 4294901760
        %7427 = vmatpush1.msra.mxu0 %v7426
        %v7428 = vand.u32 %v6409, 4294901760
        %7429 = vmatprep.subr.mxu0 %v7428
        %v7430 = vand.u32 %v6415, 4294901760
        %7431 = vmatpush1.msra.mxu0 %v7430
        %v7432 = vand.u32 %v6410, 4294901760
        %7433 = vmatprep.subr.mxu0 %v7432
        %v7434 = vand.u32 %v6416, 4294901760
        %7435 = vmatpush1.msra.mxu0 %v7434
        %v7436 = vand.u32 %v6434, 4294901760
        %7437 = vmatprep.subr.mxu0 %v7436
        %v7438 = vand.u32 %v6433, 4294901760
        %7439 = vmatpush1.msra.mxu0 %v7438
        %v7440 = vand.u32 %v6436, 4294901760
        %7441 = vmatprep.subr.mxu0 %v7440
        %v7442 = vand.u32 %v6435, 4294901760
        %7443 = vmatpush1.msra.mxu0 %v7442
        %v7444 = vand.u32 %v6454, 4294901760
        %7445 = vmatprep.subr.mxu0 %v7444
        %v7446 = vand.u32 %v6453, 4294901760
        %7447 = vmatpush1.msra.mxu0 %v7446
        %v7448 = vand.u32 %v6456, 4294901760
        %7449 = vmatprep.subr.mxu0 %v7448
        %v7450 = vand.u32 %v6455, 4294901760
        %7451 = vmatpush1.msra.mxu0 %v7450
        %v7452 = vand.u32 %v6374, 4294901760
        %7453 = vmatprep.subr.mxu0 %v7452
        %v7454 = vand.u32 %v6373, 4294901760
        %7455 = vmatpush1.msra.mxu0 %v7454
        %v7456 = vand.u32 %v6376, 4294901760
        %7457 = vmatprep.subr.mxu0 %v7456
        %v7458 = vand.u32 %v6375, 4294901760
        %7459 = vmatpush1.msra.mxu0 %v7458
        %v7460 = vand.u32 %v6474, 4294901760
        %7461 = vmatprep.subr.mxu0 %v7460
        %v7462 = vand.u32 %v6473, 4294901760
        %7463 = vmatpush1.msra.mxu0 %v7462
        %v7464 = vand.u32 %v6476, 4294901760
        %7465 = vmatprep.subr.mxu0 %v7464
        %v7466 = vand.u32 %v6475, 4294901760
        %7467 = vmatpush1.msra.mxu0 %v7466
        %v7468 = vand.u32 %v6494, 4294901760
        %7469 = vmatprep.subr.mxu0 %v7468
        %v7470 = vand.u32 %v6493, 4294901760
        %7471 = vmatpush1.msra.mxu0 %v7470
        %v7472 = vand.u32 %v6496, 4294901760
        %7473 = vmatprep.subr.mxu0 %v7472
        %v7474 = vand.u32 %v6495, 4294901760
        %7475 = vmatpush1.msra.mxu0 %v7474
        %v7476 = vand.u32 %v6511, 4294901760
        %7477 = vmatprep.subr.mxu0 %v7476
        %v7478 = vand.u32 %v6505, 4294901760
        %7479 = vmatpush1.msra.mxu0 %v7478
        %v7480 = vand.u32 %v6512, 4294901760
        %7481 = vmatprep.subr.mxu0 %v7480
        %v7482 = vand.u32 %v6506, 4294901760
        %7483 = vmatpush1.msra.mxu0 %v7482
        %v7484 = vand.u32 %v6530, 4294901760
        %7485 = vmatprep.subr.mxu0 %v7484
        %v7486 = vand.u32 %v6529, 4294901760
        %7487 = vmatpush1.msra.mxu0 %v7486
        %v7488 = vand.u32 %v6532, 4294901760
        %7489 = vmatprep.subr.mxu0 %v7488
        %v7490 = vand.u32 %v6531, 4294901760
        %7491 = vmatpush1.msra.mxu0 %v7490
        %7492 = vmatprep.subr.mxu0 0.0
        %7493 = vmatpush1.msra.mxu0 0.0
        %7494 = vmatprep.subr.mxu0 0.0
        %7495 = vmatpush1.msra.mxu0 0.0
        %7496 = vmatprep.subr.mxu0 0.0
        %7497 = vmatpush1.msra.mxu0 0.0
        %7498 = vmatprep.subr.mxu0 0.0
        %7499 = vmatpush1.msra.mxu0 0.0
        %7500 = vmatprep.subr.mxu0 0.0
        %7501 = vmatpush1.msra.mxu0 0.0
        %7502 = vmatprep.subr.mxu0 0.0
        %7503 = vmatpush1.msra.mxu0 0.0
        %7504 = vmatprep.subr.mxu0 0.0
        %7505 = vmatpush1.msra.mxu0 0.0
        %7506 = vmatprep.subr.mxu0 0.0
        %7507 = vmatpush1.msra.mxu0 0.0
        %7508 = vmatprep.subr.mxu0 0.0
        %7509 = vmatpush1.msra.mxu0 0.0
        %7510 = vmatprep.subr.mxu0 0.0
        %7511 = vmatpush1.msra.mxu0 0.0
        %7512 = vmatprep.subr.mxu0 0.0
        %7513 = vmatpush1.msra.mxu0 0.0
        %7514 = vmatprep.subr.mxu0 0.0
        %7515 = vmatpush1.msra.mxu0 0.0
        %7516 = vmatprep.subr.mxu0 0.0
        %7517 = vmatpush1.msra.mxu0 0.0
        %7518 = vmatprep.subr.mxu0 0.0
        %7519 = vmatpush1.msra.mxu0 0.0
        %v7520 = vand.u32 %v6550, 4294901760
        %7521 = vmatprep.mubr.f32.mxu0 %v7520
        %v7522 = vand.u32 %v6533, 4294901760
        %7523 = vmatmul.mubr.f32.gmra.mrb[0].mxu0 %v7522
        %v7524 = vpop.f32.mrb[0].mxu0
        %v7525 = vadd.f32 %v7408, %v7524
        %v7526 = vpop.f32.mrb[0].mxu0
        %v7527 = vadd.f32 %v7410, %v7526
        %v7528 = vand.u32 %v6553, 4294901760
        %7529 = vmatprep.mubr.f32.mxu0 %v7528
        %v7530 = vand.u32 %v6535, 4294901760
        %7531 = vmatmul.mubr.f32.gmra.mrb[0].mxu0 %v7530
        %v7532 = vpop.f32.mrb[0].mxu0
        %v7533 = vadd.f32 %v7416, %v7532
        %v7534 = vpop.f32.mrb[0].mxu0
        %v7535 = vadd.f32 %v7418, %v7534
        %7536 = vdwg.mxu0
        %v7537 = vadd.f32 %v7525, %v7527
        %7538 = vadd.xlane.f32.xlu0 %v7537
        %v7539 = vpop.xlane.xlu0 %7538
        %v7540 = vadd.f32 %v7533, %v7535
        %7541 = vadd.xlane.f32.xlu0 %v7540
        %v7542 = vpop.xlane.xlu0 %7541
        %v7543 = vmul.f32 %v7539, %v2252
        %v7544 = vmul.f32 %v7542, %v2252
        %v7545 = vmul.f32 %v7525, %v7525
        %v7546 = vmul.f32 %v7527, %v7527
        %v7547 = vmul.f32 %v7533, %v7533
        %v7548 = vmul.f32 %v7535, %v7535
        %v7549 = vadd.f32 %v7545, %v7546
        %7550 = vadd.xlane.f32.xlu0 %v7549
        %v7551 = vpop.xlane.xlu0 %7550
        %v7552 = vadd.f32 %v7547, %v7548
        %7553 = vadd.xlane.f32.xlu0 %v7552
        %v7554 = vpop.xlane.xlu0 %7553
        %v7555 = vmul.f32 %v7551, %v2252
        %v7556 = vmul.f32 %v7554, %v2252
        %v7557 = vsel %vm1454, %v7543, %v7555
        %v7558 = vsel %vm1454, %v7544, %v7556
        %7559 = vmatprep.subr.mxu0 0.0
        %v7560 = vand.u32 %v7557, 4294901760
        %7561 = vmatpush1.msra.mxu0 %v7560
        %7562 = vmatprep.subr.mxu0 0.0
        %v7563 = vand.u32 %v7558, 4294901760
        %7564 = vmatpush1.msra.mxu0 %v7563
        %7565 = vmatprep.subr.mxu0 0.0
        %7566 = vmatpush1.msra.mxu0 0.0
        %7567 = vmatprep.subr.mxu0 0.0
        %7568 = vmatpush1.msra.mxu0 0.0
        %7569 = vmatprep.subr.mxu0 0.0
        %7570 = vmatpush1.msra.mxu0 0.0
        %7571 = vmatprep.subr.mxu0 0.0
        %7572 = vmatpush1.msra.mxu0 0.0
        %7573 = vmatprep.subr.mxu0 0.0
        %7574 = vmatpush1.msra.mxu0 0.0
        %7575 = vmatprep.subr.mxu0 0.0
        %7576 = vmatpush1.msra.mxu0 0.0
        %7577 = vmatprep.subr.mxu0 0.0
        %7578 = vmatpush1.msra.mxu0 0.0
        %7579 = vmatprep.subr.mxu0 0.0
        %7580 = vmatpush1.msra.mxu0 0.0
        %7581 = vmatprep.subr.mxu0 0.0
        %7582 = vmatpush1.msra.mxu0 0.0
        %7583 = vmatprep.subr.mxu0 0.0
        %7584 = vmatpush1.msra.mxu0 0.0
        %7585 = vmatprep.subr.mxu0 0.0
        %7586 = vmatpush1.msra.mxu0 0.0
        %7587 = vmatprep.subr.mxu0 0.0
        %7588 = vmatpush1.msra.mxu0 0.0
        %7589 = vmatprep.subr.mxu0 0.0
        %7590 = vmatpush1.msra.mxu0 0.0
        %7591 = vmatprep.subr.mxu0 0.0
        %7592 = vmatpush1.msra.mxu0 0.0
        %7593 = vmatprep.subr.mxu0 0.0
        %7594 = vmatpush1.msra.mxu0 0.0
        %7595 = vmatprep.subr.mxu0 0.0
        %7596 = vmatpush1.msra.mxu0 0.0
        %7597 = vmatprep.subr.mxu0 0.0
        %7598 = vmatpush1.msra.mxu0 0.0
        %7599 = vmatprep.subr.mxu0 0.0
        %7600 = vmatpush1.msra.mxu0 0.0
        %7601 = vmatprep.subr.mxu0 0.0
        %7602 = vmatpush1.msra.mxu0 0.0
        %7603 = vmatprep.subr.mxu0 0.0
        %7604 = vmatpush1.msra.mxu0 0.0
        %7605 = vmatprep.subr.mxu0 0.0
        %7606 = vmatpush1.msra.mxu0 0.0
        %7607 = vmatprep.subr.mxu0 0.0
        %7608 = vmatpush1.msra.mxu0 0.0
        %7609 = vmatprep.subr.mxu0 0.0
        %7610 = vmatpush1.msra.mxu0 0.0
        %7611 = vmatprep.subr.mxu0 0.0
        %7612 = vmatpush1.msra.mxu0 0.0
        %7613 = vmatprep.subr.mxu0 0.0
        %7614 = vmatpush1.msra.mxu0 0.0
        %7615 = vmatprep.subr.mxu0 0.0
        %7616 = vmatpush1.msra.mxu0 0.0
        %7617 = vmatprep.subr.mxu0 0.0
        %7618 = vmatpush1.msra.mxu0 0.0
        %7619 = vmatprep.subr.mxu0 0.0
        %7620 = vmatpush1.msra.mxu0 0.0
        %7621 = vmatprep.subr.mxu0 0.0
        %7622 = vmatpush1.msra.mxu0 0.0
        %7623 = vmatprep.subr.mxu0 0.0
        %7624 = vmatpush1.msra.mxu0 0.0
        %7625 = vmatprep.mubr.f32.mxu0 0.0
        %v7626 = vand.u32 %v2272, 4294901760
        %v7627 = vsub.f32 %v2272, %v7626
        %v7628 = vand.u32 %v7627, 4294901760
        %v7629 = vsub.f32 %v7627, %v7628
        %v7630 = vand.u32 %v7629, 4294901760
        %7631 = vmatmul.mubr.f32.gmra.mrb[0].mxu0 %v7630
        %v7632 = vpop.f32.mrb[0].mxu0
        %v7633 = vadd.f32 0.0, %v7632
        %v7634 = vpop.f32.mrb[0].mxu0
        %7635 = vmatprep.mubr.f32.mxu0 0.0
        %v7636 = vand.u32 %v2275, 4294901760
        %v7637 = vsub.f32 %v2275, %v7636
        %v7638 = vand.u32 %v7637, 4294901760
        %v7639 = vsub.f32 %v7637, %v7638
        %v7640 = vand.u32 %v7639, 4294901760
        %7641 = vmatmul.mubr.f32.gmra.mrb[0].mxu0 %v7640
        %v7642 = vpop.f32.mrb[0].mxu0
        %v7643 = vadd.f32 0.0, %v7642
        %v7644 = vpop.f32.mrb[0].mxu0
        %7645 = vdwg.mxu0
        %7646 = vmatprep.subr.mxu0 0.0
        %v7647 = vand.u32 %v7557, 4294901760
        %v7648 = vsub.f32 %v7557, %v7647
        %v7649 = vand.u32 %v7648, 4294901760
        %v7650 = vsub.f32 %v7648, %v7649
        %v7651 = vand.u32 %v7650, 4294901760
        %7652 = vmatpush1.msra.mxu0 %v7651
        %7653 = vmatprep.subr.mxu0 0.0
        %v7654 = vand.u32 %v7558, 4294901760
        %v7655 = vsub.f32 %v7558, %v7654
        %v7656 = vand.u32 %v7655, 4294901760
        %v7657 = vsub.f32 %v7655, %v7656
        %v7658 = vand.u32 %v7657, 4294901760
        %7659 = vmatpush1.msra.mxu0 %v7658
        %7660 = vmatprep.subr.mxu0 0.0
        %7661 = vmatpush1.msra.mxu0 0.0
        %7662 = vmatprep.subr.mxu0 0.0
        %7663 = vmatpush1.msra.mxu0 0.0
        %7664 = vmatprep.subr.mxu0 0.0
        %7665 = vmatpush1.msra.mxu0 0.0
        %7666 = vmatprep.subr.mxu0 0.0
        %7667 = vmatpush1.msra.mxu0 0.0
        %7668 = vmatprep.subr.mxu0 0.0
        %7669 = vmatpush1.msra.mxu0 0.0
        %7670 = vmatprep.subr.mxu0 0.0
        %7671 = vmatpush1.msra.mxu0 0.0
        %7672 = vmatprep.subr.mxu0 0.0
        %7673 = vmatpush1.msra.mxu0 0.0
        %7674 = vmatprep.subr.mxu0 0.0
        %7675 = vmatpush1.msra.mxu0 0.0
        %7676 = vmatprep.subr.mxu0 0.0
        %7677 = vmatpush1.msra.mxu0 0.0
        %7678 = vmatprep.subr.mxu0 0.0
        %7679 = vmatpush1.msra.mxu0 0.0
        %7680 = vmatprep.subr.mxu0 0.0
        %7681 = vmatpush1.msra.mxu0 0.0
        %7682 = vmatprep.subr.mxu0 0.0
        %7683 = vmatpush1.msra.mxu0 0.0
        %7684 = vmatprep.subr.mxu0 0.0
        %7685 = vmatpush1.msra.mxu0 0.0
        %7686 = vmatprep.subr.mxu0 0.0
        %7687 = vmatpush1.msra.mxu0 0.0
        %7688 = vmatprep.subr.mxu0 0.0
        %7689 = vmatpush1.msra.mxu0 0.0
        %7690 = vmatprep.subr.mxu0 0.0
        %7691 = vmatpush1.msra.mxu0 0.0
        %7692 = vmatprep.subr.mxu0 0.0
        %7693 = vmatpush1.msra.mxu0 0.0
        %7694 = vmatprep.subr.mxu0 0.0
        %7695 = vmatpush1.msra.mxu0 0.0
        %7696 = vmatprep.subr.mxu0 0.0
        %7697 = vmatpush1.msra.mxu0 0.0
        %7698 = vmatprep.subr.mxu0 0.0
        %7699 = vmatpush1.msra.mxu0 0.0
        %7700 = vmatprep.subr.mxu0 0.0
        %7701 = vmatpush1.msra.mxu0 0.0
        %7702 = vmatprep.subr.mxu0 0.0
        %7703 = vmatpush1.msra.mxu0 0.0
        %7704 = vmatprep.subr.mxu0 0.0
        %7705 = vmatpush1.msra.mxu0 0.0
        %7706 = vmatprep.subr.mxu0 0.0
        %7707 = vmatpush1.msra.mxu0 0.0
        %7708 = vmatprep.subr.mxu0 0.0
        %7709 = vmatpush1.msra.mxu0 0.0
        %7710 = vmatprep.subr.mxu0 0.0
        %7711 = vmatpush1.msra.mxu0 0.0
        %7712 = vmatprep.subr.mxu0 0.0
        %7713 = vmatpush1.msra.mxu0 0.0
        %7714 = vmatprep.subr.mxu0 0.0
        %7715 = vmatpush1.msra.mxu0 0.0
        %7716 = vmatprep.subr.mxu0 0.0
        %7717 = vmatpush1.msra.mxu0 0.0
        %7718 = vmatprep.subr.mxu0 0.0
        %7719 = vmatpush1.msra.mxu0 0.0
        %7720 = vmatprep.mubr.f32.mxu0 0.0
        %v7721 = vand.u32 %v2272, 4294901760
        %7722 = vmatmul.mubr.f32.gmra.mrb[0].mxu0 %v7721
        %v7723 = vpop.f32.mrb[0].mxu0
        %v7724 = vadd.f32 %v7633, %v7723
        %v7725 = vpop.f32.mrb[0].mxu0
        %7726 = vmatprep.mubr.f32.mxu0 0.0
        %v7727 = vand.u32 %v2275, 4294901760
        %7728 = vmatmul.mubr.f32.gmra.mrb[0].mxu0 %v7727
        %v7729 = vpop.f32.mrb[0].mxu0
        %v7730 = vadd.f32 %v7643, %v7729
        %v7731 = vpop.f32.mrb[0].mxu0
        %7732 = vdwg.mxu0
        %7733 = vmatprep.subr.mxu0 0.0
        %v7734 = vand.u32 %v7557, 4294901760
        %v7735 = vsub.f32 %v7557, %v7734
        %7736 = vmatpush1.msra.mxu0 %v7735
        %7737 = vmatprep.subr.mxu0 0.0
        %v7738 = vand.u32 %v7558, 4294901760
        %v7739 = vsub.f32 %v7558, %v7738
        %7740 = vmatpush1.msra.mxu0 %v7739
        %7741 = vmatprep.subr.mxu0 0.0
        %7742 = vmatpush1.msra.mxu0 0.0
        %7743 = vmatprep.subr.mxu0 0.0
        %7744 = vmatpush1.msra.mxu0 0.0
        %7745 = vmatprep.subr.mxu0 0.0
        %7746 = vmatpush1.msra.mxu0 0.0
        %7747 = vmatprep.subr.mxu0 0.0
        %7748 = vmatpush1.msra.mxu0 0.0
        %7749 = vmatprep.subr.mxu0 0.0
        %7750 = vmatpush1.msra.mxu0 0.0
        %7751 = vmatprep.subr.mxu0 0.0
        %7752 = vmatpush1.msra.mxu0 0.0
        %7753 = vmatprep.subr.mxu0 0.0
        %7754 = vmatpush1.msra.mxu0 0.0
        %7755 = vmatprep.subr.mxu0 0.0
        %7756 = vmatpush1.msra.mxu0 0.0
        %7757 = vmatprep.subr.mxu0 0.0
        %7758 = vmatpush1.msra.mxu0 0.0
        %7759 = vmatprep.subr.mxu0 0.0
        %7760 = vmatpush1.msra.mxu0 0.0
        %7761 = vmatprep.subr.mxu0 0.0
        %7762 = vmatpush1.msra.mxu0 0.0
        %7763 = vmatprep.subr.mxu0 0.0
        %7764 = vmatpush1.msra.mxu0 0.0
        %7765 = vmatprep.subr.mxu0 0.0
        %7766 = vmatpush1.msra.mxu0 0.0
        %7767 = vmatprep.subr.mxu0 0.0
        %7768 = vmatpush1.msra.mxu0 0.0
        %7769 = vmatprep.subr.mxu0 0.0
        %7770 = vmatpush1.msra.mxu0 0.0
        %7771 = vmatprep.subr.mxu0 0.0
        %7772 = vmatpush1.msra.mxu0 0.0
        %7773 = vmatprep.subr.mxu0 0.0
        %7774 = vmatpush1.msra.mxu0 0.0
        %7775 = vmatprep.subr.mxu0 0.0
        %7776 = vmatpush1.msra.mxu0 0.0
        %7777 = vmatprep.subr.mxu0 0.0
        %7778 = vmatpush1.msra.mxu0 0.0
        %7779 = vmatprep.subr.mxu0 0.0
        %7780 = vmatpush1.msra.mxu0 0.0
        %7781 = vmatprep.subr.mxu0 0.0
        %7782 = vmatpush1.msra.mxu0 0.0
        %7783 = vmatprep.subr.mxu0 0.0
        %7784 = vmatpush1.msra.mxu0 0.0
        %7785 = vmatprep.subr.mxu0 0.0
        %7786 = vmatpush1.msra.mxu0 0.0
        %7787 = vmatprep.subr.mxu0 0.0
        %7788 = vmatpush1.msra.mxu0 0.0
        %7789 = vmatprep.subr.mxu0 0.0
        %7790 = vmatpush1.msra.mxu0 0.0
        %7791 = vmatprep.subr.mxu0 0.0
        %7792 = vmatpush1.msra.mxu0 0.0
        %7793 = vmatprep.subr.mxu0 0.0
        %7794 = vmatpush1.msra.mxu0 0.0
        %7795 = vmatprep.subr.mxu0 0.0
        %7796 = vmatpush1.msra.mxu0 0.0
        %7797 = vmatprep.subr.mxu0 0.0
        %7798 = vmatpush1.msra.mxu0 0.0
        %7799 = vmatprep.subr.mxu0 0.0
        %7800 = vmatpush1.msra.mxu0 0.0
        %7801 = vmatprep.mubr.f32.mxu0 0.0
        %v7802 = vand.u32 %v2272, 4294901760
        %v7803 = vsub.f32 %v2272, %v7802
        %7804 = vmatmul.mubr.f32.gmra.mrb[0].mxu0 %v7803
        %v7805 = vpop.f32.mrb[0].mxu0
        %v7806 = vadd.f32 %v7724, %v7805
        %v7807 = vpop.f32.mrb[0].mxu0
        %7808 = vmatprep.mubr.f32.mxu0 0.0
        %v7809 = vand.u32 %v2275, 4294901760
        %v7810 = vsub.f32 %v2275, %v7809
        %7811 = vmatmul.mubr.f32.gmra.mrb[0].mxu0 %v7810
        %v7812 = vpop.f32.mrb[0].mxu0
        %v7813 = vadd.f32 %v7730, %v7812
        %v7814 = vpop.f32.mrb[0].mxu0
        %7815 = vdwg.mxu0
        %7816 = vmatprep.subr.mxu0 0.0
        %v7817 = vand.u32 %v7557, 4294901760
        %7818 = vmatpush1.msra.mxu0 %v7817
        %7819 = vmatprep.subr.mxu0 0.0
        %v7820 = vand.u32 %v7558, 4294901760
        %7821 = vmatpush1.msra.mxu0 %v7820
        %7822 = vmatprep.subr.mxu0 0.0
        %7823 = vmatpush1.msra.mxu0 0.0
        %7824 = vmatprep.subr.mxu0 0.0
        %7825 = vmatpush1.msra.mxu0 0.0
        %7826 = vmatprep.subr.mxu0 0.0
        %7827 = vmatpush1.msra.mxu0 0.0
        %7828 = vmatprep.subr.mxu0 0.0
        %7829 = vmatpush1.msra.mxu0 0.0
        %7830 = vmatprep.subr.mxu0 0.0
        %7831 = vmatpush1.msra.mxu0 0.0
        %7832 = vmatprep.subr.mxu0 0.0
        %7833 = vmatpush1.msra.mxu0 0.0
        %7834 = vmatprep.subr.mxu0 0.0
        %7835 = vmatpush1.msra.mxu0 0.0
        %7836 = vmatprep.subr.mxu0 0.0
        %7837 = vmatpush1.msra.mxu0 0.0
        %7838 = vmatprep.subr.mxu0 0.0
        %7839 = vmatpush1.msra.mxu0 0.0
        %7840 = vmatprep.subr.mxu0 0.0
        %7841 = vmatpush1.msra.mxu0 0.0
        %7842 = vmatprep.subr.mxu0 0.0
        %7843 = vmatpush1.msra.mxu0 0.0
        %7844 = vmatprep.subr.mxu0 0.0
        %7845 = vmatpush1.msra.mxu0 0.0
        %7846 = vmatprep.subr.mxu0 0.0
        %7847 = vmatpush1.msra.mxu0 0.0
        %7848 = vmatprep.subr.mxu0 0.0
        %7849 = vmatpush1.msra.mxu0 0.0
        %7850 = vmatprep.subr.mxu0 0.0
        %7851 = vmatpush1.msra.mxu0 0.0
        %7852 = vmatprep.subr.mxu0 0.0
        %7853 = vmatpush1.msra.mxu0 0.0
        %7854 = vmatprep.subr.mxu0 0.0
        %7855 = vmatpush1.msra.mxu0 0.0
        %7856 = vmatprep.subr.mxu0 0.0
        %7857 = vmatpush1.msra.mxu0 0.0
        %7858 = vmatprep.subr.mxu0 0.0
        %7859 = vmatpush1.msra.mxu0 0.0
        %7860 = vmatprep.subr.mxu0 0.0
        %7861 = vmatpush1.msra.mxu0 0.0
        %7862 = vmatprep.subr.mxu0 0.0
        %7863 = vmatpush1.msra.mxu0 0.0
        %7864 = vmatprep.subr.mxu0 0.0
        %7865 = vmatpush1.msra.mxu0 0.0
        %7866 = vmatprep.subr.mxu0 0.0
        %7867 = vmatpush1.msra.mxu0 0.0
        %7868 = vmatprep.subr.mxu0 0.0
        %7869 = vmatpush1.msra.mxu0 0.0
        %7870 = vmatprep.subr.mxu0 0.0
        %7871 = vmatpush1.msra.mxu0 0.0
        %7872 = vmatprep.subr.mxu0 0.0
        %7873 = vmatpush1.msra.mxu0 0.0
        %7874 = vmatprep.subr.mxu0 0.0
        %7875 = vmatpush1.msra.mxu0 0.0
        %7876 = vmatprep.subr.mxu0 0.0
        %7877 = vmatpush1.msra.mxu0 0.0
        %7878 = vmatprep.subr.mxu0 0.0
        %7879 = vmatpush1.msra.mxu0 0.0
        %7880 = vmatprep.subr.mxu0 0.0
        %7881 = vmatpush1.msra.mxu0 0.0
        %7882 = vmatprep.mubr.f32.mxu0 0.0
        %v7883 = vand.u32 %v2272, 4294901760
        %v7884 = vsub.f32 %v2272, %v7883
        %v7885 = vand.u32 %v7884, 4294901760
        %7886 = vmatmul.mubr.f32.gmra.mrb[0].mxu0 %v7885
        %v7887 = vpop.f32.mrb[0].mxu0
        %v7888 = vadd.f32 %v7806, %v7887
        %v7889 = vpop.f32.mrb[0].mxu0
        %7890 = vmatprep.mubr.f32.mxu0 0.0
        %v7891 = vand.u32 %v2275, 4294901760
        %v7892 = vsub.f32 %v2275, %v7891
        %v7893 = vand.u32 %v7892, 4294901760
        %7894 = vmatmul.mubr.f32.gmra.mrb[0].mxu0 %v7893
        %v7895 = vpop.f32.mrb[0].mxu0
        %v7896 = vadd.f32 %v7813, %v7895
        %v7897 = vpop.f32.mrb[0].mxu0
        %7898 = vdwg.mxu0
        %7899 = vmatprep.subr.mxu0 0.0
        %v7900 = vand.u32 %v7557, 4294901760
        %v7901 = vsub.f32 %v7557, %v7900
        %v7902 = vand.u32 %v7901, 4294901760
        %7903 = vmatpush1.msra.mxu0 %v7902
        %7904 = vmatprep.subr.mxu0 0.0
        %v7905 = vand.u32 %v7558, 4294901760
        %v7906 = vsub.f32 %v7558, %v7905
        %v7907 = vand.u32 %v7906, 4294901760
        %7908 = vmatpush1.msra.mxu0 %v7907
        %7909 = vmatprep.subr.mxu0 0.0
        %7910 = vmatpush1.msra.mxu0 0.0
        %7911 = vmatprep.subr.mxu0 0.0
        %7912 = vmatpush1.msra.mxu0 0.0
        %7913 = vmatprep.subr.mxu0 0.0
        %7914 = vmatpush1.msra.mxu0 0.0
        %7915 = vmatprep.subr.mxu0 0.0
        %7916 = vmatpush1.msra.mxu0 0.0
        %7917 = vmatprep.subr.mxu0 0.0
        %7918 = vmatpush1.msra.mxu0 0.0
        %7919 = vmatprep.subr.mxu0 0.0
        %7920 = vmatpush1.msra.mxu0 0.0
        %7921 = vmatprep.subr.mxu0 0.0
        %7922 = vmatpush1.msra.mxu0 0.0
        %7923 = vmatprep.subr.mxu0 0.0
        %7924 = vmatpush1.msra.mxu0 0.0
        %7925 = vmatprep.subr.mxu0 0.0
        %7926 = vmatpush1.msra.mxu0 0.0
        %7927 = vmatprep.subr.mxu0 0.0
        %7928 = vmatpush1.msra.mxu0 0.0
        %7929 = vmatprep.subr.mxu0 0.0
        %7930 = vmatpush1.msra.mxu0 0.0
        %7931 = vmatprep.subr.mxu0 0.0
        %7932 = vmatpush1.msra.mxu0 0.0
        %7933 = vmatprep.subr.mxu0 0.0
        %7934 = vmatpush1.msra.mxu0 0.0
        %7935 = vmatprep.subr.mxu0 0.0
        %7936 = vmatpush1.msra.mxu0 0.0
        %7937 = vmatprep.subr.mxu0 0.0
        %7938 = vmatpush1.msra.mxu0 0.0
        %7939 = vmatprep.subr.mxu0 0.0
        %7940 = vmatpush1.msra.mxu0 0.0
        %7941 = vmatprep.subr.mxu0 0.0
        %7942 = vmatpush1.msra.mxu0 0.0
        %7943 = vmatprep.subr.mxu0 0.0
        %7944 = vmatpush1.msra.mxu0 0.0
        %7945 = vmatprep.subr.mxu0 0.0
        %7946 = vmatpush1.msra.mxu0 0.0
        %7947 = vmatprep.subr.mxu0 0.0
        %7948 = vmatpush1.msra.mxu0 0.0
        %7949 = vmatprep.subr.mxu0 0.0
        %7950 = vmatpush1.msra.mxu0 0.0
        %7951 = vmatprep.subr.mxu0 0.0
        %7952 = vmatpush1.msra.mxu0 0.0
        %7953 = vmatprep.subr.mxu0 0.0
        %7954 = vmatpush1.msra.mxu0 0.0
        %7955 = vmatprep.subr.mxu0 0.0
        %7956 = vmatpush1.msra.mxu0 0.0
        %7957 = vmatprep.subr.mxu0 0.0
        %7958 = vmatpush1.msra.mxu0 0.0
        %7959 = vmatprep.subr.mxu0 0.0
        %7960 = vmatpush1.msra.mxu0 0.0
        %7961 = vmatprep.subr.mxu0 0.0
        %7962 = vmatpush1.msra.mxu0 0.0
        %7963 = vmatprep.subr.mxu0 0.0
        %7964 = vmatpush1.msra.mxu0 0.0
        %7965 = vmatprep.subr.mxu0 0.0
        %7966 = vmatpush1.msra.mxu0 0.0
        %7967 = vmatprep.subr.mxu0 0.0
        %7968 = vmatpush1.msra.mxu0 0.0
        %7969 = vmatprep.mubr.f32.mxu0 0.0
        %v7970 = vand.u32 %v2272, 4294901760
        %7971 = vmatmul.mubr.f32.gmra.mrb[0].mxu0 %v7970
        %v7972 = vpop.f32.mrb[0].mxu0
        %v7973 = vadd.f32 %v7888, %v7972
        %v7974 = vpop.f32.mrb[0].mxu0
        %7975 = vmatprep.mubr.f32.mxu0 0.0
        %v7976 = vand.u32 %v2275, 4294901760
        %7977 = vmatmul.mubr.f32.gmra.mrb[0].mxu0 %v7976
        %v7978 = vpop.f32.mrb[0].mxu0
        %v7979 = vadd.f32 %v7896, %v7978
        %v7980 = vpop.f32.mrb[0].mxu0
        %7981 = vdwg.mxu0
        %7982 = vmatprep.subr.mxu0 0.0
        %v7983 = vand.u32 %v7557, 4294901760
        %7984 = vmatpush1.msra.mxu0 %v7983
        %7985 = vmatprep.subr.mxu0 0.0
        %v7986 = vand.u32 %v7558, 4294901760
        %7987 = vmatpush1.msra.mxu0 %v7986
        %7988 = vmatprep.subr.mxu0 0.0
        %7989 = vmatpush1.msra.mxu0 0.0
        %7990 = vmatprep.subr.mxu0 0.0
        %7991 = vmatpush1.msra.mxu0 0.0
        %7992 = vmatprep.subr.mxu0 0.0
        %7993 = vmatpush1.msra.mxu0 0.0
        %7994 = vmatprep.subr.mxu0 0.0
        %7995 = vmatpush1.msra.mxu0 0.0
        %7996 = vmatprep.subr.mxu0 0.0
        %7997 = vmatpush1.msra.mxu0 0.0
        %7998 = vmatprep.subr.mxu0 0.0
        %7999 = vmatpush1.msra.mxu0 0.0
        %8000 = vmatprep.subr.mxu0 0.0
        %8001 = vmatpush1.msra.mxu0 0.0
        %8002 = vmatprep.subr.mxu0 0.0
        %8003 = vmatpush1.msra.mxu0 0.0
        %8004 = vmatprep.subr.mxu0 0.0
        %8005 = vmatpush1.msra.mxu0 0.0
        %8006 = vmatprep.subr.mxu0 0.0
        %8007 = vmatpush1.msra.mxu0 0.0
        %8008 = vmatprep.subr.mxu0 0.0
        %8009 = vmatpush1.msra.mxu0 0.0
        %8010 = vmatprep.subr.mxu0 0.0
        %8011 = vmatpush1.msra.mxu0 0.0
        %8012 = vmatprep.subr.mxu0 0.0
        %8013 = vmatpush1.msra.mxu0 0.0
        %8014 = vmatprep.subr.mxu0 0.0
        %8015 = vmatpush1.msra.mxu0 0.0
        %8016 = vmatprep.subr.mxu0 0.0
        %8017 = vmatpush1.msra.mxu0 0.0
        %8018 = vmatprep.subr.mxu0 0.0
        %8019 = vmatpush1.msra.mxu0 0.0
        %8020 = vmatprep.subr.mxu0 0.0
        %8021 = vmatpush1.msra.mxu0 0.0
        %8022 = vmatprep.subr.mxu0 0.0
        %8023 = vmatpush1.msra.mxu0 0.0
        %8024 = vmatprep.subr.mxu0 0.0
        %8025 = vmatpush1.msra.mxu0 0.0
        %8026 = vmatprep.subr.mxu0 0.0
        %8027 = vmatpush1.msra.mxu0 0.0
        %8028 = vmatprep.subr.mxu0 0.0
        %8029 = vmatpush1.msra.mxu0 0.0
        %8030 = vmatprep.subr.mxu0 0.0
        %8031 = vmatpush1.msra.mxu0 0.0
        %8032 = vmatprep.subr.mxu0 0.0
        %8033 = vmatpush1.msra.mxu0 0.0
        %8034 = vmatprep.subr.mxu0 0.0
        %8035 = vmatpush1.msra.mxu0 0.0
        %8036 = vmatprep.subr.mxu0 0.0
        %8037 = vmatpush1.msra.mxu0 0.0
        %8038 = vmatprep.subr.mxu0 0.0
        %8039 = vmatpush1.msra.mxu0 0.0
        %8040 = vmatprep.subr.mxu0 0.0
        %8041 = vmatpush1.msra.mxu0 0.0
        %8042 = vmatprep.subr.mxu0 0.0
        %8043 = vmatpush1.msra.mxu0 0.0
        %8044 = vmatprep.subr.mxu0 0.0
        %8045 = vmatpush1.msra.mxu0 0.0
        %8046 = vmatprep.subr.mxu0 0.0
        %8047 = vmatpush1.msra.mxu0 0.0
        %8048 = vmatprep.mubr.f32.mxu0 0.0
        %v8049 = vand.u32 %v2272, 4294901760
        %8050 = vmatmul.mubr.f32.gmra.mrb[0].mxu0 %v8049
        %v8051 = vpop.f32.mrb[0].mxu0
        %v8052 = vadd.f32 %v7973, %v8051
        %v8053 = vpop.f32.mrb[0].mxu0
        %8054 = vmatprep.mubr.f32.mxu0 0.0
        %v8055 = vand.u32 %v2275, 4294901760
        %8056 = vmatmul.mubr.f32.gmra.mrb[0].mxu0 %v8055
        %v8057 = vpop.f32.mrb[0].mxu0
        %v8058 = vadd.f32 %v7979, %v8057
        %v8059 = vpop.f32.mrb[0].mxu0
        %8060 = vdwg.mxu0
        %v8061 = vmul.f32 %v8052, %v8052
        %v8062 = vmul.f32 %v8058, %v8058
        %8065 = vrot.lane.b32.xlu0 %v8061, 1
        %v8066 = vpop.permute.xlu0 %8065
        %8067 = vrot.lane.b32.xlu0 %v8062, 1
        %v8068 = vpop.permute.xlu0 %8067
        %v8071 = vsub.f32 %v8052, %v8066
        %v8072 = vsub.f32 %v8058, %v8068
        %v8073 = vadd.f32 %v8071, 1e-05
        %v8074 = vadd.f32 %v8072, 1e-05
        %v8075 = vrsqrt.pop %v8073
        %v8076 = vrsqrt.pop %v8074
        %8078 = vset.pattern.permute.xlu0 0
        %8079 = vperm.xlu0 %8078, %v8052
        %v8080 = vpop.permute.xlu0 %8079
        %8083 = vset.pattern.permute.xlu0 0
        %8084 = vperm.xlu0 %8083, %v8058
        %v8085 = vpop.permute.xlu0 %8084
        %v8087 = vsub.f32 %v7525, %v8080
        %v8088 = vsub.f32 %v7527, %v8080
        %v8089 = vsub.f32 %v7533, %v8085
        %v8090 = vsub.f32 %v7535, %v8085
        %8092 = vset.pattern.permute.xlu0 1
        %8093 = vperm.xlu0 %8092, %v8075
        %v8094 = vpop.permute.xlu0 %8093
        %8097 = vset.pattern.permute.xlu0 1
        %8098 = vperm.xlu0 %8097, %v8076
        %v8099 = vpop.permute.xlu0 %8098
        %v8101 = vmul.f32 %v8087, %v8094
        %v8102 = vmul.f32 %v8088, %v8094
        %v8103 = vmul.f32 %v8089, %v8099
        %v8104 = vmul.f32 %v8090, %v8099
        %v8105 = vld [vmem:[%s20] sm:$0xff]
        %v8106 = vld [vmem:[%s20 + $0x8] sm:$0xff]
        %8108 = vset.pattern.permute.xlu0 0
        %8109 = vperm.xlu0 %8108, %v8105
        %v8110 = vpop.permute.xlu0 %8109
        %8113 = vset.pattern.permute.xlu0 0
        %8114 = vperm.xlu0 %8113, %v8106
        %v8115 = vpop.permute.xlu0 %8114
        %v8117 = vmul.f32 %v8101, %v8110
        %v8118 = vmul.f32 %v8102, %v8110
        %v8119 = vmul.f32 %v8103, %v8115
        %v8120 = vmul.f32 %v8104, %v8115
        %v8121 = vld [vmem:[%s21] sm:$0xff]
        %v8122 = vld [vmem:[%s21 + $0x8] sm:$0xff]
        %8124 = vset.pattern.permute.xlu0 0
        %8125 = vperm.xlu0 %8124, %v8121
        %v8126 = vpop.permute.xlu0 %8125
        %8129 = vset.pattern.permute.xlu0 0
        %8130 = vperm.xlu0 %8129, %v8122
        %v8131 = vpop.permute.xlu0 %8130
        %v8133 = vadd.f32 %v8117, %v8126
        %v8134 = vadd.f32 %v8118, %v8126
        %v8135 = vadd.f32 %v8119, %v8131
        %v8136 = vadd.f32 %v8120, %v8131
        %v8137 = vxor.u32 %v8133, 2147483648
        %v8138 = vxor.u32 %v8134, 2147483648
        %v8139 = vxor.u32 %v8135, 2147483648
        %v8140 = vxor.u32 %v8136, 2147483648
        %v8141 = vmul.f32 %v8137, 1.442695
        %v8142 = vpow.pop %v8141
        %v8143 = vmul.f32 %v8138, 1.442695
        %v8144 = vpow.pop %v8143
        %v8145 = vmul.f32 %v8139, 1.442695
        %v8146 = vpow.pop %v8145
        %v8147 = vmul.f32 %v8140, 1.442695
        %v8148 = vpow.pop %v8147
        %v8149 = vadd.f32 %v8142, 1.0
        %v8150 = vadd.f32 %v8144, 1.0
        %v8151 = vadd.f32 %v8146, 1.0
        %v8152 = vadd.f32 %v8148, 1.0
        %v8153 = vrcp.pop %v8149
        %v8154 = vmul.f32 1.0, %v8153
        %v8155 = vrcp.pop %v8150
        %v8156 = vmul.f32 1.0, %v8155
        %v8157 = vrcp.pop %v8151
        %v8158 = vmul.f32 1.0, %v8157
        %v8159 = vrcp.pop %v8152
        %v8160 = vmul.f32 1.0, %v8159
        %v8161 = vmul.f32 %v8133, %v8154
        %v8162 = vmul.f32 %v8134, %v8156
        %v8163 = vmul.f32 %v8135, %v8158
        %v8164 = vmul.f32 %v8136, %v8160
        %v8165 = vld [vmem:[#allocation2] sm:$0x1]
        %v8167 = vlaneseq
        %v8168 = vshrl.u32 %v8167, 7
        %v8169 = vsub.s32 0, %v8168
        %v8170 = vrot.slane %v8165, %v8169
        %8171 = vset.pattern.permute.xlu0 0
        %8172 = vperm.xlu0 %8171, %v8170
        %v8173 = vpop.permute.xlu0 %8172
        %v8175 = vmul.f32 %v8173, %v8161
        %v8176 = vmul.f32 %v8173, %v8162
        %v8177 = vmul.f32 %v8173, %v8163
        %v8178 = vmul.f32 %v8173, %v8164
        %v8179 = vadd.f32 %v1413, %v8175
        %v8180 = vadd.f32 %v1414, %v8176
        %v8181 = vadd.f32 %v1415, %v8177
        %v8182 = vadd.f32 %v1416, %v8178
        %8183 = vst [vmem:[%s747] sm:$0xff] %v8179
        %8184 = vst [vmem:[%s747 + $0x8] sm:$0xff] %v8180
        %8185 = vst [vmem:[%s747 + $0x10] sm:$0xff] %v8181
        %8186 = vst [vmem:[%s747 + $0x18] sm:$0xff] %v8182
        %s8187 = sand.u32 %s562, 1
        %s8188 = scalar_lea.sflag [#allocation4], %s8187
        %s8189 = sand.u32 %s562, 1
        %s8190 = smul.addr %s8189, 32
        %s8191 = scalar_lea.vmem [#allocation3], %s8190
        // Predicated region
        $region117: #{tpu_custom_call.1} parent=115 // pred_check
          %p8192 = pneg %p572
        $region118: #{tpu_custom_call.1} parent=115 // pred_check_branch
          %8194 = sbr.rel (%p8192) target = $region120
        $region119: #{tpu_custom_call.1} parent=115 // pred_region
          %s8196 = ssub.s32 512, 512
          %8197 = vsyncadd %s8188, %s8196
          %s8198 = smul.addr %s40, 4
          %s8199 = smul.addr %s8198, 128
          %s8200 = scalar_lea.hbm %s24, %s8199
          %s8201 = sshll.u32 %s8191, 4
          %s8202 = int_to_ptr.vmem [resolvable:$true] %s8201
          %8207 = dma.vmem_to_hbm [thread:$0]  %s8202, 512, %s8200, %s8188, 256, 256, 16
        $region120: #{tpu_custom_call.1} parent=115 // pred_fallthru
          _
      $region116: #{tpu_custom_call.1} parent=5 // pred_fallthru
        _
      %p8208 = scmp.le.s32.totalorder 2, %s35
      // Predicated region
      $region121: #{tpu_custom_call.1} parent=5 // pred_check
        %p8209 = pneg %p8208
      $region122: #{tpu_custom_call.1} parent=5 // pred_check_branch
        %8211 = sbr.rel (%p8209) target = $region124
      $region123: #{tpu_custom_call.1} parent=5 // pred_region
        %s8212 = ssub.s32 %s35, 2
        // Predicated region
        $region125: #{tpu_custom_call.1} parent=123 // pred_check
          %p8213 = pneg %p578
        $region126: #{tpu_custom_call.1} parent=123 // pred_check_branch
          %8215 = sbr.rel (%p8213) target = $region128
        $region127: #{tpu_custom_call.1} parent=123 // pred_region
          %s8216 = sand.u32 %s563, 1
          %s8217 = scalar_lea.sflag [#allocation4], %s8216
          %s8218 = sand.u32 %s563, 1
          %s8219 = smul.addr %s8218, 32
          %s8220 = scalar_lea.vmem [#allocation3], %s8219
          %8221 = dma.done %s8217, 512
        $region128: #{tpu_custom_call.1} parent=123 // pred_fallthru
          _
      $region124: #{tpu_custom_call.1} parent=5 // pred_fallthru
        _
    $region6: #{tpu_custom_call.1} parent=1 // loop_footer
      %s39 = sadd.s32 1, %s35
    $region7: #{tpu_custom_call.1} parent=1 // loop_footer_branch
      %34 = sbr.rel target = $region3
    $region8: #{tpu_custom_call.1} parent=1 // loop_exit
      _
    %8222 = vsyncpa [#allocation4], 1
    %s8223 = scalar_lea.sflag [#allocation4], 1
    %8224 = vsyncpa %s8223, 1

</llo_original>
